<compile_context>
chip_gen: v7x
topology: tpu7x:2x2x1
jax: 0.10.0
libtpu: 0.0.40
codegen_flags: <defaults>
</compile_context>

<pallas_src>
import jax
import jax.numpy as jnp
from jax.experimental import pallas as pl
from jax.experimental.pallas import tpu as pltpu


RATIO = 4                  # per-stage down/up-sampling ratio
C1, C2, Z = 16, 32, 8      # channel widths of the synthetic RAVE
ENC_K, DEC_K = 2 * RATIO, 7
LEAKY_SLOPE = 0.2


# ----------------------------------------------------------------------------
# In-kernel helpers (traced into the single fused kernel body)
# ----------------------------------------------------------------------------
def _time_gather(l_in, l_out, k_off, stride, up):
    """0/1 matrix G[l_in, l_out]: for output step t, selects the input time
    index read by conv tap with offset `k_off` (out-of-range -> zero column,
    i.e. implicit zero padding).

      up == 1 : G[i, t] = (i == stride*t + k_off)              strided conv
      up  > 1 : G[j, t] = (j == (t + k_off) // up), t+k_off>=0  (x`up` nearest
                upsample fused into the stride-1 conv)
    """
    row = jax.lax.broadcasted_iota(jnp.int32, (l_in, l_out), 0)
    col = jax.lax.broadcasted_iota(jnp.int32, (l_in, l_out), 1)
    src = stride * col + k_off
    if up == 1:
        hit = row == src
    else:
        hit = (up * row <= src) & (src <= up * row + (up - 1))
    return jnp.where(hit, 1.0, 0.0).astype(jnp.bfloat16)


def _conv1d(h, w_ref, b_ref, *, kernel, pad, stride, up, l_out, act):
    """act( sum_k W[k] @ gather_k(h) + b ), time on the lane axis throughout.

    h     : [C_in, L_in] activation (cast to bf16 at the MXU)
    w_ref : [kernel, C_out, C_in] bf16 tap-major weights (resident in VMEM)
    b_ref : [C_out, 1] f32 bias
    returns [C_out, l_out] f32
    """
    hb = h.astype(jnp.bfloat16)
    c_out = w_ref.shape[1]

    if kernel == 1 and stride == 1 and up == 1 and pad == 0:     # 1x1 conv
        acc = jnp.dot(w_ref[0], hb, preferred_element_type=jnp.float32)
    else:
        l_in = hb.shape[1]
        acc = jnp.zeros((c_out, l_out), jnp.float32)
        for k in range(kernel):                 # unrolled at trace time
            g = _time_gather(l_in, l_out, k - pad, stride, up)
            # exact gather of bf16 values (0/1 matrix, f32 accumulate)
            xg = jnp.dot(hb, g, preferred_element_type=jnp.float32)
            acc = acc + jnp.dot(w_ref[k], xg.astype(jnp.bfloat16),
                                preferred_element_type=jnp.float32)

    acc = acc + b_ref[...]                      # [C_out, 1] lane-broadcast
    if act == "leaky_relu":
        acc = jnp.where(acc >= 0.0, acc, LEAKY_SLOPE * acc)
    elif act == "tanh":
        acc = jnp.tanh(acc)
    return acc


def _rave_fused_kernel(x_ref,
                       e1w_ref, e1b_ref, e2w_ref, e2b_ref,
                       muw_ref, mub_ref, d0w_ref, d0b_ref,
                       d1w_ref, d1b_ref, d2w_ref, d2b_ref,
                       o_ref):
    t0 = x_ref.shape[-1]                 # full time length (lane axis)
    t1 = t0 // RATIO
    t2 = t0 // (RATIO * RATIO)

    x = x_ref[0]                                                   # [8, T] bf16
    # ---- encode ----
    h = _conv1d(x, e1w_ref, e1b_ref, kernel=ENC_K, pad=RATIO // 2,
                stride=RATIO, up=1, l_out=t1, act="leaky_relu")    # [C1, T/4]
    h = _conv1d(h, e2w_ref, e2b_ref, kernel=ENC_K, pad=RATIO // 2,
                stride=RATIO, up=1, l_out=t2, act="leaky_relu")    # [C2, T/16]
    z = _conv1d(h, muw_ref, mub_ref, kernel=1, pad=0,
                stride=1, up=1, l_out=t2, act="none")              # [Z,  T/16]
    # ---- decode ----
    h = _conv1d(z, d0w_ref, d0b_ref, kernel=1, pad=0,
                stride=1, up=1, l_out=t2, act="leaky_relu")        # [C2, T/16]
    h = _conv1d(h, d1w_ref, d1b_ref, kernel=DEC_K, pad=DEC_K // 2,
                stride=1, up=RATIO, l_out=t1, act="leaky_relu")    # [C1, T/4]
    y = _conv1d(h, d2w_ref, d2b_ref, kernel=DEC_K, pad=DEC_K // 2,
                stride=1, up=RATIO, l_out=t0, act="tanh")          # [8,  T]
    # row 0 holds the real (C_out=1) output; rows 1..7 are zero-weight padding
    o_ref[0] = y[0:1, :].astype(o_ref.dtype)


# ----------------------------------------------------------------------------
# Host-side wrapper
# ----------------------------------------------------------------------------
def init_params(key):
    """Deterministic synthetic RAVE parameters (torch Conv1d layout)."""
    def wb(key, c_out, c_in, k):
        kw, kb = jax.random.split(key)
        scale = 1.0 / jnp.sqrt(c_in * k)
        w = jax.random.normal(kw, (c_out, c_in, k), jnp.float32) * scale
        b = jax.random.normal(kb, (c_out,), jnp.float32) * 0.01
        return w, b

    ks = jax.random.split(key, 6)
    p = {}
    p["enc1_w"], p["enc1_b"] = wb(ks[0], C1, 1, ENC_K)
    p["enc2_w"], p["enc2_b"] = wb(ks[1], C2, C1, ENC_K)
    p["mu_w"], p["mu_b"] = wb(ks[2], Z, C2, 1)
    p["dec0_w"], p["dec0_b"] = wb(ks[3], C2, Z, 1)
    p["dec1_w"], p["dec1_b"] = wb(ks[4], C1, C2, DEC_K)
    p["dec2_w"], p["dec2_b"] = wb(ks[5], 1, C1, DEC_K)
    return p


def _prep_kernel_params(p):
    """Torch layout [C_out, C_in, K] -> tap-major bf16 [K, C_out, C_in];
    degenerate channel dims zero-padded to 8; biases as f32 columns."""
    def tap(w):
        return jnp.transpose(w, (2, 0, 1)).astype(jnp.bfloat16)

    def col(b):
        return b.reshape(-1, 1).astype(jnp.float32)

    e1w = jnp.transpose(p["enc1_w"], (2, 0, 1))                    # [K, C1, 1]
    e1w = jnp.pad(e1w, ((0, 0), (0, 0), (0, 7))).astype(jnp.bfloat16)   # C_in 1->8
    d2w = jnp.transpose(p["dec2_w"], (2, 0, 1))                    # [K, 1, C1]
    d2w = jnp.pad(d2w, ((0, 0), (0, 7), (0, 0))).astype(jnp.bfloat16)   # C_out 1->8
    d2b = jnp.pad(p["dec2_b"], (0, 7)).reshape(-1, 1).astype(jnp.float32)

    return dict(
        e1w=e1w, e1b=col(p["enc1_b"]),
        e2w=tap(p["enc2_w"]), e2b=col(p["enc2_b"]),
        muw=tap(p["mu_w"]), mub=col(p["mu_b"]),
        d0w=tap(p["dec0_w"]), d0b=col(p["dec0_b"]),
        d1w=tap(p["dec1_w"]), d1b=col(p["dec1_b"]),
        d2w=d2w, d2b=d2b,
    )


def _const_spec(shape):
    """Whole-array block, resident across the batch grid."""
    if len(shape) == 2:
        return pl.BlockSpec(shape, lambda b: (0, 0))
    return pl.BlockSpec(shape, lambda b: (0, 0, 0))


def combined_forward_pallas(x, p):
    """Combined.forward == self._rave(x): [B, 1, T] f32 -> [B, 1, T] f32."""
    B, cx, T = x.shape
    assert cx == 1 and T % (RATIO * RATIO) == 0 and T % 128 == 0
    kp = _prep_kernel_params(p)
    # mono input padded to 8 channels (matching zero-padded enc1 weights), bf16
    x8 = jnp.pad(x, ((0, 0), (0, 7), (0, 0))).astype(jnp.bfloat16)  # [B, 8, T]

    args = [x8,
            kp["e1w"], kp["e1b"], kp["e2w"], kp["e2b"],
            kp["muw"], kp["mub"], kp["d0w"], kp["d0b"],
            kp["d1w"], kp["d1b"], kp["d2w"], kp["d2b"]]

    in_specs = [pl.BlockSpec((1, 8, T), lambda b: (b, 0, 0))]
    in_specs += [_const_spec(a.shape) for a in args[1:]]

    return pl.pallas_call(
        _rave_fused_kernel,
        out_shape=jax.ShapeDtypeStruct((B, 1, T), jnp.float32),
        grid=(B,),
        in_specs=in_specs,
        out_specs=pl.BlockSpec((1, 1, T), lambda b: (b, 0, 0)),
        compiler_params=pltpu.CompilerParams(
            dimension_semantics=("parallel",)),
    )(*args)


# ----------------------------------------------------------------------------
# Pure-JAX reference (same bf16-in / f32-accumulate precision policy)
# ----------------------------------------------------------------------------
def _conv1d_ref(x, w, b, *, stride, padding, act):
    y = jax.lax.conv_general_dilated(
        x.astype(jnp.bfloat16), w.astype(jnp.bfloat16),
        window_strides=(stride,), padding=[(padding, padding)],
        dimension_numbers=("NCH", "OIH", "NCH"),
        preferred_element_type=jnp.float32)
    y = y + b.reshape(1, -1, 1)
    if act == "leaky_relu":
        y = jnp.where(y >= 0.0, y, LEAKY_SLOPE * y)
    elif act == "tanh":
        y = jnp.tanh(y)
    return y


def combined_forward_ref(x, p):
    h = _conv1d_ref(x, p["enc1_w"], p["enc1_b"], stride=RATIO,
                    padding=RATIO // 2, act="leaky_relu")
    h = _conv1d_ref(h, p["enc2_w"], p["enc2_b"], stride=RATIO,
                    padding=RATIO // 2, act="leaky_relu")
    z = _conv1d_ref(h, p["mu_w"], p["mu_b"], stride=1, padding=0, act="none")
    h = _conv1d_ref(z, p["dec0_w"], p["dec0_b"], stride=1, padding=0,
                    act="leaky_relu")
    h = jnp.repeat(h, RATIO, axis=-1)
    h = _conv1d_ref(h, p["dec1_w"], p["dec1_b"], stride=1, padding=DEC_K // 2,
                    act="leaky_relu")
    h = jnp.repeat(h, RATIO, axis=-1)
    y = _conv1d_ref(h, p["dec2_w"], p["dec2_b"], stride=1, padding=DEC_K // 2,
                    act="tanh")
    return y


if __name__ == "__main__":
    key = jax.random.PRNGKey(0)
    k_param, k_x = jax.random.split(key)
    params = init_params(k_param)

    B, T = 2, 256
    x = jax.random.normal(k_x, (B, 1, T), jnp.float32)      # NCW audio

    fwd = jax.jit(combined_forward_pallas)
    y = jax.block_until_ready(fwd(x, params))
    assert y.shape == (B, 1, T), y.shape

    y_ref = jax.block_until_ready(jax.jit(combined_forward_ref)(x, params))
    err = float(jnp.max(jnp.abs(y - y_ref)))
    assert jnp.allclose(y, y_ref, atol=2e-2, rtol=2e-2), err

    print("KERNEL_OK")
</pallas_src>

<mosaic_0001>
module attributes {stable_mosaic.version = 11 : i64} {
  func.func @_rave_fused_kernel(%arg0: i32, %arg1: memref<1x8x256xbf16, #tpu.memory_space<vmem>>, %arg2: memref<8x16x8xbf16, #tpu.memory_space<vmem>>, %arg3: memref<16x1xf32, #tpu.memory_space<vmem>>, %arg4: memref<8x32x16xbf16, #tpu.memory_space<vmem>>, %arg5: memref<32x1xf32, #tpu.memory_space<vmem>>, %arg6: memref<1x8x32xbf16, #tpu.memory_space<vmem>>, %arg7: memref<8x1xf32, #tpu.memory_space<vmem>>, %arg8: memref<1x32x8xbf16, #tpu.memory_space<vmem>>, %arg9: memref<32x1xf32, #tpu.memory_space<vmem>>, %arg10: memref<7x16x32xbf16, #tpu.memory_space<vmem>>, %arg11: memref<16x1xf32, #tpu.memory_space<vmem>>, %arg12: memref<7x8x16xbf16, #tpu.memory_space<vmem>>, %arg13: memref<8x1xf32, #tpu.memory_space<vmem>>, %arg14: memref<1x1x256xf32, #tpu.memory_space<vmem>>) attributes {dimension_semantics = [#tpu.dimension_semantics<parallel>], iteration_bounds = array<i64: 2>, scalar_prefetch = 0 : i64, scratch_operands = 0 : i64, tpu.core_type = #tpu.core_type<tc>, window_params = [{transform_indices = @transform_0, window_bounds = array<i64: 1, 8, 256>}, {pipeline_mode = #tpu.pipeline_mode<synchronous>, transform_indices = @transform_1, window_bounds = array<i64: 8, 16, 8>}, {pipeline_mode = #tpu.pipeline_mode<synchronous>, transform_indices = @transform_2, window_bounds = array<i64: 16, 1>}, {pipeline_mode = #tpu.pipeline_mode<synchronous>, transform_indices = @transform_3, window_bounds = array<i64: 8, 32, 16>}, {pipeline_mode = #tpu.pipeline_mode<synchronous>, transform_indices = @transform_4, window_bounds = array<i64: 32, 1>}, {pipeline_mode = #tpu.pipeline_mode<synchronous>, transform_indices = @transform_5, window_bounds = array<i64: 1, 8, 32>}, {pipeline_mode = #tpu.pipeline_mode<synchronous>, transform_indices = @transform_6, window_bounds = array<i64: 8, 1>}, {pipeline_mode = #tpu.pipeline_mode<synchronous>, transform_indices = @transform_7, window_bounds = array<i64: 1, 32, 8>}, {pipeline_mode = #tpu.pipeline_mode<synchronous>, transform_indices = @transform_8, window_bounds = array<i64: 32, 1>}, {pipeline_mode = #tpu.pipeline_mode<synchronous>, transform_indices = @transform_9, window_bounds = array<i64: 7, 16, 32>}, {pipeline_mode = #tpu.pipeline_mode<synchronous>, transform_indices = @transform_10, window_bounds = array<i64: 16, 1>}, {pipeline_mode = #tpu.pipeline_mode<synchronous>, transform_indices = @transform_11, window_bounds = array<i64: 7, 8, 16>}, {pipeline_mode = #tpu.pipeline_mode<synchronous>, transform_indices = @transform_12, window_bounds = array<i64: 8, 1>}, {transform_indices = @transform_13, window_bounds = array<i64: 1, 1, 256>}]} {
    %c0 = arith.constant 0 : index
    %c0_0 = arith.constant 0 : index
    %c0_1 = arith.constant 0 : index
    %0 = vector.load %arg1[%c0, %c0_0, %c0_1] : memref<1x8x256xbf16, #tpu.memory_space<vmem>>, vector<1x8x256xbf16>
    %1 = vector.shape_cast %0 : vector<1x8x256xbf16> to vector<8x256xbf16>
    %cst = arith.constant 0.000000e+00 : f32
    %2 = vector.broadcast %cst : f32 to vector<16x64xf32>
    %3 = tpu.iota {dimensions = array<i32: 0>} : vector<256x64xi32>
    %4 = tpu.iota {dimensions = array<i32: 1>} : vector<256x64xi32>
    %c4_i32 = arith.constant 4 : i32
    %5 = vector.broadcast %c4_i32 : i32 to vector<256x64xi32>
    %6 = arith.muli %5, %4 : vector<256x64xi32>
    %c-2_i32 = arith.constant -2 : i32
    %7 = vector.broadcast %c-2_i32 : i32 to vector<256x64xi32>
    %8 = arith.addi %6, %7 : vector<256x64xi32>
    %9 = arith.cmpi eq, %3, %8 : vector<256x64xi32>
    %cst_2 = arith.constant 1.000000e+00 : f32
    %cst_3 = arith.constant 0.000000e+00 : f32
    %10 = vector.broadcast %cst_2 : f32 to vector<256x64xf32>
    %11 = vector.broadcast %cst_3 : f32 to vector<256x64xf32>
    %12 = arith.select %9, %10, %11 : vector<256x64xi1>, vector<256x64xf32>
    %13 = arith.truncf %12 : vector<256x64xf32> to vector<256x64xbf16>
    %cst_4 = arith.constant dense<0.000000e+00> : vector<8x64xf32>
    %14 = tpu.matmul %1, %13, %cst_4 {dimension_numbers = #tpu.dot_dimension_numbers<[1], [0], [0], [1], [0, 0, 1, 1], [], []>} : vector<8x256xbf16>, vector<256x64xbf16>, vector<8x64xf32> -> vector<8x64xf32>
    %c0_5 = arith.constant 0 : index
    %c0_6 = arith.constant 0 : index
    %c0_7 = arith.constant 0 : index
    %15 = vector.load %arg2[%c0_5, %c0_6, %c0_7] : memref<8x16x8xbf16, #tpu.memory_space<vmem>>, vector<1x16x8xbf16>
    %16 = vector.shape_cast %15 : vector<1x16x8xbf16> to vector<16x8xbf16>
    %17 = arith.truncf %14 : vector<8x64xf32> to vector<8x64xbf16>
    %cst_8 = arith.constant dense<0.000000e+00> : vector<16x64xf32>
    %18 = tpu.matmul %16, %17, %cst_8 {dimension_numbers = #tpu.dot_dimension_numbers<[1], [0], [0], [1], [0, 0, 1, 1], [], []>} : vector<16x8xbf16>, vector<8x64xbf16>, vector<16x64xf32> -> vector<16x64xf32>
    %19 = arith.addf %2, %18 : vector<16x64xf32>
    %20 = tpu.iota {dimensions = array<i32: 0>} : vector<256x64xi32>
    %21 = tpu.iota {dimensions = array<i32: 1>} : vector<256x64xi32>
    %c4_i32_9 = arith.constant 4 : i32
    %22 = vector.broadcast %c4_i32_9 : i32 to vector<256x64xi32>
    %23 = arith.muli %22, %21 : vector<256x64xi32>
    %c-1_i32 = arith.constant -1 : i32
    %24 = vector.broadcast %c-1_i32 : i32 to vector<256x64xi32>
    %25 = arith.addi %23, %24 : vector<256x64xi32>
    %26 = arith.cmpi eq, %20, %25 : vector<256x64xi32>
    %cst_10 = arith.constant 1.000000e+00 : f32
    %cst_11 = arith.constant 0.000000e+00 : f32
    %27 = vector.broadcast %cst_10 : f32 to vector<256x64xf32>
    %28 = vector.broadcast %cst_11 : f32 to vector<256x64xf32>
    %29 = arith.select %26, %27, %28 : vector<256x64xi1>, vector<256x64xf32>
    %30 = arith.truncf %29 : vector<256x64xf32> to vector<256x64xbf16>
    %cst_12 = arith.constant dense<0.000000e+00> : vector<8x64xf32>
    %31 = tpu.matmul %1, %30, %cst_12 {dimension_numbers = #tpu.dot_dimension_numbers<[1], [0], [0], [1], [0, 0, 1, 1], [], []>} : vector<8x256xbf16>, vector<256x64xbf16>, vector<8x64xf32> -> vector<8x64xf32>
    %c1 = arith.constant 1 : index
    %c0_13 = arith.constant 0 : index
    %c0_14 = arith.constant 0 : index
    %32 = vector.load %arg2[%c1, %c0_13, %c0_14] : memref<8x16x8xbf16, #tpu.memory_space<vmem>>, vector<1x16x8xbf16>
    %33 = vector.shape_cast %32 : vector<1x16x8xbf16> to vector<16x8xbf16>
    %34 = arith.truncf %31 : vector<8x64xf32> to vector<8x64xbf16>
    %cst_15 = arith.constant dense<0.000000e+00> : vector<16x64xf32>
    %35 = tpu.matmul %33, %34, %cst_15 {dimension_numbers = #tpu.dot_dimension_numbers<[1], [0], [0], [1], [0, 0, 1, 1], [], []>} : vector<16x8xbf16>, vector<8x64xbf16>, vector<16x64xf32> -> vector<16x64xf32>
    %36 = arith.addf %19, %35 : vector<16x64xf32>
    %37 = tpu.iota {dimensions = array<i32: 0>} : vector<256x64xi32>
    %38 = tpu.iota {dimensions = array<i32: 1>} : vector<256x64xi32>
    %c4_i32_16 = arith.constant 4 : i32
    %39 = vector.broadcast %c4_i32_16 : i32 to vector<256x64xi32>
    %40 = arith.muli %39, %38 : vector<256x64xi32>
    %c0_i32 = arith.constant 0 : i32
    %41 = vector.broadcast %c0_i32 : i32 to vector<256x64xi32>
    %42 = arith.addi %40, %41 : vector<256x64xi32>
    %43 = arith.cmpi eq, %37, %42 : vector<256x64xi32>
    %cst_17 = arith.constant 1.000000e+00 : f32
    %cst_18 = arith.constant 0.000000e+00 : f32
    %44 = vector.broadcast %cst_17 : f32 to vector<256x64xf32>
    %45 = vector.broadcast %cst_18 : f32 to vector<256x64xf32>
    %46 = arith.select %43, %44, %45 : vector<256x64xi1>, vector<256x64xf32>
    %47 = arith.truncf %46 : vector<256x64xf32> to vector<256x64xbf16>
    %cst_19 = arith.constant dense<0.000000e+00> : vector<8x64xf32>
    %48 = tpu.matmul %1, %47, %cst_19 {dimension_numbers = #tpu.dot_dimension_numbers<[1], [0], [0], [1], [0, 0, 1, 1], [], []>} : vector<8x256xbf16>, vector<256x64xbf16>, vector<8x64xf32> -> vector<8x64xf32>
    %c2 = arith.constant 2 : index
    %c0_20 = arith.constant 0 : index
    %c0_21 = arith.constant 0 : index
    %49 = vector.load %arg2[%c2, %c0_20, %c0_21] : memref<8x16x8xbf16, #tpu.memory_space<vmem>>, vector<1x16x8xbf16>
    %50 = vector.shape_cast %49 : vector<1x16x8xbf16> to vector<16x8xbf16>
    %51 = arith.truncf %48 : vector<8x64xf32> to vector<8x64xbf16>
    %cst_22 = arith.constant dense<0.000000e+00> : vector<16x64xf32>
    %52 = tpu.matmul %50, %51, %cst_22 {dimension_numbers = #tpu.dot_dimension_numbers<[1], [0], [0], [1], [0, 0, 1, 1], [], []>} : vector<16x8xbf16>, vector<8x64xbf16>, vector<16x64xf32> -> vector<16x64xf32>
    %53 = arith.addf %36, %52 : vector<16x64xf32>
    %54 = tpu.iota {dimensions = array<i32: 0>} : vector<256x64xi32>
    %55 = tpu.iota {dimensions = array<i32: 1>} : vector<256x64xi32>
    %c4_i32_23 = arith.constant 4 : i32
    %56 = vector.broadcast %c4_i32_23 : i32 to vector<256x64xi32>
    %57 = arith.muli %56, %55 : vector<256x64xi32>
    %c1_i32 = arith.constant 1 : i32
    %58 = vector.broadcast %c1_i32 : i32 to vector<256x64xi32>
    %59 = arith.addi %57, %58 : vector<256x64xi32>
    %60 = arith.cmpi eq, %54, %59 : vector<256x64xi32>
    %cst_24 = arith.constant 1.000000e+00 : f32
    %cst_25 = arith.constant 0.000000e+00 : f32
    %61 = vector.broadcast %cst_24 : f32 to vector<256x64xf32>
    %62 = vector.broadcast %cst_25 : f32 to vector<256x64xf32>
    %63 = arith.select %60, %61, %62 : vector<256x64xi1>, vector<256x64xf32>
    %64 = arith.truncf %63 : vector<256x64xf32> to vector<256x64xbf16>
    %cst_26 = arith.constant dense<0.000000e+00> : vector<8x64xf32>
    %65 = tpu.matmul %1, %64, %cst_26 {dimension_numbers = #tpu.dot_dimension_numbers<[1], [0], [0], [1], [0, 0, 1, 1], [], []>} : vector<8x256xbf16>, vector<256x64xbf16>, vector<8x64xf32> -> vector<8x64xf32>
    %c3 = arith.constant 3 : index
    %c0_27 = arith.constant 0 : index
    %c0_28 = arith.constant 0 : index
    %66 = vector.load %arg2[%c3, %c0_27, %c0_28] : memref<8x16x8xbf16, #tpu.memory_space<vmem>>, vector<1x16x8xbf16>
    %67 = vector.shape_cast %66 : vector<1x16x8xbf16> to vector<16x8xbf16>
    %68 = arith.truncf %65 : vector<8x64xf32> to vector<8x64xbf16>
    %cst_29 = arith.constant dense<0.000000e+00> : vector<16x64xf32>
    %69 = tpu.matmul %67, %68, %cst_29 {dimension_numbers = #tpu.dot_dimension_numbers<[1], [0], [0], [1], [0, 0, 1, 1], [], []>} : vector<16x8xbf16>, vector<8x64xbf16>, vector<16x64xf32> -> vector<16x64xf32>
    %70 = arith.addf %53, %69 : vector<16x64xf32>
    %71 = tpu.iota {dimensions = array<i32: 0>} : vector<256x64xi32>
    %72 = tpu.iota {dimensions = array<i32: 1>} : vector<256x64xi32>
    %c4_i32_30 = arith.constant 4 : i32
    %73 = vector.broadcast %c4_i32_30 : i32 to vector<256x64xi32>
    %74 = arith.muli %73, %72 : vector<256x64xi32>
    %c2_i32 = arith.constant 2 : i32
    %75 = vector.broadcast %c2_i32 : i32 to vector<256x64xi32>
    %76 = arith.addi %74, %75 : vector<256x64xi32>
    %77 = arith.cmpi eq, %71, %76 : vector<256x64xi32>
    %cst_31 = arith.constant 1.000000e+00 : f32
    %cst_32 = arith.constant 0.000000e+00 : f32
    %78 = vector.broadcast %cst_31 : f32 to vector<256x64xf32>
    %79 = vector.broadcast %cst_32 : f32 to vector<256x64xf32>
    %80 = arith.select %77, %78, %79 : vector<256x64xi1>, vector<256x64xf32>
    %81 = arith.truncf %80 : vector<256x64xf32> to vector<256x64xbf16>
    %cst_33 = arith.constant dense<0.000000e+00> : vector<8x64xf32>
    %82 = tpu.matmul %1, %81, %cst_33 {dimension_numbers = #tpu.dot_dimension_numbers<[1], [0], [0], [1], [0, 0, 1, 1], [], []>} : vector<8x256xbf16>, vector<256x64xbf16>, vector<8x64xf32> -> vector<8x64xf32>
    %c4 = arith.constant 4 : index
    %c0_34 = arith.constant 0 : index
    %c0_35 = arith.constant 0 : index
    %83 = vector.load %arg2[%c4, %c0_34, %c0_35] : memref<8x16x8xbf16, #tpu.memory_space<vmem>>, vector<1x16x8xbf16>
    %84 = vector.shape_cast %83 : vector<1x16x8xbf16> to vector<16x8xbf16>
    %85 = arith.truncf %82 : vector<8x64xf32> to vector<8x64xbf16>
    %cst_36 = arith.constant dense<0.000000e+00> : vector<16x64xf32>
    %86 = tpu.matmul %84, %85, %cst_36 {dimension_numbers = #tpu.dot_dimension_numbers<[1], [0], [0], [1], [0, 0, 1, 1], [], []>} : vector<16x8xbf16>, vector<8x64xbf16>, vector<16x64xf32> -> vector<16x64xf32>
    %87 = arith.addf %70, %86 : vector<16x64xf32>
    %88 = tpu.iota {dimensions = array<i32: 0>} : vector<256x64xi32>
    %89 = tpu.iota {dimensions = array<i32: 1>} : vector<256x64xi32>
    %c4_i32_37 = arith.constant 4 : i32
    %90 = vector.broadcast %c4_i32_37 : i32 to vector<256x64xi32>
    %91 = arith.muli %90, %89 : vector<256x64xi32>
    %c3_i32 = arith.constant 3 : i32
    %92 = vector.broadcast %c3_i32 : i32 to vector<256x64xi32>
    %93 = arith.addi %91, %92 : vector<256x64xi32>
    %94 = arith.cmpi eq, %88, %93 : vector<256x64xi32>
    %cst_38 = arith.constant 1.000000e+00 : f32
    %cst_39 = arith.constant 0.000000e+00 : f32
    %95 = vector.broadcast %cst_38 : f32 to vector<256x64xf32>
    %96 = vector.broadcast %cst_39 : f32 to vector<256x64xf32>
    %97 = arith.select %94, %95, %96 : vector<256x64xi1>, vector<256x64xf32>
    %98 = arith.truncf %97 : vector<256x64xf32> to vector<256x64xbf16>
    %cst_40 = arith.constant dense<0.000000e+00> : vector<8x64xf32>
    %99 = tpu.matmul %1, %98, %cst_40 {dimension_numbers = #tpu.dot_dimension_numbers<[1], [0], [0], [1], [0, 0, 1, 1], [], []>} : vector<8x256xbf16>, vector<256x64xbf16>, vector<8x64xf32> -> vector<8x64xf32>
    %c5 = arith.constant 5 : index
    %c0_41 = arith.constant 0 : index
    %c0_42 = arith.constant 0 : index
    %100 = vector.load %arg2[%c5, %c0_41, %c0_42] : memref<8x16x8xbf16, #tpu.memory_space<vmem>>, vector<1x16x8xbf16>
    %101 = vector.shape_cast %100 : vector<1x16x8xbf16> to vector<16x8xbf16>
    %102 = arith.truncf %99 : vector<8x64xf32> to vector<8x64xbf16>
    %cst_43 = arith.constant dense<0.000000e+00> : vector<16x64xf32>
    %103 = tpu.matmul %101, %102, %cst_43 {dimension_numbers = #tpu.dot_dimension_numbers<[1], [0], [0], [1], [0, 0, 1, 1], [], []>} : vector<16x8xbf16>, vector<8x64xbf16>, vector<16x64xf32> -> vector<16x64xf32>
    %104 = arith.addf %87, %103 : vector<16x64xf32>
    %105 = tpu.iota {dimensions = array<i32: 0>} : vector<256x64xi32>
    %106 = tpu.iota {dimensions = array<i32: 1>} : vector<256x64xi32>
    %c4_i32_44 = arith.constant 4 : i32
    %107 = vector.broadcast %c4_i32_44 : i32 to vector<256x64xi32>
    %108 = arith.muli %107, %106 : vector<256x64xi32>
    %c4_i32_45 = arith.constant 4 : i32
    %109 = vector.broadcast %c4_i32_45 : i32 to vector<256x64xi32>
    %110 = arith.addi %108, %109 : vector<256x64xi32>
    %111 = arith.cmpi eq, %105, %110 : vector<256x64xi32>
    %cst_46 = arith.constant 1.000000e+00 : f32
    %cst_47 = arith.constant 0.000000e+00 : f32
    %112 = vector.broadcast %cst_46 : f32 to vector<256x64xf32>
    %113 = vector.broadcast %cst_47 : f32 to vector<256x64xf32>
    %114 = arith.select %111, %112, %113 : vector<256x64xi1>, vector<256x64xf32>
    %115 = arith.truncf %114 : vector<256x64xf32> to vector<256x64xbf16>
    %cst_48 = arith.constant dense<0.000000e+00> : vector<8x64xf32>
    %116 = tpu.matmul %1, %115, %cst_48 {dimension_numbers = #tpu.dot_dimension_numbers<[1], [0], [0], [1], [0, 0, 1, 1], [], []>} : vector<8x256xbf16>, vector<256x64xbf16>, vector<8x64xf32> -> vector<8x64xf32>
    %c6 = arith.constant 6 : index
    %c0_49 = arith.constant 0 : index
    %c0_50 = arith.constant 0 : index
    %117 = vector.load %arg2[%c6, %c0_49, %c0_50] : memref<8x16x8xbf16, #tpu.memory_space<vmem>>, vector<1x16x8xbf16>
    %118 = vector.shape_cast %117 : vector<1x16x8xbf16> to vector<16x8xbf16>
    %119 = arith.truncf %116 : vector<8x64xf32> to vector<8x64xbf16>
    %cst_51 = arith.constant dense<0.000000e+00> : vector<16x64xf32>
    %120 = tpu.matmul %118, %119, %cst_51 {dimension_numbers = #tpu.dot_dimension_numbers<[1], [0], [0], [1], [0, 0, 1, 1], [], []>} : vector<16x8xbf16>, vector<8x64xbf16>, vector<16x64xf32> -> vector<16x64xf32>
    %121 = arith.addf %104, %120 : vector<16x64xf32>
    %122 = tpu.iota {dimensions = array<i32: 0>} : vector<256x64xi32>
    %123 = tpu.iota {dimensions = array<i32: 1>} : vector<256x64xi32>
    %c4_i32_52 = arith.constant 4 : i32
    %124 = vector.broadcast %c4_i32_52 : i32 to vector<256x64xi32>
    %125 = arith.muli %124, %123 : vector<256x64xi32>
    %c5_i32 = arith.constant 5 : i32
    %126 = vector.broadcast %c5_i32 : i32 to vector<256x64xi32>
    %127 = arith.addi %125, %126 : vector<256x64xi32>
    %128 = arith.cmpi eq, %122, %127 : vector<256x64xi32>
    %cst_53 = arith.constant 1.000000e+00 : f32
    %cst_54 = arith.constant 0.000000e+00 : f32
    %129 = vector.broadcast %cst_53 : f32 to vector<256x64xf32>
    %130 = vector.broadcast %cst_54 : f32 to vector<256x64xf32>
    %131 = arith.select %128, %129, %130 : vector<256x64xi1>, vector<256x64xf32>
    %132 = arith.truncf %131 : vector<256x64xf32> to vector<256x64xbf16>
    %cst_55 = arith.constant dense<0.000000e+00> : vector<8x64xf32>
    %133 = tpu.matmul %1, %132, %cst_55 {dimension_numbers = #tpu.dot_dimension_numbers<[1], [0], [0], [1], [0, 0, 1, 1], [], []>} : vector<8x256xbf16>, vector<256x64xbf16>, vector<8x64xf32> -> vector<8x64xf32>
    %c7 = arith.constant 7 : index
    %c0_56 = arith.constant 0 : index
    %c0_57 = arith.constant 0 : index
    %134 = vector.load %arg2[%c7, %c0_56, %c0_57] : memref<8x16x8xbf16, #tpu.memory_space<vmem>>, vector<1x16x8xbf16>
    %135 = vector.shape_cast %134 : vector<1x16x8xbf16> to vector<16x8xbf16>
    %136 = arith.truncf %133 : vector<8x64xf32> to vector<8x64xbf16>
    %cst_58 = arith.constant dense<0.000000e+00> : vector<16x64xf32>
    %137 = tpu.matmul %135, %136, %cst_58 {dimension_numbers = #tpu.dot_dimension_numbers<[1], [0], [0], [1], [0, 0, 1, 1], [], []>} : vector<16x8xbf16>, vector<8x64xbf16>, vector<16x64xf32> -> vector<16x64xf32>
    %138 = arith.addf %121, %137 : vector<16x64xf32>
    %c0_59 = arith.constant 0 : index
    %c0_60 = arith.constant 0 : index
    %139 = vector.load %arg3[%c0_59, %c0_60] : memref<16x1xf32, #tpu.memory_space<vmem>>, vector<16x1xf32>
    %140 = vector.broadcast %139 : vector<16x1xf32> to vector<16x64xf32>
    %141 = arith.addf %138, %140 : vector<16x64xf32>
    %cst_61 = arith.constant 0.000000e+00 : f32
    %142 = vector.broadcast %cst_61 : f32 to vector<16x64xf32>
    %143 = arith.cmpf oge, %141, %142 : vector<16x64xf32>
    %cst_62 = arith.constant 2.000000e-01 : f32
    %144 = vector.broadcast %cst_62 : f32 to vector<16x64xf32>
    %145 = arith.mulf %144, %141 : vector<16x64xf32>
    %146 = arith.select %143, %141, %145 : vector<16x64xi1>, vector<16x64xf32>
    %147 = arith.truncf %146 : vector<16x64xf32> to vector<16x64xbf16>
    %cst_63 = arith.constant 0.000000e+00 : f32
    %148 = vector.broadcast %cst_63 : f32 to vector<32x16xf32>
    %149 = tpu.iota {dimensions = array<i32: 0>} : vector<64x16xi32>
    %150 = tpu.iota {dimensions = array<i32: 1>} : vector<64x16xi32>
    %c4_i32_64 = arith.constant 4 : i32
    %151 = vector.broadcast %c4_i32_64 : i32 to vector<64x16xi32>
    %152 = arith.muli %151, %150 : vector<64x16xi32>
    %c-2_i32_65 = arith.constant -2 : i32
    %153 = vector.broadcast %c-2_i32_65 : i32 to vector<64x16xi32>
    %154 = arith.addi %152, %153 : vector<64x16xi32>
    %155 = arith.cmpi eq, %149, %154 : vector<64x16xi32>
    %cst_66 = arith.constant 1.000000e+00 : f32
    %cst_67 = arith.constant 0.000000e+00 : f32
    %156 = vector.broadcast %cst_66 : f32 to vector<64x16xf32>
    %157 = vector.broadcast %cst_67 : f32 to vector<64x16xf32>
    %158 = arith.select %155, %156, %157 : vector<64x16xi1>, vector<64x16xf32>
    %159 = arith.truncf %158 : vector<64x16xf32> to vector<64x16xbf16>
    %cst_68 = arith.constant dense<0.000000e+00> : vector<16x16xf32>
    %160 = tpu.matmul %147, %159, %cst_68 {dimension_numbers = #tpu.dot_dimension_numbers<[1], [0], [0], [1], [0, 0, 1, 1], [], []>} : vector<16x64xbf16>, vector<64x16xbf16>, vector<16x16xf32> -> vector<16x16xf32>
    %c0_69 = arith.constant 0 : index
    %c0_70 = arith.constant 0 : index
    %c0_71 = arith.constant 0 : index
    %161 = vector.load %arg4[%c0_69, %c0_70, %c0_71] : memref<8x32x16xbf16, #tpu.memory_space<vmem>>, vector<1x32x16xbf16>
    %162 = vector.shape_cast %161 : vector<1x32x16xbf16> to vector<32x16xbf16>
    %163 = arith.truncf %160 : vector<16x16xf32> to vector<16x16xbf16>
    %cst_72 = arith.constant dense<0.000000e+00> : vector<32x16xf32>
    %164 = tpu.matmul %162, %163, %cst_72 {dimension_numbers = #tpu.dot_dimension_numbers<[1], [0], [0], [1], [0, 0, 1, 1], [], []>} : vector<32x16xbf16>, vector<16x16xbf16>, vector<32x16xf32> -> vector<32x16xf32>
    %165 = arith.addf %148, %164 : vector<32x16xf32>
    %166 = tpu.iota {dimensions = array<i32: 0>} : vector<64x16xi32>
    %167 = tpu.iota {dimensions = array<i32: 1>} : vector<64x16xi32>
    %c4_i32_73 = arith.constant 4 : i32
    %168 = vector.broadcast %c4_i32_73 : i32 to vector<64x16xi32>
    %169 = arith.muli %168, %167 : vector<64x16xi32>
    %c-1_i32_74 = arith.constant -1 : i32
    %170 = vector.broadcast %c-1_i32_74 : i32 to vector<64x16xi32>
    %171 = arith.addi %169, %170 : vector<64x16xi32>
    %172 = arith.cmpi eq, %166, %171 : vector<64x16xi32>
    %cst_75 = arith.constant 1.000000e+00 : f32
    %cst_76 = arith.constant 0.000000e+00 : f32
    %173 = vector.broadcast %cst_75 : f32 to vector<64x16xf32>
    %174 = vector.broadcast %cst_76 : f32 to vector<64x16xf32>
    %175 = arith.select %172, %173, %174 : vector<64x16xi1>, vector<64x16xf32>
    %176 = arith.truncf %175 : vector<64x16xf32> to vector<64x16xbf16>
    %cst_77 = arith.constant dense<0.000000e+00> : vector<16x16xf32>
    %177 = tpu.matmul %147, %176, %cst_77 {dimension_numbers = #tpu.dot_dimension_numbers<[1], [0], [0], [1], [0, 0, 1, 1], [], []>} : vector<16x64xbf16>, vector<64x16xbf16>, vector<16x16xf32> -> vector<16x16xf32>
    %c1_78 = arith.constant 1 : index
    %c0_79 = arith.constant 0 : index
    %c0_80 = arith.constant 0 : index
    %178 = vector.load %arg4[%c1_78, %c0_79, %c0_80] : memref<8x32x16xbf16, #tpu.memory_space<vmem>>, vector<1x32x16xbf16>
    %179 = vector.shape_cast %178 : vector<1x32x16xbf16> to vector<32x16xbf16>
    %180 = arith.truncf %177 : vector<16x16xf32> to vector<16x16xbf16>
    %cst_81 = arith.constant dense<0.000000e+00> : vector<32x16xf32>
    %181 = tpu.matmul %179, %180, %cst_81 {dimension_numbers = #tpu.dot_dimension_numbers<[1], [0], [0], [1], [0, 0, 1, 1], [], []>} : vector<32x16xbf16>, vector<16x16xbf16>, vector<32x16xf32> -> vector<32x16xf32>
    %182 = arith.addf %165, %181 : vector<32x16xf32>
    %183 = tpu.iota {dimensions = array<i32: 0>} : vector<64x16xi32>
    %184 = tpu.iota {dimensions = array<i32: 1>} : vector<64x16xi32>
    %c4_i32_82 = arith.constant 4 : i32
    %185 = vector.broadcast %c4_i32_82 : i32 to vector<64x16xi32>
    %186 = arith.muli %185, %184 : vector<64x16xi32>
    %c0_i32_83 = arith.constant 0 : i32
    %187 = vector.broadcast %c0_i32_83 : i32 to vector<64x16xi32>
    %188 = arith.addi %186, %187 : vector<64x16xi32>
    %189 = arith.cmpi eq, %183, %188 : vector<64x16xi32>
    %cst_84 = arith.constant 1.000000e+00 : f32
    %cst_85 = arith.constant 0.000000e+00 : f32
    %190 = vector.broadcast %cst_84 : f32 to vector<64x16xf32>
    %191 = vector.broadcast %cst_85 : f32 to vector<64x16xf32>
    %192 = arith.select %189, %190, %191 : vector<64x16xi1>, vector<64x16xf32>
    %193 = arith.truncf %192 : vector<64x16xf32> to vector<64x16xbf16>
    %cst_86 = arith.constant dense<0.000000e+00> : vector<16x16xf32>
    %194 = tpu.matmul %147, %193, %cst_86 {dimension_numbers = #tpu.dot_dimension_numbers<[1], [0], [0], [1], [0, 0, 1, 1], [], []>} : vector<16x64xbf16>, vector<64x16xbf16>, vector<16x16xf32> -> vector<16x16xf32>
    %c2_87 = arith.constant 2 : index
    %c0_88 = arith.constant 0 : index
    %c0_89 = arith.constant 0 : index
    %195 = vector.load %arg4[%c2_87, %c0_88, %c0_89] : memref<8x32x16xbf16, #tpu.memory_space<vmem>>, vector<1x32x16xbf16>
    %196 = vector.shape_cast %195 : vector<1x32x16xbf16> to vector<32x16xbf16>
    %197 = arith.truncf %194 : vector<16x16xf32> to vector<16x16xbf16>
    %cst_90 = arith.constant dense<0.000000e+00> : vector<32x16xf32>
    %198 = tpu.matmul %196, %197, %cst_90 {dimension_numbers = #tpu.dot_dimension_numbers<[1], [0], [0], [1], [0, 0, 1, 1], [], []>} : vector<32x16xbf16>, vector<16x16xbf16>, vector<32x16xf32> -> vector<32x16xf32>
    %199 = arith.addf %182, %198 : vector<32x16xf32>
    %200 = tpu.iota {dimensions = array<i32: 0>} : vector<64x16xi32>
    %201 = tpu.iota {dimensions = array<i32: 1>} : vector<64x16xi32>
    %c4_i32_91 = arith.constant 4 : i32
    %202 = vector.broadcast %c4_i32_91 : i32 to vector<64x16xi32>
    %203 = arith.muli %202, %201 : vector<64x16xi32>
    %c1_i32_92 = arith.constant 1 : i32
    %204 = vector.broadcast %c1_i32_92 : i32 to vector<64x16xi32>
    %205 = arith.addi %203, %204 : vector<64x16xi32>
    %206 = arith.cmpi eq, %200, %205 : vector<64x16xi32>
    %cst_93 = arith.constant 1.000000e+00 : f32
    %cst_94 = arith.constant 0.000000e+00 : f32
    %207 = vector.broadcast %cst_93 : f32 to vector<64x16xf32>
    %208 = vector.broadcast %cst_94 : f32 to vector<64x16xf32>
    %209 = arith.select %206, %207, %208 : vector<64x16xi1>, vector<64x16xf32>
    %210 = arith.truncf %209 : vector<64x16xf32> to vector<64x16xbf16>
    %cst_95 = arith.constant dense<0.000000e+00> : vector<16x16xf32>
    %211 = tpu.matmul %147, %210, %cst_95 {dimension_numbers = #tpu.dot_dimension_numbers<[1], [0], [0], [1], [0, 0, 1, 1], [], []>} : vector<16x64xbf16>, vector<64x16xbf16>, vector<16x16xf32> -> vector<16x16xf32>
    %c3_96 = arith.constant 3 : index
    %c0_97 = arith.constant 0 : index
    %c0_98 = arith.constant 0 : index
    %212 = vector.load %arg4[%c3_96, %c0_97, %c0_98] : memref<8x32x16xbf16, #tpu.memory_space<vmem>>, vector<1x32x16xbf16>
    %213 = vector.shape_cast %212 : vector<1x32x16xbf16> to vector<32x16xbf16>
    %214 = arith.truncf %211 : vector<16x16xf32> to vector<16x16xbf16>
    %cst_99 = arith.constant dense<0.000000e+00> : vector<32x16xf32>
    %215 = tpu.matmul %213, %214, %cst_99 {dimension_numbers = #tpu.dot_dimension_numbers<[1], [0], [0], [1], [0, 0, 1, 1], [], []>} : vector<32x16xbf16>, vector<16x16xbf16>, vector<32x16xf32> -> vector<32x16xf32>
    %216 = arith.addf %199, %215 : vector<32x16xf32>
    %217 = tpu.iota {dimensions = array<i32: 0>} : vector<64x16xi32>
    %218 = tpu.iota {dimensions = array<i32: 1>} : vector<64x16xi32>
    %c4_i32_100 = arith.constant 4 : i32
    %219 = vector.broadcast %c4_i32_100 : i32 to vector<64x16xi32>
    %220 = arith.muli %219, %218 : vector<64x16xi32>
    %c2_i32_101 = arith.constant 2 : i32
    %221 = vector.broadcast %c2_i32_101 : i32 to vector<64x16xi32>
    %222 = arith.addi %220, %221 : vector<64x16xi32>
    %223 = arith.cmpi eq, %217, %222 : vector<64x16xi32>
    %cst_102 = arith.constant 1.000000e+00 : f32
    %cst_103 = arith.constant 0.000000e+00 : f32
    %224 = vector.broadcast %cst_102 : f32 to vector<64x16xf32>
    %225 = vector.broadcast %cst_103 : f32 to vector<64x16xf32>
    %226 = arith.select %223, %224, %225 : vector<64x16xi1>, vector<64x16xf32>
    %227 = arith.truncf %226 : vector<64x16xf32> to vector<64x16xbf16>
    %cst_104 = arith.constant dense<0.000000e+00> : vector<16x16xf32>
    %228 = tpu.matmul %147, %227, %cst_104 {dimension_numbers = #tpu.dot_dimension_numbers<[1], [0], [0], [1], [0, 0, 1, 1], [], []>} : vector<16x64xbf16>, vector<64x16xbf16>, vector<16x16xf32> -> vector<16x16xf32>
    %c4_105 = arith.constant 4 : index
    %c0_106 = arith.constant 0 : index
    %c0_107 = arith.constant 0 : index
    %229 = vector.load %arg4[%c4_105, %c0_106, %c0_107] : memref<8x32x16xbf16, #tpu.memory_space<vmem>>, vector<1x32x16xbf16>
    %230 = vector.shape_cast %229 : vector<1x32x16xbf16> to vector<32x16xbf16>
    %231 = arith.truncf %228 : vector<16x16xf32> to vector<16x16xbf16>
    %cst_108 = arith.constant dense<0.000000e+00> : vector<32x16xf32>
    %232 = tpu.matmul %230, %231, %cst_108 {dimension_numbers = #tpu.dot_dimension_numbers<[1], [0], [0], [1], [0, 0, 1, 1], [], []>} : vector<32x16xbf16>, vector<16x16xbf16>, vector<32x16xf32> -> vector<32x16xf32>
    %233 = arith.addf %216, %232 : vector<32x16xf32>
    %234 = tpu.iota {dimensions = array<i32: 0>} : vector<64x16xi32>
    %235 = tpu.iota {dimensions = array<i32: 1>} : vector<64x16xi32>
    %c4_i32_109 = arith.constant 4 : i32
    %236 = vector.broadcast %c4_i32_109 : i32 to vector<64x16xi32>
    %237 = arith.muli %236, %235 : vector<64x16xi32>
    %c3_i32_110 = arith.constant 3 : i32
    %238 = vector.broadcast %c3_i32_110 : i32 to vector<64x16xi32>
    %239 = arith.addi %237, %238 : vector<64x16xi32>
    %240 = arith.cmpi eq, %234, %239 : vector<64x16xi32>
    %cst_111 = arith.constant 1.000000e+00 : f32
    %cst_112 = arith.constant 0.000000e+00 : f32
    %241 = vector.broadcast %cst_111 : f32 to vector<64x16xf32>
    %242 = vector.broadcast %cst_112 : f32 to vector<64x16xf32>
    %243 = arith.select %240, %241, %242 : vector<64x16xi1>, vector<64x16xf32>
    %244 = arith.truncf %243 : vector<64x16xf32> to vector<64x16xbf16>
    %cst_113 = arith.constant dense<0.000000e+00> : vector<16x16xf32>
    %245 = tpu.matmul %147, %244, %cst_113 {dimension_numbers = #tpu.dot_dimension_numbers<[1], [0], [0], [1], [0, 0, 1, 1], [], []>} : vector<16x64xbf16>, vector<64x16xbf16>, vector<16x16xf32> -> vector<16x16xf32>
    %c5_114 = arith.constant 5 : index
    %c0_115 = arith.constant 0 : index
    %c0_116 = arith.constant 0 : index
    %246 = vector.load %arg4[%c5_114, %c0_115, %c0_116] : memref<8x32x16xbf16, #tpu.memory_space<vmem>>, vector<1x32x16xbf16>
    %247 = vector.shape_cast %246 : vector<1x32x16xbf16> to vector<32x16xbf16>
    %248 = arith.truncf %245 : vector<16x16xf32> to vector<16x16xbf16>
    %cst_117 = arith.constant dense<0.000000e+00> : vector<32x16xf32>
    %249 = tpu.matmul %247, %248, %cst_117 {dimension_numbers = #tpu.dot_dimension_numbers<[1], [0], [0], [1], [0, 0, 1, 1], [], []>} : vector<32x16xbf16>, vector<16x16xbf16>, vector<32x16xf32> -> vector<32x16xf32>
    %250 = arith.addf %233, %249 : vector<32x16xf32>
    %251 = tpu.iota {dimensions = array<i32: 0>} : vector<64x16xi32>
    %252 = tpu.iota {dimensions = array<i32: 1>} : vector<64x16xi32>
    %c4_i32_118 = arith.constant 4 : i32
    %253 = vector.broadcast %c4_i32_118 : i32 to vector<64x16xi32>
    %254 = arith.muli %253, %252 : vector<64x16xi32>
    %c4_i32_119 = arith.constant 4 : i32
    %255 = vector.broadcast %c4_i32_119 : i32 to vector<64x16xi32>
    %256 = arith.addi %254, %255 : vector<64x16xi32>
    %257 = arith.cmpi eq, %251, %256 : vector<64x16xi32>
    %cst_120 = arith.constant 1.000000e+00 : f32
    %cst_121 = arith.constant 0.000000e+00 : f32
    %258 = vector.broadcast %cst_120 : f32 to vector<64x16xf32>
    %259 = vector.broadcast %cst_121 : f32 to vector<64x16xf32>
    %260 = arith.select %257, %258, %259 : vector<64x16xi1>, vector<64x16xf32>
    %261 = arith.truncf %260 : vector<64x16xf32> to vector<64x16xbf16>
    %cst_122 = arith.constant dense<0.000000e+00> : vector<16x16xf32>
    %262 = tpu.matmul %147, %261, %cst_122 {dimension_numbers = #tpu.dot_dimension_numbers<[1], [0], [0], [1], [0, 0, 1, 1], [], []>} : vector<16x64xbf16>, vector<64x16xbf16>, vector<16x16xf32> -> vector<16x16xf32>
    %c6_123 = arith.constant 6 : index
    %c0_124 = arith.constant 0 : index
    %c0_125 = arith.constant 0 : index
    %263 = vector.load %arg4[%c6_123, %c0_124, %c0_125] : memref<8x32x16xbf16, #tpu.memory_space<vmem>>, vector<1x32x16xbf16>
    %264 = vector.shape_cast %263 : vector<1x32x16xbf16> to vector<32x16xbf16>
    %265 = arith.truncf %262 : vector<16x16xf32> to vector<16x16xbf16>
    %cst_126 = arith.constant dense<0.000000e+00> : vector<32x16xf32>
    %266 = tpu.matmul %264, %265, %cst_126 {dimension_numbers = #tpu.dot_dimension_numbers<[1], [0], [0], [1], [0, 0, 1, 1], [], []>} : vector<32x16xbf16>, vector<16x16xbf16>, vector<32x16xf32> -> vector<32x16xf32>
    %267 = arith.addf %250, %266 : vector<32x16xf32>
    %268 = tpu.iota {dimensions = array<i32: 0>} : vector<64x16xi32>
    %269 = tpu.iota {dimensions = array<i32: 1>} : vector<64x16xi32>
    %c4_i32_127 = arith.constant 4 : i32
    %270 = vector.broadcast %c4_i32_127 : i32 to vector<64x16xi32>
    %271 = arith.muli %270, %269 : vector<64x16xi32>
    %c5_i32_128 = arith.constant 5 : i32
    %272 = vector.broadcast %c5_i32_128 : i32 to vector<64x16xi32>
    %273 = arith.addi %271, %272 : vector<64x16xi32>
    %274 = arith.cmpi eq, %268, %273 : vector<64x16xi32>
    %cst_129 = arith.constant 1.000000e+00 : f32
    %cst_130 = arith.constant 0.000000e+00 : f32
    %275 = vector.broadcast %cst_129 : f32 to vector<64x16xf32>
    %276 = vector.broadcast %cst_130 : f32 to vector<64x16xf32>
    %277 = arith.select %274, %275, %276 : vector<64x16xi1>, vector<64x16xf32>
    %278 = arith.truncf %277 : vector<64x16xf32> to vector<64x16xbf16>
    %cst_131 = arith.constant dense<0.000000e+00> : vector<16x16xf32>
    %279 = tpu.matmul %147, %278, %cst_131 {dimension_numbers = #tpu.dot_dimension_numbers<[1], [0], [0], [1], [0, 0, 1, 1], [], []>} : vector<16x64xbf16>, vector<64x16xbf16>, vector<16x16xf32> -> vector<16x16xf32>
    %c7_132 = arith.constant 7 : index
    %c0_133 = arith.constant 0 : index
    %c0_134 = arith.constant 0 : index
    %280 = vector.load %arg4[%c7_132, %c0_133, %c0_134] : memref<8x32x16xbf16, #tpu.memory_space<vmem>>, vector<1x32x16xbf16>
    %281 = vector.shape_cast %280 : vector<1x32x16xbf16> to vector<32x16xbf16>
    %282 = arith.truncf %279 : vector<16x16xf32> to vector<16x16xbf16>
    %cst_135 = arith.constant dense<0.000000e+00> : vector<32x16xf32>
    %283 = tpu.matmul %281, %282, %cst_135 {dimension_numbers = #tpu.dot_dimension_numbers<[1], [0], [0], [1], [0, 0, 1, 1], [], []>} : vector<32x16xbf16>, vector<16x16xbf16>, vector<32x16xf32> -> vector<32x16xf32>
    %284 = arith.addf %267, %283 : vector<32x16xf32>
    %c0_136 = arith.constant 0 : index
    %c0_137 = arith.constant 0 : index
    %285 = vector.load %arg5[%c0_136, %c0_137] : memref<32x1xf32, #tpu.memory_space<vmem>>, vector<32x1xf32>
    %286 = vector.broadcast %285 : vector<32x1xf32> to vector<32x16xf32>
    %287 = arith.addf %284, %286 : vector<32x16xf32>
    %cst_138 = arith.constant 0.000000e+00 : f32
    %288 = vector.broadcast %cst_138 : f32 to vector<32x16xf32>
    %289 = arith.cmpf oge, %287, %288 : vector<32x16xf32>
    %cst_139 = arith.constant 2.000000e-01 : f32
    %290 = vector.broadcast %cst_139 : f32 to vector<32x16xf32>
    %291 = arith.mulf %290, %287 : vector<32x16xf32>
    %292 = arith.select %289, %287, %291 : vector<32x16xi1>, vector<32x16xf32>
    %293 = arith.truncf %292 : vector<32x16xf32> to vector<32x16xbf16>
    %c0_140 = arith.constant 0 : index
    %c0_141 = arith.constant 0 : index
    %c0_142 = arith.constant 0 : index
    %294 = vector.load %arg6[%c0_140, %c0_141, %c0_142] : memref<1x8x32xbf16, #tpu.memory_space<vmem>>, vector<1x8x32xbf16>
    %295 = vector.shape_cast %294 : vector<1x8x32xbf16> to vector<8x32xbf16>
    %cst_143 = arith.constant dense<0.000000e+00> : vector<8x16xf32>
    %296 = tpu.matmul %295, %293, %cst_143 {dimension_numbers = #tpu.dot_dimension_numbers<[1], [0], [0], [1], [0, 0, 1, 1], [], []>} : vector<8x32xbf16>, vector<32x16xbf16>, vector<8x16xf32> -> vector<8x16xf32>
    %c0_144 = arith.constant 0 : index
    %c0_145 = arith.constant 0 : index
    %297 = vector.load %arg7[%c0_144, %c0_145] : memref<8x1xf32, #tpu.memory_space<vmem>>, vector<8x1xf32>
    %298 = vector.broadcast %297 : vector<8x1xf32> to vector<8x16xf32>
    %299 = arith.addf %296, %298 : vector<8x16xf32>
    %300 = arith.truncf %299 : vector<8x16xf32> to vector<8x16xbf16>
    %c0_146 = arith.constant 0 : index
    %c0_147 = arith.constant 0 : index
    %c0_148 = arith.constant 0 : index
    %301 = vector.load %arg8[%c0_146, %c0_147, %c0_148] : memref<1x32x8xbf16, #tpu.memory_space<vmem>>, vector<1x32x8xbf16>
    %302 = vector.shape_cast %301 : vector<1x32x8xbf16> to vector<32x8xbf16>
    %cst_149 = arith.constant dense<0.000000e+00> : vector<32x16xf32>
    %303 = tpu.matmul %302, %300, %cst_149 {dimension_numbers = #tpu.dot_dimension_numbers<[1], [0], [0], [1], [0, 0, 1, 1], [], []>} : vector<32x8xbf16>, vector<8x16xbf16>, vector<32x16xf32> -> vector<32x16xf32>
    %c0_150 = arith.constant 0 : index
    %c0_151 = arith.constant 0 : index
    %304 = vector.load %arg9[%c0_150, %c0_151] : memref<32x1xf32, #tpu.memory_space<vmem>>, vector<32x1xf32>
    %305 = vector.broadcast %304 : vector<32x1xf32> to vector<32x16xf32>
    %306 = arith.addf %303, %305 : vector<32x16xf32>
    %cst_152 = arith.constant 0.000000e+00 : f32
    %307 = vector.broadcast %cst_152 : f32 to vector<32x16xf32>
    %308 = arith.cmpf oge, %306, %307 : vector<32x16xf32>
    %cst_153 = arith.constant 2.000000e-01 : f32
    %309 = vector.broadcast %cst_153 : f32 to vector<32x16xf32>
    %310 = arith.mulf %309, %306 : vector<32x16xf32>
    %311 = arith.select %308, %306, %310 : vector<32x16xi1>, vector<32x16xf32>
    %312 = arith.truncf %311 : vector<32x16xf32> to vector<32x16xbf16>
    %cst_154 = arith.constant 0.000000e+00 : f32
    %313 = vector.broadcast %cst_154 : f32 to vector<16x64xf32>
    %314 = tpu.iota {dimensions = array<i32: 0>} : vector<16x64xi32>
    %315 = tpu.iota {dimensions = array<i32: 1>} : vector<16x64xi32>
    %c1_i32_155 = arith.constant 1 : i32
    %316 = vector.broadcast %c1_i32_155 : i32 to vector<16x64xi32>
    %317 = arith.muli %316, %315 : vector<16x64xi32>
    %c-3_i32 = arith.constant -3 : i32
    %318 = vector.broadcast %c-3_i32 : i32 to vector<16x64xi32>
    %319 = arith.addi %317, %318 : vector<16x64xi32>
    %c4_i32_156 = arith.constant 4 : i32
    %320 = vector.broadcast %c4_i32_156 : i32 to vector<16x64xi32>
    %321 = arith.muli %320, %314 : vector<16x64xi32>
    %322 = arith.cmpi sle, %321, %319 : vector<16x64xi32>
    %c4_i32_157 = arith.constant 4 : i32
    %323 = vector.broadcast %c4_i32_157 : i32 to vector<16x64xi32>
    %324 = arith.muli %323, %314 : vector<16x64xi32>
    %c3_i32_158 = arith.constant 3 : i32
    %325 = vector.broadcast %c3_i32_158 : i32 to vector<16x64xi32>
    %326 = arith.addi %324, %325 : vector<16x64xi32>
    %327 = arith.cmpi sle, %319, %326 : vector<16x64xi32>
    %328 = arith.andi %322, %327 : vector<16x64xi1>
    %cst_159 = arith.constant 1.000000e+00 : f32
    %cst_160 = arith.constant 0.000000e+00 : f32
    %329 = vector.broadcast %cst_159 : f32 to vector<16x64xf32>
    %330 = vector.broadcast %cst_160 : f32 to vector<16x64xf32>
    %331 = arith.select %328, %329, %330 : vector<16x64xi1>, vector<16x64xf32>
    %332 = arith.truncf %331 : vector<16x64xf32> to vector<16x64xbf16>
    %cst_161 = arith.constant dense<0.000000e+00> : vector<32x64xf32>
    %333 = tpu.matmul %312, %332, %cst_161 {dimension_numbers = #tpu.dot_dimension_numbers<[1], [0], [0], [1], [0, 0, 1, 1], [], []>} : vector<32x16xbf16>, vector<16x64xbf16>, vector<32x64xf32> -> vector<32x64xf32>
    %c0_162 = arith.constant 0 : index
    %c0_163 = arith.constant 0 : index
    %c0_164 = arith.constant 0 : index
    %334 = vector.load %arg10[%c0_162, %c0_163, %c0_164] : memref<7x16x32xbf16, #tpu.memory_space<vmem>>, vector<1x16x32xbf16>
    %335 = vector.shape_cast %334 : vector<1x16x32xbf16> to vector<16x32xbf16>
    %336 = arith.truncf %333 : vector<32x64xf32> to vector<32x64xbf16>
    %cst_165 = arith.constant dense<0.000000e+00> : vector<16x64xf32>
    %337 = tpu.matmul %335, %336, %cst_165 {dimension_numbers = #tpu.dot_dimension_numbers<[1], [0], [0], [1], [0, 0, 1, 1], [], []>} : vector<16x32xbf16>, vector<32x64xbf16>, vector<16x64xf32> -> vector<16x64xf32>
    %338 = arith.addf %313, %337 : vector<16x64xf32>
    %339 = tpu.iota {dimensions = array<i32: 0>} : vector<16x64xi32>
    %340 = tpu.iota {dimensions = array<i32: 1>} : vector<16x64xi32>
    %c1_i32_166 = arith.constant 1 : i32
    %341 = vector.broadcast %c1_i32_166 : i32 to vector<16x64xi32>
    %342 = arith.muli %341, %340 : vector<16x64xi32>
    %c-2_i32_167 = arith.constant -2 : i32
    %343 = vector.broadcast %c-2_i32_167 : i32 to vector<16x64xi32>
    %344 = arith.addi %342, %343 : vector<16x64xi32>
    %c4_i32_168 = arith.constant 4 : i32
    %345 = vector.broadcast %c4_i32_168 : i32 to vector<16x64xi32>
    %346 = arith.muli %345, %339 : vector<16x64xi32>
    %347 = arith.cmpi sle, %346, %344 : vector<16x64xi32>
    %c4_i32_169 = arith.constant 4 : i32
    %348 = vector.broadcast %c4_i32_169 : i32 to vector<16x64xi32>
    %349 = arith.muli %348, %339 : vector<16x64xi32>
    %c3_i32_170 = arith.constant 3 : i32
    %350 = vector.broadcast %c3_i32_170 : i32 to vector<16x64xi32>
    %351 = arith.addi %349, %350 : vector<16x64xi32>
    %352 = arith.cmpi sle, %344, %351 : vector<16x64xi32>
    %353 = arith.andi %347, %352 : vector<16x64xi1>
    %cst_171 = arith.constant 1.000000e+00 : f32
    %cst_172 = arith.constant 0.000000e+00 : f32
    %354 = vector.broadcast %cst_171 : f32 to vector<16x64xf32>
    %355 = vector.broadcast %cst_172 : f32 to vector<16x64xf32>
    %356 = arith.select %353, %354, %355 : vector<16x64xi1>, vector<16x64xf32>
    %357 = arith.truncf %356 : vector<16x64xf32> to vector<16x64xbf16>
    %cst_173 = arith.constant dense<0.000000e+00> : vector<32x64xf32>
    %358 = tpu.matmul %312, %357, %cst_173 {dimension_numbers = #tpu.dot_dimension_numbers<[1], [0], [0], [1], [0, 0, 1, 1], [], []>} : vector<32x16xbf16>, vector<16x64xbf16>, vector<32x64xf32> -> vector<32x64xf32>
    %c1_174 = arith.constant 1 : index
    %c0_175 = arith.constant 0 : index
    %c0_176 = arith.constant 0 : index
    %359 = vector.load %arg10[%c1_174, %c0_175, %c0_176] : memref<7x16x32xbf16, #tpu.memory_space<vmem>>, vector<1x16x32xbf16>
    %360 = vector.shape_cast %359 : vector<1x16x32xbf16> to vector<16x32xbf16>
    %361 = arith.truncf %358 : vector<32x64xf32> to vector<32x64xbf16>
    %cst_177 = arith.constant dense<0.000000e+00> : vector<16x64xf32>
    %362 = tpu.matmul %360, %361, %cst_177 {dimension_numbers = #tpu.dot_dimension_numbers<[1], [0], [0], [1], [0, 0, 1, 1], [], []>} : vector<16x32xbf16>, vector<32x64xbf16>, vector<16x64xf32> -> vector<16x64xf32>
    %363 = arith.addf %338, %362 : vector<16x64xf32>
    %364 = tpu.iota {dimensions = array<i32: 0>} : vector<16x64xi32>
    %365 = tpu.iota {dimensions = array<i32: 1>} : vector<16x64xi32>
    %c1_i32_178 = arith.constant 1 : i32
    %366 = vector.broadcast %c1_i32_178 : i32 to vector<16x64xi32>
    %367 = arith.muli %366, %365 : vector<16x64xi32>
    %c-1_i32_179 = arith.constant -1 : i32
    %368 = vector.broadcast %c-1_i32_179 : i32 to vector<16x64xi32>
    %369 = arith.addi %367, %368 : vector<16x64xi32>
    %c4_i32_180 = arith.constant 4 : i32
    %370 = vector.broadcast %c4_i32_180 : i32 to vector<16x64xi32>
    %371 = arith.muli %370, %364 : vector<16x64xi32>
    %372 = arith.cmpi sle, %371, %369 : vector<16x64xi32>
    %c4_i32_181 = arith.constant 4 : i32
    %373 = vector.broadcast %c4_i32_181 : i32 to vector<16x64xi32>
    %374 = arith.muli %373, %364 : vector<16x64xi32>
    %c3_i32_182 = arith.constant 3 : i32
    %375 = vector.broadcast %c3_i32_182 : i32 to vector<16x64xi32>
    %376 = arith.addi %374, %375 : vector<16x64xi32>
    %377 = arith.cmpi sle, %369, %376 : vector<16x64xi32>
    %378 = arith.andi %372, %377 : vector<16x64xi1>
    %cst_183 = arith.constant 1.000000e+00 : f32
    %cst_184 = arith.constant 0.000000e+00 : f32
    %379 = vector.broadcast %cst_183 : f32 to vector<16x64xf32>
    %380 = vector.broadcast %cst_184 : f32 to vector<16x64xf32>
    %381 = arith.select %378, %379, %380 : vector<16x64xi1>, vector<16x64xf32>
    %382 = arith.truncf %381 : vector<16x64xf32> to vector<16x64xbf16>
    %cst_185 = arith.constant dense<0.000000e+00> : vector<32x64xf32>
    %383 = tpu.matmul %312, %382, %cst_185 {dimension_numbers = #tpu.dot_dimension_numbers<[1], [0], [0], [1], [0, 0, 1, 1], [], []>} : vector<32x16xbf16>, vector<16x64xbf16>, vector<32x64xf32> -> vector<32x64xf32>
    %c2_186 = arith.constant 2 : index
    %c0_187 = arith.constant 0 : index
    %c0_188 = arith.constant 0 : index
    %384 = vector.load %arg10[%c2_186, %c0_187, %c0_188] : memref<7x16x32xbf16, #tpu.memory_space<vmem>>, vector<1x16x32xbf16>
    %385 = vector.shape_cast %384 : vector<1x16x32xbf16> to vector<16x32xbf16>
    %386 = arith.truncf %383 : vector<32x64xf32> to vector<32x64xbf16>
    %cst_189 = arith.constant dense<0.000000e+00> : vector<16x64xf32>
    %387 = tpu.matmul %385, %386, %cst_189 {dimension_numbers = #tpu.dot_dimension_numbers<[1], [0], [0], [1], [0, 0, 1, 1], [], []>} : vector<16x32xbf16>, vector<32x64xbf16>, vector<16x64xf32> -> vector<16x64xf32>
    %388 = arith.addf %363, %387 : vector<16x64xf32>
    %389 = tpu.iota {dimensions = array<i32: 0>} : vector<16x64xi32>
    %390 = tpu.iota {dimensions = array<i32: 1>} : vector<16x64xi32>
    %c1_i32_190 = arith.constant 1 : i32
    %391 = vector.broadcast %c1_i32_190 : i32 to vector<16x64xi32>
    %392 = arith.muli %391, %390 : vector<16x64xi32>
    %c0_i32_191 = arith.constant 0 : i32
    %393 = vector.broadcast %c0_i32_191 : i32 to vector<16x64xi32>
    %394 = arith.addi %392, %393 : vector<16x64xi32>
    %c4_i32_192 = arith.constant 4 : i32
    %395 = vector.broadcast %c4_i32_192 : i32 to vector<16x64xi32>
    %396 = arith.muli %395, %389 : vector<16x64xi32>
    %397 = arith.cmpi sle, %396, %394 : vector<16x64xi32>
    %c4_i32_193 = arith.constant 4 : i32
    %398 = vector.broadcast %c4_i32_193 : i32 to vector<16x64xi32>
    %399 = arith.muli %398, %389 : vector<16x64xi32>
    %c3_i32_194 = arith.constant 3 : i32
    %400 = vector.broadcast %c3_i32_194 : i32 to vector<16x64xi32>
    %401 = arith.addi %399, %400 : vector<16x64xi32>
    %402 = arith.cmpi sle, %394, %401 : vector<16x64xi32>
    %403 = arith.andi %397, %402 : vector<16x64xi1>
    %cst_195 = arith.constant 1.000000e+00 : f32
    %cst_196 = arith.constant 0.000000e+00 : f32
    %404 = vector.broadcast %cst_195 : f32 to vector<16x64xf32>
    %405 = vector.broadcast %cst_196 : f32 to vector<16x64xf32>
    %406 = arith.select %403, %404, %405 : vector<16x64xi1>, vector<16x64xf32>
    %407 = arith.truncf %406 : vector<16x64xf32> to vector<16x64xbf16>
    %cst_197 = arith.constant dense<0.000000e+00> : vector<32x64xf32>
    %408 = tpu.matmul %312, %407, %cst_197 {dimension_numbers = #tpu.dot_dimension_numbers<[1], [0], [0], [1], [0, 0, 1, 1], [], []>} : vector<32x16xbf16>, vector<16x64xbf16>, vector<32x64xf32> -> vector<32x64xf32>
    %c3_198 = arith.constant 3 : index
    %c0_199 = arith.constant 0 : index
    %c0_200 = arith.constant 0 : index
    %409 = vector.load %arg10[%c3_198, %c0_199, %c0_200] : memref<7x16x32xbf16, #tpu.memory_space<vmem>>, vector<1x16x32xbf16>
    %410 = vector.shape_cast %409 : vector<1x16x32xbf16> to vector<16x32xbf16>
    %411 = arith.truncf %408 : vector<32x64xf32> to vector<32x64xbf16>
    %cst_201 = arith.constant dense<0.000000e+00> : vector<16x64xf32>
    %412 = tpu.matmul %410, %411, %cst_201 {dimension_numbers = #tpu.dot_dimension_numbers<[1], [0], [0], [1], [0, 0, 1, 1], [], []>} : vector<16x32xbf16>, vector<32x64xbf16>, vector<16x64xf32> -> vector<16x64xf32>
    %413 = arith.addf %388, %412 : vector<16x64xf32>
    %414 = tpu.iota {dimensions = array<i32: 0>} : vector<16x64xi32>
    %415 = tpu.iota {dimensions = array<i32: 1>} : vector<16x64xi32>
    %c1_i32_202 = arith.constant 1 : i32
    %416 = vector.broadcast %c1_i32_202 : i32 to vector<16x64xi32>
    %417 = arith.muli %416, %415 : vector<16x64xi32>
    %c1_i32_203 = arith.constant 1 : i32
    %418 = vector.broadcast %c1_i32_203 : i32 to vector<16x64xi32>
    %419 = arith.addi %417, %418 : vector<16x64xi32>
    %c4_i32_204 = arith.constant 4 : i32
    %420 = vector.broadcast %c4_i32_204 : i32 to vector<16x64xi32>
    %421 = arith.muli %420, %414 : vector<16x64xi32>
    %422 = arith.cmpi sle, %421, %419 : vector<16x64xi32>
    %c4_i32_205 = arith.constant 4 : i32
    %423 = vector.broadcast %c4_i32_205 : i32 to vector<16x64xi32>
    %424 = arith.muli %423, %414 : vector<16x64xi32>
    %c3_i32_206 = arith.constant 3 : i32
    %425 = vector.broadcast %c3_i32_206 : i32 to vector<16x64xi32>
    %426 = arith.addi %424, %425 : vector<16x64xi32>
    %427 = arith.cmpi sle, %419, %426 : vector<16x64xi32>
    %428 = arith.andi %422, %427 : vector<16x64xi1>
    %cst_207 = arith.constant 1.000000e+00 : f32
    %cst_208 = arith.constant 0.000000e+00 : f32
    %429 = vector.broadcast %cst_207 : f32 to vector<16x64xf32>
    %430 = vector.broadcast %cst_208 : f32 to vector<16x64xf32>
    %431 = arith.select %428, %429, %430 : vector<16x64xi1>, vector<16x64xf32>
    %432 = arith.truncf %431 : vector<16x64xf32> to vector<16x64xbf16>
    %cst_209 = arith.constant dense<0.000000e+00> : vector<32x64xf32>
    %433 = tpu.matmul %312, %432, %cst_209 {dimension_numbers = #tpu.dot_dimension_numbers<[1], [0], [0], [1], [0, 0, 1, 1], [], []>} : vector<32x16xbf16>, vector<16x64xbf16>, vector<32x64xf32> -> vector<32x64xf32>
    %c4_210 = arith.constant 4 : index
    %c0_211 = arith.constant 0 : index
    %c0_212 = arith.constant 0 : index
    %434 = vector.load %arg10[%c4_210, %c0_211, %c0_212] : memref<7x16x32xbf16, #tpu.memory_space<vmem>>, vector<1x16x32xbf16>
    %435 = vector.shape_cast %434 : vector<1x16x32xbf16> to vector<16x32xbf16>
    %436 = arith.truncf %433 : vector<32x64xf32> to vector<32x64xbf16>
    %cst_213 = arith.constant dense<0.000000e+00> : vector<16x64xf32>
    %437 = tpu.matmul %435, %436, %cst_213 {dimension_numbers = #tpu.dot_dimension_numbers<[1], [0], [0], [1], [0, 0, 1, 1], [], []>} : vector<16x32xbf16>, vector<32x64xbf16>, vector<16x64xf32> -> vector<16x64xf32>
    %438 = arith.addf %413, %437 : vector<16x64xf32>
    %439 = tpu.iota {dimensions = array<i32: 0>} : vector<16x64xi32>
    %440 = tpu.iota {dimensions = array<i32: 1>} : vector<16x64xi32>
    %c1_i32_214 = arith.constant 1 : i32
    %441 = vector.broadcast %c1_i32_214 : i32 to vector<16x64xi32>
    %442 = arith.muli %441, %440 : vector<16x64xi32>
    %c2_i32_215 = arith.constant 2 : i32
    %443 = vector.broadcast %c2_i32_215 : i32 to vector<16x64xi32>
    %444 = arith.addi %442, %443 : vector<16x64xi32>
    %c4_i32_216 = arith.constant 4 : i32
    %445 = vector.broadcast %c4_i32_216 : i32 to vector<16x64xi32>
    %446 = arith.muli %445, %439 : vector<16x64xi32>
    %447 = arith.cmpi sle, %446, %444 : vector<16x64xi32>
    %c4_i32_217 = arith.constant 4 : i32
    %448 = vector.broadcast %c4_i32_217 : i32 to vector<16x64xi32>
    %449 = arith.muli %448, %439 : vector<16x64xi32>
    %c3_i32_218 = arith.constant 3 : i32
    %450 = vector.broadcast %c3_i32_218 : i32 to vector<16x64xi32>
    %451 = arith.addi %449, %450 : vector<16x64xi32>
    %452 = arith.cmpi sle, %444, %451 : vector<16x64xi32>
    %453 = arith.andi %447, %452 : vector<16x64xi1>
    %cst_219 = arith.constant 1.000000e+00 : f32
    %cst_220 = arith.constant 0.000000e+00 : f32
    %454 = vector.broadcast %cst_219 : f32 to vector<16x64xf32>
    %455 = vector.broadcast %cst_220 : f32 to vector<16x64xf32>
    %456 = arith.select %453, %454, %455 : vector<16x64xi1>, vector<16x64xf32>
    %457 = arith.truncf %456 : vector<16x64xf32> to vector<16x64xbf16>
    %cst_221 = arith.constant dense<0.000000e+00> : vector<32x64xf32>
    %458 = tpu.matmul %312, %457, %cst_221 {dimension_numbers = #tpu.dot_dimension_numbers<[1], [0], [0], [1], [0, 0, 1, 1], [], []>} : vector<32x16xbf16>, vector<16x64xbf16>, vector<32x64xf32> -> vector<32x64xf32>
    %c5_222 = arith.constant 5 : index
    %c0_223 = arith.constant 0 : index
    %c0_224 = arith.constant 0 : index
    %459 = vector.load %arg10[%c5_222, %c0_223, %c0_224] : memref<7x16x32xbf16, #tpu.memory_space<vmem>>, vector<1x16x32xbf16>
    %460 = vector.shape_cast %459 : vector<1x16x32xbf16> to vector<16x32xbf16>
    %461 = arith.truncf %458 : vector<32x64xf32> to vector<32x64xbf16>
    %cst_225 = arith.constant dense<0.000000e+00> : vector<16x64xf32>
    %462 = tpu.matmul %460, %461, %cst_225 {dimension_numbers = #tpu.dot_dimension_numbers<[1], [0], [0], [1], [0, 0, 1, 1], [], []>} : vector<16x32xbf16>, vector<32x64xbf16>, vector<16x64xf32> -> vector<16x64xf32>
    %463 = arith.addf %438, %462 : vector<16x64xf32>
    %464 = tpu.iota {dimensions = array<i32: 0>} : vector<16x64xi32>
    %465 = tpu.iota {dimensions = array<i32: 1>} : vector<16x64xi32>
    %c1_i32_226 = arith.constant 1 : i32
    %466 = vector.broadcast %c1_i32_226 : i32 to vector<16x64xi32>
    %467 = arith.muli %466, %465 : vector<16x64xi32>
    %c3_i32_227 = arith.constant 3 : i32
    %468 = vector.broadcast %c3_i32_227 : i32 to vector<16x64xi32>
    %469 = arith.addi %467, %468 : vector<16x64xi32>
    %c4_i32_228 = arith.constant 4 : i32
    %470 = vector.broadcast %c4_i32_228 : i32 to vector<16x64xi32>
    %471 = arith.muli %470, %464 : vector<16x64xi32>
    %472 = arith.cmpi sle, %471, %469 : vector<16x64xi32>
    %c4_i32_229 = arith.constant 4 : i32
    %473 = vector.broadcast %c4_i32_229 : i32 to vector<16x64xi32>
    %474 = arith.muli %473, %464 : vector<16x64xi32>
    %c3_i32_230 = arith.constant 3 : i32
    %475 = vector.broadcast %c3_i32_230 : i32 to vector<16x64xi32>
    %476 = arith.addi %474, %475 : vector<16x64xi32>
    %477 = arith.cmpi sle, %469, %476 : vector<16x64xi32>
    %478 = arith.andi %472, %477 : vector<16x64xi1>
    %cst_231 = arith.constant 1.000000e+00 : f32
    %cst_232 = arith.constant 0.000000e+00 : f32
    %479 = vector.broadcast %cst_231 : f32 to vector<16x64xf32>
    %480 = vector.broadcast %cst_232 : f32 to vector<16x64xf32>
    %481 = arith.select %478, %479, %480 : vector<16x64xi1>, vector<16x64xf32>
    %482 = arith.truncf %481 : vector<16x64xf32> to vector<16x64xbf16>
    %cst_233 = arith.constant dense<0.000000e+00> : vector<32x64xf32>
    %483 = tpu.matmul %312, %482, %cst_233 {dimension_numbers = #tpu.dot_dimension_numbers<[1], [0], [0], [1], [0, 0, 1, 1], [], []>} : vector<32x16xbf16>, vector<16x64xbf16>, vector<32x64xf32> -> vector<32x64xf32>
    %c6_234 = arith.constant 6 : index
    %c0_235 = arith.constant 0 : index
    %c0_236 = arith.constant 0 : index
    %484 = vector.load %arg10[%c6_234, %c0_235, %c0_236] : memref<7x16x32xbf16, #tpu.memory_space<vmem>>, vector<1x16x32xbf16>
    %485 = vector.shape_cast %484 : vector<1x16x32xbf16> to vector<16x32xbf16>
    %486 = arith.truncf %483 : vector<32x64xf32> to vector<32x64xbf16>
    %cst_237 = arith.constant dense<0.000000e+00> : vector<16x64xf32>
    %487 = tpu.matmul %485, %486, %cst_237 {dimension_numbers = #tpu.dot_dimension_numbers<[1], [0], [0], [1], [0, 0, 1, 1], [], []>} : vector<16x32xbf16>, vector<32x64xbf16>, vector<16x64xf32> -> vector<16x64xf32>
    %488 = arith.addf %463, %487 : vector<16x64xf32>
    %c0_238 = arith.constant 0 : index
    %c0_239 = arith.constant 0 : index
    %489 = vector.load %arg11[%c0_238, %c0_239] : memref<16x1xf32, #tpu.memory_space<vmem>>, vector<16x1xf32>
    %490 = vector.broadcast %489 : vector<16x1xf32> to vector<16x64xf32>
    %491 = arith.addf %488, %490 : vector<16x64xf32>
    %cst_240 = arith.constant 0.000000e+00 : f32
    %492 = vector.broadcast %cst_240 : f32 to vector<16x64xf32>
    %493 = arith.cmpf oge, %491, %492 : vector<16x64xf32>
    %cst_241 = arith.constant 2.000000e-01 : f32
    %494 = vector.broadcast %cst_241 : f32 to vector<16x64xf32>
    %495 = arith.mulf %494, %491 : vector<16x64xf32>
    %496 = arith.select %493, %491, %495 : vector<16x64xi1>, vector<16x64xf32>
    %497 = arith.truncf %496 : vector<16x64xf32> to vector<16x64xbf16>
    %cst_242 = arith.constant 0.000000e+00 : f32
    %498 = vector.broadcast %cst_242 : f32 to vector<8x256xf32>
    %499 = tpu.iota {dimensions = array<i32: 0>} : vector<64x256xi32>
    %500 = tpu.iota {dimensions = array<i32: 1>} : vector<64x256xi32>
    %c1_i32_243 = arith.constant 1 : i32
    %501 = vector.broadcast %c1_i32_243 : i32 to vector<64x256xi32>
    %502 = arith.muli %501, %500 : vector<64x256xi32>
    %c-3_i32_244 = arith.constant -3 : i32
    %503 = vector.broadcast %c-3_i32_244 : i32 to vector<64x256xi32>
    %504 = arith.addi %502, %503 : vector<64x256xi32>
    %c4_i32_245 = arith.constant 4 : i32
    %505 = vector.broadcast %c4_i32_245 : i32 to vector<64x256xi32>
    %506 = arith.muli %505, %499 : vector<64x256xi32>
    %507 = arith.cmpi sle, %506, %504 : vector<64x256xi32>
    %c4_i32_246 = arith.constant 4 : i32
    %508 = vector.broadcast %c4_i32_246 : i32 to vector<64x256xi32>
    %509 = arith.muli %508, %499 : vector<64x256xi32>
    %c3_i32_247 = arith.constant 3 : i32
    %510 = vector.broadcast %c3_i32_247 : i32 to vector<64x256xi32>
    %511 = arith.addi %509, %510 : vector<64x256xi32>
    %512 = arith.cmpi sle, %504, %511 : vector<64x256xi32>
    %513 = arith.andi %507, %512 : vector<64x256xi1>
    %cst_248 = arith.constant 1.000000e+00 : f32
    %cst_249 = arith.constant 0.000000e+00 : f32
    %514 = vector.broadcast %cst_248 : f32 to vector<64x256xf32>
    %515 = vector.broadcast %cst_249 : f32 to vector<64x256xf32>
    %516 = arith.select %513, %514, %515 : vector<64x256xi1>, vector<64x256xf32>
    %517 = arith.truncf %516 : vector<64x256xf32> to vector<64x256xbf16>
    %cst_250 = arith.constant dense<0.000000e+00> : vector<16x256xf32>
    %518 = tpu.matmul %497, %517, %cst_250 {dimension_numbers = #tpu.dot_dimension_numbers<[1], [0], [0], [1], [0, 0, 1, 1], [], []>} : vector<16x64xbf16>, vector<64x256xbf16>, vector<16x256xf32> -> vector<16x256xf32>
    %c0_251 = arith.constant 0 : index
    %c0_252 = arith.constant 0 : index
    %c0_253 = arith.constant 0 : index
    %519 = vector.load %arg12[%c0_251, %c0_252, %c0_253] : memref<7x8x16xbf16, #tpu.memory_space<vmem>>, vector<1x8x16xbf16>
    %520 = vector.shape_cast %519 : vector<1x8x16xbf16> to vector<8x16xbf16>
    %521 = arith.truncf %518 : vector<16x256xf32> to vector<16x256xbf16>
    %cst_254 = arith.constant dense<0.000000e+00> : vector<8x256xf32>
    %522 = tpu.matmul %520, %521, %cst_254 {dimension_numbers = #tpu.dot_dimension_numbers<[1], [0], [0], [1], [0, 0, 1, 1], [], []>} : vector<8x16xbf16>, vector<16x256xbf16>, vector<8x256xf32> -> vector<8x256xf32>
    %523 = arith.addf %498, %522 : vector<8x256xf32>
    %524 = tpu.iota {dimensions = array<i32: 0>} : vector<64x256xi32>
    %525 = tpu.iota {dimensions = array<i32: 1>} : vector<64x256xi32>
    %c1_i32_255 = arith.constant 1 : i32
    %526 = vector.broadcast %c1_i32_255 : i32 to vector<64x256xi32>
    %527 = arith.muli %526, %525 : vector<64x256xi32>
    %c-2_i32_256 = arith.constant -2 : i32
    %528 = vector.broadcast %c-2_i32_256 : i32 to vector<64x256xi32>
    %529 = arith.addi %527, %528 : vector<64x256xi32>
    %c4_i32_257 = arith.constant 4 : i32
    %530 = vector.broadcast %c4_i32_257 : i32 to vector<64x256xi32>
    %531 = arith.muli %530, %524 : vector<64x256xi32>
    %532 = arith.cmpi sle, %531, %529 : vector<64x256xi32>
    %c4_i32_258 = arith.constant 4 : i32
    %533 = vector.broadcast %c4_i32_258 : i32 to vector<64x256xi32>
    %534 = arith.muli %533, %524 : vector<64x256xi32>
    %c3_i32_259 = arith.constant 3 : i32
    %535 = vector.broadcast %c3_i32_259 : i32 to vector<64x256xi32>
    %536 = arith.addi %534, %535 : vector<64x256xi32>
    %537 = arith.cmpi sle, %529, %536 : vector<64x256xi32>
    %538 = arith.andi %532, %537 : vector<64x256xi1>
    %cst_260 = arith.constant 1.000000e+00 : f32
    %cst_261 = arith.constant 0.000000e+00 : f32
    %539 = vector.broadcast %cst_260 : f32 to vector<64x256xf32>
    %540 = vector.broadcast %cst_261 : f32 to vector<64x256xf32>
    %541 = arith.select %538, %539, %540 : vector<64x256xi1>, vector<64x256xf32>
    %542 = arith.truncf %541 : vector<64x256xf32> to vector<64x256xbf16>
    %cst_262 = arith.constant dense<0.000000e+00> : vector<16x256xf32>
    %543 = tpu.matmul %497, %542, %cst_262 {dimension_numbers = #tpu.dot_dimension_numbers<[1], [0], [0], [1], [0, 0, 1, 1], [], []>} : vector<16x64xbf16>, vector<64x256xbf16>, vector<16x256xf32> -> vector<16x256xf32>
    %c1_263 = arith.constant 1 : index
    %c0_264 = arith.constant 0 : index
    %c0_265 = arith.constant 0 : index
    %544 = vector.load %arg12[%c1_263, %c0_264, %c0_265] : memref<7x8x16xbf16, #tpu.memory_space<vmem>>, vector<1x8x16xbf16>
    %545 = vector.shape_cast %544 : vector<1x8x16xbf16> to vector<8x16xbf16>
    %546 = arith.truncf %543 : vector<16x256xf32> to vector<16x256xbf16>
    %cst_266 = arith.constant dense<0.000000e+00> : vector<8x256xf32>
    %547 = tpu.matmul %545, %546, %cst_266 {dimension_numbers = #tpu.dot_dimension_numbers<[1], [0], [0], [1], [0, 0, 1, 1], [], []>} : vector<8x16xbf16>, vector<16x256xbf16>, vector<8x256xf32> -> vector<8x256xf32>
    %548 = arith.addf %523, %547 : vector<8x256xf32>
    %549 = tpu.iota {dimensions = array<i32: 0>} : vector<64x256xi32>
    %550 = tpu.iota {dimensions = array<i32: 1>} : vector<64x256xi32>
    %c1_i32_267 = arith.constant 1 : i32
    %551 = vector.broadcast %c1_i32_267 : i32 to vector<64x256xi32>
    %552 = arith.muli %551, %550 : vector<64x256xi32>
    %c-1_i32_268 = arith.constant -1 : i32
    %553 = vector.broadcast %c-1_i32_268 : i32 to vector<64x256xi32>
    %554 = arith.addi %552, %553 : vector<64x256xi32>
    %c4_i32_269 = arith.constant 4 : i32
    %555 = vector.broadcast %c4_i32_269 : i32 to vector<64x256xi32>
    %556 = arith.muli %555, %549 : vector<64x256xi32>
    %557 = arith.cmpi sle, %556, %554 : vector<64x256xi32>
    %c4_i32_270 = arith.constant 4 : i32
    %558 = vector.broadcast %c4_i32_270 : i32 to vector<64x256xi32>
    %559 = arith.muli %558, %549 : vector<64x256xi32>
    %c3_i32_271 = arith.constant 3 : i32
    %560 = vector.broadcast %c3_i32_271 : i32 to vector<64x256xi32>
    %561 = arith.addi %559, %560 : vector<64x256xi32>
    %562 = arith.cmpi sle, %554, %561 : vector<64x256xi32>
    %563 = arith.andi %557, %562 : vector<64x256xi1>
    %cst_272 = arith.constant 1.000000e+00 : f32
    %cst_273 = arith.constant 0.000000e+00 : f32
    %564 = vector.broadcast %cst_272 : f32 to vector<64x256xf32>
    %565 = vector.broadcast %cst_273 : f32 to vector<64x256xf32>
    %566 = arith.select %563, %564, %565 : vector<64x256xi1>, vector<64x256xf32>
    %567 = arith.truncf %566 : vector<64x256xf32> to vector<64x256xbf16>
    %cst_274 = arith.constant dense<0.000000e+00> : vector<16x256xf32>
    %568 = tpu.matmul %497, %567, %cst_274 {dimension_numbers = #tpu.dot_dimension_numbers<[1], [0], [0], [1], [0, 0, 1, 1], [], []>} : vector<16x64xbf16>, vector<64x256xbf16>, vector<16x256xf32> -> vector<16x256xf32>
    %c2_275 = arith.constant 2 : index
    %c0_276 = arith.constant 0 : index
    %c0_277 = arith.constant 0 : index
    %569 = vector.load %arg12[%c2_275, %c0_276, %c0_277] : memref<7x8x16xbf16, #tpu.memory_space<vmem>>, vector<1x8x16xbf16>
    %570 = vector.shape_cast %569 : vector<1x8x16xbf16> to vector<8x16xbf16>
    %571 = arith.truncf %568 : vector<16x256xf32> to vector<16x256xbf16>
    %cst_278 = arith.constant dense<0.000000e+00> : vector<8x256xf32>
    %572 = tpu.matmul %570, %571, %cst_278 {dimension_numbers = #tpu.dot_dimension_numbers<[1], [0], [0], [1], [0, 0, 1, 1], [], []>} : vector<8x16xbf16>, vector<16x256xbf16>, vector<8x256xf32> -> vector<8x256xf32>
    %573 = arith.addf %548, %572 : vector<8x256xf32>
    %574 = tpu.iota {dimensions = array<i32: 0>} : vector<64x256xi32>
    %575 = tpu.iota {dimensions = array<i32: 1>} : vector<64x256xi32>
    %c1_i32_279 = arith.constant 1 : i32
    %576 = vector.broadcast %c1_i32_279 : i32 to vector<64x256xi32>
    %577 = arith.muli %576, %575 : vector<64x256xi32>
    %c0_i32_280 = arith.constant 0 : i32
    %578 = vector.broadcast %c0_i32_280 : i32 to vector<64x256xi32>
    %579 = arith.addi %577, %578 : vector<64x256xi32>
    %c4_i32_281 = arith.constant 4 : i32
    %580 = vector.broadcast %c4_i32_281 : i32 to vector<64x256xi32>
    %581 = arith.muli %580, %574 : vector<64x256xi32>
    %582 = arith.cmpi sle, %581, %579 : vector<64x256xi32>
    %c4_i32_282 = arith.constant 4 : i32
    %583 = vector.broadcast %c4_i32_282 : i32 to vector<64x256xi32>
    %584 = arith.muli %583, %574 : vector<64x256xi32>
    %c3_i32_283 = arith.constant 3 : i32
    %585 = vector.broadcast %c3_i32_283 : i32 to vector<64x256xi32>
    %586 = arith.addi %584, %585 : vector<64x256xi32>
    %587 = arith.cmpi sle, %579, %586 : vector<64x256xi32>
    %588 = arith.andi %582, %587 : vector<64x256xi1>
    %cst_284 = arith.constant 1.000000e+00 : f32
    %cst_285 = arith.constant 0.000000e+00 : f32
    %589 = vector.broadcast %cst_284 : f32 to vector<64x256xf32>
    %590 = vector.broadcast %cst_285 : f32 to vector<64x256xf32>
    %591 = arith.select %588, %589, %590 : vector<64x256xi1>, vector<64x256xf32>
    %592 = arith.truncf %591 : vector<64x256xf32> to vector<64x256xbf16>
    %cst_286 = arith.constant dense<0.000000e+00> : vector<16x256xf32>
    %593 = tpu.matmul %497, %592, %cst_286 {dimension_numbers = #tpu.dot_dimension_numbers<[1], [0], [0], [1], [0, 0, 1, 1], [], []>} : vector<16x64xbf16>, vector<64x256xbf16>, vector<16x256xf32> -> vector<16x256xf32>
    %c3_287 = arith.constant 3 : index
    %c0_288 = arith.constant 0 : index
    %c0_289 = arith.constant 0 : index
    %594 = vector.load %arg12[%c3_287, %c0_288, %c0_289] : memref<7x8x16xbf16, #tpu.memory_space<vmem>>, vector<1x8x16xbf16>
    %595 = vector.shape_cast %594 : vector<1x8x16xbf16> to vector<8x16xbf16>
    %596 = arith.truncf %593 : vector<16x256xf32> to vector<16x256xbf16>
    %cst_290 = arith.constant dense<0.000000e+00> : vector<8x256xf32>
    %597 = tpu.matmul %595, %596, %cst_290 {dimension_numbers = #tpu.dot_dimension_numbers<[1], [0], [0], [1], [0, 0, 1, 1], [], []>} : vector<8x16xbf16>, vector<16x256xbf16>, vector<8x256xf32> -> vector<8x256xf32>
    %598 = arith.addf %573, %597 : vector<8x256xf32>
    %599 = tpu.iota {dimensions = array<i32: 0>} : vector<64x256xi32>
    %600 = tpu.iota {dimensions = array<i32: 1>} : vector<64x256xi32>
    %c1_i32_291 = arith.constant 1 : i32
    %601 = vector.broadcast %c1_i32_291 : i32 to vector<64x256xi32>
    %602 = arith.muli %601, %600 : vector<64x256xi32>
    %c1_i32_292 = arith.constant 1 : i32
    %603 = vector.broadcast %c1_i32_292 : i32 to vector<64x256xi32>
    %604 = arith.addi %602, %603 : vector<64x256xi32>
    %c4_i32_293 = arith.constant 4 : i32
    %605 = vector.broadcast %c4_i32_293 : i32 to vector<64x256xi32>
    %606 = arith.muli %605, %599 : vector<64x256xi32>
    %607 = arith.cmpi sle, %606, %604 : vector<64x256xi32>
    %c4_i32_294 = arith.constant 4 : i32
    %608 = vector.broadcast %c4_i32_294 : i32 to vector<64x256xi32>
    %609 = arith.muli %608, %599 : vector<64x256xi32>
    %c3_i32_295 = arith.constant 3 : i32
    %610 = vector.broadcast %c3_i32_295 : i32 to vector<64x256xi32>
    %611 = arith.addi %609, %610 : vector<64x256xi32>
    %612 = arith.cmpi sle, %604, %611 : vector<64x256xi32>
    %613 = arith.andi %607, %612 : vector<64x256xi1>
    %cst_296 = arith.constant 1.000000e+00 : f32
    %cst_297 = arith.constant 0.000000e+00 : f32
    %614 = vector.broadcast %cst_296 : f32 to vector<64x256xf32>
    %615 = vector.broadcast %cst_297 : f32 to vector<64x256xf32>
    %616 = arith.select %613, %614, %615 : vector<64x256xi1>, vector<64x256xf32>
    %617 = arith.truncf %616 : vector<64x256xf32> to vector<64x256xbf16>
    %cst_298 = arith.constant dense<0.000000e+00> : vector<16x256xf32>
    %618 = tpu.matmul %497, %617, %cst_298 {dimension_numbers = #tpu.dot_dimension_numbers<[1], [0], [0], [1], [0, 0, 1, 1], [], []>} : vector<16x64xbf16>, vector<64x256xbf16>, vector<16x256xf32> -> vector<16x256xf32>
    %c4_299 = arith.constant 4 : index
    %c0_300 = arith.constant 0 : index
    %c0_301 = arith.constant 0 : index
    %619 = vector.load %arg12[%c4_299, %c0_300, %c0_301] : memref<7x8x16xbf16, #tpu.memory_space<vmem>>, vector<1x8x16xbf16>
    %620 = vector.shape_cast %619 : vector<1x8x16xbf16> to vector<8x16xbf16>
    %621 = arith.truncf %618 : vector<16x256xf32> to vector<16x256xbf16>
    %cst_302 = arith.constant dense<0.000000e+00> : vector<8x256xf32>
    %622 = tpu.matmul %620, %621, %cst_302 {dimension_numbers = #tpu.dot_dimension_numbers<[1], [0], [0], [1], [0, 0, 1, 1], [], []>} : vector<8x16xbf16>, vector<16x256xbf16>, vector<8x256xf32> -> vector<8x256xf32>
    %623 = arith.addf %598, %622 : vector<8x256xf32>
    %624 = tpu.iota {dimensions = array<i32: 0>} : vector<64x256xi32>
    %625 = tpu.iota {dimensions = array<i32: 1>} : vector<64x256xi32>
    %c1_i32_303 = arith.constant 1 : i32
    %626 = vector.broadcast %c1_i32_303 : i32 to vector<64x256xi32>
    %627 = arith.muli %626, %625 : vector<64x256xi32>
    %c2_i32_304 = arith.constant 2 : i32
    %628 = vector.broadcast %c2_i32_304 : i32 to vector<64x256xi32>
    %629 = arith.addi %627, %628 : vector<64x256xi32>
    %c4_i32_305 = arith.constant 4 : i32
    %630 = vector.broadcast %c4_i32_305 : i32 to vector<64x256xi32>
    %631 = arith.muli %630, %624 : vector<64x256xi32>
    %632 = arith.cmpi sle, %631, %629 : vector<64x256xi32>
    %c4_i32_306 = arith.constant 4 : i32
    %633 = vector.broadcast %c4_i32_306 : i32 to vector<64x256xi32>
    %634 = arith.muli %633, %624 : vector<64x256xi32>
    %c3_i32_307 = arith.constant 3 : i32
    %635 = vector.broadcast %c3_i32_307 : i32 to vector<64x256xi32>
    %636 = arith.addi %634, %635 : vector<64x256xi32>
    %637 = arith.cmpi sle, %629, %636 : vector<64x256xi32>
    %638 = arith.andi %632, %637 : vector<64x256xi1>
    %cst_308 = arith.constant 1.000000e+00 : f32
    %cst_309 = arith.constant 0.000000e+00 : f32
    %639 = vector.broadcast %cst_308 : f32 to vector<64x256xf32>
    %640 = vector.broadcast %cst_309 : f32 to vector<64x256xf32>
    %641 = arith.select %638, %639, %640 : vector<64x256xi1>, vector<64x256xf32>
    %642 = arith.truncf %641 : vector<64x256xf32> to vector<64x256xbf16>
    %cst_310 = arith.constant dense<0.000000e+00> : vector<16x256xf32>
    %643 = tpu.matmul %497, %642, %cst_310 {dimension_numbers = #tpu.dot_dimension_numbers<[1], [0], [0], [1], [0, 0, 1, 1], [], []>} : vector<16x64xbf16>, vector<64x256xbf16>, vector<16x256xf32> -> vector<16x256xf32>
    %c5_311 = arith.constant 5 : index
    %c0_312 = arith.constant 0 : index
    %c0_313 = arith.constant 0 : index
    %644 = vector.load %arg12[%c5_311, %c0_312, %c0_313] : memref<7x8x16xbf16, #tpu.memory_space<vmem>>, vector<1x8x16xbf16>
    %645 = vector.shape_cast %644 : vector<1x8x16xbf16> to vector<8x16xbf16>
    %646 = arith.truncf %643 : vector<16x256xf32> to vector<16x256xbf16>
    %cst_314 = arith.constant dense<0.000000e+00> : vector<8x256xf32>
    %647 = tpu.matmul %645, %646, %cst_314 {dimension_numbers = #tpu.dot_dimension_numbers<[1], [0], [0], [1], [0, 0, 1, 1], [], []>} : vector<8x16xbf16>, vector<16x256xbf16>, vector<8x256xf32> -> vector<8x256xf32>
    %648 = arith.addf %623, %647 : vector<8x256xf32>
    %649 = tpu.iota {dimensions = array<i32: 0>} : vector<64x256xi32>
    %650 = tpu.iota {dimensions = array<i32: 1>} : vector<64x256xi32>
    %c1_i32_315 = arith.constant 1 : i32
    %651 = vector.broadcast %c1_i32_315 : i32 to vector<64x256xi32>
    %652 = arith.muli %651, %650 : vector<64x256xi32>
    %c3_i32_316 = arith.constant 3 : i32
    %653 = vector.broadcast %c3_i32_316 : i32 to vector<64x256xi32>
    %654 = arith.addi %652, %653 : vector<64x256xi32>
    %c4_i32_317 = arith.constant 4 : i32
    %655 = vector.broadcast %c4_i32_317 : i32 to vector<64x256xi32>
    %656 = arith.muli %655, %649 : vector<64x256xi32>
    %657 = arith.cmpi sle, %656, %654 : vector<64x256xi32>
    %c4_i32_318 = arith.constant 4 : i32
    %658 = vector.broadcast %c4_i32_318 : i32 to vector<64x256xi32>
    %659 = arith.muli %658, %649 : vector<64x256xi32>
    %c3_i32_319 = arith.constant 3 : i32
    %660 = vector.broadcast %c3_i32_319 : i32 to vector<64x256xi32>
    %661 = arith.addi %659, %660 : vector<64x256xi32>
    %662 = arith.cmpi sle, %654, %661 : vector<64x256xi32>
    %663 = arith.andi %657, %662 : vector<64x256xi1>
    %cst_320 = arith.constant 1.000000e+00 : f32
    %cst_321 = arith.constant 0.000000e+00 : f32
    %664 = vector.broadcast %cst_320 : f32 to vector<64x256xf32>
    %665 = vector.broadcast %cst_321 : f32 to vector<64x256xf32>
    %666 = arith.select %663, %664, %665 : vector<64x256xi1>, vector<64x256xf32>
    %667 = arith.truncf %666 : vector<64x256xf32> to vector<64x256xbf16>
    %cst_322 = arith.constant dense<0.000000e+00> : vector<16x256xf32>
    %668 = tpu.matmul %497, %667, %cst_322 {dimension_numbers = #tpu.dot_dimension_numbers<[1], [0], [0], [1], [0, 0, 1, 1], [], []>} : vector<16x64xbf16>, vector<64x256xbf16>, vector<16x256xf32> -> vector<16x256xf32>
    %c6_323 = arith.constant 6 : index
    %c0_324 = arith.constant 0 : index
    %c0_325 = arith.constant 0 : index
    %669 = vector.load %arg12[%c6_323, %c0_324, %c0_325] : memref<7x8x16xbf16, #tpu.memory_space<vmem>>, vector<1x8x16xbf16>
    %670 = vector.shape_cast %669 : vector<1x8x16xbf16> to vector<8x16xbf16>
    %671 = arith.truncf %668 : vector<16x256xf32> to vector<16x256xbf16>
    %cst_326 = arith.constant dense<0.000000e+00> : vector<8x256xf32>
    %672 = tpu.matmul %670, %671, %cst_326 {dimension_numbers = #tpu.dot_dimension_numbers<[1], [0], [0], [1], [0, 0, 1, 1], [], []>} : vector<8x16xbf16>, vector<16x256xbf16>, vector<8x256xf32> -> vector<8x256xf32>
    %673 = arith.addf %648, %672 : vector<8x256xf32>
    %c0_327 = arith.constant 0 : index
    %c0_328 = arith.constant 0 : index
    %674 = vector.load %arg13[%c0_327, %c0_328] : memref<8x1xf32, #tpu.memory_space<vmem>>, vector<8x1xf32>
    %675 = vector.broadcast %674 : vector<8x1xf32> to vector<8x256xf32>
    %676 = arith.addf %673, %675 : vector<8x256xf32>
    %677 = math.tanh %676 : vector<8x256xf32>
    %678 = vector.extract_strided_slice %677 {offsets = [0, 0], sizes = [1, 256], strides = [1, 1]} : vector<8x256xf32> to vector<1x256xf32>
    %c0_329 = arith.constant 0 : index
    %c0_330 = arith.constant 0 : index
    %c0_331 = arith.constant 0 : index
    %679 = vector.load %arg14[%c0_329, %c0_330, %c0_331] : memref<1x1x256xf32, #tpu.memory_space<vmem>>, vector<1x1x256xf32>
    %680 = vector.shape_cast %679 : vector<1x1x256xf32> to vector<1x256xf32>
    %681 = vector.shape_cast %678 : vector<1x256xf32> to vector<1x1x256xf32>
    tpu.vector_store %arg14[%c0_329, %c0_330, %c0_331], %681 {strides = array<i32>} : memref<1x1x256xf32, #tpu.memory_space<vmem>>, vector<1x1x256xf32>,
    return
  }
  func.func @transform_0(%arg0: i32) -> (i32, i32, i32) {
    %c0_i32 = arith.constant 0 : i32
    %c0_i32_0 = arith.constant 0 : i32
    %c0_i32_1 = arith.constant 0 : i32
    return %arg0, %c0_i32, %c0_i32_0 : i32, i32, i32
  }
  func.func @transform_1(%arg0: i32) -> (i32, i32, i32) {
    %c0_i32 = arith.constant 0 : i32
    %c0_i32_0 = arith.constant 0 : i32
    %c0_i32_1 = arith.constant 0 : i32
    %c0_i32_2 = arith.constant 0 : i32
    return %c0_i32, %c0_i32_0, %c0_i32_1 : i32, i32, i32
  }
  func.func @transform_2(%arg0: i32) -> (i32, i32) {
    %c0_i32 = arith.constant 0 : i32
    %c0_i32_0 = arith.constant 0 : i32
    %c0_i32_1 = arith.constant 0 : i32
    return %c0_i32, %c0_i32_0 : i32, i32
  }
  func.func @transform_3(%arg0: i32) -> (i32, i32, i32) {
    %c0_i32 = arith.constant 0 : i32
    %c0_i32_0 = arith.constant 0 : i32
    %c0_i32_1 = arith.constant 0 : i32
    %c0_i32_2 = arith.constant 0 : i32
    return %c0_i32, %c0_i32_0, %c0_i32_1 : i32, i32, i32
  }
  func.func @transform_4(%arg0: i32) -> (i32, i32) {
    %c0_i32 = arith.constant 0 : i32
    %c0_i32_0 = arith.constant 0 : i32
    %c0_i32_1 = arith.constant 0 : i32
    return %c0_i32, %c0_i32_0 : i32, i32
  }
  func.func @transform_5(%arg0: i32) -> (i32, i32, i32) {
    %c0_i32 = arith.constant 0 : i32
    %c0_i32_0 = arith.constant 0 : i32
    %c0_i32_1 = arith.constant 0 : i32
    %c0_i32_2 = arith.constant 0 : i32
    return %c0_i32, %c0_i32_0, %c0_i32_1 : i32, i32, i32
  }
  func.func @transform_6(%arg0: i32) -> (i32, i32) {
    %c0_i32 = arith.constant 0 : i32
    %c0_i32_0 = arith.constant 0 : i32
    %c0_i32_1 = arith.constant 0 : i32
    return %c0_i32, %c0_i32_0 : i32, i32
  }
  func.func @transform_7(%arg0: i32) -> (i32, i32, i32) {
    %c0_i32 = arith.constant 0 : i32
    %c0_i32_0 = arith.constant 0 : i32
    %c0_i32_1 = arith.constant 0 : i32
    %c0_i32_2 = arith.constant 0 : i32
    return %c0_i32, %c0_i32_0, %c0_i32_1 : i32, i32, i32
  }
  func.func @transform_8(%arg0: i32) -> (i32, i32) {
    %c0_i32 = arith.constant 0 : i32
    %c0_i32_0 = arith.constant 0 : i32
    %c0_i32_1 = arith.constant 0 : i32
    return %c0_i32, %c0_i32_0 : i32, i32
  }
  func.func @transform_9(%arg0: i32) -> (i32, i32, i32) {
    %c0_i32 = arith.constant 0 : i32
    %c0_i32_0 = arith.constant 0 : i32
    %c0_i32_1 = arith.constant 0 : i32
    %c0_i32_2 = arith.constant 0 : i32
    return %c0_i32, %c0_i32_0, %c0_i32_1 : i32, i32, i32
  }
  func.func @transform_10(%arg0: i32) -> (i32, i32) {
    %c0_i32 = arith.constant 0 : i32
    %c0_i32_0 = arith.constant 0 : i32
    %c0_i32_1 = arith.constant 0 : i32
    return %c0_i32, %c0_i32_0 : i32, i32
  }
  func.func @transform_11(%arg0: i32) -> (i32, i32, i32) {
    %c0_i32 = arith.constant 0 : i32
    %c0_i32_0 = arith.constant 0 : i32
    %c0_i32_1 = arith.constant 0 : i32
    %c0_i32_2 = arith.constant 0 : i32
    return %c0_i32, %c0_i32_0, %c0_i32_1 : i32, i32, i32
  }
  func.func @transform_12(%arg0: i32) -> (i32, i32) {
    %c0_i32 = arith.constant 0 : i32
    %c0_i32_0 = arith.constant 0 : i32
    %c0_i32_1 = arith.constant 0 : i32
    return %c0_i32, %c0_i32_0 : i32, i32
  }
  func.func @transform_13(%arg0: i32) -> (i32, i32, i32) {
    %c0_i32 = arith.constant 0 : i32
    %c0_i32_0 = arith.constant 0 : i32
    %c0_i32_1 = arith.constant 0 : i32
    return %arg0, %c0_i32, %c0_i32_0 : i32, i32, i32
  }
}

</mosaic_0001>

<llo_original>
// kernel: combined_forward_pallas.1
$region0: #{combined_forward_pallas.1}
  #allocation0 [shape = 'u32[]', space=smem, size = 0x4, offset = 0x4, fixed_abs, tag = 'smem constant byte address 0x4 - core index']
  #allocation1 [shape = 'u32[144,128]{1,0:T(1,128)}', space=vmem, size = 0x12000, scoped, tag = 'internal scratch']
  %s0 = inlined_call_operand.vmem [shape: bf16[2,8,256], index: 0, kind: input, shape index: {}]
  %s1 = inlined_call_operand.vmem [shape: bf16[8,16,8], index: 1, kind: input, shape index: {}]
  %s2 = inlined_call_operand.vmem [shape: f32[16,1], index: 2, kind: input, shape index: {}]
  %s3 = inlined_call_operand.vmem [shape: bf16[8,32,16], index: 3, kind: input, shape index: {}]
  %s4 = inlined_call_operand.vmem [shape: f32[32,1], index: 4, kind: input, shape index: {}]
  %s5 = inlined_call_operand.vmem [shape: bf16[1,8,32], index: 5, kind: input, shape index: {}]
  %s6 = inlined_call_operand.vmem [shape: f32[8,1], index: 6, kind: input, shape index: {}]
  %s7 = inlined_call_operand.vmem [shape: bf16[1,32,8], index: 7, kind: input, shape index: {}]
  %s8 = inlined_call_operand.vmem [shape: f32[32,1], index: 8, kind: input, shape index: {}]
  %s9 = inlined_call_operand.vmem [shape: bf16[7,16,32], index: 9, kind: input, shape index: {}]
  %s10 = inlined_call_operand.vmem [shape: f32[16,1], index: 10, kind: input, shape index: {}]
  %s11 = inlined_call_operand.vmem [shape: bf16[7,8,16], index: 11, kind: input, shape index: {}]
  %s12 = inlined_call_operand.vmem [shape: f32[8,1], index: 12, kind: input, shape index: {}]
  %s13 = inlined_call_operand.hbm [shape: f32[2,1,256], index: 13, kind: output, shape index: {}]
  %s14 = sld [smem:[#allocation0]]
  $region85: #{combined_forward_pallas.1} parent=0
    _
  %s16 = ssub.s32 1, %s14
  %s17 = scalar_select 0, %s16, %s14
  $region1: #{combined_forward_pallas.1} parent=0
    #allocation2 [shape = 'u8[2048]{0}', space=vmem, size = 0x800, scoped, tag = 'output window, operand 0']
    #allocation3 [shape = 's32[2]{0}', space=sflag, size = 0x8, scoped, tag = 'scoped memory for combined_forward_pallas.1']
    %18 = vsyncpa [#allocation3], 0
    %s19 = scalar_lea.sflag [#allocation3], 1
    %20 = vsyncpa %s19, 0
    loop: start=0, step=1, limit=4
    $region2: #{combined_forward_pallas.1} parent=1 // loop_pre_header
      _
    $region3: #{combined_forward_pallas.1} parent=1 // loop_header
      %s22 = sphi 0, %s26
      %p23 = scmp.ge.s32.totalorder %s22, 4
      %s32 = sphi 0, %s34
      %s35 = sphi 0, %s32
      %s36 = sphi 0, %s35
      %s52 = sphi 0, %s36
      %s56 = sphi 0, %s56
      %s58 = sphi 0, %s56
      %s59 = sphi 0, %s58
      %s73 = sphi 0, %s59
      %s77 = sphi 0, %s77
      %s79 = sphi 0, %s77
      %s80 = sphi 0, %s79
      %s94 = sphi 0, %s80
      %s98 = sphi 0, %s98
      %s100 = sphi 0, %s98
      %s101 = sphi 0, %s100
      %s115 = sphi 0, %s101
      %s119 = sphi 0, %s119
      %s121 = sphi 0, %s119
      %s122 = sphi 0, %s121
      %s136 = sphi 0, %s122
      %s140 = sphi 0, %s140
      %s142 = sphi 0, %s140
      %s143 = sphi 0, %s142
      %s157 = sphi 0, %s143
      %s161 = sphi 0, %s161
      %s163 = sphi 0, %s161
      %s164 = sphi 0, %s163
      %s178 = sphi 0, %s164
      %s182 = sphi 0, %s182
      %s184 = sphi 0, %s182
      %s185 = sphi 0, %s184
      %s199 = sphi 0, %s185
      %s203 = sphi 0, %s203
      %s205 = sphi 0, %s203
      %s206 = sphi 0, %s205
      %s220 = sphi 0, %s206
      %s224 = sphi 0, %s224
      %s226 = sphi 0, %s224
      %s227 = sphi 0, %s226
      %s241 = sphi 0, %s227
      %s245 = sphi 0, %s245
      %s247 = sphi 0, %s245
      %s248 = sphi 0, %s247
      %s262 = sphi 0, %s248
      %s266 = sphi 0, %s266
      %s268 = sphi 0, %s266
      %s269 = sphi 0, %s268
      %s283 = sphi 0, %s269
      %s287 = sphi 0, %s287
      %s289 = sphi 0, %s287
      %s290 = sphi 0, %s289
      %s304 = sphi 0, %s290
      %s310 = sphi 0, %s312
      %s313 = sphi 0, %s310
      %s314 = sphi 0, %s313
      %s330 = sphi 0, %s314
    $region4: #{combined_forward_pallas.1} parent=1 // loop_header_branch
      %25 = sbr.rel (%p23) target = $region8
    $region5: #{combined_forward_pallas.1} parent=1 // loop_body
      %s27 = ssub.s32 %s22, 1
      %s28 = ssub.s32 %s22, 2
      %s29 = sadd.s32 %s22, 1
      %s30 = ssub.s32 %s22, %s29
      %p31 = scmp.eq.s32.totalorder %s30, 0
      %s33 = sadd.s32 %s32, 1
      %s34 = scalar_select %p31, %s32, %s33
      %p37 = pneg %p31
      %p38 = scmp.eq.s32.totalorder %s22, 1
      %p39 = por %p37, %p38
      %p40 = scmp.ne.s32.totalorder %s32, %s35
      %p41 = scmp.eq.s32.totalorder %s22, 0
      %p42 = por %p40, %p41
      %p43 = scmp.ne.s32.totalorder %s32, %s35
      %p44 = scmp.eq.s32.totalorder %s27, 1
      %p45 = por %p43, %p44
      %p46 = scmp.ne.s32.totalorder %s35, %s36
      %p47 = scmp.eq.s32.totalorder %s27, 0
      %p48 = por %p46, %p47
      %p49 = scmp.ne.s32.totalorder %s35, %s36
      %p50 = scmp.eq.s32.totalorder %s28, 1
      %p51 = por %p49, %p50
      %p53 = scmp.ne.s32.totalorder %s36, %s52
      %p54 = scmp.eq.s32.totalorder %s28, 0
      %p55 = por %p53, %p54
      %s57 = sadd.s32 %s56, 1
      %p60 = scmp.eq.s32.totalorder %s22, 1
      %p61 = scmp.ne.s32.totalorder %s56, %s58
      %p62 = scmp.eq.s32.totalorder %s22, 0
      %p63 = por %p61, %p62
      %p64 = scmp.ne.s32.totalorder %s56, %s58
      %p65 = scmp.eq.s32.totalorder %s27, 1
      %p66 = por %p64, %p65
      %p67 = scmp.ne.s32.totalorder %s58, %s59
      %p68 = scmp.eq.s32.totalorder %s27, 0
      %p69 = por %p67, %p68
      %p70 = scmp.ne.s32.totalorder %s58, %s59
      %p71 = scmp.eq.s32.totalorder %s28, 1
      %p72 = por %p70, %p71
      %p74 = scmp.ne.s32.totalorder %s59, %s73
      %p75 = scmp.eq.s32.totalorder %s28, 0
      %p76 = por %p74, %p75
      %s78 = sadd.s32 %s77, 1
      %p81 = scmp.eq.s32.totalorder %s22, 1
      %p82 = scmp.ne.s32.totalorder %s77, %s79
      %p83 = scmp.eq.s32.totalorder %s22, 0
      %p84 = por %p82, %p83
      %p85 = scmp.ne.s32.totalorder %s77, %s79
      %p86 = scmp.eq.s32.totalorder %s27, 1
      %p87 = por %p85, %p86
      %p88 = scmp.ne.s32.totalorder %s79, %s80
      %p89 = scmp.eq.s32.totalorder %s27, 0
      %p90 = por %p88, %p89
      %p91 = scmp.ne.s32.totalorder %s79, %s80
      %p92 = scmp.eq.s32.totalorder %s28, 1
      %p93 = por %p91, %p92
      %p95 = scmp.ne.s32.totalorder %s80, %s94
      %p96 = scmp.eq.s32.totalorder %s28, 0
      %p97 = por %p95, %p96
      %s99 = sadd.s32 %s98, 1
      %p102 = scmp.eq.s32.totalorder %s22, 1
      %p103 = scmp.ne.s32.totalorder %s98, %s100
      %p104 = scmp.eq.s32.totalorder %s22, 0
      %p105 = por %p103, %p104
      %p106 = scmp.ne.s32.totalorder %s98, %s100
      %p107 = scmp.eq.s32.totalorder %s27, 1
      %p108 = por %p106, %p107
      %p109 = scmp.ne.s32.totalorder %s100, %s101
      %p110 = scmp.eq.s32.totalorder %s27, 0
      %p111 = por %p109, %p110
      %p112 = scmp.ne.s32.totalorder %s100, %s101
      %p113 = scmp.eq.s32.totalorder %s28, 1
      %p114 = por %p112, %p113
      %p116 = scmp.ne.s32.totalorder %s101, %s115
      %p117 = scmp.eq.s32.totalorder %s28, 0
      %p118 = por %p116, %p117
      %s120 = sadd.s32 %s119, 1
      %p123 = scmp.eq.s32.totalorder %s22, 1
      %p124 = scmp.ne.s32.totalorder %s119, %s121
      %p125 = scmp.eq.s32.totalorder %s22, 0
      %p126 = por %p124, %p125
      %p127 = scmp.ne.s32.totalorder %s119, %s121
      %p128 = scmp.eq.s32.totalorder %s27, 1
      %p129 = por %p127, %p128
      %p130 = scmp.ne.s32.totalorder %s121, %s122
      %p131 = scmp.eq.s32.totalorder %s27, 0
      %p132 = por %p130, %p131
      %p133 = scmp.ne.s32.totalorder %s121, %s122
      %p134 = scmp.eq.s32.totalorder %s28, 1
      %p135 = por %p133, %p134
      %p137 = scmp.ne.s32.totalorder %s122, %s136
      %p138 = scmp.eq.s32.totalorder %s28, 0
      %p139 = por %p137, %p138
      %s141 = sadd.s32 %s140, 1
      %p144 = scmp.eq.s32.totalorder %s22, 1
      %p145 = scmp.ne.s32.totalorder %s140, %s142
      %p146 = scmp.eq.s32.totalorder %s22, 0
      %p147 = por %p145, %p146
      %p148 = scmp.ne.s32.totalorder %s140, %s142
      %p149 = scmp.eq.s32.totalorder %s27, 1
      %p150 = por %p148, %p149
      %p151 = scmp.ne.s32.totalorder %s142, %s143
      %p152 = scmp.eq.s32.totalorder %s27, 0
      %p153 = por %p151, %p152
      %p154 = scmp.ne.s32.totalorder %s142, %s143
      %p155 = scmp.eq.s32.totalorder %s28, 1
      %p156 = por %p154, %p155
      %p158 = scmp.ne.s32.totalorder %s143, %s157
      %p159 = scmp.eq.s32.totalorder %s28, 0
      %p160 = por %p158, %p159
      %s162 = sadd.s32 %s161, 1
      %p165 = scmp.eq.s32.totalorder %s22, 1
      %p166 = scmp.ne.s32.totalorder %s161, %s163
      %p167 = scmp.eq.s32.totalorder %s22, 0
      %p168 = por %p166, %p167
      %p169 = scmp.ne.s32.totalorder %s161, %s163
      %p170 = scmp.eq.s32.totalorder %s27, 1
      %p171 = por %p169, %p170
      %p172 = scmp.ne.s32.totalorder %s163, %s164
      %p173 = scmp.eq.s32.totalorder %s27, 0
      %p174 = por %p172, %p173
      %p175 = scmp.ne.s32.totalorder %s163, %s164
      %p176 = scmp.eq.s32.totalorder %s28, 1
      %p177 = por %p175, %p176
      %p179 = scmp.ne.s32.totalorder %s164, %s178
      %p180 = scmp.eq.s32.totalorder %s28, 0
      %p181 = por %p179, %p180
      %s183 = sadd.s32 %s182, 1
      %p186 = scmp.eq.s32.totalorder %s22, 1
      %p187 = scmp.ne.s32.totalorder %s182, %s184
      %p188 = scmp.eq.s32.totalorder %s22, 0
      %p189 = por %p187, %p188
      %p190 = scmp.ne.s32.totalorder %s182, %s184
      %p191 = scmp.eq.s32.totalorder %s27, 1
      %p192 = por %p190, %p191
      %p193 = scmp.ne.s32.totalorder %s184, %s185
      %p194 = scmp.eq.s32.totalorder %s27, 0
      %p195 = por %p193, %p194
      %p196 = scmp.ne.s32.totalorder %s184, %s185
      %p197 = scmp.eq.s32.totalorder %s28, 1
      %p198 = por %p196, %p197
      %p200 = scmp.ne.s32.totalorder %s185, %s199
      %p201 = scmp.eq.s32.totalorder %s28, 0
      %p202 = por %p200, %p201
      %s204 = sadd.s32 %s203, 1
      %p207 = scmp.eq.s32.totalorder %s22, 1
      %p208 = scmp.ne.s32.totalorder %s203, %s205
      %p209 = scmp.eq.s32.totalorder %s22, 0
      %p210 = por %p208, %p209
      %p211 = scmp.ne.s32.totalorder %s203, %s205
      %p212 = scmp.eq.s32.totalorder %s27, 1
      %p213 = por %p211, %p212
      %p214 = scmp.ne.s32.totalorder %s205, %s206
      %p215 = scmp.eq.s32.totalorder %s27, 0
      %p216 = por %p214, %p215
      %p217 = scmp.ne.s32.totalorder %s205, %s206
      %p218 = scmp.eq.s32.totalorder %s28, 1
      %p219 = por %p217, %p218
      %p221 = scmp.ne.s32.totalorder %s206, %s220
      %p222 = scmp.eq.s32.totalorder %s28, 0
      %p223 = por %p221, %p222
      %s225 = sadd.s32 %s224, 1
      %p228 = scmp.eq.s32.totalorder %s22, 1
      %p229 = scmp.ne.s32.totalorder %s224, %s226
      %p230 = scmp.eq.s32.totalorder %s22, 0
      %p231 = por %p229, %p230
      %p232 = scmp.ne.s32.totalorder %s224, %s226
      %p233 = scmp.eq.s32.totalorder %s27, 1
      %p234 = por %p232, %p233
      %p235 = scmp.ne.s32.totalorder %s226, %s227
      %p236 = scmp.eq.s32.totalorder %s27, 0
      %p237 = por %p235, %p236
      %p238 = scmp.ne.s32.totalorder %s226, %s227
      %p239 = scmp.eq.s32.totalorder %s28, 1
      %p240 = por %p238, %p239
      %p242 = scmp.ne.s32.totalorder %s227, %s241
      %p243 = scmp.eq.s32.totalorder %s28, 0
      %p244 = por %p242, %p243
      %s246 = sadd.s32 %s245, 1
      %p249 = scmp.eq.s32.totalorder %s22, 1
      %p250 = scmp.ne.s32.totalorder %s245, %s247
      %p251 = scmp.eq.s32.totalorder %s22, 0
      %p252 = por %p250, %p251
      %p253 = scmp.ne.s32.totalorder %s245, %s247
      %p254 = scmp.eq.s32.totalorder %s27, 1
      %p255 = por %p253, %p254
      %p256 = scmp.ne.s32.totalorder %s247, %s248
      %p257 = scmp.eq.s32.totalorder %s27, 0
      %p258 = por %p256, %p257
      %p259 = scmp.ne.s32.totalorder %s247, %s248
      %p260 = scmp.eq.s32.totalorder %s28, 1
      %p261 = por %p259, %p260
      %p263 = scmp.ne.s32.totalorder %s248, %s262
      %p264 = scmp.eq.s32.totalorder %s28, 0
      %p265 = por %p263, %p264
      %s267 = sadd.s32 %s266, 1
      %p270 = scmp.eq.s32.totalorder %s22, 1
      %p271 = scmp.ne.s32.totalorder %s266, %s268
      %p272 = scmp.eq.s32.totalorder %s22, 0
      %p273 = por %p271, %p272
      %p274 = scmp.ne.s32.totalorder %s266, %s268
      %p275 = scmp.eq.s32.totalorder %s27, 1
      %p276 = por %p274, %p275
      %p277 = scmp.ne.s32.totalorder %s268, %s269
      %p278 = scmp.eq.s32.totalorder %s27, 0
      %p279 = por %p277, %p278
      %p280 = scmp.ne.s32.totalorder %s268, %s269
      %p281 = scmp.eq.s32.totalorder %s28, 1
      %p282 = por %p280, %p281
      %p284 = scmp.ne.s32.totalorder %s269, %s283
      %p285 = scmp.eq.s32.totalorder %s28, 0
      %p286 = por %p284, %p285
      %s288 = sadd.s32 %s287, 1
      %p291 = scmp.eq.s32.totalorder %s22, 1
      %p292 = scmp.ne.s32.totalorder %s287, %s289
      %p293 = scmp.eq.s32.totalorder %s22, 0
      %p294 = por %p292, %p293
      %p295 = scmp.ne.s32.totalorder %s287, %s289
      %p296 = scmp.eq.s32.totalorder %s27, 1
      %p297 = por %p295, %p296
      %p298 = scmp.ne.s32.totalorder %s289, %s290
      %p299 = scmp.eq.s32.totalorder %s27, 0
      %p300 = por %p298, %p299
      %p301 = scmp.ne.s32.totalorder %s289, %s290
      %p302 = scmp.eq.s32.totalorder %s28, 1
      %p303 = por %p301, %p302
      %p305 = scmp.ne.s32.totalorder %s290, %s304
      %p306 = scmp.eq.s32.totalorder %s28, 0
      %p307 = por %p305, %p306
      %s308 = ssub.s32 %s22, %s29
      %p309 = scmp.eq.s32.totalorder %s308, 0
      %s311 = sadd.s32 %s310, 1
      %s312 = scalar_select %p309, %s310, %s311
      %p315 = pneg %p309
      %p316 = scmp.eq.s32.totalorder %s22, 1
      %p317 = por %p315, %p316
      %p318 = scmp.ne.s32.totalorder %s310, %s313
      %p319 = scmp.eq.s32.totalorder %s22, 0
      %p320 = por %p318, %p319
      %p321 = scmp.ne.s32.totalorder %s310, %s313
      %p322 = scmp.eq.s32.totalorder %s27, 1
      %p323 = por %p321, %p322
      %p324 = scmp.ne.s32.totalorder %s313, %s314
      %p325 = scmp.eq.s32.totalorder %s27, 0
      %p326 = por %p324, %p325
      %p327 = scmp.ne.s32.totalorder %s313, %s314
      %p328 = scmp.eq.s32.totalorder %s28, 1
      %p329 = por %p327, %p328
      %p331 = scmp.ne.s32.totalorder %s314, %s330
      %p332 = scmp.eq.s32.totalorder %s28, 0
      %p333 = por %p331, %p332
      %p334 = scmp.le.s32.totalorder 1, %s22
      %p335 = scmp.lt.s32.totalorder %s22, 3
      %p336 = pnand %p334, %p335
      %p337 = pneg %p336
      // Predicated region
      $region9: #{combined_forward_pallas.1} parent=5 // pred_check
        _
      $region10: #{combined_forward_pallas.1} parent=5 // pred_check_branch
        %339 = sbr.rel (%p336) target = $region12
      $region11: #{combined_forward_pallas.1} parent=5 // pred_region
        %s340 = ssub.s32 %s22, 1
        // Predicated region
        $region13: #{combined_forward_pallas.1} parent=11 // pred_check
          %p341 = pneg %p69
        $region14: #{combined_forward_pallas.1} parent=11 // pred_check_branch
          %343 = sbr.rel (%p341) target = $region16
        $region15: #{combined_forward_pallas.1} parent=11 // pred_region
          _
        $region16: #{combined_forward_pallas.1} parent=11 // pred_fallthru
          _
        // Predicated region
        $region17: #{combined_forward_pallas.1} parent=11 // pred_check
          %p344 = pneg %p90
        $region18: #{combined_forward_pallas.1} parent=11 // pred_check_branch
          %346 = sbr.rel (%p344) target = $region20
        $region19: #{combined_forward_pallas.1} parent=11 // pred_region
          _
        $region20: #{combined_forward_pallas.1} parent=11 // pred_fallthru
          _
        // Predicated region
        $region21: #{combined_forward_pallas.1} parent=11 // pred_check
          %p347 = pneg %p111
        $region22: #{combined_forward_pallas.1} parent=11 // pred_check_branch
          %349 = sbr.rel (%p347) target = $region24
        $region23: #{combined_forward_pallas.1} parent=11 // pred_region
          _
        $region24: #{combined_forward_pallas.1} parent=11 // pred_fallthru
          _
        // Predicated region
        $region25: #{combined_forward_pallas.1} parent=11 // pred_check
          %p350 = pneg %p132
        $region26: #{combined_forward_pallas.1} parent=11 // pred_check_branch
          %352 = sbr.rel (%p350) target = $region28
        $region27: #{combined_forward_pallas.1} parent=11 // pred_region
          _
        $region28: #{combined_forward_pallas.1} parent=11 // pred_fallthru
          _
        // Predicated region
        $region29: #{combined_forward_pallas.1} parent=11 // pred_check
          %p353 = pneg %p153
        $region30: #{combined_forward_pallas.1} parent=11 // pred_check_branch
          %355 = sbr.rel (%p353) target = $region32
        $region31: #{combined_forward_pallas.1} parent=11 // pred_region
          _
        $region32: #{combined_forward_pallas.1} parent=11 // pred_fallthru
          _
        // Predicated region
        $region33: #{combined_forward_pallas.1} parent=11 // pred_check
          %p356 = pneg %p174
        $region34: #{combined_forward_pallas.1} parent=11 // pred_check_branch
          %358 = sbr.rel (%p356) target = $region36
        $region35: #{combined_forward_pallas.1} parent=11 // pred_region
          _
        $region36: #{combined_forward_pallas.1} parent=11 // pred_fallthru
          _
        // Predicated region
        $region37: #{combined_forward_pallas.1} parent=11 // pred_check
          %p359 = pneg %p195
        $region38: #{combined_forward_pallas.1} parent=11 // pred_check_branch
          %361 = sbr.rel (%p359) target = $region40
        $region39: #{combined_forward_pallas.1} parent=11 // pred_region
          _
        $region40: #{combined_forward_pallas.1} parent=11 // pred_fallthru
          _
        // Predicated region
        $region41: #{combined_forward_pallas.1} parent=11 // pred_check
          %p362 = pneg %p216
        $region42: #{combined_forward_pallas.1} parent=11 // pred_check_branch
          %364 = sbr.rel (%p362) target = $region44
        $region43: #{combined_forward_pallas.1} parent=11 // pred_region
          _
        $region44: #{combined_forward_pallas.1} parent=11 // pred_fallthru
          _
        // Predicated region
        $region45: #{combined_forward_pallas.1} parent=11 // pred_check
          %p365 = pneg %p237
        $region46: #{combined_forward_pallas.1} parent=11 // pred_check_branch
          %367 = sbr.rel (%p365) target = $region48
        $region47: #{combined_forward_pallas.1} parent=11 // pred_region
          _
        $region48: #{combined_forward_pallas.1} parent=11 // pred_fallthru
          _
        // Predicated region
        $region49: #{combined_forward_pallas.1} parent=11 // pred_check
          %p368 = pneg %p258
        $region50: #{combined_forward_pallas.1} parent=11 // pred_check_branch
          %370 = sbr.rel (%p368) target = $region52
        $region51: #{combined_forward_pallas.1} parent=11 // pred_region
          _
        $region52: #{combined_forward_pallas.1} parent=11 // pred_fallthru
          _
        // Predicated region
        $region53: #{combined_forward_pallas.1} parent=11 // pred_check
          %p371 = pneg %p279
        $region54: #{combined_forward_pallas.1} parent=11 // pred_check_branch
          %373 = sbr.rel (%p371) target = $region56
        $region55: #{combined_forward_pallas.1} parent=11 // pred_region
          _
        $region56: #{combined_forward_pallas.1} parent=11 // pred_fallthru
          _
        // Predicated region
        $region57: #{combined_forward_pallas.1} parent=11 // pred_check
          %p374 = pneg %p300
        $region58: #{combined_forward_pallas.1} parent=11 // pred_check_branch
          %376 = sbr.rel (%p374) target = $region60
        $region59: #{combined_forward_pallas.1} parent=11 // pred_region
          _
        $region60: #{combined_forward_pallas.1} parent=11 // pred_fallthru
          _
      $region12: #{combined_forward_pallas.1} parent=5 // pred_fallthru
        _
      %p377 = scmp.lt.s32.totalorder %s22, 2
      // Predicated region
      $region61: #{combined_forward_pallas.1} parent=5 // pred_check
        %p378 = pneg %p377
      $region62: #{combined_forward_pallas.1} parent=5 // pred_check_branch
        %380 = sbr.rel (%p378) target = $region64
      $region63: #{combined_forward_pallas.1} parent=5 // pred_region
        // Predicated region
        $region65: #{combined_forward_pallas.1} parent=63 // pred_check
          %p381 = pneg %p42
        $region66: #{combined_forward_pallas.1} parent=63 // pred_check_branch
          %383 = sbr.rel (%p381) target = $region68
        $region67: #{combined_forward_pallas.1} parent=63 // pred_region
          %p384 = scmp.lt.s32.totalorder %s22, 1
          %s385 = scalar_select %p384, %s22, 1
          %s386 = smul.addr %s385, 2
          %s387 = smul.addr %s386, 4
          %s388 = scalar_lea.vmem %s0, %s387
        $region68: #{combined_forward_pallas.1} parent=63 // pred_fallthru
          _
      $region64: #{combined_forward_pallas.1} parent=5 // pred_fallthru
        _
      %p389 = scmp.le.s32.totalorder 1, %s22
      %p390 = scmp.lt.s32.totalorder %s22, 3
      %p391 = pnand %p389, %p390
      %p392 = pneg %p391
      // Predicated region
      $region69: #{combined_forward_pallas.1} parent=5 // pred_check
        _
      $region70: #{combined_forward_pallas.1} parent=5 // pred_check_branch
        %394 = sbr.rel (%p391) target = $region72
      $region71: #{combined_forward_pallas.1} parent=5 // pred_region
        %s395 = ssub.s32 %s22, 1
        %p396 = scmp.lt.s32.totalorder %s27, 1
        %s397 = scalar_select %p396, %s27, 1
        %s398 = smul.addr %s397, 2
        %s399 = smul.addr %s398, 4
        %s400 = scalar_lea.vmem %s0, %s399
        %p401 = pneg %p48
        %p402 = pneg %p45
        %p403 = pneg %p69
        %p404 = pneg %p66
        %p405 = pneg %p90
        %p406 = pneg %p87
        %p407 = pneg %p111
        %p408 = pneg %p108
        %p409 = pneg %p132
        %p410 = pneg %p129
        %p411 = pneg %p153
        %p412 = pneg %p150
        %p413 = pneg %p174
        %p414 = pneg %p171
        %p415 = pneg %p195
        %p416 = pneg %p192
        %p417 = pneg %p216
        %p418 = pneg %p213
        %p419 = pneg %p237
        %p420 = pneg %p234
        %p421 = pneg %p258
        %p422 = pneg %p255
        %p423 = pneg %p279
        %p424 = pneg %p276
        %p425 = pneg %p300
        %p426 = pneg %p297
        %p427 = pneg %p326
        %p428 = pneg %p323
        %s429 = sand.u32 %s313, 1
        %s430 = scalar_lea.sflag [#allocation3], %s429
        %s431 = sand.u32 %s313, 1
        %s432 = smul.addr %s431, 2
        %s433 = scalar_lea.vmem [#allocation2], %s432
        %p434 = scmp.lt.s32.totalorder %s27, 1
        %s435 = scalar_select %p434, %s27, 1
        %s436 = smul.addr %s435, 2
        %s437 = smul.addr %s436, 4
        %s438 = scalar_lea.vmem %s0, %s437
        %v440 = vld [vmem:[%s438] sm:$0xff]
        %v441 = vlaneseq
        %v442 = vshrl.u32 %v441, 7
        %v443 = vadd.s32 %v442, 8
        %v444 = vadd.s32 %v442, 16
        %v445 = vadd.s32 %v442, 24
        %v446 = vadd.s32 %v442, 32
        %v447 = vadd.s32 %v442, 40
        %v448 = vadd.s32 %v442, 48
        %v449 = vadd.s32 %v442, 56
        %v450 = vadd.s32 %v442, 64
        %v451 = vadd.s32 %v442, 72
        %v452 = vadd.s32 %v442, 80
        %v453 = vadd.s32 %v442, 88
        %v454 = vadd.s32 %v442, 96
        %v455 = vadd.s32 %v442, 104
        %v456 = vadd.s32 %v442, 112
        %v457 = vadd.s32 %v442, 120
        %v458 = vadd.s32 %v442, 128
        %v459 = vadd.s32 %v442, 136
        %v460 = vadd.s32 %v442, 144
        %v461 = vadd.s32 %v442, 152
        %v462 = vadd.s32 %v442, 160
        %v463 = vadd.s32 %v442, 168
        %v464 = vadd.s32 %v442, 176
        %v465 = vadd.s32 %v442, 184
        %v466 = vadd.s32 %v442, 192
        %v467 = vadd.s32 %v442, 200
        %v468 = vadd.s32 %v442, 208
        %v469 = vadd.s32 %v442, 216
        %v470 = vadd.s32 %v442, 224
        %v471 = vadd.s32 %v442, 232
        %v472 = vadd.s32 %v442, 240
        %v473 = vadd.s32 %v442, 248
        %v474 = vlaneseq
        %v475 = vand.u32 %v474, 127
        %v476 = vmul.u32 %v475, 4
        %v477 = vadd.s32 %v476, 4294967294
        %vm478 = vcmp.eq.s32.totalorder %v442, %v477
        %vm479 = vcmp.eq.s32.totalorder %v443, %v477
        %vm480 = vcmp.eq.s32.totalorder %v444, %v477
        %vm481 = vcmp.eq.s32.totalorder %v445, %v477
        %vm482 = vcmp.eq.s32.totalorder %v446, %v477
        %vm483 = vcmp.eq.s32.totalorder %v447, %v477
        %vm484 = vcmp.eq.s32.totalorder %v448, %v477
        %vm485 = vcmp.eq.s32.totalorder %v449, %v477
        %vm486 = vcmp.eq.s32.totalorder %v450, %v477
        %vm487 = vcmp.eq.s32.totalorder %v451, %v477
        %vm488 = vcmp.eq.s32.totalorder %v452, %v477
        %vm489 = vcmp.eq.s32.totalorder %v453, %v477
        %vm490 = vcmp.eq.s32.totalorder %v454, %v477
        %vm491 = vcmp.eq.s32.totalorder %v455, %v477
        %vm492 = vcmp.eq.s32.totalorder %v456, %v477
        %vm493 = vcmp.eq.s32.totalorder %v457, %v477
        %vm494 = vcmp.eq.s32.totalorder %v458, %v477
        %vm495 = vcmp.eq.s32.totalorder %v459, %v477
        %vm496 = vcmp.eq.s32.totalorder %v460, %v477
        %vm497 = vcmp.eq.s32.totalorder %v461, %v477
        %vm498 = vcmp.eq.s32.totalorder %v462, %v477
        %vm499 = vcmp.eq.s32.totalorder %v463, %v477
        %vm500 = vcmp.eq.s32.totalorder %v464, %v477
        %vm501 = vcmp.eq.s32.totalorder %v465, %v477
        %vm502 = vcmp.eq.s32.totalorder %v466, %v477
        %vm503 = vcmp.eq.s32.totalorder %v467, %v477
        %vm504 = vcmp.eq.s32.totalorder %v468, %v477
        %vm505 = vcmp.eq.s32.totalorder %v469, %v477
        %vm506 = vcmp.eq.s32.totalorder %v470, %v477
        %vm507 = vcmp.eq.s32.totalorder %v471, %v477
        %vm508 = vcmp.eq.s32.totalorder %v472, %v477
        %vm509 = vcmp.eq.s32.totalorder %v473, %v477
        %v510 = vsel %vm478, 1.0, 0.0
        %v511 = vsel %vm479, 1.0, 0.0
        %v512 = vsel %vm480, 1.0, 0.0
        %v513 = vsel %vm481, 1.0, 0.0
        %v514 = vsel %vm482, 1.0, 0.0
        %v515 = vsel %vm483, 1.0, 0.0
        %v516 = vsel %vm484, 1.0, 0.0
        %v517 = vsel %vm485, 1.0, 0.0
        %v518 = vsel %vm486, 1.0, 0.0
        %v519 = vsel %vm487, 1.0, 0.0
        %v520 = vsel %vm488, 1.0, 0.0
        %v521 = vsel %vm489, 1.0, 0.0
        %v522 = vsel %vm490, 1.0, 0.0
        %v523 = vsel %vm491, 1.0, 0.0
        %v524 = vsel %vm492, 1.0, 0.0
        %v525 = vsel %vm493, 1.0, 0.0
        %v526 = vsel %vm494, 1.0, 0.0
        %v527 = vsel %vm495, 1.0, 0.0
        %v528 = vsel %vm496, 1.0, 0.0
        %v529 = vsel %vm497, 1.0, 0.0
        %v530 = vsel %vm498, 1.0, 0.0
        %v531 = vsel %vm499, 1.0, 0.0
        %v532 = vsel %vm500, 1.0, 0.0
        %v533 = vsel %vm501, 1.0, 0.0
        %v534 = vsel %vm502, 1.0, 0.0
        %v535 = vsel %vm503, 1.0, 0.0
        %v536 = vsel %vm504, 1.0, 0.0
        %v537 = vsel %vm505, 1.0, 0.0
        %v538 = vsel %vm506, 1.0, 0.0
        %v539 = vsel %vm507, 1.0, 0.0
        %v540 = vsel %vm508, 1.0, 0.0
        %v541 = vsel %vm509, 1.0, 0.0
        %v542 = vpack.c.bf16 %v511, %v510
        %v543 = vpack.c.bf16 %v513, %v512
        %v544 = vpack.c.bf16 %v515, %v514
        %v545 = vpack.c.bf16 %v517, %v516
        %v546 = vpack.c.bf16 %v519, %v518
        %v547 = vpack.c.bf16 %v521, %v520
        %v548 = vpack.c.bf16 %v523, %v522
        %v549 = vpack.c.bf16 %v525, %v524
        %v550 = vpack.c.bf16 %v527, %v526
        %v551 = vpack.c.bf16 %v529, %v528
        %v552 = vpack.c.bf16 %v531, %v530
        %v553 = vpack.c.bf16 %v533, %v532
        %v554 = vpack.c.bf16 %v535, %v534
        %v555 = vpack.c.bf16 %v537, %v536
        %v556 = vpack.c.bf16 %v539, %v538
        %v557 = vpack.c.bf16 %v541, %v540
        %v559 = vunpack.c.l.b16 %v440
        %v560 = vunpack.c.h.b16 %v440
        %v561 = vpack.c.b16 %v559, %v559
        %v562 = vpack.c.b16 %v560, %v560
        %565 = vmatprep.subr.bf16.mxu0 0
        %566 = vmatpush1.bf16.msra.mxu0 %v542
        %567 = vmatprep.subr.bf16.mxu0 0
        %568 = vmatpush1.bf16.msra.mxu0 %v543
        %569 = vmatprep.subr.bf16.mxu0 0
        %570 = vmatpush1.bf16.msra.mxu0 %v544
        %571 = vmatprep.subr.bf16.mxu0 0
        %572 = vmatpush1.bf16.msra.mxu0 %v545
        %573 = vmatprep.subr.bf16.mxu0 0
        %574 = vmatpush1.bf16.msra.mxu0 %v546
        %575 = vmatprep.subr.bf16.mxu0 0
        %576 = vmatpush1.bf16.msra.mxu0 %v547
        %577 = vmatprep.subr.bf16.mxu0 0
        %578 = vmatpush1.bf16.msra.mxu0 %v548
        %579 = vmatprep.subr.bf16.mxu0 0
        %580 = vmatpush1.bf16.msra.mxu0 %v549
        %581 = vmatprep.subr.bf16.mxu0 0
        %582 = vmatpush1.bf16.msra.mxu0 %v550
        %583 = vmatprep.subr.bf16.mxu0 0
        %584 = vmatpush1.bf16.msra.mxu0 %v551
        %585 = vmatprep.subr.bf16.mxu0 0
        %586 = vmatpush1.bf16.msra.mxu0 %v552
        %587 = vmatprep.subr.bf16.mxu0 0
        %588 = vmatpush1.bf16.msra.mxu0 %v553
        %589 = vmatprep.subr.bf16.mxu0 0
        %590 = vmatpush1.bf16.msra.mxu0 %v554
        %591 = vmatprep.subr.bf16.mxu0 0
        %592 = vmatpush1.bf16.msra.mxu0 %v555
        %593 = vmatprep.subr.bf16.mxu0 0
        %594 = vmatpush1.bf16.msra.mxu0 %v556
        %595 = vmatprep.subr.bf16.mxu0 0
        %596 = vmatpush1.bf16.msra.mxu0 %v557
        %597 = vmatprep.mubr.bf16.mxu0 %v562
        %598 = vmatmul.mubr.bf16.gmra.mrb[0].mxu0 %v561
        %v599 = vpop.f32.mrb[0].mxu0
        %v600 = vadd.f32 0.0, %v599
        %v601 = vpop.f32.mrb[0].mxu0
        %v602 = vpop.f32.mrb[0].mxu0
        %v603 = vpop.f32.mrb[0].mxu0
        %604 = vdwg.mxu0
        %v605 = vld [vmem:[%s1] sm:$0xf]
        %v606 = vld [vmem:[%s1 + $0x4] sm:$0xf]
        %v607 = vpack.c.bf16 %v600, %v600
        %v608 = vadd.s32 %v476, 4294967295
        %vm609 = vcmp.eq.s32.totalorder %v442, %v608
        %vm610 = vcmp.eq.s32.totalorder %v443, %v608
        %vm611 = vcmp.eq.s32.totalorder %v444, %v608
        %vm612 = vcmp.eq.s32.totalorder %v445, %v608
        %vm613 = vcmp.eq.s32.totalorder %v446, %v608
        %vm614 = vcmp.eq.s32.totalorder %v447, %v608
        %vm615 = vcmp.eq.s32.totalorder %v448, %v608
        %vm616 = vcmp.eq.s32.totalorder %v449, %v608
        %vm617 = vcmp.eq.s32.totalorder %v450, %v608
        %vm618 = vcmp.eq.s32.totalorder %v451, %v608
        %vm619 = vcmp.eq.s32.totalorder %v452, %v608
        %vm620 = vcmp.eq.s32.totalorder %v453, %v608
        %vm621 = vcmp.eq.s32.totalorder %v454, %v608
        %vm622 = vcmp.eq.s32.totalorder %v455, %v608
        %vm623 = vcmp.eq.s32.totalorder %v456, %v608
        %vm624 = vcmp.eq.s32.totalorder %v457, %v608
        %vm625 = vcmp.eq.s32.totalorder %v458, %v608
        %vm626 = vcmp.eq.s32.totalorder %v459, %v608
        %vm627 = vcmp.eq.s32.totalorder %v460, %v608
        %vm628 = vcmp.eq.s32.totalorder %v461, %v608
        %vm629 = vcmp.eq.s32.totalorder %v462, %v608
        %vm630 = vcmp.eq.s32.totalorder %v463, %v608
        %vm631 = vcmp.eq.s32.totalorder %v464, %v608
        %vm632 = vcmp.eq.s32.totalorder %v465, %v608
        %vm633 = vcmp.eq.s32.totalorder %v466, %v608
        %vm634 = vcmp.eq.s32.totalorder %v467, %v608
        %vm635 = vcmp.eq.s32.totalorder %v468, %v608
        %vm636 = vcmp.eq.s32.totalorder %v469, %v608
        %vm637 = vcmp.eq.s32.totalorder %v470, %v608
        %vm638 = vcmp.eq.s32.totalorder %v471, %v608
        %vm639 = vcmp.eq.s32.totalorder %v472, %v608
        %vm640 = vcmp.eq.s32.totalorder %v473, %v608
        %v641 = vsel %vm609, 1.0, 0.0
        %v642 = vsel %vm610, 1.0, 0.0
        %v643 = vsel %vm611, 1.0, 0.0
        %v644 = vsel %vm612, 1.0, 0.0
        %v645 = vsel %vm613, 1.0, 0.0
        %v646 = vsel %vm614, 1.0, 0.0
        %v647 = vsel %vm615, 1.0, 0.0
        %v648 = vsel %vm616, 1.0, 0.0
        %v649 = vsel %vm617, 1.0, 0.0
        %v650 = vsel %vm618, 1.0, 0.0
        %v651 = vsel %vm619, 1.0, 0.0
        %v652 = vsel %vm620, 1.0, 0.0
        %v653 = vsel %vm621, 1.0, 0.0
        %v654 = vsel %vm622, 1.0, 0.0
        %v655 = vsel %vm623, 1.0, 0.0
        %v656 = vsel %vm624, 1.0, 0.0
        %v657 = vsel %vm625, 1.0, 0.0
        %v658 = vsel %vm626, 1.0, 0.0
        %v659 = vsel %vm627, 1.0, 0.0
        %v660 = vsel %vm628, 1.0, 0.0
        %v661 = vsel %vm629, 1.0, 0.0
        %v662 = vsel %vm630, 1.0, 0.0
        %v663 = vsel %vm631, 1.0, 0.0
        %v664 = vsel %vm632, 1.0, 0.0
        %v665 = vsel %vm633, 1.0, 0.0
        %v666 = vsel %vm634, 1.0, 0.0
        %v667 = vsel %vm635, 1.0, 0.0
        %v668 = vsel %vm636, 1.0, 0.0
        %v669 = vsel %vm637, 1.0, 0.0
        %v670 = vsel %vm638, 1.0, 0.0
        %v671 = vsel %vm639, 1.0, 0.0
        %v672 = vsel %vm640, 1.0, 0.0
        %v673 = vpack.c.bf16 %v642, %v641
        %v674 = vpack.c.bf16 %v644, %v643
        %v675 = vpack.c.bf16 %v646, %v645
        %v676 = vpack.c.bf16 %v648, %v647
        %v677 = vpack.c.bf16 %v650, %v649
        %v678 = vpack.c.bf16 %v652, %v651
        %v679 = vpack.c.bf16 %v654, %v653
        %v680 = vpack.c.bf16 %v656, %v655
        %v681 = vpack.c.bf16 %v658, %v657
        %v682 = vpack.c.bf16 %v660, %v659
        %v683 = vpack.c.bf16 %v662, %v661
        %v684 = vpack.c.bf16 %v664, %v663
        %v685 = vpack.c.bf16 %v666, %v665
        %v686 = vpack.c.bf16 %v668, %v667
        %v687 = vpack.c.bf16 %v670, %v669
        %v688 = vpack.c.bf16 %v672, %v671
        %689 = vmatprep.subr.bf16.mxu0 0
        %690 = vmatpush1.bf16.msra.mxu0 %v673
        %691 = vmatprep.subr.bf16.mxu0 0
        %692 = vmatpush1.bf16.msra.mxu0 %v674
        %693 = vmatprep.subr.bf16.mxu0 0
        %694 = vmatpush1.bf16.msra.mxu0 %v675
        %695 = vmatprep.subr.bf16.mxu0 0
        %696 = vmatpush1.bf16.msra.mxu0 %v676
        %697 = vmatprep.subr.bf16.mxu0 0
        %698 = vmatpush1.bf16.msra.mxu0 %v677
        %699 = vmatprep.subr.bf16.mxu0 0
        %700 = vmatpush1.bf16.msra.mxu0 %v678
        %701 = vmatprep.subr.bf16.mxu0 0
        %702 = vmatpush1.bf16.msra.mxu0 %v679
        %703 = vmatprep.subr.bf16.mxu0 0
        %704 = vmatpush1.bf16.msra.mxu0 %v680
        %705 = vmatprep.subr.bf16.mxu0 0
        %706 = vmatpush1.bf16.msra.mxu0 %v681
        %707 = vmatprep.subr.bf16.mxu0 0
        %708 = vmatpush1.bf16.msra.mxu0 %v682
        %709 = vmatprep.subr.bf16.mxu0 0
        %710 = vmatpush1.bf16.msra.mxu0 %v683
        %711 = vmatprep.subr.bf16.mxu0 0
        %712 = vmatpush1.bf16.msra.mxu0 %v684
        %713 = vmatprep.subr.bf16.mxu0 0
        %714 = vmatpush1.bf16.msra.mxu0 %v685
        %715 = vmatprep.subr.bf16.mxu0 0
        %716 = vmatpush1.bf16.msra.mxu0 %v686
        %717 = vmatprep.subr.bf16.mxu0 0
        %718 = vmatpush1.bf16.msra.mxu0 %v687
        %719 = vmatprep.subr.bf16.mxu0 0
        %720 = vmatpush1.bf16.msra.mxu0 %v688
        %721 = vmatprep.mubr.bf16.mxu0 %v562
        %722 = vmatmul.mubr.bf16.gmra.mrb[0].mxu0 %v561
        %v723 = vpop.f32.mrb[0].mxu0
        %v724 = vadd.f32 0.0, %v723
        %v725 = vpop.f32.mrb[0].mxu0
        %v726 = vpop.f32.mrb[0].mxu0
        %v727 = vpop.f32.mrb[0].mxu0
        %728 = vdwg.mxu0
        %s729 = scalar_lea.vmem %s1, 8
        %v730 = vld [vmem:[%s729] sm:$0xf]
        %v731 = vld [vmem:[%s729 + $0x4] sm:$0xf]
        %v732 = vpack.c.bf16 %v724, %v724
        %v735 = vunpack.c.l.b16 %v730
        %v736 = vunpack.c.l.b16 %v731
        %v737 = vpack.c.b16 %v736, %v735
        %vm738 = vcmask 64512
        %v740 = vsel %vm738, %v737, 0
        %vm742 = vcmask 1043456
        %v744 = vsel %vm742, %v732, 0
        %746 = vmatprep.subr.bf16.mxu0 0
        %747 = vmatpush1.bf16.msra.mxu0 %v744
        %748 = vmatprep.subr.bf16.mxu0 0
        %749 = vmatpush1.bf16.msra.mxu0 0
        %750 = vmatprep.subr.bf16.mxu0 0
        %751 = vmatpush1.bf16.msra.mxu0 0
        %752 = vmatprep.subr.bf16.mxu0 0
        %753 = vmatpush1.bf16.msra.mxu0 0
        %754 = vmatprep.subr.bf16.mxu0 0
        %755 = vmatpush1.bf16.msra.mxu0 0
        %756 = vmatprep.subr.bf16.mxu0 0
        %757 = vmatpush1.bf16.msra.mxu0 0
        %758 = vmatprep.subr.bf16.mxu0 0
        %759 = vmatpush1.bf16.msra.mxu0 0
        %760 = vmatprep.subr.bf16.mxu0 0
        %761 = vmatpush1.bf16.msra.mxu0 0
        %762 = vmatprep.subr.bf16.mxu0 0
        %763 = vmatpush1.bf16.msra.mxu0 0
        %764 = vmatprep.subr.bf16.mxu0 0
        %765 = vmatpush1.bf16.msra.mxu0 0
        %766 = vmatprep.subr.bf16.mxu0 0
        %767 = vmatpush1.bf16.msra.mxu0 0
        %768 = vmatprep.subr.bf16.mxu0 0
        %769 = vmatpush1.bf16.msra.mxu0 0
        %770 = vmatprep.subr.bf16.mxu0 0
        %771 = vmatpush1.bf16.msra.mxu0 0
        %772 = vmatprep.subr.bf16.mxu0 0
        %773 = vmatpush1.bf16.msra.mxu0 0
        %774 = vmatprep.subr.bf16.mxu0 0
        %775 = vmatpush1.bf16.msra.mxu0 0
        %776 = vmatprep.subr.bf16.mxu0 0
        %777 = vmatpush1.bf16.msra.mxu0 0
        %778 = vmatprep.mubr.bf16.mxu0 0
        %779 = vmatmul.mubr.bf16.gmra.mrb[0].mxu0 %v740
        %v780 = vpop.f32.mrb[0].mxu0
        %v781 = vadd.f32 0.0, %v780
        %v782 = vpop.f32.mrb[0].mxu0
        %v783 = vpop.f32.mrb[0].mxu0
        %v784 = vadd.f32 0.0, %v783
        %v785 = vpop.f32.mrb[0].mxu0
        %786 = vdwg.mxu0
        %v789 = vunpack.c.l.b16 %v605
        %v790 = vunpack.c.l.b16 %v606
        %v791 = vpack.c.b16 %v790, %v789
        %v793 = vsel %vm738, %v791, 0
        %v796 = vsel %vm742, %v607, 0
        %798 = vmatprep.subr.bf16.mxu0 0
        %799 = vmatpush1.bf16.msra.mxu0 %v796
        %800 = vmatprep.subr.bf16.mxu0 0
        %801 = vmatpush1.bf16.msra.mxu0 0
        %802 = vmatprep.subr.bf16.mxu0 0
        %803 = vmatpush1.bf16.msra.mxu0 0
        %804 = vmatprep.subr.bf16.mxu0 0
        %805 = vmatpush1.bf16.msra.mxu0 0
        %806 = vmatprep.subr.bf16.mxu0 0
        %807 = vmatpush1.bf16.msra.mxu0 0
        %808 = vmatprep.subr.bf16.mxu0 0
        %809 = vmatpush1.bf16.msra.mxu0 0
        %810 = vmatprep.subr.bf16.mxu0 0
        %811 = vmatpush1.bf16.msra.mxu0 0
        %812 = vmatprep.subr.bf16.mxu0 0
        %813 = vmatpush1.bf16.msra.mxu0 0
        %814 = vmatprep.subr.bf16.mxu0 0
        %815 = vmatpush1.bf16.msra.mxu0 0
        %816 = vmatprep.subr.bf16.mxu0 0
        %817 = vmatpush1.bf16.msra.mxu0 0
        %818 = vmatprep.subr.bf16.mxu0 0
        %819 = vmatpush1.bf16.msra.mxu0 0
        %820 = vmatprep.subr.bf16.mxu0 0
        %821 = vmatpush1.bf16.msra.mxu0 0
        %822 = vmatprep.subr.bf16.mxu0 0
        %823 = vmatpush1.bf16.msra.mxu0 0
        %824 = vmatprep.subr.bf16.mxu0 0
        %825 = vmatpush1.bf16.msra.mxu0 0
        %826 = vmatprep.subr.bf16.mxu0 0
        %827 = vmatpush1.bf16.msra.mxu0 0
        %828 = vmatprep.subr.bf16.mxu0 0
        %829 = vmatpush1.bf16.msra.mxu0 0
        %830 = vmatprep.mubr.bf16.mxu0 0
        %831 = vmatmul.mubr.bf16.gmra.mrb[0].mxu0 %v793
        %v832 = vpop.f32.mrb[0].mxu0
        %v833 = vadd.f32 %v781, %v832
        %v834 = vpop.f32.mrb[0].mxu0
        %v835 = vpop.f32.mrb[0].mxu0
        %v836 = vadd.f32 %v784, %v835
        %v837 = vpop.f32.mrb[0].mxu0
        %838 = vdwg.mxu0
        %vm839 = vcmp.eq.s32.totalorder %v442, %v476
        %vm840 = vcmp.eq.s32.totalorder %v443, %v476
        %vm841 = vcmp.eq.s32.totalorder %v444, %v476
        %vm842 = vcmp.eq.s32.totalorder %v445, %v476
        %vm843 = vcmp.eq.s32.totalorder %v446, %v476
        %vm844 = vcmp.eq.s32.totalorder %v447, %v476
        %vm845 = vcmp.eq.s32.totalorder %v448, %v476
        %vm846 = vcmp.eq.s32.totalorder %v449, %v476
        %vm847 = vcmp.eq.s32.totalorder %v450, %v476
        %vm848 = vcmp.eq.s32.totalorder %v451, %v476
        %vm849 = vcmp.eq.s32.totalorder %v452, %v476
        %vm850 = vcmp.eq.s32.totalorder %v453, %v476
        %vm851 = vcmp.eq.s32.totalorder %v454, %v476
        %vm852 = vcmp.eq.s32.totalorder %v455, %v476
        %vm853 = vcmp.eq.s32.totalorder %v456, %v476
        %vm854 = vcmp.eq.s32.totalorder %v457, %v476
        %vm855 = vcmp.eq.s32.totalorder %v458, %v476
        %vm856 = vcmp.eq.s32.totalorder %v459, %v476
        %vm857 = vcmp.eq.s32.totalorder %v460, %v476
        %vm858 = vcmp.eq.s32.totalorder %v461, %v476
        %vm859 = vcmp.eq.s32.totalorder %v462, %v476
        %vm860 = vcmp.eq.s32.totalorder %v463, %v476
        %vm861 = vcmp.eq.s32.totalorder %v464, %v476
        %vm862 = vcmp.eq.s32.totalorder %v465, %v476
        %vm863 = vcmp.eq.s32.totalorder %v466, %v476
        %vm864 = vcmp.eq.s32.totalorder %v467, %v476
        %vm865 = vcmp.eq.s32.totalorder %v468, %v476
        %vm866 = vcmp.eq.s32.totalorder %v469, %v476
        %vm867 = vcmp.eq.s32.totalorder %v470, %v476
        %vm868 = vcmp.eq.s32.totalorder %v471, %v476
        %vm869 = vcmp.eq.s32.totalorder %v472, %v476
        %vm870 = vcmp.eq.s32.totalorder %v473, %v476
        %v871 = vsel %vm839, 1.0, 0.0
        %v872 = vsel %vm840, 1.0, 0.0
        %v873 = vsel %vm841, 1.0, 0.0
        %v874 = vsel %vm842, 1.0, 0.0
        %v875 = vsel %vm843, 1.0, 0.0
        %v876 = vsel %vm844, 1.0, 0.0
        %v877 = vsel %vm845, 1.0, 0.0
        %v878 = vsel %vm846, 1.0, 0.0
        %v879 = vsel %vm847, 1.0, 0.0
        %v880 = vsel %vm848, 1.0, 0.0
        %v881 = vsel %vm849, 1.0, 0.0
        %v882 = vsel %vm850, 1.0, 0.0
        %v883 = vsel %vm851, 1.0, 0.0
        %v884 = vsel %vm852, 1.0, 0.0
        %v885 = vsel %vm853, 1.0, 0.0
        %v886 = vsel %vm854, 1.0, 0.0
        %v887 = vsel %vm855, 1.0, 0.0
        %v888 = vsel %vm856, 1.0, 0.0
        %v889 = vsel %vm857, 1.0, 0.0
        %v890 = vsel %vm858, 1.0, 0.0
        %v891 = vsel %vm859, 1.0, 0.0
        %v892 = vsel %vm860, 1.0, 0.0
        %v893 = vsel %vm861, 1.0, 0.0
        %v894 = vsel %vm862, 1.0, 0.0
        %v895 = vsel %vm863, 1.0, 0.0
        %v896 = vsel %vm864, 1.0, 0.0
        %v897 = vsel %vm865, 1.0, 0.0
        %v898 = vsel %vm866, 1.0, 0.0
        %v899 = vsel %vm867, 1.0, 0.0
        %v900 = vsel %vm868, 1.0, 0.0
        %v901 = vsel %vm869, 1.0, 0.0
        %v902 = vsel %vm870, 1.0, 0.0
        %v903 = vpack.c.bf16 %v872, %v871
        %v904 = vpack.c.bf16 %v874, %v873
        %v905 = vpack.c.bf16 %v876, %v875
        %v906 = vpack.c.bf16 %v878, %v877
        %v907 = vpack.c.bf16 %v880, %v879
        %v908 = vpack.c.bf16 %v882, %v881
        %v909 = vpack.c.bf16 %v884, %v883
        %v910 = vpack.c.bf16 %v886, %v885
        %v911 = vpack.c.bf16 %v888, %v887
        %v912 = vpack.c.bf16 %v890, %v889
        %v913 = vpack.c.bf16 %v892, %v891
        %v914 = vpack.c.bf16 %v894, %v893
        %v915 = vpack.c.bf16 %v896, %v895
        %v916 = vpack.c.bf16 %v898, %v897
        %v917 = vpack.c.bf16 %v900, %v899
        %v918 = vpack.c.bf16 %v902, %v901
        %919 = vmatprep.subr.bf16.mxu0 0
        %920 = vmatpush1.bf16.msra.mxu0 %v903
        %921 = vmatprep.subr.bf16.mxu0 0
        %922 = vmatpush1.bf16.msra.mxu0 %v904
        %923 = vmatprep.subr.bf16.mxu0 0
        %924 = vmatpush1.bf16.msra.mxu0 %v905
        %925 = vmatprep.subr.bf16.mxu0 0
        %926 = vmatpush1.bf16.msra.mxu0 %v906
        %927 = vmatprep.subr.bf16.mxu0 0
        %928 = vmatpush1.bf16.msra.mxu0 %v907
        %929 = vmatprep.subr.bf16.mxu0 0
        %930 = vmatpush1.bf16.msra.mxu0 %v908
        %931 = vmatprep.subr.bf16.mxu0 0
        %932 = vmatpush1.bf16.msra.mxu0 %v909
        %933 = vmatprep.subr.bf16.mxu0 0
        %934 = vmatpush1.bf16.msra.mxu0 %v910
        %935 = vmatprep.subr.bf16.mxu0 0
        %936 = vmatpush1.bf16.msra.mxu0 %v911
        %937 = vmatprep.subr.bf16.mxu0 0
        %938 = vmatpush1.bf16.msra.mxu0 %v912
        %939 = vmatprep.subr.bf16.mxu0 0
        %940 = vmatpush1.bf16.msra.mxu0 %v913
        %941 = vmatprep.subr.bf16.mxu0 0
        %942 = vmatpush1.bf16.msra.mxu0 %v914
        %943 = vmatprep.subr.bf16.mxu0 0
        %944 = vmatpush1.bf16.msra.mxu0 %v915
        %945 = vmatprep.subr.bf16.mxu0 0
        %946 = vmatpush1.bf16.msra.mxu0 %v916
        %947 = vmatprep.subr.bf16.mxu0 0
        %948 = vmatpush1.bf16.msra.mxu0 %v917
        %949 = vmatprep.subr.bf16.mxu0 0
        %950 = vmatpush1.bf16.msra.mxu0 %v918
        %951 = vmatprep.mubr.bf16.mxu0 %v562
        %952 = vmatmul.mubr.bf16.gmra.mrb[0].mxu0 %v561
        %v953 = vpop.f32.mrb[0].mxu0
        %v954 = vadd.f32 0.0, %v953
        %v955 = vpop.f32.mrb[0].mxu0
        %v956 = vpop.f32.mrb[0].mxu0
        %v957 = vpop.f32.mrb[0].mxu0
        %958 = vdwg.mxu0
        %s959 = scalar_lea.vmem %s1, 16
        %v960 = vld [vmem:[%s959] sm:$0xf]
        %v961 = vld [vmem:[%s959 + $0x4] sm:$0xf]
        %v962 = vpack.c.bf16 %v954, %v954
        %v965 = vunpack.c.l.b16 %v960
        %v966 = vunpack.c.l.b16 %v961
        %v967 = vpack.c.b16 %v966, %v965
        %v969 = vsel %vm738, %v967, 0
        %v972 = vsel %vm742, %v962, 0
        %974 = vmatprep.subr.bf16.mxu0 0
        %975 = vmatpush1.bf16.msra.mxu0 %v972
        %976 = vmatprep.subr.bf16.mxu0 0
        %977 = vmatpush1.bf16.msra.mxu0 0
        %978 = vmatprep.subr.bf16.mxu0 0
        %979 = vmatpush1.bf16.msra.mxu0 0
        %980 = vmatprep.subr.bf16.mxu0 0
        %981 = vmatpush1.bf16.msra.mxu0 0
        %982 = vmatprep.subr.bf16.mxu0 0
        %983 = vmatpush1.bf16.msra.mxu0 0
        %984 = vmatprep.subr.bf16.mxu0 0
        %985 = vmatpush1.bf16.msra.mxu0 0
        %986 = vmatprep.subr.bf16.mxu0 0
        %987 = vmatpush1.bf16.msra.mxu0 0
        %988 = vmatprep.subr.bf16.mxu0 0
        %989 = vmatpush1.bf16.msra.mxu0 0
        %990 = vmatprep.subr.bf16.mxu0 0
        %991 = vmatpush1.bf16.msra.mxu0 0
        %992 = vmatprep.subr.bf16.mxu0 0
        %993 = vmatpush1.bf16.msra.mxu0 0
        %994 = vmatprep.subr.bf16.mxu0 0
        %995 = vmatpush1.bf16.msra.mxu0 0
        %996 = vmatprep.subr.bf16.mxu0 0
        %997 = vmatpush1.bf16.msra.mxu0 0
        %998 = vmatprep.subr.bf16.mxu0 0
        %999 = vmatpush1.bf16.msra.mxu0 0
        %1000 = vmatprep.subr.bf16.mxu0 0
        %1001 = vmatpush1.bf16.msra.mxu0 0
        %1002 = vmatprep.subr.bf16.mxu0 0
        %1003 = vmatpush1.bf16.msra.mxu0 0
        %1004 = vmatprep.subr.bf16.mxu0 0
        %1005 = vmatpush1.bf16.msra.mxu0 0
        %1006 = vmatprep.mubr.bf16.mxu0 0
        %1007 = vmatmul.mubr.bf16.gmra.mrb[0].mxu0 %v969
        %v1008 = vpop.f32.mrb[0].mxu0
        %v1009 = vadd.f32 0.0, %v1008
        %v1010 = vpop.f32.mrb[0].mxu0
        %v1011 = vpop.f32.mrb[0].mxu0
        %v1012 = vadd.f32 0.0, %v1011
        %v1013 = vpop.f32.mrb[0].mxu0
        %1014 = vdwg.mxu0
        %v1015 = vadd.f32 %v833, %v1009
        %v1016 = vadd.f32 %v836, %v1012
        %v1017 = vadd.s32 %v476, 1
        %vm1018 = vcmp.eq.s32.totalorder %v442, %v1017
        %vm1019 = vcmp.eq.s32.totalorder %v443, %v1017
        %vm1020 = vcmp.eq.s32.totalorder %v444, %v1017
        %vm1021 = vcmp.eq.s32.totalorder %v445, %v1017
        %vm1022 = vcmp.eq.s32.totalorder %v446, %v1017
        %vm1023 = vcmp.eq.s32.totalorder %v447, %v1017
        %vm1024 = vcmp.eq.s32.totalorder %v448, %v1017
        %vm1025 = vcmp.eq.s32.totalorder %v449, %v1017
        %vm1026 = vcmp.eq.s32.totalorder %v450, %v1017
        %vm1027 = vcmp.eq.s32.totalorder %v451, %v1017
        %vm1028 = vcmp.eq.s32.totalorder %v452, %v1017
        %vm1029 = vcmp.eq.s32.totalorder %v453, %v1017
        %vm1030 = vcmp.eq.s32.totalorder %v454, %v1017
        %vm1031 = vcmp.eq.s32.totalorder %v455, %v1017
        %vm1032 = vcmp.eq.s32.totalorder %v456, %v1017
        %vm1033 = vcmp.eq.s32.totalorder %v457, %v1017
        %vm1034 = vcmp.eq.s32.totalorder %v458, %v1017
        %vm1035 = vcmp.eq.s32.totalorder %v459, %v1017
        %vm1036 = vcmp.eq.s32.totalorder %v460, %v1017
        %vm1037 = vcmp.eq.s32.totalorder %v461, %v1017
        %vm1038 = vcmp.eq.s32.totalorder %v462, %v1017
        %vm1039 = vcmp.eq.s32.totalorder %v463, %v1017
        %vm1040 = vcmp.eq.s32.totalorder %v464, %v1017
        %vm1041 = vcmp.eq.s32.totalorder %v465, %v1017
        %vm1042 = vcmp.eq.s32.totalorder %v466, %v1017
        %vm1043 = vcmp.eq.s32.totalorder %v467, %v1017
        %vm1044 = vcmp.eq.s32.totalorder %v468, %v1017
        %vm1045 = vcmp.eq.s32.totalorder %v469, %v1017
        %vm1046 = vcmp.eq.s32.totalorder %v470, %v1017
        %vm1047 = vcmp.eq.s32.totalorder %v471, %v1017
        %vm1048 = vcmp.eq.s32.totalorder %v472, %v1017
        %vm1049 = vcmp.eq.s32.totalorder %v473, %v1017
        %v1050 = vsel %vm1018, 1.0, 0.0
        %v1051 = vsel %vm1019, 1.0, 0.0
        %v1052 = vsel %vm1020, 1.0, 0.0
        %v1053 = vsel %vm1021, 1.0, 0.0
        %v1054 = vsel %vm1022, 1.0, 0.0
        %v1055 = vsel %vm1023, 1.0, 0.0
        %v1056 = vsel %vm1024, 1.0, 0.0
        %v1057 = vsel %vm1025, 1.0, 0.0
        %v1058 = vsel %vm1026, 1.0, 0.0
        %v1059 = vsel %vm1027, 1.0, 0.0
        %v1060 = vsel %vm1028, 1.0, 0.0
        %v1061 = vsel %vm1029, 1.0, 0.0
        %v1062 = vsel %vm1030, 1.0, 0.0
        %v1063 = vsel %vm1031, 1.0, 0.0
        %v1064 = vsel %vm1032, 1.0, 0.0
        %v1065 = vsel %vm1033, 1.0, 0.0
        %v1066 = vsel %vm1034, 1.0, 0.0
        %v1067 = vsel %vm1035, 1.0, 0.0
        %v1068 = vsel %vm1036, 1.0, 0.0
        %v1069 = vsel %vm1037, 1.0, 0.0
        %v1070 = vsel %vm1038, 1.0, 0.0
        %v1071 = vsel %vm1039, 1.0, 0.0
        %v1072 = vsel %vm1040, 1.0, 0.0
        %v1073 = vsel %vm1041, 1.0, 0.0
        %v1074 = vsel %vm1042, 1.0, 0.0
        %v1075 = vsel %vm1043, 1.0, 0.0
        %v1076 = vsel %vm1044, 1.0, 0.0
        %v1077 = vsel %vm1045, 1.0, 0.0
        %v1078 = vsel %vm1046, 1.0, 0.0
        %v1079 = vsel %vm1047, 1.0, 0.0
        %v1080 = vsel %vm1048, 1.0, 0.0
        %v1081 = vsel %vm1049, 1.0, 0.0
        %v1082 = vpack.c.bf16 %v1051, %v1050
        %v1083 = vpack.c.bf16 %v1053, %v1052
        %v1084 = vpack.c.bf16 %v1055, %v1054
        %v1085 = vpack.c.bf16 %v1057, %v1056
        %v1086 = vpack.c.bf16 %v1059, %v1058
        %v1087 = vpack.c.bf16 %v1061, %v1060
        %v1088 = vpack.c.bf16 %v1063, %v1062
        %v1089 = vpack.c.bf16 %v1065, %v1064
        %v1090 = vpack.c.bf16 %v1067, %v1066
        %v1091 = vpack.c.bf16 %v1069, %v1068
        %v1092 = vpack.c.bf16 %v1071, %v1070
        %v1093 = vpack.c.bf16 %v1073, %v1072
        %v1094 = vpack.c.bf16 %v1075, %v1074
        %v1095 = vpack.c.bf16 %v1077, %v1076
        %v1096 = vpack.c.bf16 %v1079, %v1078
        %v1097 = vpack.c.bf16 %v1081, %v1080
        %1098 = vmatprep.subr.bf16.mxu0 0
        %1099 = vmatpush1.bf16.msra.mxu0 %v1082
        %1100 = vmatprep.subr.bf16.mxu0 0
        %1101 = vmatpush1.bf16.msra.mxu0 %v1083
        %1102 = vmatprep.subr.bf16.mxu0 0
        %1103 = vmatpush1.bf16.msra.mxu0 %v1084
        %1104 = vmatprep.subr.bf16.mxu0 0
        %1105 = vmatpush1.bf16.msra.mxu0 %v1085
        %1106 = vmatprep.subr.bf16.mxu0 0
        %1107 = vmatpush1.bf16.msra.mxu0 %v1086
        %1108 = vmatprep.subr.bf16.mxu0 0
        %1109 = vmatpush1.bf16.msra.mxu0 %v1087
        %1110 = vmatprep.subr.bf16.mxu0 0
        %1111 = vmatpush1.bf16.msra.mxu0 %v1088
        %1112 = vmatprep.subr.bf16.mxu0 0
        %1113 = vmatpush1.bf16.msra.mxu0 %v1089
        %1114 = vmatprep.subr.bf16.mxu0 0
        %1115 = vmatpush1.bf16.msra.mxu0 %v1090
        %1116 = vmatprep.subr.bf16.mxu0 0
        %1117 = vmatpush1.bf16.msra.mxu0 %v1091
        %1118 = vmatprep.subr.bf16.mxu0 0
        %1119 = vmatpush1.bf16.msra.mxu0 %v1092
        %1120 = vmatprep.subr.bf16.mxu0 0
        %1121 = vmatpush1.bf16.msra.mxu0 %v1093
        %1122 = vmatprep.subr.bf16.mxu0 0
        %1123 = vmatpush1.bf16.msra.mxu0 %v1094
        %1124 = vmatprep.subr.bf16.mxu0 0
        %1125 = vmatpush1.bf16.msra.mxu0 %v1095
        %1126 = vmatprep.subr.bf16.mxu0 0
        %1127 = vmatpush1.bf16.msra.mxu0 %v1096
        %1128 = vmatprep.subr.bf16.mxu0 0
        %1129 = vmatpush1.bf16.msra.mxu0 %v1097
        %1130 = vmatprep.mubr.bf16.mxu0 %v562
        %1131 = vmatmul.mubr.bf16.gmra.mrb[0].mxu0 %v561
        %v1132 = vpop.f32.mrb[0].mxu0
        %v1133 = vadd.f32 0.0, %v1132
        %v1134 = vpop.f32.mrb[0].mxu0
        %v1135 = vpop.f32.mrb[0].mxu0
        %v1136 = vpop.f32.mrb[0].mxu0
        %1137 = vdwg.mxu0
        %s1138 = scalar_lea.vmem %s1, 24
        %v1139 = vld [vmem:[%s1138] sm:$0xf]
        %v1140 = vld [vmem:[%s1138 + $0x4] sm:$0xf]
        %v1141 = vpack.c.bf16 %v1133, %v1133
        %v1144 = vunpack.c.l.b16 %v1139
        %v1145 = vunpack.c.l.b16 %v1140
        %v1146 = vpack.c.b16 %v1145, %v1144
        %v1148 = vsel %vm738, %v1146, 0
        %v1151 = vsel %vm742, %v1141, 0
        %1153 = vmatprep.subr.bf16.mxu0 0
        %1154 = vmatpush1.bf16.msra.mxu0 %v1151
        %1155 = vmatprep.subr.bf16.mxu0 0
        %1156 = vmatpush1.bf16.msra.mxu0 0
        %1157 = vmatprep.subr.bf16.mxu0 0
        %1158 = vmatpush1.bf16.msra.mxu0 0
        %1159 = vmatprep.subr.bf16.mxu0 0
        %1160 = vmatpush1.bf16.msra.mxu0 0
        %1161 = vmatprep.subr.bf16.mxu0 0
        %1162 = vmatpush1.bf16.msra.mxu0 0
        %1163 = vmatprep.subr.bf16.mxu0 0
        %1164 = vmatpush1.bf16.msra.mxu0 0
        %1165 = vmatprep.subr.bf16.mxu0 0
        %1166 = vmatpush1.bf16.msra.mxu0 0
        %1167 = vmatprep.subr.bf16.mxu0 0
        %1168 = vmatpush1.bf16.msra.mxu0 0
        %1169 = vmatprep.subr.bf16.mxu0 0
        %1170 = vmatpush1.bf16.msra.mxu0 0
        %1171 = vmatprep.subr.bf16.mxu0 0
        %1172 = vmatpush1.bf16.msra.mxu0 0
        %1173 = vmatprep.subr.bf16.mxu0 0
        %1174 = vmatpush1.bf16.msra.mxu0 0
        %1175 = vmatprep.subr.bf16.mxu0 0
        %1176 = vmatpush1.bf16.msra.mxu0 0
        %1177 = vmatprep.subr.bf16.mxu0 0
        %1178 = vmatpush1.bf16.msra.mxu0 0
        %1179 = vmatprep.subr.bf16.mxu0 0
        %1180 = vmatpush1.bf16.msra.mxu0 0
        %1181 = vmatprep.subr.bf16.mxu0 0
        %1182 = vmatpush1.bf16.msra.mxu0 0
        %1183 = vmatprep.subr.bf16.mxu0 0
        %1184 = vmatpush1.bf16.msra.mxu0 0
        %1185 = vmatprep.mubr.bf16.mxu0 0
        %1186 = vmatmul.mubr.bf16.gmra.mrb[0].mxu0 %v1148
        %v1187 = vpop.f32.mrb[0].mxu0
        %v1188 = vadd.f32 0.0, %v1187
        %v1189 = vpop.f32.mrb[0].mxu0
        %v1190 = vpop.f32.mrb[0].mxu0
        %v1191 = vadd.f32 0.0, %v1190
        %v1192 = vpop.f32.mrb[0].mxu0
        %1193 = vdwg.mxu0
        %v1194 = vadd.f32 %v1015, %v1188
        %v1195 = vadd.f32 %v1016, %v1191
        %v1196 = vadd.s32 %v476, 2
        %vm1197 = vcmp.eq.s32.totalorder %v442, %v1196
        %vm1198 = vcmp.eq.s32.totalorder %v443, %v1196
        %vm1199 = vcmp.eq.s32.totalorder %v444, %v1196
        %vm1200 = vcmp.eq.s32.totalorder %v445, %v1196
        %vm1201 = vcmp.eq.s32.totalorder %v446, %v1196
        %vm1202 = vcmp.eq.s32.totalorder %v447, %v1196
        %vm1203 = vcmp.eq.s32.totalorder %v448, %v1196
        %vm1204 = vcmp.eq.s32.totalorder %v449, %v1196
        %vm1205 = vcmp.eq.s32.totalorder %v450, %v1196
        %vm1206 = vcmp.eq.s32.totalorder %v451, %v1196
        %vm1207 = vcmp.eq.s32.totalorder %v452, %v1196
        %vm1208 = vcmp.eq.s32.totalorder %v453, %v1196
        %vm1209 = vcmp.eq.s32.totalorder %v454, %v1196
        %vm1210 = vcmp.eq.s32.totalorder %v455, %v1196
        %vm1211 = vcmp.eq.s32.totalorder %v456, %v1196
        %vm1212 = vcmp.eq.s32.totalorder %v457, %v1196
        %vm1213 = vcmp.eq.s32.totalorder %v458, %v1196
        %vm1214 = vcmp.eq.s32.totalorder %v459, %v1196
        %vm1215 = vcmp.eq.s32.totalorder %v460, %v1196
        %vm1216 = vcmp.eq.s32.totalorder %v461, %v1196
        %vm1217 = vcmp.eq.s32.totalorder %v462, %v1196
        %vm1218 = vcmp.eq.s32.totalorder %v463, %v1196
        %vm1219 = vcmp.eq.s32.totalorder %v464, %v1196
        %vm1220 = vcmp.eq.s32.totalorder %v465, %v1196
        %vm1221 = vcmp.eq.s32.totalorder %v466, %v1196
        %vm1222 = vcmp.eq.s32.totalorder %v467, %v1196
        %vm1223 = vcmp.eq.s32.totalorder %v468, %v1196
        %vm1224 = vcmp.eq.s32.totalorder %v469, %v1196
        %vm1225 = vcmp.eq.s32.totalorder %v470, %v1196
        %vm1226 = vcmp.eq.s32.totalorder %v471, %v1196
        %vm1227 = vcmp.eq.s32.totalorder %v472, %v1196
        %vm1228 = vcmp.eq.s32.totalorder %v473, %v1196
        %v1229 = vsel %vm1197, 1.0, 0.0
        %v1230 = vsel %vm1198, 1.0, 0.0
        %v1231 = vsel %vm1199, 1.0, 0.0
        %v1232 = vsel %vm1200, 1.0, 0.0
        %v1233 = vsel %vm1201, 1.0, 0.0
        %v1234 = vsel %vm1202, 1.0, 0.0
        %v1235 = vsel %vm1203, 1.0, 0.0
        %v1236 = vsel %vm1204, 1.0, 0.0
        %v1237 = vsel %vm1205, 1.0, 0.0
        %v1238 = vsel %vm1206, 1.0, 0.0
        %v1239 = vsel %vm1207, 1.0, 0.0
        %v1240 = vsel %vm1208, 1.0, 0.0
        %v1241 = vsel %vm1209, 1.0, 0.0
        %v1242 = vsel %vm1210, 1.0, 0.0
        %v1243 = vsel %vm1211, 1.0, 0.0
        %v1244 = vsel %vm1212, 1.0, 0.0
        %v1245 = vsel %vm1213, 1.0, 0.0
        %v1246 = vsel %vm1214, 1.0, 0.0
        %v1247 = vsel %vm1215, 1.0, 0.0
        %v1248 = vsel %vm1216, 1.0, 0.0
        %v1249 = vsel %vm1217, 1.0, 0.0
        %v1250 = vsel %vm1218, 1.0, 0.0
        %v1251 = vsel %vm1219, 1.0, 0.0
        %v1252 = vsel %vm1220, 1.0, 0.0
        %v1253 = vsel %vm1221, 1.0, 0.0
        %v1254 = vsel %vm1222, 1.0, 0.0
        %v1255 = vsel %vm1223, 1.0, 0.0
        %v1256 = vsel %vm1224, 1.0, 0.0
        %v1257 = vsel %vm1225, 1.0, 0.0
        %v1258 = vsel %vm1226, 1.0, 0.0
        %v1259 = vsel %vm1227, 1.0, 0.0
        %v1260 = vsel %vm1228, 1.0, 0.0
        %v1261 = vpack.c.bf16 %v1230, %v1229
        %v1262 = vpack.c.bf16 %v1232, %v1231
        %v1263 = vpack.c.bf16 %v1234, %v1233
        %v1264 = vpack.c.bf16 %v1236, %v1235
        %v1265 = vpack.c.bf16 %v1238, %v1237
        %v1266 = vpack.c.bf16 %v1240, %v1239
        %v1267 = vpack.c.bf16 %v1242, %v1241
        %v1268 = vpack.c.bf16 %v1244, %v1243
        %v1269 = vpack.c.bf16 %v1246, %v1245
        %v1270 = vpack.c.bf16 %v1248, %v1247
        %v1271 = vpack.c.bf16 %v1250, %v1249
        %v1272 = vpack.c.bf16 %v1252, %v1251
        %v1273 = vpack.c.bf16 %v1254, %v1253
        %v1274 = vpack.c.bf16 %v1256, %v1255
        %v1275 = vpack.c.bf16 %v1258, %v1257
        %v1276 = vpack.c.bf16 %v1260, %v1259
        %1277 = vmatprep.subr.bf16.mxu0 0
        %1278 = vmatpush1.bf16.msra.mxu0 %v1261
        %1279 = vmatprep.subr.bf16.mxu0 0
        %1280 = vmatpush1.bf16.msra.mxu0 %v1262
        %1281 = vmatprep.subr.bf16.mxu0 0
        %1282 = vmatpush1.bf16.msra.mxu0 %v1263
        %1283 = vmatprep.subr.bf16.mxu0 0
        %1284 = vmatpush1.bf16.msra.mxu0 %v1264
        %1285 = vmatprep.subr.bf16.mxu0 0
        %1286 = vmatpush1.bf16.msra.mxu0 %v1265
        %1287 = vmatprep.subr.bf16.mxu0 0
        %1288 = vmatpush1.bf16.msra.mxu0 %v1266
        %1289 = vmatprep.subr.bf16.mxu0 0
        %1290 = vmatpush1.bf16.msra.mxu0 %v1267
        %1291 = vmatprep.subr.bf16.mxu0 0
        %1292 = vmatpush1.bf16.msra.mxu0 %v1268
        %1293 = vmatprep.subr.bf16.mxu0 0
        %1294 = vmatpush1.bf16.msra.mxu0 %v1269
        %1295 = vmatprep.subr.bf16.mxu0 0
        %1296 = vmatpush1.bf16.msra.mxu0 %v1270
        %1297 = vmatprep.subr.bf16.mxu0 0
        %1298 = vmatpush1.bf16.msra.mxu0 %v1271
        %1299 = vmatprep.subr.bf16.mxu0 0
        %1300 = vmatpush1.bf16.msra.mxu0 %v1272
        %1301 = vmatprep.subr.bf16.mxu0 0
        %1302 = vmatpush1.bf16.msra.mxu0 %v1273
        %1303 = vmatprep.subr.bf16.mxu0 0
        %1304 = vmatpush1.bf16.msra.mxu0 %v1274
        %1305 = vmatprep.subr.bf16.mxu0 0
        %1306 = vmatpush1.bf16.msra.mxu0 %v1275
        %1307 = vmatprep.subr.bf16.mxu0 0
        %1308 = vmatpush1.bf16.msra.mxu0 %v1276
        %1309 = vmatprep.mubr.bf16.mxu0 %v562
        %1310 = vmatmul.mubr.bf16.gmra.mrb[0].mxu0 %v561
        %v1311 = vpop.f32.mrb[0].mxu0
        %v1312 = vadd.f32 0.0, %v1311
        %v1313 = vpop.f32.mrb[0].mxu0
        %v1314 = vpop.f32.mrb[0].mxu0
        %v1315 = vpop.f32.mrb[0].mxu0
        %1316 = vdwg.mxu0
        %s1317 = scalar_lea.vmem %s1, 32
        %v1318 = vld [vmem:[%s1317] sm:$0xf]
        %v1319 = vld [vmem:[%s1317 + $0x4] sm:$0xf]
        %v1320 = vpack.c.bf16 %v1312, %v1312
        %v1323 = vunpack.c.l.b16 %v1318
        %v1324 = vunpack.c.l.b16 %v1319
        %v1325 = vpack.c.b16 %v1324, %v1323
        %v1327 = vsel %vm738, %v1325, 0
        %v1330 = vsel %vm742, %v1320, 0
        %1332 = vmatprep.subr.bf16.mxu0 0
        %1333 = vmatpush1.bf16.msra.mxu0 %v1330
        %1334 = vmatprep.subr.bf16.mxu0 0
        %1335 = vmatpush1.bf16.msra.mxu0 0
        %1336 = vmatprep.subr.bf16.mxu0 0
        %1337 = vmatpush1.bf16.msra.mxu0 0
        %1338 = vmatprep.subr.bf16.mxu0 0
        %1339 = vmatpush1.bf16.msra.mxu0 0
        %1340 = vmatprep.subr.bf16.mxu0 0
        %1341 = vmatpush1.bf16.msra.mxu0 0
        %1342 = vmatprep.subr.bf16.mxu0 0
        %1343 = vmatpush1.bf16.msra.mxu0 0
        %1344 = vmatprep.subr.bf16.mxu0 0
        %1345 = vmatpush1.bf16.msra.mxu0 0
        %1346 = vmatprep.subr.bf16.mxu0 0
        %1347 = vmatpush1.bf16.msra.mxu0 0
        %1348 = vmatprep.subr.bf16.mxu0 0
        %1349 = vmatpush1.bf16.msra.mxu0 0
        %1350 = vmatprep.subr.bf16.mxu0 0
        %1351 = vmatpush1.bf16.msra.mxu0 0
        %1352 = vmatprep.subr.bf16.mxu0 0
        %1353 = vmatpush1.bf16.msra.mxu0 0
        %1354 = vmatprep.subr.bf16.mxu0 0
        %1355 = vmatpush1.bf16.msra.mxu0 0
        %1356 = vmatprep.subr.bf16.mxu0 0
        %1357 = vmatpush1.bf16.msra.mxu0 0
        %1358 = vmatprep.subr.bf16.mxu0 0
        %1359 = vmatpush1.bf16.msra.mxu0 0
        %1360 = vmatprep.subr.bf16.mxu0 0
        %1361 = vmatpush1.bf16.msra.mxu0 0
        %1362 = vmatprep.subr.bf16.mxu0 0
        %1363 = vmatpush1.bf16.msra.mxu0 0
        %1364 = vmatprep.mubr.bf16.mxu0 0
        %1365 = vmatmul.mubr.bf16.gmra.mrb[0].mxu0 %v1327
        %v1366 = vpop.f32.mrb[0].mxu0
        %v1367 = vadd.f32 0.0, %v1366
        %v1368 = vpop.f32.mrb[0].mxu0
        %v1369 = vpop.f32.mrb[0].mxu0
        %v1370 = vadd.f32 0.0, %v1369
        %v1371 = vpop.f32.mrb[0].mxu0
        %1372 = vdwg.mxu0
        %v1373 = vadd.f32 %v1194, %v1367
        %v1374 = vadd.f32 %v1195, %v1370
        %v1375 = vadd.s32 %v476, 3
        %vm1376 = vcmp.eq.s32.totalorder %v442, %v1375
        %vm1377 = vcmp.eq.s32.totalorder %v443, %v1375
        %vm1378 = vcmp.eq.s32.totalorder %v444, %v1375
        %vm1379 = vcmp.eq.s32.totalorder %v445, %v1375
        %vm1380 = vcmp.eq.s32.totalorder %v446, %v1375
        %vm1381 = vcmp.eq.s32.totalorder %v447, %v1375
        %vm1382 = vcmp.eq.s32.totalorder %v448, %v1375
        %vm1383 = vcmp.eq.s32.totalorder %v449, %v1375
        %vm1384 = vcmp.eq.s32.totalorder %v450, %v1375
        %vm1385 = vcmp.eq.s32.totalorder %v451, %v1375
        %vm1386 = vcmp.eq.s32.totalorder %v452, %v1375
        %vm1387 = vcmp.eq.s32.totalorder %v453, %v1375
        %vm1388 = vcmp.eq.s32.totalorder %v454, %v1375
        %vm1389 = vcmp.eq.s32.totalorder %v455, %v1375
        %vm1390 = vcmp.eq.s32.totalorder %v456, %v1375
        %vm1391 = vcmp.eq.s32.totalorder %v457, %v1375
        %vm1392 = vcmp.eq.s32.totalorder %v458, %v1375
        %vm1393 = vcmp.eq.s32.totalorder %v459, %v1375
        %vm1394 = vcmp.eq.s32.totalorder %v460, %v1375
        %vm1395 = vcmp.eq.s32.totalorder %v461, %v1375
        %vm1396 = vcmp.eq.s32.totalorder %v462, %v1375
        %vm1397 = vcmp.eq.s32.totalorder %v463, %v1375
        %vm1398 = vcmp.eq.s32.totalorder %v464, %v1375
        %vm1399 = vcmp.eq.s32.totalorder %v465, %v1375
        %vm1400 = vcmp.eq.s32.totalorder %v466, %v1375
        %vm1401 = vcmp.eq.s32.totalorder %v467, %v1375
        %vm1402 = vcmp.eq.s32.totalorder %v468, %v1375
        %vm1403 = vcmp.eq.s32.totalorder %v469, %v1375
        %vm1404 = vcmp.eq.s32.totalorder %v470, %v1375
        %vm1405 = vcmp.eq.s32.totalorder %v471, %v1375
        %vm1406 = vcmp.eq.s32.totalorder %v472, %v1375
        %vm1407 = vcmp.eq.s32.totalorder %v473, %v1375
        %v1408 = vsel %vm1376, 1.0, 0.0
        %v1409 = vsel %vm1377, 1.0, 0.0
        %v1410 = vsel %vm1378, 1.0, 0.0
        %v1411 = vsel %vm1379, 1.0, 0.0
        %v1412 = vsel %vm1380, 1.0, 0.0
        %v1413 = vsel %vm1381, 1.0, 0.0
        %v1414 = vsel %vm1382, 1.0, 0.0
        %v1415 = vsel %vm1383, 1.0, 0.0
        %v1416 = vsel %vm1384, 1.0, 0.0
        %v1417 = vsel %vm1385, 1.0, 0.0
        %v1418 = vsel %vm1386, 1.0, 0.0
        %v1419 = vsel %vm1387, 1.0, 0.0
        %v1420 = vsel %vm1388, 1.0, 0.0
        %v1421 = vsel %vm1389, 1.0, 0.0
        %v1422 = vsel %vm1390, 1.0, 0.0
        %v1423 = vsel %vm1391, 1.0, 0.0
        %v1424 = vsel %vm1392, 1.0, 0.0
        %v1425 = vsel %vm1393, 1.0, 0.0
        %v1426 = vsel %vm1394, 1.0, 0.0
        %v1427 = vsel %vm1395, 1.0, 0.0
        %v1428 = vsel %vm1396, 1.0, 0.0
        %v1429 = vsel %vm1397, 1.0, 0.0
        %v1430 = vsel %vm1398, 1.0, 0.0
        %v1431 = vsel %vm1399, 1.0, 0.0
        %v1432 = vsel %vm1400, 1.0, 0.0
        %v1433 = vsel %vm1401, 1.0, 0.0
        %v1434 = vsel %vm1402, 1.0, 0.0
        %v1435 = vsel %vm1403, 1.0, 0.0
        %v1436 = vsel %vm1404, 1.0, 0.0
        %v1437 = vsel %vm1405, 1.0, 0.0
        %v1438 = vsel %vm1406, 1.0, 0.0
        %v1439 = vsel %vm1407, 1.0, 0.0
        %v1440 = vpack.c.bf16 %v1409, %v1408
        %v1441 = vpack.c.bf16 %v1411, %v1410
        %v1442 = vpack.c.bf16 %v1413, %v1412
        %v1443 = vpack.c.bf16 %v1415, %v1414
        %v1444 = vpack.c.bf16 %v1417, %v1416
        %v1445 = vpack.c.bf16 %v1419, %v1418
        %v1446 = vpack.c.bf16 %v1421, %v1420
        %v1447 = vpack.c.bf16 %v1423, %v1422
        %v1448 = vpack.c.bf16 %v1425, %v1424
        %v1449 = vpack.c.bf16 %v1427, %v1426
        %v1450 = vpack.c.bf16 %v1429, %v1428
        %v1451 = vpack.c.bf16 %v1431, %v1430
        %v1452 = vpack.c.bf16 %v1433, %v1432
        %v1453 = vpack.c.bf16 %v1435, %v1434
        %v1454 = vpack.c.bf16 %v1437, %v1436
        %v1455 = vpack.c.bf16 %v1439, %v1438
        %1456 = vmatprep.subr.bf16.mxu0 0
        %1457 = vmatpush1.bf16.msra.mxu0 %v1440
        %1458 = vmatprep.subr.bf16.mxu0 0
        %1459 = vmatpush1.bf16.msra.mxu0 %v1441
        %1460 = vmatprep.subr.bf16.mxu0 0
        %1461 = vmatpush1.bf16.msra.mxu0 %v1442
        %1462 = vmatprep.subr.bf16.mxu0 0
        %1463 = vmatpush1.bf16.msra.mxu0 %v1443
        %1464 = vmatprep.subr.bf16.mxu0 0
        %1465 = vmatpush1.bf16.msra.mxu0 %v1444
        %1466 = vmatprep.subr.bf16.mxu0 0
        %1467 = vmatpush1.bf16.msra.mxu0 %v1445
        %1468 = vmatprep.subr.bf16.mxu0 0
        %1469 = vmatpush1.bf16.msra.mxu0 %v1446
        %1470 = vmatprep.subr.bf16.mxu0 0
        %1471 = vmatpush1.bf16.msra.mxu0 %v1447
        %1472 = vmatprep.subr.bf16.mxu0 0
        %1473 = vmatpush1.bf16.msra.mxu0 %v1448
        %1474 = vmatprep.subr.bf16.mxu0 0
        %1475 = vmatpush1.bf16.msra.mxu0 %v1449
        %1476 = vmatprep.subr.bf16.mxu0 0
        %1477 = vmatpush1.bf16.msra.mxu0 %v1450
        %1478 = vmatprep.subr.bf16.mxu0 0
        %1479 = vmatpush1.bf16.msra.mxu0 %v1451
        %1480 = vmatprep.subr.bf16.mxu0 0
        %1481 = vmatpush1.bf16.msra.mxu0 %v1452
        %1482 = vmatprep.subr.bf16.mxu0 0
        %1483 = vmatpush1.bf16.msra.mxu0 %v1453
        %1484 = vmatprep.subr.bf16.mxu0 0
        %1485 = vmatpush1.bf16.msra.mxu0 %v1454
        %1486 = vmatprep.subr.bf16.mxu0 0
        %1487 = vmatpush1.bf16.msra.mxu0 %v1455
        %1488 = vmatprep.mubr.bf16.mxu0 %v562
        %1489 = vmatmul.mubr.bf16.gmra.mrb[0].mxu0 %v561
        %v1490 = vpop.f32.mrb[0].mxu0
        %v1491 = vadd.f32 0.0, %v1490
        %v1492 = vpop.f32.mrb[0].mxu0
        %v1493 = vpop.f32.mrb[0].mxu0
        %v1494 = vpop.f32.mrb[0].mxu0
        %1495 = vdwg.mxu0
        %s1496 = scalar_lea.vmem %s1, 40
        %v1497 = vld [vmem:[%s1496] sm:$0xf]
        %v1498 = vld [vmem:[%s1496 + $0x4] sm:$0xf]
        %v1499 = vpack.c.bf16 %v1491, %v1491
        %v1502 = vunpack.c.l.b16 %v1497
        %v1503 = vunpack.c.l.b16 %v1498
        %v1504 = vpack.c.b16 %v1503, %v1502
        %v1506 = vsel %vm738, %v1504, 0
        %v1509 = vsel %vm742, %v1499, 0
        %1511 = vmatprep.subr.bf16.mxu0 0
        %1512 = vmatpush1.bf16.msra.mxu0 %v1509
        %1513 = vmatprep.subr.bf16.mxu0 0
        %1514 = vmatpush1.bf16.msra.mxu0 0
        %1515 = vmatprep.subr.bf16.mxu0 0
        %1516 = vmatpush1.bf16.msra.mxu0 0
        %1517 = vmatprep.subr.bf16.mxu0 0
        %1518 = vmatpush1.bf16.msra.mxu0 0
        %1519 = vmatprep.subr.bf16.mxu0 0
        %1520 = vmatpush1.bf16.msra.mxu0 0
        %1521 = vmatprep.subr.bf16.mxu0 0
        %1522 = vmatpush1.bf16.msra.mxu0 0
        %1523 = vmatprep.subr.bf16.mxu0 0
        %1524 = vmatpush1.bf16.msra.mxu0 0
        %1525 = vmatprep.subr.bf16.mxu0 0
        %1526 = vmatpush1.bf16.msra.mxu0 0
        %1527 = vmatprep.subr.bf16.mxu0 0
        %1528 = vmatpush1.bf16.msra.mxu0 0
        %1529 = vmatprep.subr.bf16.mxu0 0
        %1530 = vmatpush1.bf16.msra.mxu0 0
        %1531 = vmatprep.subr.bf16.mxu0 0
        %1532 = vmatpush1.bf16.msra.mxu0 0
        %1533 = vmatprep.subr.bf16.mxu0 0
        %1534 = vmatpush1.bf16.msra.mxu0 0
        %1535 = vmatprep.subr.bf16.mxu0 0
        %1536 = vmatpush1.bf16.msra.mxu0 0
        %1537 = vmatprep.subr.bf16.mxu0 0
        %1538 = vmatpush1.bf16.msra.mxu0 0
        %1539 = vmatprep.subr.bf16.mxu0 0
        %1540 = vmatpush1.bf16.msra.mxu0 0
        %1541 = vmatprep.subr.bf16.mxu0 0
        %1542 = vmatpush1.bf16.msra.mxu0 0
        %1543 = vmatprep.mubr.bf16.mxu0 0
        %1544 = vmatmul.mubr.bf16.gmra.mrb[0].mxu0 %v1506
        %v1545 = vpop.f32.mrb[0].mxu0
        %v1546 = vadd.f32 0.0, %v1545
        %v1547 = vpop.f32.mrb[0].mxu0
        %v1548 = vpop.f32.mrb[0].mxu0
        %v1549 = vadd.f32 0.0, %v1548
        %v1550 = vpop.f32.mrb[0].mxu0
        %1551 = vdwg.mxu0
        %v1552 = vadd.f32 %v1373, %v1546
        %v1553 = vadd.f32 %v1374, %v1549
        %v1554 = vadd.s32 %v476, 4
        %vm1555 = vcmp.eq.s32.totalorder %v442, %v1554
        %vm1556 = vcmp.eq.s32.totalorder %v443, %v1554
        %vm1557 = vcmp.eq.s32.totalorder %v444, %v1554
        %vm1558 = vcmp.eq.s32.totalorder %v445, %v1554
        %vm1559 = vcmp.eq.s32.totalorder %v446, %v1554
        %vm1560 = vcmp.eq.s32.totalorder %v447, %v1554
        %vm1561 = vcmp.eq.s32.totalorder %v448, %v1554
        %vm1562 = vcmp.eq.s32.totalorder %v449, %v1554
        %vm1563 = vcmp.eq.s32.totalorder %v450, %v1554
        %vm1564 = vcmp.eq.s32.totalorder %v451, %v1554
        %vm1565 = vcmp.eq.s32.totalorder %v452, %v1554
        %vm1566 = vcmp.eq.s32.totalorder %v453, %v1554
        %vm1567 = vcmp.eq.s32.totalorder %v454, %v1554
        %vm1568 = vcmp.eq.s32.totalorder %v455, %v1554
        %vm1569 = vcmp.eq.s32.totalorder %v456, %v1554
        %vm1570 = vcmp.eq.s32.totalorder %v457, %v1554
        %vm1571 = vcmp.eq.s32.totalorder %v458, %v1554
        %vm1572 = vcmp.eq.s32.totalorder %v459, %v1554
        %vm1573 = vcmp.eq.s32.totalorder %v460, %v1554
        %vm1574 = vcmp.eq.s32.totalorder %v461, %v1554
        %vm1575 = vcmp.eq.s32.totalorder %v462, %v1554
        %vm1576 = vcmp.eq.s32.totalorder %v463, %v1554
        %vm1577 = vcmp.eq.s32.totalorder %v464, %v1554
        %vm1578 = vcmp.eq.s32.totalorder %v465, %v1554
        %vm1579 = vcmp.eq.s32.totalorder %v466, %v1554
        %vm1580 = vcmp.eq.s32.totalorder %v467, %v1554
        %vm1581 = vcmp.eq.s32.totalorder %v468, %v1554
        %vm1582 = vcmp.eq.s32.totalorder %v469, %v1554
        %vm1583 = vcmp.eq.s32.totalorder %v470, %v1554
        %vm1584 = vcmp.eq.s32.totalorder %v471, %v1554
        %vm1585 = vcmp.eq.s32.totalorder %v472, %v1554
        %vm1586 = vcmp.eq.s32.totalorder %v473, %v1554
        %v1587 = vsel %vm1555, 1.0, 0.0
        %v1588 = vsel %vm1556, 1.0, 0.0
        %v1589 = vsel %vm1557, 1.0, 0.0
        %v1590 = vsel %vm1558, 1.0, 0.0
        %v1591 = vsel %vm1559, 1.0, 0.0
        %v1592 = vsel %vm1560, 1.0, 0.0
        %v1593 = vsel %vm1561, 1.0, 0.0
        %v1594 = vsel %vm1562, 1.0, 0.0
        %v1595 = vsel %vm1563, 1.0, 0.0
        %v1596 = vsel %vm1564, 1.0, 0.0
        %v1597 = vsel %vm1565, 1.0, 0.0
        %v1598 = vsel %vm1566, 1.0, 0.0
        %v1599 = vsel %vm1567, 1.0, 0.0
        %v1600 = vsel %vm1568, 1.0, 0.0
        %v1601 = vsel %vm1569, 1.0, 0.0
        %v1602 = vsel %vm1570, 1.0, 0.0
        %v1603 = vsel %vm1571, 1.0, 0.0
        %v1604 = vsel %vm1572, 1.0, 0.0
        %v1605 = vsel %vm1573, 1.0, 0.0
        %v1606 = vsel %vm1574, 1.0, 0.0
        %v1607 = vsel %vm1575, 1.0, 0.0
        %v1608 = vsel %vm1576, 1.0, 0.0
        %v1609 = vsel %vm1577, 1.0, 0.0
        %v1610 = vsel %vm1578, 1.0, 0.0
        %v1611 = vsel %vm1579, 1.0, 0.0
        %v1612 = vsel %vm1580, 1.0, 0.0
        %v1613 = vsel %vm1581, 1.0, 0.0
        %v1614 = vsel %vm1582, 1.0, 0.0
        %v1615 = vsel %vm1583, 1.0, 0.0
        %v1616 = vsel %vm1584, 1.0, 0.0
        %v1617 = vsel %vm1585, 1.0, 0.0
        %v1618 = vsel %vm1586, 1.0, 0.0
        %v1619 = vpack.c.bf16 %v1588, %v1587
        %v1620 = vpack.c.bf16 %v1590, %v1589
        %v1621 = vpack.c.bf16 %v1592, %v1591
        %v1622 = vpack.c.bf16 %v1594, %v1593
        %v1623 = vpack.c.bf16 %v1596, %v1595
        %v1624 = vpack.c.bf16 %v1598, %v1597
        %v1625 = vpack.c.bf16 %v1600, %v1599
        %v1626 = vpack.c.bf16 %v1602, %v1601
        %v1627 = vpack.c.bf16 %v1604, %v1603
        %v1628 = vpack.c.bf16 %v1606, %v1605
        %v1629 = vpack.c.bf16 %v1608, %v1607
        %v1630 = vpack.c.bf16 %v1610, %v1609
        %v1631 = vpack.c.bf16 %v1612, %v1611
        %v1632 = vpack.c.bf16 %v1614, %v1613
        %v1633 = vpack.c.bf16 %v1616, %v1615
        %v1634 = vpack.c.bf16 %v1618, %v1617
        %1635 = vmatprep.subr.bf16.mxu0 0
        %1636 = vmatpush1.bf16.msra.mxu0 %v1619
        %1637 = vmatprep.subr.bf16.mxu0 0
        %1638 = vmatpush1.bf16.msra.mxu0 %v1620
        %1639 = vmatprep.subr.bf16.mxu0 0
        %1640 = vmatpush1.bf16.msra.mxu0 %v1621
        %1641 = vmatprep.subr.bf16.mxu0 0
        %1642 = vmatpush1.bf16.msra.mxu0 %v1622
        %1643 = vmatprep.subr.bf16.mxu0 0
        %1644 = vmatpush1.bf16.msra.mxu0 %v1623
        %1645 = vmatprep.subr.bf16.mxu0 0
        %1646 = vmatpush1.bf16.msra.mxu0 %v1624
        %1647 = vmatprep.subr.bf16.mxu0 0
        %1648 = vmatpush1.bf16.msra.mxu0 %v1625
        %1649 = vmatprep.subr.bf16.mxu0 0
        %1650 = vmatpush1.bf16.msra.mxu0 %v1626
        %1651 = vmatprep.subr.bf16.mxu0 0
        %1652 = vmatpush1.bf16.msra.mxu0 %v1627
        %1653 = vmatprep.subr.bf16.mxu0 0
        %1654 = vmatpush1.bf16.msra.mxu0 %v1628
        %1655 = vmatprep.subr.bf16.mxu0 0
        %1656 = vmatpush1.bf16.msra.mxu0 %v1629
        %1657 = vmatprep.subr.bf16.mxu0 0
        %1658 = vmatpush1.bf16.msra.mxu0 %v1630
        %1659 = vmatprep.subr.bf16.mxu0 0
        %1660 = vmatpush1.bf16.msra.mxu0 %v1631
        %1661 = vmatprep.subr.bf16.mxu0 0
        %1662 = vmatpush1.bf16.msra.mxu0 %v1632
        %1663 = vmatprep.subr.bf16.mxu0 0
        %1664 = vmatpush1.bf16.msra.mxu0 %v1633
        %1665 = vmatprep.subr.bf16.mxu0 0
        %1666 = vmatpush1.bf16.msra.mxu0 %v1634
        %1667 = vmatprep.mubr.bf16.mxu0 %v562
        %1668 = vmatmul.mubr.bf16.gmra.mrb[0].mxu0 %v561
        %v1669 = vpop.f32.mrb[0].mxu0
        %v1670 = vadd.f32 0.0, %v1669
        %v1671 = vpop.f32.mrb[0].mxu0
        %v1672 = vpop.f32.mrb[0].mxu0
        %v1673 = vpop.f32.mrb[0].mxu0
        %1674 = vdwg.mxu0
        %s1675 = scalar_lea.vmem %s1, 48
        %v1676 = vld [vmem:[%s1675] sm:$0xf]
        %v1677 = vld [vmem:[%s1675 + $0x4] sm:$0xf]
        %v1678 = vpack.c.bf16 %v1670, %v1670
        %v1681 = vunpack.c.l.b16 %v1676
        %v1682 = vunpack.c.l.b16 %v1677
        %v1683 = vpack.c.b16 %v1682, %v1681
        %v1685 = vsel %vm738, %v1683, 0
        %v1688 = vsel %vm742, %v1678, 0
        %1690 = vmatprep.subr.bf16.mxu0 0
        %1691 = vmatpush1.bf16.msra.mxu0 %v1688
        %1692 = vmatprep.subr.bf16.mxu0 0
        %1693 = vmatpush1.bf16.msra.mxu0 0
        %1694 = vmatprep.subr.bf16.mxu0 0
        %1695 = vmatpush1.bf16.msra.mxu0 0
        %1696 = vmatprep.subr.bf16.mxu0 0
        %1697 = vmatpush1.bf16.msra.mxu0 0
        %1698 = vmatprep.subr.bf16.mxu0 0
        %1699 = vmatpush1.bf16.msra.mxu0 0
        %1700 = vmatprep.subr.bf16.mxu0 0
        %1701 = vmatpush1.bf16.msra.mxu0 0
        %1702 = vmatprep.subr.bf16.mxu0 0
        %1703 = vmatpush1.bf16.msra.mxu0 0
        %1704 = vmatprep.subr.bf16.mxu0 0
        %1705 = vmatpush1.bf16.msra.mxu0 0
        %1706 = vmatprep.subr.bf16.mxu0 0
        %1707 = vmatpush1.bf16.msra.mxu0 0
        %1708 = vmatprep.subr.bf16.mxu0 0
        %1709 = vmatpush1.bf16.msra.mxu0 0
        %1710 = vmatprep.subr.bf16.mxu0 0
        %1711 = vmatpush1.bf16.msra.mxu0 0
        %1712 = vmatprep.subr.bf16.mxu0 0
        %1713 = vmatpush1.bf16.msra.mxu0 0
        %1714 = vmatprep.subr.bf16.mxu0 0
        %1715 = vmatpush1.bf16.msra.mxu0 0
        %1716 = vmatprep.subr.bf16.mxu0 0
        %1717 = vmatpush1.bf16.msra.mxu0 0
        %1718 = vmatprep.subr.bf16.mxu0 0
        %1719 = vmatpush1.bf16.msra.mxu0 0
        %1720 = vmatprep.subr.bf16.mxu0 0
        %1721 = vmatpush1.bf16.msra.mxu0 0
        %1722 = vmatprep.mubr.bf16.mxu0 0
        %1723 = vmatmul.mubr.bf16.gmra.mrb[0].mxu0 %v1685
        %v1724 = vpop.f32.mrb[0].mxu0
        %v1725 = vadd.f32 0.0, %v1724
        %v1726 = vpop.f32.mrb[0].mxu0
        %v1727 = vpop.f32.mrb[0].mxu0
        %v1728 = vadd.f32 0.0, %v1727
        %v1729 = vpop.f32.mrb[0].mxu0
        %1730 = vdwg.mxu0
        %v1731 = vadd.f32 %v1552, %v1725
        %v1732 = vadd.f32 %v1553, %v1728
        %v1733 = vadd.s32 %v476, 5
        %vm1734 = vcmp.eq.s32.totalorder %v442, %v1733
        %vm1735 = vcmp.eq.s32.totalorder %v443, %v1733
        %vm1736 = vcmp.eq.s32.totalorder %v444, %v1733
        %vm1737 = vcmp.eq.s32.totalorder %v445, %v1733
        %vm1738 = vcmp.eq.s32.totalorder %v446, %v1733
        %vm1739 = vcmp.eq.s32.totalorder %v447, %v1733
        %vm1740 = vcmp.eq.s32.totalorder %v448, %v1733
        %vm1741 = vcmp.eq.s32.totalorder %v449, %v1733
        %vm1742 = vcmp.eq.s32.totalorder %v450, %v1733
        %vm1743 = vcmp.eq.s32.totalorder %v451, %v1733
        %vm1744 = vcmp.eq.s32.totalorder %v452, %v1733
        %vm1745 = vcmp.eq.s32.totalorder %v453, %v1733
        %vm1746 = vcmp.eq.s32.totalorder %v454, %v1733
        %vm1747 = vcmp.eq.s32.totalorder %v455, %v1733
        %vm1748 = vcmp.eq.s32.totalorder %v456, %v1733
        %vm1749 = vcmp.eq.s32.totalorder %v457, %v1733
        %vm1750 = vcmp.eq.s32.totalorder %v458, %v1733
        %vm1751 = vcmp.eq.s32.totalorder %v459, %v1733
        %vm1752 = vcmp.eq.s32.totalorder %v460, %v1733
        %vm1753 = vcmp.eq.s32.totalorder %v461, %v1733
        %vm1754 = vcmp.eq.s32.totalorder %v462, %v1733
        %vm1755 = vcmp.eq.s32.totalorder %v463, %v1733
        %vm1756 = vcmp.eq.s32.totalorder %v464, %v1733
        %vm1757 = vcmp.eq.s32.totalorder %v465, %v1733
        %vm1758 = vcmp.eq.s32.totalorder %v466, %v1733
        %vm1759 = vcmp.eq.s32.totalorder %v467, %v1733
        %vm1760 = vcmp.eq.s32.totalorder %v468, %v1733
        %vm1761 = vcmp.eq.s32.totalorder %v469, %v1733
        %vm1762 = vcmp.eq.s32.totalorder %v470, %v1733
        %vm1763 = vcmp.eq.s32.totalorder %v471, %v1733
        %vm1764 = vcmp.eq.s32.totalorder %v472, %v1733
        %vm1765 = vcmp.eq.s32.totalorder %v473, %v1733
        %v1766 = vsel %vm1734, 1.0, 0.0
        %v1767 = vsel %vm1735, 1.0, 0.0
        %v1768 = vsel %vm1736, 1.0, 0.0
        %v1769 = vsel %vm1737, 1.0, 0.0
        %v1770 = vsel %vm1738, 1.0, 0.0
        %v1771 = vsel %vm1739, 1.0, 0.0
        %v1772 = vsel %vm1740, 1.0, 0.0
        %v1773 = vsel %vm1741, 1.0, 0.0
        %v1774 = vsel %vm1742, 1.0, 0.0
        %v1775 = vsel %vm1743, 1.0, 0.0
        %v1776 = vsel %vm1744, 1.0, 0.0
        %v1777 = vsel %vm1745, 1.0, 0.0
        %v1778 = vsel %vm1746, 1.0, 0.0
        %v1779 = vsel %vm1747, 1.0, 0.0
        %v1780 = vsel %vm1748, 1.0, 0.0
        %v1781 = vsel %vm1749, 1.0, 0.0
        %v1782 = vsel %vm1750, 1.0, 0.0
        %v1783 = vsel %vm1751, 1.0, 0.0
        %v1784 = vsel %vm1752, 1.0, 0.0
        %v1785 = vsel %vm1753, 1.0, 0.0
        %v1786 = vsel %vm1754, 1.0, 0.0
        %v1787 = vsel %vm1755, 1.0, 0.0
        %v1788 = vsel %vm1756, 1.0, 0.0
        %v1789 = vsel %vm1757, 1.0, 0.0
        %v1790 = vsel %vm1758, 1.0, 0.0
        %v1791 = vsel %vm1759, 1.0, 0.0
        %v1792 = vsel %vm1760, 1.0, 0.0
        %v1793 = vsel %vm1761, 1.0, 0.0
        %v1794 = vsel %vm1762, 1.0, 0.0
        %v1795 = vsel %vm1763, 1.0, 0.0
        %v1796 = vsel %vm1764, 1.0, 0.0
        %v1797 = vsel %vm1765, 1.0, 0.0
        %v1798 = vpack.c.bf16 %v1767, %v1766
        %v1799 = vpack.c.bf16 %v1769, %v1768
        %v1800 = vpack.c.bf16 %v1771, %v1770
        %v1801 = vpack.c.bf16 %v1773, %v1772
        %v1802 = vpack.c.bf16 %v1775, %v1774
        %v1803 = vpack.c.bf16 %v1777, %v1776
        %v1804 = vpack.c.bf16 %v1779, %v1778
        %v1805 = vpack.c.bf16 %v1781, %v1780
        %v1806 = vpack.c.bf16 %v1783, %v1782
        %v1807 = vpack.c.bf16 %v1785, %v1784
        %v1808 = vpack.c.bf16 %v1787, %v1786
        %v1809 = vpack.c.bf16 %v1789, %v1788
        %v1810 = vpack.c.bf16 %v1791, %v1790
        %v1811 = vpack.c.bf16 %v1793, %v1792
        %v1812 = vpack.c.bf16 %v1795, %v1794
        %v1813 = vpack.c.bf16 %v1797, %v1796
        %1814 = vmatprep.subr.bf16.mxu0 0
        %1815 = vmatpush1.bf16.msra.mxu0 %v1798
        %1816 = vmatprep.subr.bf16.mxu0 0
        %1817 = vmatpush1.bf16.msra.mxu0 %v1799
        %1818 = vmatprep.subr.bf16.mxu0 0
        %1819 = vmatpush1.bf16.msra.mxu0 %v1800
        %1820 = vmatprep.subr.bf16.mxu0 0
        %1821 = vmatpush1.bf16.msra.mxu0 %v1801
        %1822 = vmatprep.subr.bf16.mxu0 0
        %1823 = vmatpush1.bf16.msra.mxu0 %v1802
        %1824 = vmatprep.subr.bf16.mxu0 0
        %1825 = vmatpush1.bf16.msra.mxu0 %v1803
        %1826 = vmatprep.subr.bf16.mxu0 0
        %1827 = vmatpush1.bf16.msra.mxu0 %v1804
        %1828 = vmatprep.subr.bf16.mxu0 0
        %1829 = vmatpush1.bf16.msra.mxu0 %v1805
        %1830 = vmatprep.subr.bf16.mxu0 0
        %1831 = vmatpush1.bf16.msra.mxu0 %v1806
        %1832 = vmatprep.subr.bf16.mxu0 0
        %1833 = vmatpush1.bf16.msra.mxu0 %v1807
        %1834 = vmatprep.subr.bf16.mxu0 0
        %1835 = vmatpush1.bf16.msra.mxu0 %v1808
        %1836 = vmatprep.subr.bf16.mxu0 0
        %1837 = vmatpush1.bf16.msra.mxu0 %v1809
        %1838 = vmatprep.subr.bf16.mxu0 0
        %1839 = vmatpush1.bf16.msra.mxu0 %v1810
        %1840 = vmatprep.subr.bf16.mxu0 0
        %1841 = vmatpush1.bf16.msra.mxu0 %v1811
        %1842 = vmatprep.subr.bf16.mxu0 0
        %1843 = vmatpush1.bf16.msra.mxu0 %v1812
        %1844 = vmatprep.subr.bf16.mxu0 0
        %1845 = vmatpush1.bf16.msra.mxu0 %v1813
        %1846 = vmatprep.mubr.bf16.mxu0 %v562
        %1847 = vmatmul.mubr.bf16.gmra.mrb[0].mxu0 %v561
        %v1848 = vpop.f32.mrb[0].mxu0
        %v1849 = vadd.f32 0.0, %v1848
        %v1850 = vpop.f32.mrb[0].mxu0
        %v1851 = vpop.f32.mrb[0].mxu0
        %v1852 = vpop.f32.mrb[0].mxu0
        %1853 = vdwg.mxu0
        %s1854 = scalar_lea.vmem %s1, 56
        %v1855 = vld [vmem:[%s1854] sm:$0xf]
        %v1856 = vld [vmem:[%s1854 + $0x4] sm:$0xf]
        %v1857 = vpack.c.bf16 %v1849, %v1849
        %v1860 = vunpack.c.l.b16 %v1855
        %v1861 = vunpack.c.l.b16 %v1856
        %v1862 = vpack.c.b16 %v1861, %v1860
        %v1864 = vsel %vm738, %v1862, 0
        %v1867 = vsel %vm742, %v1857, 0
        %1869 = vmatprep.subr.bf16.mxu0 0
        %1870 = vmatpush1.bf16.msra.mxu0 %v1867
        %1871 = vmatprep.subr.bf16.mxu0 0
        %1872 = vmatpush1.bf16.msra.mxu0 0
        %1873 = vmatprep.subr.bf16.mxu0 0
        %1874 = vmatpush1.bf16.msra.mxu0 0
        %1875 = vmatprep.subr.bf16.mxu0 0
        %1876 = vmatpush1.bf16.msra.mxu0 0
        %1877 = vmatprep.subr.bf16.mxu0 0
        %1878 = vmatpush1.bf16.msra.mxu0 0
        %1879 = vmatprep.subr.bf16.mxu0 0
        %1880 = vmatpush1.bf16.msra.mxu0 0
        %1881 = vmatprep.subr.bf16.mxu0 0
        %1882 = vmatpush1.bf16.msra.mxu0 0
        %1883 = vmatprep.subr.bf16.mxu0 0
        %1884 = vmatpush1.bf16.msra.mxu0 0
        %1885 = vmatprep.subr.bf16.mxu0 0
        %1886 = vmatpush1.bf16.msra.mxu0 0
        %1887 = vmatprep.subr.bf16.mxu0 0
        %1888 = vmatpush1.bf16.msra.mxu0 0
        %1889 = vmatprep.subr.bf16.mxu0 0
        %1890 = vmatpush1.bf16.msra.mxu0 0
        %1891 = vmatprep.subr.bf16.mxu0 0
        %1892 = vmatpush1.bf16.msra.mxu0 0
        %1893 = vmatprep.subr.bf16.mxu0 0
        %1894 = vmatpush1.bf16.msra.mxu0 0
        %1895 = vmatprep.subr.bf16.mxu0 0
        %1896 = vmatpush1.bf16.msra.mxu0 0
        %1897 = vmatprep.subr.bf16.mxu0 0
        %1898 = vmatpush1.bf16.msra.mxu0 0
        %1899 = vmatprep.subr.bf16.mxu0 0
        %1900 = vmatpush1.bf16.msra.mxu0 0
        %1901 = vmatprep.mubr.bf16.mxu0 0
        %1902 = vmatmul.mubr.bf16.gmra.mrb[0].mxu0 %v1864
        %v1903 = vpop.f32.mrb[0].mxu0
        %v1904 = vadd.f32 0.0, %v1903
        %v1905 = vpop.f32.mrb[0].mxu0
        %v1906 = vpop.f32.mrb[0].mxu0
        %v1907 = vadd.f32 0.0, %v1906
        %v1908 = vpop.f32.mrb[0].mxu0
        %1909 = vdwg.mxu0
        %v1910 = vadd.f32 %v1731, %v1904
        %v1911 = vadd.f32 %v1732, %v1907
        %v1912 = vld [vmem:[%s2] sm:$0xff]
        %v1913 = vld [vmem:[%s2 + $0x8] sm:$0xff]
        %1915 = vset.pattern.permute.xlu0 0
        %1916 = vperm.xlu0 %1915, %v1912
        %v1917 = vpop.permute.xlu0 %1916
        %1920 = vset.pattern.permute.xlu0 0
        %1921 = vperm.xlu0 %1920, %v1913
        %v1922 = vpop.permute.xlu0 %1921
        %v1924 = vadd.f32 %v1910, %v1917
        %v1925 = vadd.f32 %v1911, %v1922
        %vm1926 = vcmp.ge.f32.partialorder %v1924, 0.0
        %vm1927 = vcmp.ge.f32.partialorder %v1925, 0.0
        %v1928 = vmul.f32 %v1924, 0.2
        %v1929 = vmul.f32 %v1925, 0.2
        %v1930 = vsel %vm1926, %v1924, %v1928
        %v1931 = vsel %vm1927, %v1925, %v1929
        %v1932 = vpack.c.bf16 %v1931, %v1930
        %vm1933 = vcmask 523264
        %v1935 = vsel %vm1933, %v1932, 0
        %1937 = vmatprep.subr.bf16.mxu0 0
        %1938 = vmatpush1.bf16.msra.mxu0 %v542
        %1939 = vmatprep.subr.bf16.mxu0 0
        %1940 = vmatpush1.bf16.msra.mxu0 %v543
        %1941 = vmatprep.subr.bf16.mxu0 0
        %1942 = vmatpush1.bf16.msra.mxu0 %v544
        %1943 = vmatprep.subr.bf16.mxu0 0
        %1944 = vmatpush1.bf16.msra.mxu0 %v545
        %1945 = vmatprep.subr.bf16.mxu0 0
        %1946 = vmatpush1.bf16.msra.mxu0 0
        %1947 = vmatprep.subr.bf16.mxu0 0
        %1948 = vmatpush1.bf16.msra.mxu0 0
        %1949 = vmatprep.subr.bf16.mxu0 0
        %1950 = vmatpush1.bf16.msra.mxu0 0
        %1951 = vmatprep.subr.bf16.mxu0 0
        %1952 = vmatpush1.bf16.msra.mxu0 0
        %1953 = vmatprep.subr.bf16.mxu0 0
        %1954 = vmatpush1.bf16.msra.mxu0 0
        %1955 = vmatprep.subr.bf16.mxu0 0
        %1956 = vmatpush1.bf16.msra.mxu0 0
        %1957 = vmatprep.subr.bf16.mxu0 0
        %1958 = vmatpush1.bf16.msra.mxu0 0
        %1959 = vmatprep.subr.bf16.mxu0 0
        %1960 = vmatpush1.bf16.msra.mxu0 0
        %1961 = vmatprep.subr.bf16.mxu0 0
        %1962 = vmatpush1.bf16.msra.mxu0 0
        %1963 = vmatprep.subr.bf16.mxu0 0
        %1964 = vmatpush1.bf16.msra.mxu0 0
        %1965 = vmatprep.subr.bf16.mxu0 0
        %1966 = vmatpush1.bf16.msra.mxu0 0
        %1967 = vmatprep.subr.bf16.mxu0 0
        %1968 = vmatpush1.bf16.msra.mxu0 0
        %1969 = vmatprep.mubr.bf16.mxu0 0
        %1970 = vmatmul.mubr.bf16.gmra.mrb[0].mxu0 %v1935
        %v1971 = vpop.f32.mrb[0].mxu0
        %v1972 = vadd.f32 0.0, %v1971
        %v1973 = vpop.f32.mrb[0].mxu0
        %v1974 = vpop.f32.mrb[0].mxu0
        %v1975 = vadd.f32 0.0, %v1974
        %v1976 = vpop.f32.mrb[0].mxu0
        %1977 = vdwg.mxu0
        %v1978 = vld [vmem:[%s3] sm:$0xf]
        %v1979 = vld [vmem:[%s3 + $0x4] sm:$0xf]
        %v1980 = vld [vmem:[%s3 + $0x8] sm:$0xf]
        %v1981 = vld [vmem:[%s3 + $0xc] sm:$0xf]
        %v1982 = vpack.c.bf16 %v1975, %v1972
        %1983 = vmatprep.subr.bf16.mxu0 0
        %1984 = vmatpush1.bf16.msra.mxu0 %v673
        %1985 = vmatprep.subr.bf16.mxu0 0
        %1986 = vmatpush1.bf16.msra.mxu0 %v674
        %1987 = vmatprep.subr.bf16.mxu0 0
        %1988 = vmatpush1.bf16.msra.mxu0 %v675
        %1989 = vmatprep.subr.bf16.mxu0 0
        %1990 = vmatpush1.bf16.msra.mxu0 %v676
        %1991 = vmatprep.subr.bf16.mxu0 0
        %1992 = vmatpush1.bf16.msra.mxu0 0
        %1993 = vmatprep.subr.bf16.mxu0 0
        %1994 = vmatpush1.bf16.msra.mxu0 0
        %1995 = vmatprep.subr.bf16.mxu0 0
        %1996 = vmatpush1.bf16.msra.mxu0 0
        %1997 = vmatprep.subr.bf16.mxu0 0
        %1998 = vmatpush1.bf16.msra.mxu0 0
        %1999 = vmatprep.subr.bf16.mxu0 0
        %2000 = vmatpush1.bf16.msra.mxu0 0
        %2001 = vmatprep.subr.bf16.mxu0 0
        %2002 = vmatpush1.bf16.msra.mxu0 0
        %2003 = vmatprep.subr.bf16.mxu0 0
        %2004 = vmatpush1.bf16.msra.mxu0 0
        %2005 = vmatprep.subr.bf16.mxu0 0
        %2006 = vmatpush1.bf16.msra.mxu0 0
        %2007 = vmatprep.subr.bf16.mxu0 0
        %2008 = vmatpush1.bf16.msra.mxu0 0
        %2009 = vmatprep.subr.bf16.mxu0 0
        %2010 = vmatpush1.bf16.msra.mxu0 0
        %2011 = vmatprep.subr.bf16.mxu0 0
        %2012 = vmatpush1.bf16.msra.mxu0 0
        %2013 = vmatprep.subr.bf16.mxu0 0
        %2014 = vmatpush1.bf16.msra.mxu0 0
        %2015 = vmatprep.mubr.bf16.mxu0 0
        %2016 = vmatmul.mubr.bf16.gmra.mrb[0].mxu0 %v1935
        %v2017 = vpop.f32.mrb[0].mxu0
        %v2018 = vadd.f32 0.0, %v2017
        %v2019 = vpop.f32.mrb[0].mxu0
        %v2020 = vpop.f32.mrb[0].mxu0
        %v2021 = vadd.f32 0.0, %v2020
        %v2022 = vpop.f32.mrb[0].mxu0
        %2023 = vdwg.mxu0
        %s2024 = scalar_lea.vmem %s3, 16
        %v2025 = vld [vmem:[%s2024] sm:$0xf]
        %v2026 = vld [vmem:[%s2024 + $0x4] sm:$0xf]
        %v2027 = vld [vmem:[%s2024 + $0x8] sm:$0xf]
        %v2028 = vld [vmem:[%s2024 + $0xc] sm:$0xf]
        %v2029 = vpack.c.bf16 %v2021, %v2018
        %v2034 = vunpack.c.l.b16 %v2025
        %v2035 = vunpack.c.l.b16 %v2026
        %v2036 = vunpack.c.l.b16 %v2027
        %v2037 = vunpack.c.l.b16 %v2028
        %v2038 = vpack.c.b16 %v2035, %v2034
        %v2039 = vpack.c.b16 %v2037, %v2036
        %vm2040 = vcmask 130048
        %v2042 = vsel %vm2040, %v2038, 0
        %v2045 = vsel %vm2040, %v2039, 0
        %2047 = vmatprep.subr.bf16.mxu0 0
        %2048 = vmatpush1.bf16.msra.mxu0 %v2029
        %2049 = vmatprep.subr.bf16.mxu0 0
        %2050 = vmatpush1.bf16.msra.mxu0 0
        %2051 = vmatprep.subr.bf16.mxu0 0
        %2052 = vmatpush1.bf16.msra.mxu0 0
        %2053 = vmatprep.subr.bf16.mxu0 0
        %2054 = vmatpush1.bf16.msra.mxu0 0
        %2055 = vmatprep.subr.bf16.mxu0 0
        %2056 = vmatpush1.bf16.msra.mxu0 0
        %2057 = vmatprep.subr.bf16.mxu0 0
        %2058 = vmatpush1.bf16.msra.mxu0 0
        %2059 = vmatprep.subr.bf16.mxu0 0
        %2060 = vmatpush1.bf16.msra.mxu0 0
        %2061 = vmatprep.subr.bf16.mxu0 0
        %2062 = vmatpush1.bf16.msra.mxu0 0
        %2063 = vmatprep.subr.bf16.mxu0 0
        %2064 = vmatpush1.bf16.msra.mxu0 0
        %2065 = vmatprep.subr.bf16.mxu0 0
        %2066 = vmatpush1.bf16.msra.mxu0 0
        %2067 = vmatprep.subr.bf16.mxu0 0
        %2068 = vmatpush1.bf16.msra.mxu0 0
        %2069 = vmatprep.subr.bf16.mxu0 0
        %2070 = vmatpush1.bf16.msra.mxu0 0
        %2071 = vmatprep.subr.bf16.mxu0 0
        %2072 = vmatpush1.bf16.msra.mxu0 0
        %2073 = vmatprep.subr.bf16.mxu0 0
        %2074 = vmatpush1.bf16.msra.mxu0 0
        %2075 = vmatprep.subr.bf16.mxu0 0
        %2076 = vmatpush1.bf16.msra.mxu0 0
        %2077 = vmatprep.subr.bf16.mxu0 0
        %2078 = vmatpush1.bf16.msra.mxu0 0
        %2079 = vmatprep.mubr.bf16.mxu0 0
        %2080 = vmatmul.mubr.bf16.gmra.mrb[0].mxu0 %v2042
        %v2081 = vpop.f32.mrb[0].mxu0
        %v2082 = vadd.f32 0.0, %v2081
        %v2083 = vpop.f32.mrb[0].mxu0
        %v2084 = vpop.f32.mrb[0].mxu0
        %v2085 = vadd.f32 0.0, %v2084
        %v2086 = vpop.f32.mrb[0].mxu0
        %2087 = vmatprep.mubr.bf16.mxu0 0
        %2088 = vmatmul.mubr.bf16.gmra.mrb[0].mxu0 %v2045
        %v2089 = vpop.f32.mrb[0].mxu0
        %v2090 = vadd.f32 0.0, %v2089
        %v2091 = vpop.f32.mrb[0].mxu0
        %v2092 = vpop.f32.mrb[0].mxu0
        %v2093 = vadd.f32 0.0, %v2092
        %v2094 = vpop.f32.mrb[0].mxu0
        %2095 = vdwg.mxu0
        %v2100 = vunpack.c.l.b16 %v1978
        %v2101 = vunpack.c.l.b16 %v1979
        %v2102 = vunpack.c.l.b16 %v1980
        %v2103 = vunpack.c.l.b16 %v1981
        %v2104 = vpack.c.b16 %v2101, %v2100
        %v2105 = vpack.c.b16 %v2103, %v2102
        %v2107 = vsel %vm2040, %v2104, 0
        %v2110 = vsel %vm2040, %v2105, 0
        %2112 = vmatprep.subr.bf16.mxu0 0
        %2113 = vmatpush1.bf16.msra.mxu0 %v1982
        %2114 = vmatprep.subr.bf16.mxu0 0
        %2115 = vmatpush1.bf16.msra.mxu0 0
        %2116 = vmatprep.subr.bf16.mxu0 0
        %2117 = vmatpush1.bf16.msra.mxu0 0
        %2118 = vmatprep.subr.bf16.mxu0 0
        %2119 = vmatpush1.bf16.msra.mxu0 0
        %2120 = vmatprep.subr.bf16.mxu0 0
        %2121 = vmatpush1.bf16.msra.mxu0 0
        %2122 = vmatprep.subr.bf16.mxu0 0
        %2123 = vmatpush1.bf16.msra.mxu0 0
        %2124 = vmatprep.subr.bf16.mxu0 0
        %2125 = vmatpush1.bf16.msra.mxu0 0
        %2126 = vmatprep.subr.bf16.mxu0 0
        %2127 = vmatpush1.bf16.msra.mxu0 0
        %2128 = vmatprep.subr.bf16.mxu0 0
        %2129 = vmatpush1.bf16.msra.mxu0 0
        %2130 = vmatprep.subr.bf16.mxu0 0
        %2131 = vmatpush1.bf16.msra.mxu0 0
        %2132 = vmatprep.subr.bf16.mxu0 0
        %2133 = vmatpush1.bf16.msra.mxu0 0
        %2134 = vmatprep.subr.bf16.mxu0 0
        %2135 = vmatpush1.bf16.msra.mxu0 0
        %2136 = vmatprep.subr.bf16.mxu0 0
        %2137 = vmatpush1.bf16.msra.mxu0 0
        %2138 = vmatprep.subr.bf16.mxu0 0
        %2139 = vmatpush1.bf16.msra.mxu0 0
        %2140 = vmatprep.subr.bf16.mxu0 0
        %2141 = vmatpush1.bf16.msra.mxu0 0
        %2142 = vmatprep.subr.bf16.mxu0 0
        %2143 = vmatpush1.bf16.msra.mxu0 0
        %2144 = vmatprep.mubr.bf16.mxu0 0
        %2145 = vmatmul.mubr.bf16.gmra.mrb[0].mxu0 %v2107
        %v2146 = vpop.f32.mrb[0].mxu0
        %v2147 = vadd.f32 %v2082, %v2146
        %v2148 = vpop.f32.mrb[0].mxu0
        %v2149 = vpop.f32.mrb[0].mxu0
        %v2150 = vadd.f32 %v2085, %v2149
        %v2151 = vpop.f32.mrb[0].mxu0
        %2152 = vmatprep.mubr.bf16.mxu0 0
        %2153 = vmatmul.mubr.bf16.gmra.mrb[0].mxu0 %v2110
        %v2154 = vpop.f32.mrb[0].mxu0
        %v2155 = vadd.f32 %v2090, %v2154
        %v2156 = vpop.f32.mrb[0].mxu0
        %v2157 = vpop.f32.mrb[0].mxu0
        %v2158 = vadd.f32 %v2093, %v2157
        %v2159 = vpop.f32.mrb[0].mxu0
        %2160 = vdwg.mxu0
        %2161 = vmatprep.subr.bf16.mxu0 0
        %2162 = vmatpush1.bf16.msra.mxu0 %v903
        %2163 = vmatprep.subr.bf16.mxu0 0
        %2164 = vmatpush1.bf16.msra.mxu0 %v904
        %2165 = vmatprep.subr.bf16.mxu0 0
        %2166 = vmatpush1.bf16.msra.mxu0 %v905
        %2167 = vmatprep.subr.bf16.mxu0 0
        %2168 = vmatpush1.bf16.msra.mxu0 %v906
        %2169 = vmatprep.subr.bf16.mxu0 0
        %2170 = vmatpush1.bf16.msra.mxu0 0
        %2171 = vmatprep.subr.bf16.mxu0 0
        %2172 = vmatpush1.bf16.msra.mxu0 0
        %2173 = vmatprep.subr.bf16.mxu0 0
        %2174 = vmatpush1.bf16.msra.mxu0 0
        %2175 = vmatprep.subr.bf16.mxu0 0
        %2176 = vmatpush1.bf16.msra.mxu0 0
        %2177 = vmatprep.subr.bf16.mxu0 0
        %2178 = vmatpush1.bf16.msra.mxu0 0
        %2179 = vmatprep.subr.bf16.mxu0 0
        %2180 = vmatpush1.bf16.msra.mxu0 0
        %2181 = vmatprep.subr.bf16.mxu0 0
        %2182 = vmatpush1.bf16.msra.mxu0 0
        %2183 = vmatprep.subr.bf16.mxu0 0
        %2184 = vmatpush1.bf16.msra.mxu0 0
        %2185 = vmatprep.subr.bf16.mxu0 0
        %2186 = vmatpush1.bf16.msra.mxu0 0
        %2187 = vmatprep.subr.bf16.mxu0 0
        %2188 = vmatpush1.bf16.msra.mxu0 0
        %2189 = vmatprep.subr.bf16.mxu0 0
        %2190 = vmatpush1.bf16.msra.mxu0 0
        %2191 = vmatprep.subr.bf16.mxu0 0
        %2192 = vmatpush1.bf16.msra.mxu0 0
        %2193 = vmatprep.mubr.bf16.mxu0 0
        %2194 = vmatmul.mubr.bf16.gmra.mrb[0].mxu0 %v1935
        %v2195 = vpop.f32.mrb[0].mxu0
        %v2196 = vadd.f32 0.0, %v2195
        %v2197 = vpop.f32.mrb[0].mxu0
        %v2198 = vpop.f32.mrb[0].mxu0
        %v2199 = vadd.f32 0.0, %v2198
        %v2200 = vpop.f32.mrb[0].mxu0
        %2201 = vdwg.mxu0
        %s2202 = scalar_lea.vmem %s3, 32
        %v2203 = vld [vmem:[%s2202] sm:$0xf]
        %v2204 = vld [vmem:[%s2202 + $0x4] sm:$0xf]
        %v2205 = vld [vmem:[%s2202 + $0x8] sm:$0xf]
        %v2206 = vld [vmem:[%s2202 + $0xc] sm:$0xf]
        %v2207 = vpack.c.bf16 %v2199, %v2196
        %v2212 = vunpack.c.l.b16 %v2203
        %v2213 = vunpack.c.l.b16 %v2204
        %v2214 = vunpack.c.l.b16 %v2205
        %v2215 = vunpack.c.l.b16 %v2206
        %v2216 = vpack.c.b16 %v2213, %v2212
        %v2217 = vpack.c.b16 %v2215, %v2214
        %v2219 = vsel %vm2040, %v2216, 0
        %v2222 = vsel %vm2040, %v2217, 0
        %2224 = vmatprep.subr.bf16.mxu0 0
        %2225 = vmatpush1.bf16.msra.mxu0 %v2207
        %2226 = vmatprep.subr.bf16.mxu0 0
        %2227 = vmatpush1.bf16.msra.mxu0 0
        %2228 = vmatprep.subr.bf16.mxu0 0
        %2229 = vmatpush1.bf16.msra.mxu0 0
        %2230 = vmatprep.subr.bf16.mxu0 0
        %2231 = vmatpush1.bf16.msra.mxu0 0
        %2232 = vmatprep.subr.bf16.mxu0 0
        %2233 = vmatpush1.bf16.msra.mxu0 0
        %2234 = vmatprep.subr.bf16.mxu0 0
        %2235 = vmatpush1.bf16.msra.mxu0 0
        %2236 = vmatprep.subr.bf16.mxu0 0
        %2237 = vmatpush1.bf16.msra.mxu0 0
        %2238 = vmatprep.subr.bf16.mxu0 0
        %2239 = vmatpush1.bf16.msra.mxu0 0
        %2240 = vmatprep.subr.bf16.mxu0 0
        %2241 = vmatpush1.bf16.msra.mxu0 0
        %2242 = vmatprep.subr.bf16.mxu0 0
        %2243 = vmatpush1.bf16.msra.mxu0 0
        %2244 = vmatprep.subr.bf16.mxu0 0
        %2245 = vmatpush1.bf16.msra.mxu0 0
        %2246 = vmatprep.subr.bf16.mxu0 0
        %2247 = vmatpush1.bf16.msra.mxu0 0
        %2248 = vmatprep.subr.bf16.mxu0 0
        %2249 = vmatpush1.bf16.msra.mxu0 0
        %2250 = vmatprep.subr.bf16.mxu0 0
        %2251 = vmatpush1.bf16.msra.mxu0 0
        %2252 = vmatprep.subr.bf16.mxu0 0
        %2253 = vmatpush1.bf16.msra.mxu0 0
        %2254 = vmatprep.subr.bf16.mxu0 0
        %2255 = vmatpush1.bf16.msra.mxu0 0
        %2256 = vmatprep.mubr.bf16.mxu0 0
        %2257 = vmatmul.mubr.bf16.gmra.mrb[0].mxu0 %v2219
        %v2258 = vpop.f32.mrb[0].mxu0
        %v2259 = vadd.f32 0.0, %v2258
        %v2260 = vpop.f32.mrb[0].mxu0
        %v2261 = vpop.f32.mrb[0].mxu0
        %v2262 = vadd.f32 0.0, %v2261
        %v2263 = vpop.f32.mrb[0].mxu0
        %2264 = vmatprep.mubr.bf16.mxu0 0
        %2265 = vmatmul.mubr.bf16.gmra.mrb[0].mxu0 %v2222
        %v2266 = vpop.f32.mrb[0].mxu0
        %v2267 = vadd.f32 0.0, %v2266
        %v2268 = vpop.f32.mrb[0].mxu0
        %v2269 = vpop.f32.mrb[0].mxu0
        %v2270 = vadd.f32 0.0, %v2269
        %v2271 = vpop.f32.mrb[0].mxu0
        %2272 = vdwg.mxu0
        %v2273 = vadd.f32 %v2147, %v2259
        %v2274 = vadd.f32 %v2150, %v2262
        %v2275 = vadd.f32 %v2155, %v2267
        %v2276 = vadd.f32 %v2158, %v2270
        %2277 = vmatprep.subr.bf16.mxu0 0
        %2278 = vmatpush1.bf16.msra.mxu0 %v1082
        %2279 = vmatprep.subr.bf16.mxu0 0
        %2280 = vmatpush1.bf16.msra.mxu0 %v1083
        %2281 = vmatprep.subr.bf16.mxu0 0
        %2282 = vmatpush1.bf16.msra.mxu0 %v1084
        %2283 = vmatprep.subr.bf16.mxu0 0
        %2284 = vmatpush1.bf16.msra.mxu0 %v1085
        %2285 = vmatprep.subr.bf16.mxu0 0
        %2286 = vmatpush1.bf16.msra.mxu0 0
        %2287 = vmatprep.subr.bf16.mxu0 0
        %2288 = vmatpush1.bf16.msra.mxu0 0
        %2289 = vmatprep.subr.bf16.mxu0 0
        %2290 = vmatpush1.bf16.msra.mxu0 0
        %2291 = vmatprep.subr.bf16.mxu0 0
        %2292 = vmatpush1.bf16.msra.mxu0 0
        %2293 = vmatprep.subr.bf16.mxu0 0
        %2294 = vmatpush1.bf16.msra.mxu0 0
        %2295 = vmatprep.subr.bf16.mxu0 0
        %2296 = vmatpush1.bf16.msra.mxu0 0
        %2297 = vmatprep.subr.bf16.mxu0 0
        %2298 = vmatpush1.bf16.msra.mxu0 0
        %2299 = vmatprep.subr.bf16.mxu0 0
        %2300 = vmatpush1.bf16.msra.mxu0 0
        %2301 = vmatprep.subr.bf16.mxu0 0
        %2302 = vmatpush1.bf16.msra.mxu0 0
        %2303 = vmatprep.subr.bf16.mxu0 0
        %2304 = vmatpush1.bf16.msra.mxu0 0
        %2305 = vmatprep.subr.bf16.mxu0 0
        %2306 = vmatpush1.bf16.msra.mxu0 0
        %2307 = vmatprep.subr.bf16.mxu0 0
        %2308 = vmatpush1.bf16.msra.mxu0 0
        %2309 = vmatprep.mubr.bf16.mxu0 0
        %2310 = vmatmul.mubr.bf16.gmra.mrb[0].mxu0 %v1935
        %v2311 = vpop.f32.mrb[0].mxu0
        %v2312 = vadd.f32 0.0, %v2311
        %v2313 = vpop.f32.mrb[0].mxu0
        %v2314 = vpop.f32.mrb[0].mxu0
        %v2315 = vadd.f32 0.0, %v2314
        %v2316 = vpop.f32.mrb[0].mxu0
        %2317 = vdwg.mxu0
        %s2318 = scalar_lea.vmem %s3, 48
        %v2319 = vld [vmem:[%s2318] sm:$0xf]
        %v2320 = vld [vmem:[%s2318 + $0x4] sm:$0xf]
        %v2321 = vld [vmem:[%s2318 + $0x8] sm:$0xf]
        %v2322 = vld [vmem:[%s2318 + $0xc] sm:$0xf]
        %v2323 = vpack.c.bf16 %v2315, %v2312
        %v2328 = vunpack.c.l.b16 %v2319
        %v2329 = vunpack.c.l.b16 %v2320
        %v2330 = vunpack.c.l.b16 %v2321
        %v2331 = vunpack.c.l.b16 %v2322
        %v2332 = vpack.c.b16 %v2329, %v2328
        %v2333 = vpack.c.b16 %v2331, %v2330
        %v2335 = vsel %vm2040, %v2332, 0
        %v2338 = vsel %vm2040, %v2333, 0
        %2340 = vmatprep.subr.bf16.mxu0 0
        %2341 = vmatpush1.bf16.msra.mxu0 %v2323
        %2342 = vmatprep.subr.bf16.mxu0 0
        %2343 = vmatpush1.bf16.msra.mxu0 0
        %2344 = vmatprep.subr.bf16.mxu0 0
        %2345 = vmatpush1.bf16.msra.mxu0 0
        %2346 = vmatprep.subr.bf16.mxu0 0
        %2347 = vmatpush1.bf16.msra.mxu0 0
        %2348 = vmatprep.subr.bf16.mxu0 0
        %2349 = vmatpush1.bf16.msra.mxu0 0
        %2350 = vmatprep.subr.bf16.mxu0 0
        %2351 = vmatpush1.bf16.msra.mxu0 0
        %2352 = vmatprep.subr.bf16.mxu0 0
        %2353 = vmatpush1.bf16.msra.mxu0 0
        %2354 = vmatprep.subr.bf16.mxu0 0
        %2355 = vmatpush1.bf16.msra.mxu0 0
        %2356 = vmatprep.subr.bf16.mxu0 0
        %2357 = vmatpush1.bf16.msra.mxu0 0
        %2358 = vmatprep.subr.bf16.mxu0 0
        %2359 = vmatpush1.bf16.msra.mxu0 0
        %2360 = vmatprep.subr.bf16.mxu0 0
        %2361 = vmatpush1.bf16.msra.mxu0 0
        %2362 = vmatprep.subr.bf16.mxu0 0
        %2363 = vmatpush1.bf16.msra.mxu0 0
        %2364 = vmatprep.subr.bf16.mxu0 0
        %2365 = vmatpush1.bf16.msra.mxu0 0
        %2366 = vmatprep.subr.bf16.mxu0 0
        %2367 = vmatpush1.bf16.msra.mxu0 0
        %2368 = vmatprep.subr.bf16.mxu0 0
        %2369 = vmatpush1.bf16.msra.mxu0 0
        %2370 = vmatprep.subr.bf16.mxu0 0
        %2371 = vmatpush1.bf16.msra.mxu0 0
        %2372 = vmatprep.mubr.bf16.mxu0 0
        %2373 = vmatmul.mubr.bf16.gmra.mrb[0].mxu0 %v2335
        %v2374 = vpop.f32.mrb[0].mxu0
        %v2375 = vadd.f32 0.0, %v2374
        %v2376 = vpop.f32.mrb[0].mxu0
        %v2377 = vpop.f32.mrb[0].mxu0
        %v2378 = vadd.f32 0.0, %v2377
        %v2379 = vpop.f32.mrb[0].mxu0
        %2380 = vmatprep.mubr.bf16.mxu0 0
        %2381 = vmatmul.mubr.bf16.gmra.mrb[0].mxu0 %v2338
        %v2382 = vpop.f32.mrb[0].mxu0
        %v2383 = vadd.f32 0.0, %v2382
        %v2384 = vpop.f32.mrb[0].mxu0
        %v2385 = vpop.f32.mrb[0].mxu0
        %v2386 = vadd.f32 0.0, %v2385
        %v2387 = vpop.f32.mrb[0].mxu0
        %2388 = vdwg.mxu0
        %v2389 = vadd.f32 %v2273, %v2375
        %v2390 = vadd.f32 %v2274, %v2378
        %v2391 = vadd.f32 %v2275, %v2383
        %v2392 = vadd.f32 %v2276, %v2386
        %2393 = vmatprep.subr.bf16.mxu0 0
        %2394 = vmatpush1.bf16.msra.mxu0 %v1261
        %2395 = vmatprep.subr.bf16.mxu0 0
        %2396 = vmatpush1.bf16.msra.mxu0 %v1262
        %2397 = vmatprep.subr.bf16.mxu0 0
        %2398 = vmatpush1.bf16.msra.mxu0 %v1263
        %2399 = vmatprep.subr.bf16.mxu0 0
        %2400 = vmatpush1.bf16.msra.mxu0 %v1264
        %2401 = vmatprep.subr.bf16.mxu0 0
        %2402 = vmatpush1.bf16.msra.mxu0 0
        %2403 = vmatprep.subr.bf16.mxu0 0
        %2404 = vmatpush1.bf16.msra.mxu0 0
        %2405 = vmatprep.subr.bf16.mxu0 0
        %2406 = vmatpush1.bf16.msra.mxu0 0
        %2407 = vmatprep.subr.bf16.mxu0 0
        %2408 = vmatpush1.bf16.msra.mxu0 0
        %2409 = vmatprep.subr.bf16.mxu0 0
        %2410 = vmatpush1.bf16.msra.mxu0 0
        %2411 = vmatprep.subr.bf16.mxu0 0
        %2412 = vmatpush1.bf16.msra.mxu0 0
        %2413 = vmatprep.subr.bf16.mxu0 0
        %2414 = vmatpush1.bf16.msra.mxu0 0
        %2415 = vmatprep.subr.bf16.mxu0 0
        %2416 = vmatpush1.bf16.msra.mxu0 0
        %2417 = vmatprep.subr.bf16.mxu0 0
        %2418 = vmatpush1.bf16.msra.mxu0 0
        %2419 = vmatprep.subr.bf16.mxu0 0
        %2420 = vmatpush1.bf16.msra.mxu0 0
        %2421 = vmatprep.subr.bf16.mxu0 0
        %2422 = vmatpush1.bf16.msra.mxu0 0
        %2423 = vmatprep.subr.bf16.mxu0 0
        %2424 = vmatpush1.bf16.msra.mxu0 0
        %2425 = vmatprep.mubr.bf16.mxu0 0
        %2426 = vmatmul.mubr.bf16.gmra.mrb[0].mxu0 %v1935
        %v2427 = vpop.f32.mrb[0].mxu0
        %v2428 = vadd.f32 0.0, %v2427
        %v2429 = vpop.f32.mrb[0].mxu0
        %v2430 = vpop.f32.mrb[0].mxu0
        %v2431 = vadd.f32 0.0, %v2430
        %v2432 = vpop.f32.mrb[0].mxu0
        %2433 = vdwg.mxu0
        %s2434 = scalar_lea.vmem %s3, 64
        %v2435 = vld [vmem:[%s2434] sm:$0xf]
        %v2436 = vld [vmem:[%s2434 + $0x4] sm:$0xf]
        %v2437 = vld [vmem:[%s2434 + $0x8] sm:$0xf]
        %v2438 = vld [vmem:[%s2434 + $0xc] sm:$0xf]
        %v2439 = vpack.c.bf16 %v2431, %v2428
        %v2444 = vunpack.c.l.b16 %v2435
        %v2445 = vunpack.c.l.b16 %v2436
        %v2446 = vunpack.c.l.b16 %v2437
        %v2447 = vunpack.c.l.b16 %v2438
        %v2448 = vpack.c.b16 %v2445, %v2444
        %v2449 = vpack.c.b16 %v2447, %v2446
        %v2451 = vsel %vm2040, %v2448, 0
        %v2454 = vsel %vm2040, %v2449, 0
        %2456 = vmatprep.subr.bf16.mxu0 0
        %2457 = vmatpush1.bf16.msra.mxu0 %v2439
        %2458 = vmatprep.subr.bf16.mxu0 0
        %2459 = vmatpush1.bf16.msra.mxu0 0
        %2460 = vmatprep.subr.bf16.mxu0 0
        %2461 = vmatpush1.bf16.msra.mxu0 0
        %2462 = vmatprep.subr.bf16.mxu0 0
        %2463 = vmatpush1.bf16.msra.mxu0 0
        %2464 = vmatprep.subr.bf16.mxu0 0
        %2465 = vmatpush1.bf16.msra.mxu0 0
        %2466 = vmatprep.subr.bf16.mxu0 0
        %2467 = vmatpush1.bf16.msra.mxu0 0
        %2468 = vmatprep.subr.bf16.mxu0 0
        %2469 = vmatpush1.bf16.msra.mxu0 0
        %2470 = vmatprep.subr.bf16.mxu0 0
        %2471 = vmatpush1.bf16.msra.mxu0 0
        %2472 = vmatprep.subr.bf16.mxu0 0
        %2473 = vmatpush1.bf16.msra.mxu0 0
        %2474 = vmatprep.subr.bf16.mxu0 0
        %2475 = vmatpush1.bf16.msra.mxu0 0
        %2476 = vmatprep.subr.bf16.mxu0 0
        %2477 = vmatpush1.bf16.msra.mxu0 0
        %2478 = vmatprep.subr.bf16.mxu0 0
        %2479 = vmatpush1.bf16.msra.mxu0 0
        %2480 = vmatprep.subr.bf16.mxu0 0
        %2481 = vmatpush1.bf16.msra.mxu0 0
        %2482 = vmatprep.subr.bf16.mxu0 0
        %2483 = vmatpush1.bf16.msra.mxu0 0
        %2484 = vmatprep.subr.bf16.mxu0 0
        %2485 = vmatpush1.bf16.msra.mxu0 0
        %2486 = vmatprep.subr.bf16.mxu0 0
        %2487 = vmatpush1.bf16.msra.mxu0 0
        %2488 = vmatprep.mubr.bf16.mxu0 0
        %2489 = vmatmul.mubr.bf16.gmra.mrb[0].mxu0 %v2451
        %v2490 = vpop.f32.mrb[0].mxu0
        %v2491 = vadd.f32 0.0, %v2490
        %v2492 = vpop.f32.mrb[0].mxu0
        %v2493 = vpop.f32.mrb[0].mxu0
        %v2494 = vadd.f32 0.0, %v2493
        %v2495 = vpop.f32.mrb[0].mxu0
        %2496 = vmatprep.mubr.bf16.mxu0 0
        %2497 = vmatmul.mubr.bf16.gmra.mrb[0].mxu0 %v2454
        %v2498 = vpop.f32.mrb[0].mxu0
        %v2499 = vadd.f32 0.0, %v2498
        %v2500 = vpop.f32.mrb[0].mxu0
        %v2501 = vpop.f32.mrb[0].mxu0
        %v2502 = vadd.f32 0.0, %v2501
        %v2503 = vpop.f32.mrb[0].mxu0
        %2504 = vdwg.mxu0
        %v2505 = vadd.f32 %v2389, %v2491
        %v2506 = vadd.f32 %v2390, %v2494
        %v2507 = vadd.f32 %v2391, %v2499
        %v2508 = vadd.f32 %v2392, %v2502
        %2509 = vmatprep.subr.bf16.mxu0 0
        %2510 = vmatpush1.bf16.msra.mxu0 %v1440
        %2511 = vmatprep.subr.bf16.mxu0 0
        %2512 = vmatpush1.bf16.msra.mxu0 %v1441
        %2513 = vmatprep.subr.bf16.mxu0 0
        %2514 = vmatpush1.bf16.msra.mxu0 %v1442
        %2515 = vmatprep.subr.bf16.mxu0 0
        %2516 = vmatpush1.bf16.msra.mxu0 %v1443
        %2517 = vmatprep.subr.bf16.mxu0 0
        %2518 = vmatpush1.bf16.msra.mxu0 0
        %2519 = vmatprep.subr.bf16.mxu0 0
        %2520 = vmatpush1.bf16.msra.mxu0 0
        %2521 = vmatprep.subr.bf16.mxu0 0
        %2522 = vmatpush1.bf16.msra.mxu0 0
        %2523 = vmatprep.subr.bf16.mxu0 0
        %2524 = vmatpush1.bf16.msra.mxu0 0
        %2525 = vmatprep.subr.bf16.mxu0 0
        %2526 = vmatpush1.bf16.msra.mxu0 0
        %2527 = vmatprep.subr.bf16.mxu0 0
        %2528 = vmatpush1.bf16.msra.mxu0 0
        %2529 = vmatprep.subr.bf16.mxu0 0
        %2530 = vmatpush1.bf16.msra.mxu0 0
        %2531 = vmatprep.subr.bf16.mxu0 0
        %2532 = vmatpush1.bf16.msra.mxu0 0
        %2533 = vmatprep.subr.bf16.mxu0 0
        %2534 = vmatpush1.bf16.msra.mxu0 0
        %2535 = vmatprep.subr.bf16.mxu0 0
        %2536 = vmatpush1.bf16.msra.mxu0 0
        %2537 = vmatprep.subr.bf16.mxu0 0
        %2538 = vmatpush1.bf16.msra.mxu0 0
        %2539 = vmatprep.subr.bf16.mxu0 0
        %2540 = vmatpush1.bf16.msra.mxu0 0
        %2541 = vmatprep.mubr.bf16.mxu0 0
        %2542 = vmatmul.mubr.bf16.gmra.mrb[0].mxu0 %v1935
        %v2543 = vpop.f32.mrb[0].mxu0
        %v2544 = vadd.f32 0.0, %v2543
        %v2545 = vpop.f32.mrb[0].mxu0
        %v2546 = vpop.f32.mrb[0].mxu0
        %v2547 = vadd.f32 0.0, %v2546
        %v2548 = vpop.f32.mrb[0].mxu0
        %2549 = vdwg.mxu0
        %s2550 = scalar_lea.vmem %s3, 80
        %v2551 = vld [vmem:[%s2550] sm:$0xf]
        %v2552 = vld [vmem:[%s2550 + $0x4] sm:$0xf]
        %v2553 = vld [vmem:[%s2550 + $0x8] sm:$0xf]
        %v2554 = vld [vmem:[%s2550 + $0xc] sm:$0xf]
        %v2555 = vpack.c.bf16 %v2547, %v2544
        %v2560 = vunpack.c.l.b16 %v2551
        %v2561 = vunpack.c.l.b16 %v2552
        %v2562 = vunpack.c.l.b16 %v2553
        %v2563 = vunpack.c.l.b16 %v2554
        %v2564 = vpack.c.b16 %v2561, %v2560
        %v2565 = vpack.c.b16 %v2563, %v2562
        %v2567 = vsel %vm2040, %v2564, 0
        %v2570 = vsel %vm2040, %v2565, 0
        %2572 = vmatprep.subr.bf16.mxu0 0
        %2573 = vmatpush1.bf16.msra.mxu0 %v2555
        %2574 = vmatprep.subr.bf16.mxu0 0
        %2575 = vmatpush1.bf16.msra.mxu0 0
        %2576 = vmatprep.subr.bf16.mxu0 0
        %2577 = vmatpush1.bf16.msra.mxu0 0
        %2578 = vmatprep.subr.bf16.mxu0 0
        %2579 = vmatpush1.bf16.msra.mxu0 0
        %2580 = vmatprep.subr.bf16.mxu0 0
        %2581 = vmatpush1.bf16.msra.mxu0 0
        %2582 = vmatprep.subr.bf16.mxu0 0
        %2583 = vmatpush1.bf16.msra.mxu0 0
        %2584 = vmatprep.subr.bf16.mxu0 0
        %2585 = vmatpush1.bf16.msra.mxu0 0
        %2586 = vmatprep.subr.bf16.mxu0 0
        %2587 = vmatpush1.bf16.msra.mxu0 0
        %2588 = vmatprep.subr.bf16.mxu0 0
        %2589 = vmatpush1.bf16.msra.mxu0 0
        %2590 = vmatprep.subr.bf16.mxu0 0
        %2591 = vmatpush1.bf16.msra.mxu0 0
        %2592 = vmatprep.subr.bf16.mxu0 0
        %2593 = vmatpush1.bf16.msra.mxu0 0
        %2594 = vmatprep.subr.bf16.mxu0 0
        %2595 = vmatpush1.bf16.msra.mxu0 0
        %2596 = vmatprep.subr.bf16.mxu0 0
        %2597 = vmatpush1.bf16.msra.mxu0 0
        %2598 = vmatprep.subr.bf16.mxu0 0
        %2599 = vmatpush1.bf16.msra.mxu0 0
        %2600 = vmatprep.subr.bf16.mxu0 0
        %2601 = vmatpush1.bf16.msra.mxu0 0
        %2602 = vmatprep.subr.bf16.mxu0 0
        %2603 = vmatpush1.bf16.msra.mxu0 0
        %2604 = vmatprep.mubr.bf16.mxu0 0
        %2605 = vmatmul.mubr.bf16.gmra.mrb[0].mxu0 %v2567
        %v2606 = vpop.f32.mrb[0].mxu0
        %v2607 = vadd.f32 0.0, %v2606
        %v2608 = vpop.f32.mrb[0].mxu0
        %v2609 = vpop.f32.mrb[0].mxu0
        %v2610 = vadd.f32 0.0, %v2609
        %v2611 = vpop.f32.mrb[0].mxu0
        %2612 = vmatprep.mubr.bf16.mxu0 0
        %2613 = vmatmul.mubr.bf16.gmra.mrb[0].mxu0 %v2570
        %v2614 = vpop.f32.mrb[0].mxu0
        %v2615 = vadd.f32 0.0, %v2614
        %v2616 = vpop.f32.mrb[0].mxu0
        %v2617 = vpop.f32.mrb[0].mxu0
        %v2618 = vadd.f32 0.0, %v2617
        %v2619 = vpop.f32.mrb[0].mxu0
        %2620 = vdwg.mxu0
        %v2621 = vadd.f32 %v2505, %v2607
        %v2622 = vadd.f32 %v2506, %v2610
        %v2623 = vadd.f32 %v2507, %v2615
        %v2624 = vadd.f32 %v2508, %v2618
        %2625 = vmatprep.subr.bf16.mxu0 0
        %2626 = vmatpush1.bf16.msra.mxu0 %v1619
        %2627 = vmatprep.subr.bf16.mxu0 0
        %2628 = vmatpush1.bf16.msra.mxu0 %v1620
        %2629 = vmatprep.subr.bf16.mxu0 0
        %2630 = vmatpush1.bf16.msra.mxu0 %v1621
        %2631 = vmatprep.subr.bf16.mxu0 0
        %2632 = vmatpush1.bf16.msra.mxu0 %v1622
        %2633 = vmatprep.subr.bf16.mxu0 0
        %2634 = vmatpush1.bf16.msra.mxu0 0
        %2635 = vmatprep.subr.bf16.mxu0 0
        %2636 = vmatpush1.bf16.msra.mxu0 0
        %2637 = vmatprep.subr.bf16.mxu0 0
        %2638 = vmatpush1.bf16.msra.mxu0 0
        %2639 = vmatprep.subr.bf16.mxu0 0
        %2640 = vmatpush1.bf16.msra.mxu0 0
        %2641 = vmatprep.subr.bf16.mxu0 0
        %2642 = vmatpush1.bf16.msra.mxu0 0
        %2643 = vmatprep.subr.bf16.mxu0 0
        %2644 = vmatpush1.bf16.msra.mxu0 0
        %2645 = vmatprep.subr.bf16.mxu0 0
        %2646 = vmatpush1.bf16.msra.mxu0 0
        %2647 = vmatprep.subr.bf16.mxu0 0
        %2648 = vmatpush1.bf16.msra.mxu0 0
        %2649 = vmatprep.subr.bf16.mxu0 0
        %2650 = vmatpush1.bf16.msra.mxu0 0
        %2651 = vmatprep.subr.bf16.mxu0 0
        %2652 = vmatpush1.bf16.msra.mxu0 0
        %2653 = vmatprep.subr.bf16.mxu0 0
        %2654 = vmatpush1.bf16.msra.mxu0 0
        %2655 = vmatprep.subr.bf16.mxu0 0
        %2656 = vmatpush1.bf16.msra.mxu0 0
        %2657 = vmatprep.mubr.bf16.mxu0 0
        %2658 = vmatmul.mubr.bf16.gmra.mrb[0].mxu0 %v1935
        %v2659 = vpop.f32.mrb[0].mxu0
        %v2660 = vadd.f32 0.0, %v2659
        %v2661 = vpop.f32.mrb[0].mxu0
        %v2662 = vpop.f32.mrb[0].mxu0
        %v2663 = vadd.f32 0.0, %v2662
        %v2664 = vpop.f32.mrb[0].mxu0
        %2665 = vdwg.mxu0
        %s2666 = scalar_lea.vmem %s3, 96
        %v2667 = vld [vmem:[%s2666] sm:$0xf]
        %v2668 = vld [vmem:[%s2666 + $0x4] sm:$0xf]
        %v2669 = vld [vmem:[%s2666 + $0x8] sm:$0xf]
        %v2670 = vld [vmem:[%s2666 + $0xc] sm:$0xf]
        %v2671 = vpack.c.bf16 %v2663, %v2660
        %v2676 = vunpack.c.l.b16 %v2667
        %v2677 = vunpack.c.l.b16 %v2668
        %v2678 = vunpack.c.l.b16 %v2669
        %v2679 = vunpack.c.l.b16 %v2670
        %v2680 = vpack.c.b16 %v2677, %v2676
        %v2681 = vpack.c.b16 %v2679, %v2678
        %v2683 = vsel %vm2040, %v2680, 0
        %v2686 = vsel %vm2040, %v2681, 0
        %2688 = vmatprep.subr.bf16.mxu0 0
        %2689 = vmatpush1.bf16.msra.mxu0 %v2671
        %2690 = vmatprep.subr.bf16.mxu0 0
        %2691 = vmatpush1.bf16.msra.mxu0 0
        %2692 = vmatprep.subr.bf16.mxu0 0
        %2693 = vmatpush1.bf16.msra.mxu0 0
        %2694 = vmatprep.subr.bf16.mxu0 0
        %2695 = vmatpush1.bf16.msra.mxu0 0
        %2696 = vmatprep.subr.bf16.mxu0 0
        %2697 = vmatpush1.bf16.msra.mxu0 0
        %2698 = vmatprep.subr.bf16.mxu0 0
        %2699 = vmatpush1.bf16.msra.mxu0 0
        %2700 = vmatprep.subr.bf16.mxu0 0
        %2701 = vmatpush1.bf16.msra.mxu0 0
        %2702 = vmatprep.subr.bf16.mxu0 0
        %2703 = vmatpush1.bf16.msra.mxu0 0
        %2704 = vmatprep.subr.bf16.mxu0 0
        %2705 = vmatpush1.bf16.msra.mxu0 0
        %2706 = vmatprep.subr.bf16.mxu0 0
        %2707 = vmatpush1.bf16.msra.mxu0 0
        %2708 = vmatprep.subr.bf16.mxu0 0
        %2709 = vmatpush1.bf16.msra.mxu0 0
        %2710 = vmatprep.subr.bf16.mxu0 0
        %2711 = vmatpush1.bf16.msra.mxu0 0
        %2712 = vmatprep.subr.bf16.mxu0 0
        %2713 = vmatpush1.bf16.msra.mxu0 0
        %2714 = vmatprep.subr.bf16.mxu0 0
        %2715 = vmatpush1.bf16.msra.mxu0 0
        %2716 = vmatprep.subr.bf16.mxu0 0
        %2717 = vmatpush1.bf16.msra.mxu0 0
        %2718 = vmatprep.subr.bf16.mxu0 0
        %2719 = vmatpush1.bf16.msra.mxu0 0
        %2720 = vmatprep.mubr.bf16.mxu0 0
        %2721 = vmatmul.mubr.bf16.gmra.mrb[0].mxu0 %v2683
        %v2722 = vpop.f32.mrb[0].mxu0
        %v2723 = vadd.f32 0.0, %v2722
        %v2724 = vpop.f32.mrb[0].mxu0
        %v2725 = vpop.f32.mrb[0].mxu0
        %v2726 = vadd.f32 0.0, %v2725
        %v2727 = vpop.f32.mrb[0].mxu0
        %2728 = vmatprep.mubr.bf16.mxu0 0
        %2729 = vmatmul.mubr.bf16.gmra.mrb[0].mxu0 %v2686
        %v2730 = vpop.f32.mrb[0].mxu0
        %v2731 = vadd.f32 0.0, %v2730
        %v2732 = vpop.f32.mrb[0].mxu0
        %v2733 = vpop.f32.mrb[0].mxu0
        %v2734 = vadd.f32 0.0, %v2733
        %v2735 = vpop.f32.mrb[0].mxu0
        %2736 = vdwg.mxu0
        %v2737 = vadd.f32 %v2621, %v2723
        %v2738 = vadd.f32 %v2622, %v2726
        %v2739 = vadd.f32 %v2623, %v2731
        %v2740 = vadd.f32 %v2624, %v2734
        %2741 = vmatprep.subr.bf16.mxu0 0
        %2742 = vmatpush1.bf16.msra.mxu0 %v1798
        %2743 = vmatprep.subr.bf16.mxu0 0
        %2744 = vmatpush1.bf16.msra.mxu0 %v1799
        %2745 = vmatprep.subr.bf16.mxu0 0
        %2746 = vmatpush1.bf16.msra.mxu0 %v1800
        %2747 = vmatprep.subr.bf16.mxu0 0
        %2748 = vmatpush1.bf16.msra.mxu0 %v1801
        %2749 = vmatprep.subr.bf16.mxu0 0
        %2750 = vmatpush1.bf16.msra.mxu0 0
        %2751 = vmatprep.subr.bf16.mxu0 0
        %2752 = vmatpush1.bf16.msra.mxu0 0
        %2753 = vmatprep.subr.bf16.mxu0 0
        %2754 = vmatpush1.bf16.msra.mxu0 0
        %2755 = vmatprep.subr.bf16.mxu0 0
        %2756 = vmatpush1.bf16.msra.mxu0 0
        %2757 = vmatprep.subr.bf16.mxu0 0
        %2758 = vmatpush1.bf16.msra.mxu0 0
        %2759 = vmatprep.subr.bf16.mxu0 0
        %2760 = vmatpush1.bf16.msra.mxu0 0
        %2761 = vmatprep.subr.bf16.mxu0 0
        %2762 = vmatpush1.bf16.msra.mxu0 0
        %2763 = vmatprep.subr.bf16.mxu0 0
        %2764 = vmatpush1.bf16.msra.mxu0 0
        %2765 = vmatprep.subr.bf16.mxu0 0
        %2766 = vmatpush1.bf16.msra.mxu0 0
        %2767 = vmatprep.subr.bf16.mxu0 0
        %2768 = vmatpush1.bf16.msra.mxu0 0
        %2769 = vmatprep.subr.bf16.mxu0 0
        %2770 = vmatpush1.bf16.msra.mxu0 0
        %2771 = vmatprep.subr.bf16.mxu0 0
        %2772 = vmatpush1.bf16.msra.mxu0 0
        %2773 = vmatprep.mubr.bf16.mxu0 0
        %2774 = vmatmul.mubr.bf16.gmra.mrb[0].mxu0 %v1935
        %v2775 = vpop.f32.mrb[0].mxu0
        %v2776 = vadd.f32 0.0, %v2775
        %v2777 = vpop.f32.mrb[0].mxu0
        %v2778 = vpop.f32.mrb[0].mxu0
        %v2779 = vadd.f32 0.0, %v2778
        %v2780 = vpop.f32.mrb[0].mxu0
        %2781 = vdwg.mxu0
        %s2782 = scalar_lea.vmem %s3, 112
        %v2783 = vld [vmem:[%s2782] sm:$0xf]
        %v2784 = vld [vmem:[%s2782 + $0x4] sm:$0xf]
        %v2785 = vld [vmem:[%s2782 + $0x8] sm:$0xf]
        %v2786 = vld [vmem:[%s2782 + $0xc] sm:$0xf]
        %v2787 = vpack.c.bf16 %v2779, %v2776
        %v2792 = vunpack.c.l.b16 %v2783
        %v2793 = vunpack.c.l.b16 %v2784
        %v2794 = vunpack.c.l.b16 %v2785
        %v2795 = vunpack.c.l.b16 %v2786
        %v2796 = vpack.c.b16 %v2793, %v2792
        %v2797 = vpack.c.b16 %v2795, %v2794
        %v2799 = vsel %vm2040, %v2796, 0
        %v2802 = vsel %vm2040, %v2797, 0
        %2804 = vmatprep.subr.bf16.mxu0 0
        %2805 = vmatpush1.bf16.msra.mxu0 %v2787
        %2806 = vmatprep.subr.bf16.mxu0 0
        %2807 = vmatpush1.bf16.msra.mxu0 0
        %2808 = vmatprep.subr.bf16.mxu0 0
        %2809 = vmatpush1.bf16.msra.mxu0 0
        %2810 = vmatprep.subr.bf16.mxu0 0
        %2811 = vmatpush1.bf16.msra.mxu0 0
        %2812 = vmatprep.subr.bf16.mxu0 0
        %2813 = vmatpush1.bf16.msra.mxu0 0
        %2814 = vmatprep.subr.bf16.mxu0 0
        %2815 = vmatpush1.bf16.msra.mxu0 0
        %2816 = vmatprep.subr.bf16.mxu0 0
        %2817 = vmatpush1.bf16.msra.mxu0 0
        %2818 = vmatprep.subr.bf16.mxu0 0
        %2819 = vmatpush1.bf16.msra.mxu0 0
        %2820 = vmatprep.subr.bf16.mxu0 0
        %2821 = vmatpush1.bf16.msra.mxu0 0
        %2822 = vmatprep.subr.bf16.mxu0 0
        %2823 = vmatpush1.bf16.msra.mxu0 0
        %2824 = vmatprep.subr.bf16.mxu0 0
        %2825 = vmatpush1.bf16.msra.mxu0 0
        %2826 = vmatprep.subr.bf16.mxu0 0
        %2827 = vmatpush1.bf16.msra.mxu0 0
        %2828 = vmatprep.subr.bf16.mxu0 0
        %2829 = vmatpush1.bf16.msra.mxu0 0
        %2830 = vmatprep.subr.bf16.mxu0 0
        %2831 = vmatpush1.bf16.msra.mxu0 0
        %2832 = vmatprep.subr.bf16.mxu0 0
        %2833 = vmatpush1.bf16.msra.mxu0 0
        %2834 = vmatprep.subr.bf16.mxu0 0
        %2835 = vmatpush1.bf16.msra.mxu0 0
        %2836 = vmatprep.mubr.bf16.mxu0 0
        %2837 = vmatmul.mubr.bf16.gmra.mrb[0].mxu0 %v2799
        %v2838 = vpop.f32.mrb[0].mxu0
        %v2839 = vadd.f32 0.0, %v2838
        %v2840 = vpop.f32.mrb[0].mxu0
        %v2841 = vpop.f32.mrb[0].mxu0
        %v2842 = vadd.f32 0.0, %v2841
        %v2843 = vpop.f32.mrb[0].mxu0
        %2844 = vmatprep.mubr.bf16.mxu0 0
        %2845 = vmatmul.mubr.bf16.gmra.mrb[0].mxu0 %v2802
        %v2846 = vpop.f32.mrb[0].mxu0
        %v2847 = vadd.f32 0.0, %v2846
        %v2848 = vpop.f32.mrb[0].mxu0
        %v2849 = vpop.f32.mrb[0].mxu0
        %v2850 = vadd.f32 0.0, %v2849
        %v2851 = vpop.f32.mrb[0].mxu0
        %2852 = vdwg.mxu0
        %v2853 = vadd.f32 %v2737, %v2839
        %v2854 = vadd.f32 %v2738, %v2842
        %v2855 = vadd.f32 %v2739, %v2847
        %v2856 = vadd.f32 %v2740, %v2850
        %v2857 = vld [vmem:[%s4] sm:$0xff]
        %v2858 = vld [vmem:[%s4 + $0x8] sm:$0xff]
        %v2859 = vld [vmem:[%s4 + $0x10] sm:$0xff]
        %v2860 = vld [vmem:[%s4 + $0x18] sm:$0xff]
        %2862 = vset.pattern.permute.xlu0 0
        %2863 = vperm.xlu0 %2862, %v2857
        %v2864 = vpop.permute.xlu0 %2863
        %2867 = vset.pattern.permute.xlu0 0
        %2868 = vperm.xlu0 %2867, %v2858
        %v2869 = vpop.permute.xlu0 %2868
        %2872 = vset.pattern.permute.xlu0 0
        %2873 = vperm.xlu0 %2872, %v2859
        %v2874 = vpop.permute.xlu0 %2873
        %2877 = vset.pattern.permute.xlu0 0
        %2878 = vperm.xlu0 %2877, %v2860
        %v2879 = vpop.permute.xlu0 %2878
        %v2881 = vadd.f32 %v2853, %v2864
        %v2882 = vadd.f32 %v2854, %v2869
        %v2883 = vadd.f32 %v2855, %v2874
        %v2884 = vadd.f32 %v2856, %v2879
        %vm2885 = vcmp.ge.f32.partialorder %v2881, 0.0
        %vm2886 = vcmp.ge.f32.partialorder %v2882, 0.0
        %vm2887 = vcmp.ge.f32.partialorder %v2883, 0.0
        %vm2888 = vcmp.ge.f32.partialorder %v2884, 0.0
        %v2889 = vmul.f32 %v2881, 0.2
        %v2890 = vmul.f32 %v2882, 0.2
        %v2891 = vmul.f32 %v2883, 0.2
        %v2892 = vmul.f32 %v2884, 0.2
        %v2893 = vsel %vm2885, %v2881, %v2889
        %v2894 = vsel %vm2886, %v2882, %v2890
        %v2895 = vsel %vm2887, %v2883, %v2891
        %v2896 = vsel %vm2888, %v2884, %v2892
        %v2897 = vpack.c.bf16 %v2894, %v2893
        %v2898 = vpack.c.bf16 %v2896, %v2895
        %v2899 = vld [vmem:[%s5] sm:$0xf]
        %v2900 = vld [vmem:[%s6] sm:$0xff]
        %2902 = vset.pattern.permute.xlu0 0
        %2903 = vperm.xlu0 %2902, %v2900
        %v2904 = vpop.permute.xlu0 %2903
        %vm2906 = vcmask 261120
        %v2908 = vsel %vm2906, %v2899, 0
        %2910 = vmatprep.subr.bf16.mxu0 0
        %2911 = vmatpush1.bf16.msra.mxu0 %v2897
        %2912 = vmatprep.subr.bf16.mxu0 0
        %2913 = vmatpush1.bf16.msra.mxu0 %v2898
        %2914 = vmatprep.subr.bf16.mxu0 0
        %2915 = vmatpush1.bf16.msra.mxu0 0
        %2916 = vmatprep.subr.bf16.mxu0 0
        %2917 = vmatpush1.bf16.msra.mxu0 0
        %2918 = vmatprep.subr.bf16.mxu0 0
        %2919 = vmatpush1.bf16.msra.mxu0 0
        %2920 = vmatprep.subr.bf16.mxu0 0
        %2921 = vmatpush1.bf16.msra.mxu0 0
        %2922 = vmatprep.subr.bf16.mxu0 0
        %2923 = vmatpush1.bf16.msra.mxu0 0
        %2924 = vmatprep.subr.bf16.mxu0 0
        %2925 = vmatpush1.bf16.msra.mxu0 0
        %2926 = vmatprep.subr.bf16.mxu0 0
        %2927 = vmatpush1.bf16.msra.mxu0 0
        %2928 = vmatprep.subr.bf16.mxu0 0
        %2929 = vmatpush1.bf16.msra.mxu0 0
        %2930 = vmatprep.subr.bf16.mxu0 0
        %2931 = vmatpush1.bf16.msra.mxu0 0
        %2932 = vmatprep.subr.bf16.mxu0 0
        %2933 = vmatpush1.bf16.msra.mxu0 0
        %2934 = vmatprep.subr.bf16.mxu0 0
        %2935 = vmatpush1.bf16.msra.mxu0 0
        %2936 = vmatprep.subr.bf16.mxu0 0
        %2937 = vmatpush1.bf16.msra.mxu0 0
        %2938 = vmatprep.subr.bf16.mxu0 0
        %2939 = vmatpush1.bf16.msra.mxu0 0
        %2940 = vmatprep.subr.bf16.mxu0 0
        %2941 = vmatpush1.bf16.msra.mxu0 0
        %2942 = vmatprep.mubr.bf16.mxu0 0
        %2943 = vmatmul.mubr.bf16.gmra.mrb[0].mxu0 %v2908
        %v2944 = vpop.f32.mrb[0].mxu0
        %v2945 = vadd.f32 %v2904, %v2944
        %v2946 = vpop.f32.mrb[0].mxu0
        %v2947 = vpop.f32.mrb[0].mxu0
        %v2948 = vpop.f32.mrb[0].mxu0
        %2949 = vdwg.mxu0
        %v2950 = vpack.c.bf16 %v2945, %v2945
        %v2951 = vld [vmem:[%s7] sm:$0xf]
        %v2952 = vld [vmem:[%s7 + $0x4] sm:$0xf]
        %v2953 = vld [vmem:[%s7 + $0x8] sm:$0xf]
        %v2954 = vld [vmem:[%s7 + $0xc] sm:$0xf]
        %v2955 = vld [vmem:[%s8] sm:$0xff]
        %v2956 = vld [vmem:[%s8 + $0x8] sm:$0xff]
        %v2957 = vld [vmem:[%s8 + $0x10] sm:$0xff]
        %v2958 = vld [vmem:[%s8 + $0x18] sm:$0xff]
        %2960 = vset.pattern.permute.xlu0 0
        %2961 = vperm.xlu0 %2960, %v2955
        %v2962 = vpop.permute.xlu0 %2961
        %2965 = vset.pattern.permute.xlu0 0
        %2966 = vperm.xlu0 %2965, %v2956
        %v2967 = vpop.permute.xlu0 %2966
        %2970 = vset.pattern.permute.xlu0 0
        %2971 = vperm.xlu0 %2970, %v2957
        %v2972 = vpop.permute.xlu0 %2971
        %2975 = vset.pattern.permute.xlu0 0
        %2976 = vperm.xlu0 %2975, %v2958
        %v2977 = vpop.permute.xlu0 %2976
        %v2983 = vunpack.c.l.b16 %v2951
        %v2984 = vunpack.c.l.b16 %v2952
        %v2985 = vunpack.c.l.b16 %v2953
        %v2986 = vunpack.c.l.b16 %v2954
        %v2987 = vpack.c.b16 %v2984, %v2983
        %v2988 = vpack.c.b16 %v2986, %v2985
        %v2990 = vsel %vm738, %v2987, 0
        %v2993 = vsel %vm738, %v2988, 0
        %v2996 = vsel %vm742, %v2950, 0
        %2998 = vmatprep.subr.bf16.mxu0 0
        %2999 = vmatpush1.bf16.msra.mxu0 %v2996
        %3000 = vmatprep.subr.bf16.mxu0 0
        %3001 = vmatpush1.bf16.msra.mxu0 0
        %3002 = vmatprep.subr.bf16.mxu0 0
        %3003 = vmatpush1.bf16.msra.mxu0 0
        %3004 = vmatprep.subr.bf16.mxu0 0
        %3005 = vmatpush1.bf16.msra.mxu0 0
        %3006 = vmatprep.subr.bf16.mxu0 0
        %3007 = vmatpush1.bf16.msra.mxu0 0
        %3008 = vmatprep.subr.bf16.mxu0 0
        %3009 = vmatpush1.bf16.msra.mxu0 0
        %3010 = vmatprep.subr.bf16.mxu0 0
        %3011 = vmatpush1.bf16.msra.mxu0 0
        %3012 = vmatprep.subr.bf16.mxu0 0
        %3013 = vmatpush1.bf16.msra.mxu0 0
        %3014 = vmatprep.subr.bf16.mxu0 0
        %3015 = vmatpush1.bf16.msra.mxu0 0
        %3016 = vmatprep.subr.bf16.mxu0 0
        %3017 = vmatpush1.bf16.msra.mxu0 0
        %3018 = vmatprep.subr.bf16.mxu0 0
        %3019 = vmatpush1.bf16.msra.mxu0 0
        %3020 = vmatprep.subr.bf16.mxu0 0
        %3021 = vmatpush1.bf16.msra.mxu0 0
        %3022 = vmatprep.subr.bf16.mxu0 0
        %3023 = vmatpush1.bf16.msra.mxu0 0
        %3024 = vmatprep.subr.bf16.mxu0 0
        %3025 = vmatpush1.bf16.msra.mxu0 0
        %3026 = vmatprep.subr.bf16.mxu0 0
        %3027 = vmatpush1.bf16.msra.mxu0 0
        %3028 = vmatprep.subr.bf16.mxu0 0
        %3029 = vmatpush1.bf16.msra.mxu0 0
        %3030 = vmatprep.mubr.bf16.mxu0 0
        %3031 = vmatmul.mubr.bf16.gmra.mrb[0].mxu0 %v2990
        %v3032 = vpop.f32.mrb[0].mxu0
        %v3033 = vadd.f32 %v2962, %v3032
        %v3034 = vpop.f32.mrb[0].mxu0
        %v3035 = vpop.f32.mrb[0].mxu0
        %v3036 = vadd.f32 %v2967, %v3035
        %v3037 = vpop.f32.mrb[0].mxu0
        %3038 = vmatprep.mubr.bf16.mxu0 0
        %3039 = vmatmul.mubr.bf16.gmra.mrb[0].mxu0 %v2993
        %v3040 = vpop.f32.mrb[0].mxu0
        %v3041 = vadd.f32 %v2972, %v3040
        %v3042 = vpop.f32.mrb[0].mxu0
        %v3043 = vpop.f32.mrb[0].mxu0
        %v3044 = vadd.f32 %v2977, %v3043
        %v3045 = vpop.f32.mrb[0].mxu0
        %3046 = vdwg.mxu0
        %vm3047 = vcmp.ge.f32.partialorder %v3033, 0.0
        %vm3048 = vcmp.ge.f32.partialorder %v3036, 0.0
        %vm3049 = vcmp.ge.f32.partialorder %v3041, 0.0
        %vm3050 = vcmp.ge.f32.partialorder %v3044, 0.0
        %v3051 = vmul.f32 %v3033, 0.2
        %v3052 = vmul.f32 %v3036, 0.2
        %v3053 = vmul.f32 %v3041, 0.2
        %v3054 = vmul.f32 %v3044, 0.2
        %v3055 = vsel %vm3047, %v3033, %v3051
        %v3056 = vsel %vm3048, %v3036, %v3052
        %v3057 = vsel %vm3049, %v3041, %v3053
        %v3058 = vsel %vm3050, %v3044, %v3054
        %v3059 = vpack.c.bf16 %v3056, %v3055
        %v3060 = vpack.c.bf16 %v3058, %v3057
        %v3061 = vadd.s32 %v475, 4294967293
        %v3062 = vmul.u32 %v442, 4
        %v3063 = vmul.u32 %v443, 4
        %vm3064 = vcmp.le.s32.totalorder %v3062, %v3061
        %vm3065 = vcmp.le.s32.totalorder %v3063, %v3061
        %v3066 = vadd.s32 %v3062, 3
        %v3067 = vadd.s32 %v3063, 3
        %vm3068 = vcmp.le.s32.totalorder %v3061, %v3066
        %vm3069 = vcmp.le.s32.totalorder %v3061, %v3067
        %vm3070 = vmand %vm3064, %vm3068
        %vm3071 = vmand %vm3065, %vm3069
        %v3072 = vsel %vm3070, 1.0, 0.0
        %v3073 = vsel %vm3071, 1.0, 0.0
        %v3074 = vpack.c.bf16 %v3073, %v3072
        %v3076 = vsel %vm2040, %v3059, 0
        %v3079 = vsel %vm2040, %v3060, 0
        %3081 = vmatprep.subr.bf16.mxu0 0
        %3082 = vmatpush1.bf16.msra.mxu0 %v3074
        %3083 = vmatprep.subr.bf16.mxu0 0
        %3084 = vmatpush1.bf16.msra.mxu0 0
        %3085 = vmatprep.subr.bf16.mxu0 0
        %3086 = vmatpush1.bf16.msra.mxu0 0
        %3087 = vmatprep.subr.bf16.mxu0 0
        %3088 = vmatpush1.bf16.msra.mxu0 0
        %3089 = vmatprep.subr.bf16.mxu0 0
        %3090 = vmatpush1.bf16.msra.mxu0 0
        %3091 = vmatprep.subr.bf16.mxu0 0
        %3092 = vmatpush1.bf16.msra.mxu0 0
        %3093 = vmatprep.subr.bf16.mxu0 0
        %3094 = vmatpush1.bf16.msra.mxu0 0
        %3095 = vmatprep.subr.bf16.mxu0 0
        %3096 = vmatpush1.bf16.msra.mxu0 0
        %3097 = vmatprep.subr.bf16.mxu0 0
        %3098 = vmatpush1.bf16.msra.mxu0 0
        %3099 = vmatprep.subr.bf16.mxu0 0
        %3100 = vmatpush1.bf16.msra.mxu0 0
        %3101 = vmatprep.subr.bf16.mxu0 0
        %3102 = vmatpush1.bf16.msra.mxu0 0
        %3103 = vmatprep.subr.bf16.mxu0 0
        %3104 = vmatpush1.bf16.msra.mxu0 0
        %3105 = vmatprep.subr.bf16.mxu0 0
        %3106 = vmatpush1.bf16.msra.mxu0 0
        %3107 = vmatprep.subr.bf16.mxu0 0
        %3108 = vmatpush1.bf16.msra.mxu0 0
        %3109 = vmatprep.subr.bf16.mxu0 0
        %3110 = vmatpush1.bf16.msra.mxu0 0
        %3111 = vmatprep.subr.bf16.mxu0 0
        %3112 = vmatpush1.bf16.msra.mxu0 0
        %3113 = vmatprep.mubr.bf16.mxu0 0
        %3114 = vmatmul.mubr.bf16.gmra.mrb[0].mxu0 %v3076
        %v3115 = vpop.f32.mrb[0].mxu0
        %v3116 = vadd.f32 0.0, %v3115
        %v3117 = vpop.f32.mrb[0].mxu0
        %v3118 = vpop.f32.mrb[0].mxu0
        %v3119 = vadd.f32 0.0, %v3118
        %v3120 = vpop.f32.mrb[0].mxu0
        %3121 = vmatprep.mubr.bf16.mxu0 0
        %3122 = vmatmul.mubr.bf16.gmra.mrb[0].mxu0 %v3079
        %v3123 = vpop.f32.mrb[0].mxu0
        %v3124 = vadd.f32 0.0, %v3123
        %v3125 = vpop.f32.mrb[0].mxu0
        %v3126 = vpop.f32.mrb[0].mxu0
        %v3127 = vadd.f32 0.0, %v3126
        %v3128 = vpop.f32.mrb[0].mxu0
        %3129 = vdwg.mxu0
        %v3130 = vld [vmem:[%s9] sm:$0xf]
        %v3131 = vld [vmem:[%s9 + $0x4] sm:$0xf]
        %v3132 = vpack.c.bf16 %v3119, %v3116
        %v3133 = vpack.c.bf16 %v3127, %v3124
        %v3134 = vadd.s32 %v475, 4294967294
        %vm3135 = vcmp.le.s32.totalorder %v3062, %v3134
        %vm3136 = vcmp.le.s32.totalorder %v3063, %v3134
        %vm3137 = vcmp.le.s32.totalorder %v3134, %v3066
        %vm3138 = vcmp.le.s32.totalorder %v3134, %v3067
        %vm3139 = vmand %vm3135, %vm3137
        %vm3140 = vmand %vm3136, %vm3138
        %v3141 = vsel %vm3139, 1.0, 0.0
        %v3142 = vsel %vm3140, 1.0, 0.0
        %v3143 = vpack.c.bf16 %v3142, %v3141
        %3144 = vmatprep.subr.bf16.mxu0 0
        %3145 = vmatpush1.bf16.msra.mxu0 %v3143
        %3146 = vmatprep.subr.bf16.mxu0 0
        %3147 = vmatpush1.bf16.msra.mxu0 0
        %3148 = vmatprep.subr.bf16.mxu0 0
        %3149 = vmatpush1.bf16.msra.mxu0 0
        %3150 = vmatprep.subr.bf16.mxu0 0
        %3151 = vmatpush1.bf16.msra.mxu0 0
        %3152 = vmatprep.subr.bf16.mxu0 0
        %3153 = vmatpush1.bf16.msra.mxu0 0
        %3154 = vmatprep.subr.bf16.mxu0 0
        %3155 = vmatpush1.bf16.msra.mxu0 0
        %3156 = vmatprep.subr.bf16.mxu0 0
        %3157 = vmatpush1.bf16.msra.mxu0 0
        %3158 = vmatprep.subr.bf16.mxu0 0
        %3159 = vmatpush1.bf16.msra.mxu0 0
        %3160 = vmatprep.subr.bf16.mxu0 0
        %3161 = vmatpush1.bf16.msra.mxu0 0
        %3162 = vmatprep.subr.bf16.mxu0 0
        %3163 = vmatpush1.bf16.msra.mxu0 0
        %3164 = vmatprep.subr.bf16.mxu0 0
        %3165 = vmatpush1.bf16.msra.mxu0 0
        %3166 = vmatprep.subr.bf16.mxu0 0
        %3167 = vmatpush1.bf16.msra.mxu0 0
        %3168 = vmatprep.subr.bf16.mxu0 0
        %3169 = vmatpush1.bf16.msra.mxu0 0
        %3170 = vmatprep.subr.bf16.mxu0 0
        %3171 = vmatpush1.bf16.msra.mxu0 0
        %3172 = vmatprep.subr.bf16.mxu0 0
        %3173 = vmatpush1.bf16.msra.mxu0 0
        %3174 = vmatprep.subr.bf16.mxu0 0
        %3175 = vmatpush1.bf16.msra.mxu0 0
        %3176 = vmatprep.mubr.bf16.mxu0 0
        %3177 = vmatmul.mubr.bf16.gmra.mrb[0].mxu0 %v3076
        %v3178 = vpop.f32.mrb[0].mxu0
        %v3179 = vadd.f32 0.0, %v3178
        %v3180 = vpop.f32.mrb[0].mxu0
        %v3181 = vpop.f32.mrb[0].mxu0
        %v3182 = vadd.f32 0.0, %v3181
        %v3183 = vpop.f32.mrb[0].mxu0
        %3184 = vmatprep.mubr.bf16.mxu0 0
        %3185 = vmatmul.mubr.bf16.gmra.mrb[0].mxu0 %v3079
        %v3186 = vpop.f32.mrb[0].mxu0
        %v3187 = vadd.f32 0.0, %v3186
        %v3188 = vpop.f32.mrb[0].mxu0
        %v3189 = vpop.f32.mrb[0].mxu0
        %v3190 = vadd.f32 0.0, %v3189
        %v3191 = vpop.f32.mrb[0].mxu0
        %3192 = vdwg.mxu0
        %s3193 = scalar_lea.vmem %s9, 8
        %v3194 = vld [vmem:[%s3193] sm:$0xf]
        %v3195 = vld [vmem:[%s3193 + $0x4] sm:$0xf]
        %v3196 = vpack.c.bf16 %v3182, %v3179
        %v3197 = vpack.c.bf16 %v3190, %v3187
        %v3200 = vunpack.c.l.b16 %v3194
        %v3201 = vunpack.c.l.b16 %v3195
        %v3202 = vpack.c.b16 %v3201, %v3200
        %v3204 = vsel %vm2906, %v3202, 0
        %3206 = vmatprep.subr.bf16.mxu0 0
        %3207 = vmatpush1.bf16.msra.mxu0 %v3196
        %3208 = vmatprep.subr.bf16.mxu0 0
        %3209 = vmatpush1.bf16.msra.mxu0 %v3197
        %3210 = vmatprep.subr.bf16.mxu0 0
        %3211 = vmatpush1.bf16.msra.mxu0 0
        %3212 = vmatprep.subr.bf16.mxu0 0
        %3213 = vmatpush1.bf16.msra.mxu0 0
        %3214 = vmatprep.subr.bf16.mxu0 0
        %3215 = vmatpush1.bf16.msra.mxu0 0
        %3216 = vmatprep.subr.bf16.mxu0 0
        %3217 = vmatpush1.bf16.msra.mxu0 0
        %3218 = vmatprep.subr.bf16.mxu0 0
        %3219 = vmatpush1.bf16.msra.mxu0 0
        %3220 = vmatprep.subr.bf16.mxu0 0
        %3221 = vmatpush1.bf16.msra.mxu0 0
        %3222 = vmatprep.subr.bf16.mxu0 0
        %3223 = vmatpush1.bf16.msra.mxu0 0
        %3224 = vmatprep.subr.bf16.mxu0 0
        %3225 = vmatpush1.bf16.msra.mxu0 0
        %3226 = vmatprep.subr.bf16.mxu0 0
        %3227 = vmatpush1.bf16.msra.mxu0 0
        %3228 = vmatprep.subr.bf16.mxu0 0
        %3229 = vmatpush1.bf16.msra.mxu0 0
        %3230 = vmatprep.subr.bf16.mxu0 0
        %3231 = vmatpush1.bf16.msra.mxu0 0
        %3232 = vmatprep.subr.bf16.mxu0 0
        %3233 = vmatpush1.bf16.msra.mxu0 0
        %3234 = vmatprep.subr.bf16.mxu0 0
        %3235 = vmatpush1.bf16.msra.mxu0 0
        %3236 = vmatprep.subr.bf16.mxu0 0
        %3237 = vmatpush1.bf16.msra.mxu0 0
        %3238 = vmatprep.mubr.bf16.mxu0 0
        %3239 = vmatmul.mubr.bf16.gmra.mrb[0].mxu0 %v3204
        %v3240 = vpop.f32.mrb[0].mxu0
        %v3241 = vadd.f32 0.0, %v3240
        %v3242 = vpop.f32.mrb[0].mxu0
        %v3243 = vpop.f32.mrb[0].mxu0
        %v3244 = vadd.f32 0.0, %v3243
        %v3245 = vpop.f32.mrb[0].mxu0
        %3246 = vdwg.mxu0
        %v3249 = vunpack.c.l.b16 %v3130
        %v3250 = vunpack.c.l.b16 %v3131
        %v3251 = vpack.c.b16 %v3250, %v3249
        %v3253 = vsel %vm2906, %v3251, 0
        %3255 = vmatprep.subr.bf16.mxu0 0
        %3256 = vmatpush1.bf16.msra.mxu0 %v3132
        %3257 = vmatprep.subr.bf16.mxu0 0
        %3258 = vmatpush1.bf16.msra.mxu0 %v3133
        %3259 = vmatprep.subr.bf16.mxu0 0
        %3260 = vmatpush1.bf16.msra.mxu0 0
        %3261 = vmatprep.subr.bf16.mxu0 0
        %3262 = vmatpush1.bf16.msra.mxu0 0
        %3263 = vmatprep.subr.bf16.mxu0 0
        %3264 = vmatpush1.bf16.msra.mxu0 0
        %3265 = vmatprep.subr.bf16.mxu0 0
        %3266 = vmatpush1.bf16.msra.mxu0 0
        %3267 = vmatprep.subr.bf16.mxu0 0
        %3268 = vmatpush1.bf16.msra.mxu0 0
        %3269 = vmatprep.subr.bf16.mxu0 0
        %3270 = vmatpush1.bf16.msra.mxu0 0
        %3271 = vmatprep.subr.bf16.mxu0 0
        %3272 = vmatpush1.bf16.msra.mxu0 0
        %3273 = vmatprep.subr.bf16.mxu0 0
        %3274 = vmatpush1.bf16.msra.mxu0 0
        %3275 = vmatprep.subr.bf16.mxu0 0
        %3276 = vmatpush1.bf16.msra.mxu0 0
        %3277 = vmatprep.subr.bf16.mxu0 0
        %3278 = vmatpush1.bf16.msra.mxu0 0
        %3279 = vmatprep.subr.bf16.mxu0 0
        %3280 = vmatpush1.bf16.msra.mxu0 0
        %3281 = vmatprep.subr.bf16.mxu0 0
        %3282 = vmatpush1.bf16.msra.mxu0 0
        %3283 = vmatprep.subr.bf16.mxu0 0
        %3284 = vmatpush1.bf16.msra.mxu0 0
        %3285 = vmatprep.subr.bf16.mxu0 0
        %3286 = vmatpush1.bf16.msra.mxu0 0
        %3287 = vmatprep.mubr.bf16.mxu0 0
        %3288 = vmatmul.mubr.bf16.gmra.mrb[0].mxu0 %v3253
        %v3289 = vpop.f32.mrb[0].mxu0
        %v3290 = vadd.f32 %v3241, %v3289
        %v3291 = vpop.f32.mrb[0].mxu0
        %v3292 = vpop.f32.mrb[0].mxu0
        %v3293 = vadd.f32 %v3244, %v3292
        %v3294 = vpop.f32.mrb[0].mxu0
        %3295 = vdwg.mxu0
        %v3296 = vadd.s32 %v475, 4294967295
        %vm3297 = vcmp.le.s32.totalorder %v3062, %v3296
        %vm3298 = vcmp.le.s32.totalorder %v3063, %v3296
        %vm3299 = vcmp.le.s32.totalorder %v3296, %v3066
        %vm3300 = vcmp.le.s32.totalorder %v3296, %v3067
        %vm3301 = vmand %vm3297, %vm3299
        %vm3302 = vmand %vm3298, %vm3300
        %v3303 = vsel %vm3301, 1.0, 0.0
        %v3304 = vsel %vm3302, 1.0, 0.0
        %v3305 = vpack.c.bf16 %v3304, %v3303
        %3306 = vmatprep.subr.bf16.mxu0 0
        %3307 = vmatpush1.bf16.msra.mxu0 %v3305
        %3308 = vmatprep.subr.bf16.mxu0 0
        %3309 = vmatpush1.bf16.msra.mxu0 0
        %3310 = vmatprep.subr.bf16.mxu0 0
        %3311 = vmatpush1.bf16.msra.mxu0 0
        %3312 = vmatprep.subr.bf16.mxu0 0
        %3313 = vmatpush1.bf16.msra.mxu0 0
        %3314 = vmatprep.subr.bf16.mxu0 0
        %3315 = vmatpush1.bf16.msra.mxu0 0
        %3316 = vmatprep.subr.bf16.mxu0 0
        %3317 = vmatpush1.bf16.msra.mxu0 0
        %3318 = vmatprep.subr.bf16.mxu0 0
        %3319 = vmatpush1.bf16.msra.mxu0 0
        %3320 = vmatprep.subr.bf16.mxu0 0
        %3321 = vmatpush1.bf16.msra.mxu0 0
        %3322 = vmatprep.subr.bf16.mxu0 0
        %3323 = vmatpush1.bf16.msra.mxu0 0
        %3324 = vmatprep.subr.bf16.mxu0 0
        %3325 = vmatpush1.bf16.msra.mxu0 0
        %3326 = vmatprep.subr.bf16.mxu0 0
        %3327 = vmatpush1.bf16.msra.mxu0 0
        %3328 = vmatprep.subr.bf16.mxu0 0
        %3329 = vmatpush1.bf16.msra.mxu0 0
        %3330 = vmatprep.subr.bf16.mxu0 0
        %3331 = vmatpush1.bf16.msra.mxu0 0
        %3332 = vmatprep.subr.bf16.mxu0 0
        %3333 = vmatpush1.bf16.msra.mxu0 0
        %3334 = vmatprep.subr.bf16.mxu0 0
        %3335 = vmatpush1.bf16.msra.mxu0 0
        %3336 = vmatprep.subr.bf16.mxu0 0
        %3337 = vmatpush1.bf16.msra.mxu0 0
        %3338 = vmatprep.mubr.bf16.mxu0 0
        %3339 = vmatmul.mubr.bf16.gmra.mrb[0].mxu0 %v3076
        %v3340 = vpop.f32.mrb[0].mxu0
        %v3341 = vadd.f32 0.0, %v3340
        %v3342 = vpop.f32.mrb[0].mxu0
        %v3343 = vpop.f32.mrb[0].mxu0
        %v3344 = vadd.f32 0.0, %v3343
        %v3345 = vpop.f32.mrb[0].mxu0
        %3346 = vmatprep.mubr.bf16.mxu0 0
        %3347 = vmatmul.mubr.bf16.gmra.mrb[0].mxu0 %v3079
        %v3348 = vpop.f32.mrb[0].mxu0
        %v3349 = vadd.f32 0.0, %v3348
        %v3350 = vpop.f32.mrb[0].mxu0
        %v3351 = vpop.f32.mrb[0].mxu0
        %v3352 = vadd.f32 0.0, %v3351
        %v3353 = vpop.f32.mrb[0].mxu0
        %3354 = vdwg.mxu0
        %s3355 = scalar_lea.vmem %s9, 16
        %v3356 = vld [vmem:[%s3355] sm:$0xf]
        %v3357 = vld [vmem:[%s3355 + $0x4] sm:$0xf]
        %v3358 = vpack.c.bf16 %v3344, %v3341
        %v3359 = vpack.c.bf16 %v3352, %v3349
        %v3362 = vunpack.c.l.b16 %v3356
        %v3363 = vunpack.c.l.b16 %v3357
        %v3364 = vpack.c.b16 %v3363, %v3362
        %v3366 = vsel %vm2906, %v3364, 0
        %3368 = vmatprep.subr.bf16.mxu0 0
        %3369 = vmatpush1.bf16.msra.mxu0 %v3358
        %3370 = vmatprep.subr.bf16.mxu0 0
        %3371 = vmatpush1.bf16.msra.mxu0 %v3359
        %3372 = vmatprep.subr.bf16.mxu0 0
        %3373 = vmatpush1.bf16.msra.mxu0 0
        %3374 = vmatprep.subr.bf16.mxu0 0
        %3375 = vmatpush1.bf16.msra.mxu0 0
        %3376 = vmatprep.subr.bf16.mxu0 0
        %3377 = vmatpush1.bf16.msra.mxu0 0
        %3378 = vmatprep.subr.bf16.mxu0 0
        %3379 = vmatpush1.bf16.msra.mxu0 0
        %3380 = vmatprep.subr.bf16.mxu0 0
        %3381 = vmatpush1.bf16.msra.mxu0 0
        %3382 = vmatprep.subr.bf16.mxu0 0
        %3383 = vmatpush1.bf16.msra.mxu0 0
        %3384 = vmatprep.subr.bf16.mxu0 0
        %3385 = vmatpush1.bf16.msra.mxu0 0
        %3386 = vmatprep.subr.bf16.mxu0 0
        %3387 = vmatpush1.bf16.msra.mxu0 0
        %3388 = vmatprep.subr.bf16.mxu0 0
        %3389 = vmatpush1.bf16.msra.mxu0 0
        %3390 = vmatprep.subr.bf16.mxu0 0
        %3391 = vmatpush1.bf16.msra.mxu0 0
        %3392 = vmatprep.subr.bf16.mxu0 0
        %3393 = vmatpush1.bf16.msra.mxu0 0
        %3394 = vmatprep.subr.bf16.mxu0 0
        %3395 = vmatpush1.bf16.msra.mxu0 0
        %3396 = vmatprep.subr.bf16.mxu0 0
        %3397 = vmatpush1.bf16.msra.mxu0 0
        %3398 = vmatprep.subr.bf16.mxu0 0
        %3399 = vmatpush1.bf16.msra.mxu0 0
        %3400 = vmatprep.mubr.bf16.mxu0 0
        %3401 = vmatmul.mubr.bf16.gmra.mrb[0].mxu0 %v3366
        %v3402 = vpop.f32.mrb[0].mxu0
        %v3403 = vadd.f32 0.0, %v3402
        %v3404 = vpop.f32.mrb[0].mxu0
        %v3405 = vpop.f32.mrb[0].mxu0
        %v3406 = vadd.f32 0.0, %v3405
        %v3407 = vpop.f32.mrb[0].mxu0
        %3408 = vdwg.mxu0
        %v3409 = vadd.f32 %v3290, %v3403
        %v3410 = vadd.f32 %v3293, %v3406
        %vm3411 = vcmp.le.s32.totalorder %v3062, %v475
        %vm3412 = vcmp.le.s32.totalorder %v3063, %v475
        %vm3413 = vcmp.le.s32.totalorder %v475, %v3066
        %vm3414 = vcmp.le.s32.totalorder %v475, %v3067
        %vm3415 = vmand %vm3411, %vm3413
        %vm3416 = vmand %vm3412, %vm3414
        %v3417 = vsel %vm3415, 1.0, 0.0
        %v3418 = vsel %vm3416, 1.0, 0.0
        %v3419 = vpack.c.bf16 %v3418, %v3417
        %3420 = vmatprep.subr.bf16.mxu0 0
        %3421 = vmatpush1.bf16.msra.mxu0 %v3419
        %3422 = vmatprep.subr.bf16.mxu0 0
        %3423 = vmatpush1.bf16.msra.mxu0 0
        %3424 = vmatprep.subr.bf16.mxu0 0
        %3425 = vmatpush1.bf16.msra.mxu0 0
        %3426 = vmatprep.subr.bf16.mxu0 0
        %3427 = vmatpush1.bf16.msra.mxu0 0
        %3428 = vmatprep.subr.bf16.mxu0 0
        %3429 = vmatpush1.bf16.msra.mxu0 0
        %3430 = vmatprep.subr.bf16.mxu0 0
        %3431 = vmatpush1.bf16.msra.mxu0 0
        %3432 = vmatprep.subr.bf16.mxu0 0
        %3433 = vmatpush1.bf16.msra.mxu0 0
        %3434 = vmatprep.subr.bf16.mxu0 0
        %3435 = vmatpush1.bf16.msra.mxu0 0
        %3436 = vmatprep.subr.bf16.mxu0 0
        %3437 = vmatpush1.bf16.msra.mxu0 0
        %3438 = vmatprep.subr.bf16.mxu0 0
        %3439 = vmatpush1.bf16.msra.mxu0 0
        %3440 = vmatprep.subr.bf16.mxu0 0
        %3441 = vmatpush1.bf16.msra.mxu0 0
        %3442 = vmatprep.subr.bf16.mxu0 0
        %3443 = vmatpush1.bf16.msra.mxu0 0
        %3444 = vmatprep.subr.bf16.mxu0 0
        %3445 = vmatpush1.bf16.msra.mxu0 0
        %3446 = vmatprep.subr.bf16.mxu0 0
        %3447 = vmatpush1.bf16.msra.mxu0 0
        %3448 = vmatprep.subr.bf16.mxu0 0
        %3449 = vmatpush1.bf16.msra.mxu0 0
        %3450 = vmatprep.subr.bf16.mxu0 0
        %3451 = vmatpush1.bf16.msra.mxu0 0
        %3452 = vmatprep.mubr.bf16.mxu0 0
        %3453 = vmatmul.mubr.bf16.gmra.mrb[0].mxu0 %v3076
        %v3454 = vpop.f32.mrb[0].mxu0
        %v3455 = vadd.f32 0.0, %v3454
        %v3456 = vpop.f32.mrb[0].mxu0
        %v3457 = vpop.f32.mrb[0].mxu0
        %v3458 = vadd.f32 0.0, %v3457
        %v3459 = vpop.f32.mrb[0].mxu0
        %3460 = vmatprep.mubr.bf16.mxu0 0
        %3461 = vmatmul.mubr.bf16.gmra.mrb[0].mxu0 %v3079
        %v3462 = vpop.f32.mrb[0].mxu0
        %v3463 = vadd.f32 0.0, %v3462
        %v3464 = vpop.f32.mrb[0].mxu0
        %v3465 = vpop.f32.mrb[0].mxu0
        %v3466 = vadd.f32 0.0, %v3465
        %v3467 = vpop.f32.mrb[0].mxu0
        %3468 = vdwg.mxu0
        %s3469 = scalar_lea.vmem %s9, 24
        %v3470 = vld [vmem:[%s3469] sm:$0xf]
        %v3471 = vld [vmem:[%s3469 + $0x4] sm:$0xf]
        %v3472 = vpack.c.bf16 %v3458, %v3455
        %v3473 = vpack.c.bf16 %v3466, %v3463
        %v3476 = vunpack.c.l.b16 %v3470
        %v3477 = vunpack.c.l.b16 %v3471
        %v3478 = vpack.c.b16 %v3477, %v3476
        %v3480 = vsel %vm2906, %v3478, 0
        %3482 = vmatprep.subr.bf16.mxu0 0
        %3483 = vmatpush1.bf16.msra.mxu0 %v3472
        %3484 = vmatprep.subr.bf16.mxu0 0
        %3485 = vmatpush1.bf16.msra.mxu0 %v3473
        %3486 = vmatprep.subr.bf16.mxu0 0
        %3487 = vmatpush1.bf16.msra.mxu0 0
        %3488 = vmatprep.subr.bf16.mxu0 0
        %3489 = vmatpush1.bf16.msra.mxu0 0
        %3490 = vmatprep.subr.bf16.mxu0 0
        %3491 = vmatpush1.bf16.msra.mxu0 0
        %3492 = vmatprep.subr.bf16.mxu0 0
        %3493 = vmatpush1.bf16.msra.mxu0 0
        %3494 = vmatprep.subr.bf16.mxu0 0
        %3495 = vmatpush1.bf16.msra.mxu0 0
        %3496 = vmatprep.subr.bf16.mxu0 0
        %3497 = vmatpush1.bf16.msra.mxu0 0
        %3498 = vmatprep.subr.bf16.mxu0 0
        %3499 = vmatpush1.bf16.msra.mxu0 0
        %3500 = vmatprep.subr.bf16.mxu0 0
        %3501 = vmatpush1.bf16.msra.mxu0 0
        %3502 = vmatprep.subr.bf16.mxu0 0
        %3503 = vmatpush1.bf16.msra.mxu0 0
        %3504 = vmatprep.subr.bf16.mxu0 0
        %3505 = vmatpush1.bf16.msra.mxu0 0
        %3506 = vmatprep.subr.bf16.mxu0 0
        %3507 = vmatpush1.bf16.msra.mxu0 0
        %3508 = vmatprep.subr.bf16.mxu0 0
        %3509 = vmatpush1.bf16.msra.mxu0 0
        %3510 = vmatprep.subr.bf16.mxu0 0
        %3511 = vmatpush1.bf16.msra.mxu0 0
        %3512 = vmatprep.subr.bf16.mxu0 0
        %3513 = vmatpush1.bf16.msra.mxu0 0
        %3514 = vmatprep.mubr.bf16.mxu0 0
        %3515 = vmatmul.mubr.bf16.gmra.mrb[0].mxu0 %v3480
        %v3516 = vpop.f32.mrb[0].mxu0
        %v3517 = vadd.f32 0.0, %v3516
        %v3518 = vpop.f32.mrb[0].mxu0
        %v3519 = vpop.f32.mrb[0].mxu0
        %v3520 = vadd.f32 0.0, %v3519
        %v3521 = vpop.f32.mrb[0].mxu0
        %3522 = vdwg.mxu0
        %v3523 = vadd.f32 %v3409, %v3517
        %v3524 = vadd.f32 %v3410, %v3520
        %v3525 = vadd.s32 %v475, 1
        %vm3526 = vcmp.le.s32.totalorder %v3062, %v3525
        %vm3527 = vcmp.le.s32.totalorder %v3063, %v3525
        %vm3528 = vcmp.le.s32.totalorder %v3525, %v3066
        %vm3529 = vcmp.le.s32.totalorder %v3525, %v3067
        %vm3530 = vmand %vm3526, %vm3528
        %vm3531 = vmand %vm3527, %vm3529
        %v3532 = vsel %vm3530, 1.0, 0.0
        %v3533 = vsel %vm3531, 1.0, 0.0
        %v3534 = vpack.c.bf16 %v3533, %v3532
        %3535 = vmatprep.subr.bf16.mxu0 0
        %3536 = vmatpush1.bf16.msra.mxu0 %v3534
        %3537 = vmatprep.subr.bf16.mxu0 0
        %3538 = vmatpush1.bf16.msra.mxu0 0
        %3539 = vmatprep.subr.bf16.mxu0 0
        %3540 = vmatpush1.bf16.msra.mxu0 0
        %3541 = vmatprep.subr.bf16.mxu0 0
        %3542 = vmatpush1.bf16.msra.mxu0 0
        %3543 = vmatprep.subr.bf16.mxu0 0
        %3544 = vmatpush1.bf16.msra.mxu0 0
        %3545 = vmatprep.subr.bf16.mxu0 0
        %3546 = vmatpush1.bf16.msra.mxu0 0
        %3547 = vmatprep.subr.bf16.mxu0 0
        %3548 = vmatpush1.bf16.msra.mxu0 0
        %3549 = vmatprep.subr.bf16.mxu0 0
        %3550 = vmatpush1.bf16.msra.mxu0 0
        %3551 = vmatprep.subr.bf16.mxu0 0
        %3552 = vmatpush1.bf16.msra.mxu0 0
        %3553 = vmatprep.subr.bf16.mxu0 0
        %3554 = vmatpush1.bf16.msra.mxu0 0
        %3555 = vmatprep.subr.bf16.mxu0 0
        %3556 = vmatpush1.bf16.msra.mxu0 0
        %3557 = vmatprep.subr.bf16.mxu0 0
        %3558 = vmatpush1.bf16.msra.mxu0 0
        %3559 = vmatprep.subr.bf16.mxu0 0
        %3560 = vmatpush1.bf16.msra.mxu0 0
        %3561 = vmatprep.subr.bf16.mxu0 0
        %3562 = vmatpush1.bf16.msra.mxu0 0
        %3563 = vmatprep.subr.bf16.mxu0 0
        %3564 = vmatpush1.bf16.msra.mxu0 0
        %3565 = vmatprep.subr.bf16.mxu0 0
        %3566 = vmatpush1.bf16.msra.mxu0 0
        %3567 = vmatprep.mubr.bf16.mxu0 0
        %3568 = vmatmul.mubr.bf16.gmra.mrb[0].mxu0 %v3076
        %v3569 = vpop.f32.mrb[0].mxu0
        %v3570 = vadd.f32 0.0, %v3569
        %v3571 = vpop.f32.mrb[0].mxu0
        %v3572 = vpop.f32.mrb[0].mxu0
        %v3573 = vadd.f32 0.0, %v3572
        %v3574 = vpop.f32.mrb[0].mxu0
        %3575 = vmatprep.mubr.bf16.mxu0 0
        %3576 = vmatmul.mubr.bf16.gmra.mrb[0].mxu0 %v3079
        %v3577 = vpop.f32.mrb[0].mxu0
        %v3578 = vadd.f32 0.0, %v3577
        %v3579 = vpop.f32.mrb[0].mxu0
        %v3580 = vpop.f32.mrb[0].mxu0
        %v3581 = vadd.f32 0.0, %v3580
        %v3582 = vpop.f32.mrb[0].mxu0
        %3583 = vdwg.mxu0
        %s3584 = scalar_lea.vmem %s9, 32
        %v3585 = vld [vmem:[%s3584] sm:$0xf]
        %v3586 = vld [vmem:[%s3584 + $0x4] sm:$0xf]
        %v3587 = vpack.c.bf16 %v3573, %v3570
        %v3588 = vpack.c.bf16 %v3581, %v3578
        %v3591 = vunpack.c.l.b16 %v3585
        %v3592 = vunpack.c.l.b16 %v3586
        %v3593 = vpack.c.b16 %v3592, %v3591
        %v3595 = vsel %vm2906, %v3593, 0
        %3597 = vmatprep.subr.bf16.mxu0 0
        %3598 = vmatpush1.bf16.msra.mxu0 %v3587
        %3599 = vmatprep.subr.bf16.mxu0 0
        %3600 = vmatpush1.bf16.msra.mxu0 %v3588
        %3601 = vmatprep.subr.bf16.mxu0 0
        %3602 = vmatpush1.bf16.msra.mxu0 0
        %3603 = vmatprep.subr.bf16.mxu0 0
        %3604 = vmatpush1.bf16.msra.mxu0 0
        %3605 = vmatprep.subr.bf16.mxu0 0
        %3606 = vmatpush1.bf16.msra.mxu0 0
        %3607 = vmatprep.subr.bf16.mxu0 0
        %3608 = vmatpush1.bf16.msra.mxu0 0
        %3609 = vmatprep.subr.bf16.mxu0 0
        %3610 = vmatpush1.bf16.msra.mxu0 0
        %3611 = vmatprep.subr.bf16.mxu0 0
        %3612 = vmatpush1.bf16.msra.mxu0 0
        %3613 = vmatprep.subr.bf16.mxu0 0
        %3614 = vmatpush1.bf16.msra.mxu0 0
        %3615 = vmatprep.subr.bf16.mxu0 0
        %3616 = vmatpush1.bf16.msra.mxu0 0
        %3617 = vmatprep.subr.bf16.mxu0 0
        %3618 = vmatpush1.bf16.msra.mxu0 0
        %3619 = vmatprep.subr.bf16.mxu0 0
        %3620 = vmatpush1.bf16.msra.mxu0 0
        %3621 = vmatprep.subr.bf16.mxu0 0
        %3622 = vmatpush1.bf16.msra.mxu0 0
        %3623 = vmatprep.subr.bf16.mxu0 0
        %3624 = vmatpush1.bf16.msra.mxu0 0
        %3625 = vmatprep.subr.bf16.mxu0 0
        %3626 = vmatpush1.bf16.msra.mxu0 0
        %3627 = vmatprep.subr.bf16.mxu0 0
        %3628 = vmatpush1.bf16.msra.mxu0 0
        %3629 = vmatprep.mubr.bf16.mxu0 0
        %3630 = vmatmul.mubr.bf16.gmra.mrb[0].mxu0 %v3595
        %v3631 = vpop.f32.mrb[0].mxu0
        %v3632 = vadd.f32 0.0, %v3631
        %v3633 = vpop.f32.mrb[0].mxu0
        %v3634 = vpop.f32.mrb[0].mxu0
        %v3635 = vadd.f32 0.0, %v3634
        %v3636 = vpop.f32.mrb[0].mxu0
        %3637 = vdwg.mxu0
        %v3638 = vadd.f32 %v3523, %v3632
        %v3639 = vadd.f32 %v3524, %v3635
        %v3640 = vadd.s32 %v475, 2
        %vm3641 = vcmp.le.s32.totalorder %v3062, %v3640
        %vm3642 = vcmp.le.s32.totalorder %v3063, %v3640
        %vm3643 = vcmp.le.s32.totalorder %v3640, %v3066
        %vm3644 = vcmp.le.s32.totalorder %v3640, %v3067
        %vm3645 = vmand %vm3641, %vm3643
        %vm3646 = vmand %vm3642, %vm3644
        %v3647 = vsel %vm3645, 1.0, 0.0
        %v3648 = vsel %vm3646, 1.0, 0.0
        %v3649 = vpack.c.bf16 %v3648, %v3647
        %3650 = vmatprep.subr.bf16.mxu0 0
        %3651 = vmatpush1.bf16.msra.mxu0 %v3649
        %3652 = vmatprep.subr.bf16.mxu0 0
        %3653 = vmatpush1.bf16.msra.mxu0 0
        %3654 = vmatprep.subr.bf16.mxu0 0
        %3655 = vmatpush1.bf16.msra.mxu0 0
        %3656 = vmatprep.subr.bf16.mxu0 0
        %3657 = vmatpush1.bf16.msra.mxu0 0
        %3658 = vmatprep.subr.bf16.mxu0 0
        %3659 = vmatpush1.bf16.msra.mxu0 0
        %3660 = vmatprep.subr.bf16.mxu0 0
        %3661 = vmatpush1.bf16.msra.mxu0 0
        %3662 = vmatprep.subr.bf16.mxu0 0
        %3663 = vmatpush1.bf16.msra.mxu0 0
        %3664 = vmatprep.subr.bf16.mxu0 0
        %3665 = vmatpush1.bf16.msra.mxu0 0
        %3666 = vmatprep.subr.bf16.mxu0 0
        %3667 = vmatpush1.bf16.msra.mxu0 0
        %3668 = vmatprep.subr.bf16.mxu0 0
        %3669 = vmatpush1.bf16.msra.mxu0 0
        %3670 = vmatprep.subr.bf16.mxu0 0
        %3671 = vmatpush1.bf16.msra.mxu0 0
        %3672 = vmatprep.subr.bf16.mxu0 0
        %3673 = vmatpush1.bf16.msra.mxu0 0
        %3674 = vmatprep.subr.bf16.mxu0 0
        %3675 = vmatpush1.bf16.msra.mxu0 0
        %3676 = vmatprep.subr.bf16.mxu0 0
        %3677 = vmatpush1.bf16.msra.mxu0 0
        %3678 = vmatprep.subr.bf16.mxu0 0
        %3679 = vmatpush1.bf16.msra.mxu0 0
        %3680 = vmatprep.subr.bf16.mxu0 0
        %3681 = vmatpush1.bf16.msra.mxu0 0
        %3682 = vmatprep.mubr.bf16.mxu0 0
        %3683 = vmatmul.mubr.bf16.gmra.mrb[0].mxu0 %v3076
        %v3684 = vpop.f32.mrb[0].mxu0
        %v3685 = vadd.f32 0.0, %v3684
        %v3686 = vpop.f32.mrb[0].mxu0
        %v3687 = vpop.f32.mrb[0].mxu0
        %v3688 = vadd.f32 0.0, %v3687
        %v3689 = vpop.f32.mrb[0].mxu0
        %3690 = vmatprep.mubr.bf16.mxu0 0
        %3691 = vmatmul.mubr.bf16.gmra.mrb[0].mxu0 %v3079
        %v3692 = vpop.f32.mrb[0].mxu0
        %v3693 = vadd.f32 0.0, %v3692
        %v3694 = vpop.f32.mrb[0].mxu0
        %v3695 = vpop.f32.mrb[0].mxu0
        %v3696 = vadd.f32 0.0, %v3695
        %v3697 = vpop.f32.mrb[0].mxu0
        %3698 = vdwg.mxu0
        %s3699 = scalar_lea.vmem %s9, 40
        %v3700 = vld [vmem:[%s3699] sm:$0xf]
        %v3701 = vld [vmem:[%s3699 + $0x4] sm:$0xf]
        %v3702 = vpack.c.bf16 %v3688, %v3685
        %v3703 = vpack.c.bf16 %v3696, %v3693
        %v3706 = vunpack.c.l.b16 %v3700
        %v3707 = vunpack.c.l.b16 %v3701
        %v3708 = vpack.c.b16 %v3707, %v3706
        %v3710 = vsel %vm2906, %v3708, 0
        %3712 = vmatprep.subr.bf16.mxu0 0
        %3713 = vmatpush1.bf16.msra.mxu0 %v3702
        %3714 = vmatprep.subr.bf16.mxu0 0
        %3715 = vmatpush1.bf16.msra.mxu0 %v3703
        %3716 = vmatprep.subr.bf16.mxu0 0
        %3717 = vmatpush1.bf16.msra.mxu0 0
        %3718 = vmatprep.subr.bf16.mxu0 0
        %3719 = vmatpush1.bf16.msra.mxu0 0
        %3720 = vmatprep.subr.bf16.mxu0 0
        %3721 = vmatpush1.bf16.msra.mxu0 0
        %3722 = vmatprep.subr.bf16.mxu0 0
        %3723 = vmatpush1.bf16.msra.mxu0 0
        %3724 = vmatprep.subr.bf16.mxu0 0
        %3725 = vmatpush1.bf16.msra.mxu0 0
        %3726 = vmatprep.subr.bf16.mxu0 0
        %3727 = vmatpush1.bf16.msra.mxu0 0
        %3728 = vmatprep.subr.bf16.mxu0 0
        %3729 = vmatpush1.bf16.msra.mxu0 0
        %3730 = vmatprep.subr.bf16.mxu0 0
        %3731 = vmatpush1.bf16.msra.mxu0 0
        %3732 = vmatprep.subr.bf16.mxu0 0
        %3733 = vmatpush1.bf16.msra.mxu0 0
        %3734 = vmatprep.subr.bf16.mxu0 0
        %3735 = vmatpush1.bf16.msra.mxu0 0
        %3736 = vmatprep.subr.bf16.mxu0 0
        %3737 = vmatpush1.bf16.msra.mxu0 0
        %3738 = vmatprep.subr.bf16.mxu0 0
        %3739 = vmatpush1.bf16.msra.mxu0 0
        %3740 = vmatprep.subr.bf16.mxu0 0
        %3741 = vmatpush1.bf16.msra.mxu0 0
        %3742 = vmatprep.subr.bf16.mxu0 0
        %3743 = vmatpush1.bf16.msra.mxu0 0
        %3744 = vmatprep.mubr.bf16.mxu0 0
        %3745 = vmatmul.mubr.bf16.gmra.mrb[0].mxu0 %v3710
        %v3746 = vpop.f32.mrb[0].mxu0
        %v3747 = vadd.f32 0.0, %v3746
        %v3748 = vpop.f32.mrb[0].mxu0
        %v3749 = vpop.f32.mrb[0].mxu0
        %v3750 = vadd.f32 0.0, %v3749
        %v3751 = vpop.f32.mrb[0].mxu0
        %3752 = vdwg.mxu0
        %v3753 = vadd.f32 %v3638, %v3747
        %v3754 = vadd.f32 %v3639, %v3750
        %v3755 = vadd.s32 %v475, 3
        %vm3756 = vcmp.le.s32.totalorder %v3062, %v3755
        %vm3757 = vcmp.le.s32.totalorder %v3063, %v3755
        %vm3758 = vcmp.le.s32.totalorder %v3755, %v3066
        %vm3759 = vcmp.le.s32.totalorder %v3755, %v3067
        %vm3760 = vmand %vm3756, %vm3758
        %vm3761 = vmand %vm3757, %vm3759
        %v3762 = vsel %vm3760, 1.0, 0.0
        %v3763 = vsel %vm3761, 1.0, 0.0
        %v3764 = vpack.c.bf16 %v3763, %v3762
        %3765 = vmatprep.subr.bf16.mxu0 0
        %3766 = vmatpush1.bf16.msra.mxu0 %v3764
        %3767 = vmatprep.subr.bf16.mxu0 0
        %3768 = vmatpush1.bf16.msra.mxu0 0
        %3769 = vmatprep.subr.bf16.mxu0 0
        %3770 = vmatpush1.bf16.msra.mxu0 0
        %3771 = vmatprep.subr.bf16.mxu0 0
        %3772 = vmatpush1.bf16.msra.mxu0 0
        %3773 = vmatprep.subr.bf16.mxu0 0
        %3774 = vmatpush1.bf16.msra.mxu0 0
        %3775 = vmatprep.subr.bf16.mxu0 0
        %3776 = vmatpush1.bf16.msra.mxu0 0
        %3777 = vmatprep.subr.bf16.mxu0 0
        %3778 = vmatpush1.bf16.msra.mxu0 0
        %3779 = vmatprep.subr.bf16.mxu0 0
        %3780 = vmatpush1.bf16.msra.mxu0 0
        %3781 = vmatprep.subr.bf16.mxu0 0
        %3782 = vmatpush1.bf16.msra.mxu0 0
        %3783 = vmatprep.subr.bf16.mxu0 0
        %3784 = vmatpush1.bf16.msra.mxu0 0
        %3785 = vmatprep.subr.bf16.mxu0 0
        %3786 = vmatpush1.bf16.msra.mxu0 0
        %3787 = vmatprep.subr.bf16.mxu0 0
        %3788 = vmatpush1.bf16.msra.mxu0 0
        %3789 = vmatprep.subr.bf16.mxu0 0
        %3790 = vmatpush1.bf16.msra.mxu0 0
        %3791 = vmatprep.subr.bf16.mxu0 0
        %3792 = vmatpush1.bf16.msra.mxu0 0
        %3793 = vmatprep.subr.bf16.mxu0 0
        %3794 = vmatpush1.bf16.msra.mxu0 0
        %3795 = vmatprep.subr.bf16.mxu0 0
        %3796 = vmatpush1.bf16.msra.mxu0 0
        %3797 = vmatprep.mubr.bf16.mxu0 0
        %3798 = vmatmul.mubr.bf16.gmra.mrb[0].mxu0 %v3076
        %v3799 = vpop.f32.mrb[0].mxu0
        %v3800 = vadd.f32 0.0, %v3799
        %v3801 = vpop.f32.mrb[0].mxu0
        %v3802 = vpop.f32.mrb[0].mxu0
        %v3803 = vadd.f32 0.0, %v3802
        %v3804 = vpop.f32.mrb[0].mxu0
        %3805 = vmatprep.mubr.bf16.mxu0 0
        %3806 = vmatmul.mubr.bf16.gmra.mrb[0].mxu0 %v3079
        %v3807 = vpop.f32.mrb[0].mxu0
        %v3808 = vadd.f32 0.0, %v3807
        %v3809 = vpop.f32.mrb[0].mxu0
        %v3810 = vpop.f32.mrb[0].mxu0
        %v3811 = vadd.f32 0.0, %v3810
        %v3812 = vpop.f32.mrb[0].mxu0
        %3813 = vdwg.mxu0
        %s3814 = scalar_lea.vmem %s9, 48
        %v3815 = vld [vmem:[%s3814] sm:$0xf]
        %v3816 = vld [vmem:[%s3814 + $0x4] sm:$0xf]
        %v3817 = vpack.c.bf16 %v3803, %v3800
        %v3818 = vpack.c.bf16 %v3811, %v3808
        %v3821 = vunpack.c.l.b16 %v3815
        %v3822 = vunpack.c.l.b16 %v3816
        %v3823 = vpack.c.b16 %v3822, %v3821
        %v3825 = vsel %vm2906, %v3823, 0
        %3827 = vmatprep.subr.bf16.mxu0 0
        %3828 = vmatpush1.bf16.msra.mxu0 %v3817
        %3829 = vmatprep.subr.bf16.mxu0 0
        %3830 = vmatpush1.bf16.msra.mxu0 %v3818
        %3831 = vmatprep.subr.bf16.mxu0 0
        %3832 = vmatpush1.bf16.msra.mxu0 0
        %3833 = vmatprep.subr.bf16.mxu0 0
        %3834 = vmatpush1.bf16.msra.mxu0 0
        %3835 = vmatprep.subr.bf16.mxu0 0
        %3836 = vmatpush1.bf16.msra.mxu0 0
        %3837 = vmatprep.subr.bf16.mxu0 0
        %3838 = vmatpush1.bf16.msra.mxu0 0
        %3839 = vmatprep.subr.bf16.mxu0 0
        %3840 = vmatpush1.bf16.msra.mxu0 0
        %3841 = vmatprep.subr.bf16.mxu0 0
        %3842 = vmatpush1.bf16.msra.mxu0 0
        %3843 = vmatprep.subr.bf16.mxu0 0
        %3844 = vmatpush1.bf16.msra.mxu0 0
        %3845 = vmatprep.subr.bf16.mxu0 0
        %3846 = vmatpush1.bf16.msra.mxu0 0
        %3847 = vmatprep.subr.bf16.mxu0 0
        %3848 = vmatpush1.bf16.msra.mxu0 0
        %3849 = vmatprep.subr.bf16.mxu0 0
        %3850 = vmatpush1.bf16.msra.mxu0 0
        %3851 = vmatprep.subr.bf16.mxu0 0
        %3852 = vmatpush1.bf16.msra.mxu0 0
        %3853 = vmatprep.subr.bf16.mxu0 0
        %3854 = vmatpush1.bf16.msra.mxu0 0
        %3855 = vmatprep.subr.bf16.mxu0 0
        %3856 = vmatpush1.bf16.msra.mxu0 0
        %3857 = vmatprep.subr.bf16.mxu0 0
        %3858 = vmatpush1.bf16.msra.mxu0 0
        %3859 = vmatprep.mubr.bf16.mxu0 0
        %3860 = vmatmul.mubr.bf16.gmra.mrb[0].mxu0 %v3825
        %v3861 = vpop.f32.mrb[0].mxu0
        %v3862 = vadd.f32 0.0, %v3861
        %v3863 = vpop.f32.mrb[0].mxu0
        %v3864 = vpop.f32.mrb[0].mxu0
        %v3865 = vadd.f32 0.0, %v3864
        %v3866 = vpop.f32.mrb[0].mxu0
        %3867 = vdwg.mxu0
        %v3868 = vadd.f32 %v3753, %v3862
        %v3869 = vadd.f32 %v3754, %v3865
        %v3870 = vld [vmem:[%s10] sm:$0xff]
        %v3871 = vld [vmem:[%s10 + $0x8] sm:$0xff]
        %3873 = vset.pattern.permute.xlu0 0
        %3874 = vperm.xlu0 %3873, %v3870
        %v3875 = vpop.permute.xlu0 %3874
        %3878 = vset.pattern.permute.xlu0 0
        %3879 = vperm.xlu0 %3878, %v3871
        %v3880 = vpop.permute.xlu0 %3879
        %v3882 = vadd.f32 %v3868, %v3875
        %v3883 = vadd.f32 %v3869, %v3880
        %vm3884 = vcmp.ge.f32.partialorder %v3882, 0.0
        %vm3885 = vcmp.ge.f32.partialorder %v3883, 0.0
        %v3886 = vmul.f32 %v3882, 0.2
        %v3887 = vmul.f32 %v3883, 0.2
        %v3888 = vsel %vm3884, %v3882, %v3886
        %v3889 = vsel %vm3885, %v3883, %v3887
        %v3890 = vpack.c.bf16 %v3889, %v3888
        %v3891 = vadd.s32 %v475, 128
        %v3892 = vadd.s32 %v3891, 4294967293
        %v3893 = vmul.u32 %v444, 4
        %v3894 = vmul.u32 %v445, 4
        %v3895 = vmul.u32 %v446, 4
        %v3896 = vmul.u32 %v447, 4
        %v3897 = vmul.u32 %v448, 4
        %v3898 = vmul.u32 %v449, 4
        %vm3899 = vcmp.le.s32.totalorder %v3062, %v3892
        %vm3900 = vcmp.le.s32.totalorder %v3063, %v3892
        %vm3901 = vcmp.le.s32.totalorder %v3893, %v3061
        %vm3902 = vcmp.le.s32.totalorder %v3893, %v3892
        %vm3903 = vcmp.le.s32.totalorder %v3894, %v3061
        %vm3904 = vcmp.le.s32.totalorder %v3894, %v3892
        %vm3905 = vcmp.le.s32.totalorder %v3895, %v3061
        %vm3906 = vcmp.le.s32.totalorder %v3895, %v3892
        %vm3907 = vcmp.le.s32.totalorder %v3896, %v3061
        %vm3908 = vcmp.le.s32.totalorder %v3896, %v3892
        %vm3909 = vcmp.le.s32.totalorder %v3897, %v3061
        %vm3910 = vcmp.le.s32.totalorder %v3897, %v3892
        %vm3911 = vcmp.le.s32.totalorder %v3898, %v3061
        %vm3912 = vcmp.le.s32.totalorder %v3898, %v3892
        %v3913 = vadd.s32 %v3893, 3
        %v3914 = vadd.s32 %v3894, 3
        %v3915 = vadd.s32 %v3895, 3
        %v3916 = vadd.s32 %v3896, 3
        %v3917 = vadd.s32 %v3897, 3
        %v3918 = vadd.s32 %v3898, 3
        %vm3919 = vcmp.le.s32.totalorder %v3892, %v3066
        %vm3920 = vcmp.le.s32.totalorder %v3892, %v3067
        %vm3921 = vcmp.le.s32.totalorder %v3061, %v3913
        %vm3922 = vcmp.le.s32.totalorder %v3892, %v3913
        %vm3923 = vcmp.le.s32.totalorder %v3061, %v3914
        %vm3924 = vcmp.le.s32.totalorder %v3892, %v3914
        %vm3925 = vcmp.le.s32.totalorder %v3061, %v3915
        %vm3926 = vcmp.le.s32.totalorder %v3892, %v3915
        %vm3927 = vcmp.le.s32.totalorder %v3061, %v3916
        %vm3928 = vcmp.le.s32.totalorder %v3892, %v3916
        %vm3929 = vcmp.le.s32.totalorder %v3061, %v3917
        %vm3930 = vcmp.le.s32.totalorder %v3892, %v3917
        %vm3931 = vcmp.le.s32.totalorder %v3061, %v3918
        %vm3932 = vcmp.le.s32.totalorder %v3892, %v3918
        %vm3933 = vmand %vm3899, %vm3919
        %vm3934 = vmand %vm3900, %vm3920
        %vm3935 = vmand %vm3901, %vm3921
        %vm3936 = vmand %vm3902, %vm3922
        %vm3937 = vmand %vm3903, %vm3923
        %vm3938 = vmand %vm3904, %vm3924
        %vm3939 = vmand %vm3905, %vm3925
        %vm3940 = vmand %vm3906, %vm3926
        %vm3941 = vmand %vm3907, %vm3927
        %vm3942 = vmand %vm3908, %vm3928
        %vm3943 = vmand %vm3909, %vm3929
        %vm3944 = vmand %vm3910, %vm3930
        %vm3945 = vmand %vm3911, %vm3931
        %vm3946 = vmand %vm3912, %vm3932
        %v3947 = vsel %vm3933, 1.0, 0.0
        %v3948 = vsel %vm3934, 1.0, 0.0
        %v3949 = vsel %vm3935, 1.0, 0.0
        %v3950 = vsel %vm3936, 1.0, 0.0
        %v3951 = vsel %vm3937, 1.0, 0.0
        %v3952 = vsel %vm3938, 1.0, 0.0
        %v3953 = vsel %vm3939, 1.0, 0.0
        %v3954 = vsel %vm3940, 1.0, 0.0
        %v3955 = vsel %vm3941, 1.0, 0.0
        %v3956 = vsel %vm3942, 1.0, 0.0
        %v3957 = vsel %vm3943, 1.0, 0.0
        %v3958 = vsel %vm3944, 1.0, 0.0
        %v3959 = vsel %vm3945, 1.0, 0.0
        %v3960 = vsel %vm3946, 1.0, 0.0
        %v3961 = vpack.c.bf16 %v3948, %v3947
        %v3962 = vpack.c.bf16 %v3951, %v3949
        %v3963 = vpack.c.bf16 %v3952, %v3950
        %v3964 = vpack.c.bf16 %v3955, %v3953
        %v3965 = vpack.c.bf16 %v3956, %v3954
        %v3966 = vpack.c.bf16 %v3959, %v3957
        %v3967 = vpack.c.bf16 %v3960, %v3958
        %v3969 = vsel %vm1933, %v3890, 0
        %3971 = vmatprep.subr.bf16.mxu0 %v3961
        %3972 = vmatpush1.bf16.msra.mxu0 %v3074
        %3973 = vmatprep.subr.bf16.mxu0 %v3963
        %3974 = vmatpush1.bf16.msra.mxu0 %v3962
        %3975 = vmatprep.subr.bf16.mxu0 %v3965
        %3976 = vmatpush1.bf16.msra.mxu0 %v3964
        %3977 = vmatprep.subr.bf16.mxu0 %v3967
        %3978 = vmatpush1.bf16.msra.mxu0 %v3966
        %3979 = vmatprep.subr.bf16.mxu0 0
        %3980 = vmatpush1.bf16.msra.mxu0 0
        %3981 = vmatprep.subr.bf16.mxu0 0
        %3982 = vmatpush1.bf16.msra.mxu0 0
        %3983 = vmatprep.subr.bf16.mxu0 0
        %3984 = vmatpush1.bf16.msra.mxu0 0
        %3985 = vmatprep.subr.bf16.mxu0 0
        %3986 = vmatpush1.bf16.msra.mxu0 0
        %3987 = vmatprep.subr.bf16.mxu0 0
        %3988 = vmatpush1.bf16.msra.mxu0 0
        %3989 = vmatprep.subr.bf16.mxu0 0
        %3990 = vmatpush1.bf16.msra.mxu0 0
        %3991 = vmatprep.subr.bf16.mxu0 0
        %3992 = vmatpush1.bf16.msra.mxu0 0
        %3993 = vmatprep.subr.bf16.mxu0 0
        %3994 = vmatpush1.bf16.msra.mxu0 0
        %3995 = vmatprep.subr.bf16.mxu0 0
        %3996 = vmatpush1.bf16.msra.mxu0 0
        %3997 = vmatprep.subr.bf16.mxu0 0
        %3998 = vmatpush1.bf16.msra.mxu0 0
        %3999 = vmatprep.subr.bf16.mxu0 0
        %4000 = vmatpush1.bf16.msra.mxu0 0
        %4001 = vmatprep.subr.bf16.mxu0 0
        %4002 = vmatpush1.bf16.msra.mxu0 0
        %4003 = vmatprep.mubr.bf16.mxu0 0
        %4004 = vmatmul.mubr.bf16.gmra.mrb[0].mxu0 %v3969
        %v4005 = vpop.f32.mrb[0].mxu0
        %v4006 = vadd.f32 0.0, %v4005
        %v4007 = vpop.f32.mrb[0].mxu0
        %v4008 = vadd.f32 0.0, %v4007
        %v4009 = vpop.f32.mrb[0].mxu0
        %v4010 = vadd.f32 0.0, %v4009
        %v4011 = vpop.f32.mrb[0].mxu0
        %v4012 = vadd.f32 0.0, %v4011
        %4013 = vdwg.mxu0
        %v4014 = vld [vmem:[%s11] sm:$0xf]
        %v4015 = vpack.c.bf16 %v4010, %v4006
        %v4016 = vpack.c.bf16 %v4012, %v4008
        %v4017 = vadd.s32 %v3891, 4294967294
        %vm4018 = vcmp.le.s32.totalorder %v3062, %v4017
        %vm4019 = vcmp.le.s32.totalorder %v3063, %v4017
        %vm4020 = vcmp.le.s32.totalorder %v3893, %v3134
        %vm4021 = vcmp.le.s32.totalorder %v3893, %v4017
        %vm4022 = vcmp.le.s32.totalorder %v3894, %v3134
        %vm4023 = vcmp.le.s32.totalorder %v3894, %v4017
        %vm4024 = vcmp.le.s32.totalorder %v3895, %v3134
        %vm4025 = vcmp.le.s32.totalorder %v3895, %v4017
        %vm4026 = vcmp.le.s32.totalorder %v3896, %v3134
        %vm4027 = vcmp.le.s32.totalorder %v3896, %v4017
        %vm4028 = vcmp.le.s32.totalorder %v3897, %v3134
        %vm4029 = vcmp.le.s32.totalorder %v3897, %v4017
        %vm4030 = vcmp.le.s32.totalorder %v3898, %v3134
        %vm4031 = vcmp.le.s32.totalorder %v3898, %v4017
        %vm4032 = vcmp.le.s32.totalorder %v4017, %v3066
        %vm4033 = vcmp.le.s32.totalorder %v4017, %v3067
        %vm4034 = vcmp.le.s32.totalorder %v3134, %v3913
        %vm4035 = vcmp.le.s32.totalorder %v4017, %v3913
        %vm4036 = vcmp.le.s32.totalorder %v3134, %v3914
        %vm4037 = vcmp.le.s32.totalorder %v4017, %v3914
        %vm4038 = vcmp.le.s32.totalorder %v3134, %v3915
        %vm4039 = vcmp.le.s32.totalorder %v4017, %v3915
        %vm4040 = vcmp.le.s32.totalorder %v3134, %v3916
        %vm4041 = vcmp.le.s32.totalorder %v4017, %v3916
        %vm4042 = vcmp.le.s32.totalorder %v3134, %v3917
        %vm4043 = vcmp.le.s32.totalorder %v4017, %v3917
        %vm4044 = vcmp.le.s32.totalorder %v3134, %v3918
        %vm4045 = vcmp.le.s32.totalorder %v4017, %v3918
        %vm4046 = vmand %vm4018, %vm4032
        %vm4047 = vmand %vm4019, %vm4033
        %vm4048 = vmand %vm4020, %vm4034
        %vm4049 = vmand %vm4021, %vm4035
        %vm4050 = vmand %vm4022, %vm4036
        %vm4051 = vmand %vm4023, %vm4037
        %vm4052 = vmand %vm4024, %vm4038
        %vm4053 = vmand %vm4025, %vm4039
        %vm4054 = vmand %vm4026, %vm4040
        %vm4055 = vmand %vm4027, %vm4041
        %vm4056 = vmand %vm4028, %vm4042
        %vm4057 = vmand %vm4029, %vm4043
        %vm4058 = vmand %vm4030, %vm4044
        %vm4059 = vmand %vm4031, %vm4045
        %v4060 = vsel %vm4046, 1.0, 0.0
        %v4061 = vsel %vm4047, 1.0, 0.0
        %v4062 = vsel %vm4048, 1.0, 0.0
        %v4063 = vsel %vm4049, 1.0, 0.0
        %v4064 = vsel %vm4050, 1.0, 0.0
        %v4065 = vsel %vm4051, 1.0, 0.0
        %v4066 = vsel %vm4052, 1.0, 0.0
        %v4067 = vsel %vm4053, 1.0, 0.0
        %v4068 = vsel %vm4054, 1.0, 0.0
        %v4069 = vsel %vm4055, 1.0, 0.0
        %v4070 = vsel %vm4056, 1.0, 0.0
        %v4071 = vsel %vm4057, 1.0, 0.0
        %v4072 = vsel %vm4058, 1.0, 0.0
        %v4073 = vsel %vm4059, 1.0, 0.0
        %v4074 = vpack.c.bf16 %v4061, %v4060
        %v4075 = vpack.c.bf16 %v4064, %v4062
        %v4076 = vpack.c.bf16 %v4065, %v4063
        %v4077 = vpack.c.bf16 %v4068, %v4066
        %v4078 = vpack.c.bf16 %v4069, %v4067
        %v4079 = vpack.c.bf16 %v4072, %v4070
        %v4080 = vpack.c.bf16 %v4073, %v4071
        %4081 = vmatprep.subr.bf16.mxu0 %v4074
        %4082 = vmatpush1.bf16.msra.mxu0 %v3143
        %4083 = vmatprep.subr.bf16.mxu0 %v4076
        %4084 = vmatpush1.bf16.msra.mxu0 %v4075
        %4085 = vmatprep.subr.bf16.mxu0 %v4078
        %4086 = vmatpush1.bf16.msra.mxu0 %v4077
        %4087 = vmatprep.subr.bf16.mxu0 %v4080
        %4088 = vmatpush1.bf16.msra.mxu0 %v4079
        %4089 = vmatprep.subr.bf16.mxu0 0
        %4090 = vmatpush1.bf16.msra.mxu0 0
        %4091 = vmatprep.subr.bf16.mxu0 0
        %4092 = vmatpush1.bf16.msra.mxu0 0
        %4093 = vmatprep.subr.bf16.mxu0 0
        %4094 = vmatpush1.bf16.msra.mxu0 0
        %4095 = vmatprep.subr.bf16.mxu0 0
        %4096 = vmatpush1.bf16.msra.mxu0 0
        %4097 = vmatprep.subr.bf16.mxu0 0
        %4098 = vmatpush1.bf16.msra.mxu0 0
        %4099 = vmatprep.subr.bf16.mxu0 0
        %4100 = vmatpush1.bf16.msra.mxu0 0
        %4101 = vmatprep.subr.bf16.mxu0 0
        %4102 = vmatpush1.bf16.msra.mxu0 0
        %4103 = vmatprep.subr.bf16.mxu0 0
        %4104 = vmatpush1.bf16.msra.mxu0 0
        %4105 = vmatprep.subr.bf16.mxu0 0
        %4106 = vmatpush1.bf16.msra.mxu0 0
        %4107 = vmatprep.subr.bf16.mxu0 0
        %4108 = vmatpush1.bf16.msra.mxu0 0
        %4109 = vmatprep.subr.bf16.mxu0 0
        %4110 = vmatpush1.bf16.msra.mxu0 0
        %4111 = vmatprep.subr.bf16.mxu0 0
        %4112 = vmatpush1.bf16.msra.mxu0 0
        %4113 = vmatprep.mubr.bf16.mxu0 0
        %4114 = vmatmul.mubr.bf16.gmra.mrb[0].mxu0 %v3969
        %v4115 = vpop.f32.mrb[0].mxu0
        %v4116 = vadd.f32 0.0, %v4115
        %v4117 = vpop.f32.mrb[0].mxu0
        %v4118 = vadd.f32 0.0, %v4117
        %v4119 = vpop.f32.mrb[0].mxu0
        %v4120 = vadd.f32 0.0, %v4119
        %v4121 = vpop.f32.mrb[0].mxu0
        %v4122 = vadd.f32 0.0, %v4121
        %4123 = vdwg.mxu0
        %s4124 = scalar_lea.vmem %s11, 4
        %v4125 = vld [vmem:[%s4124] sm:$0xf]
        %v4126 = vpack.c.bf16 %v4120, %v4116
        %v4127 = vpack.c.bf16 %v4122, %v4118
        %v4129 = vsel %vm2040, %v4125, 0
        %4131 = vmatprep.subr.bf16.mxu0 %v4127
        %4132 = vmatpush1.bf16.msra.mxu0 %v4126
        %4133 = vmatprep.subr.bf16.mxu0 0
        %4134 = vmatpush1.bf16.msra.mxu0 0
        %4135 = vmatprep.subr.bf16.mxu0 0
        %4136 = vmatpush1.bf16.msra.mxu0 0
        %4137 = vmatprep.subr.bf16.mxu0 0
        %4138 = vmatpush1.bf16.msra.mxu0 0
        %4139 = vmatprep.subr.bf16.mxu0 0
        %4140 = vmatpush1.bf16.msra.mxu0 0
        %4141 = vmatprep.subr.bf16.mxu0 0
        %4142 = vmatpush1.bf16.msra.mxu0 0
        %4143 = vmatprep.subr.bf16.mxu0 0
        %4144 = vmatpush1.bf16.msra.mxu0 0
        %4145 = vmatprep.subr.bf16.mxu0 0
        %4146 = vmatpush1.bf16.msra.mxu0 0
        %4147 = vmatprep.subr.bf16.mxu0 0
        %4148 = vmatpush1.bf16.msra.mxu0 0
        %4149 = vmatprep.subr.bf16.mxu0 0
        %4150 = vmatpush1.bf16.msra.mxu0 0
        %4151 = vmatprep.subr.bf16.mxu0 0
        %4152 = vmatpush1.bf16.msra.mxu0 0
        %4153 = vmatprep.subr.bf16.mxu0 0
        %4154 = vmatpush1.bf16.msra.mxu0 0
        %4155 = vmatprep.subr.bf16.mxu0 0
        %4156 = vmatpush1.bf16.msra.mxu0 0
        %4157 = vmatprep.subr.bf16.mxu0 0
        %4158 = vmatpush1.bf16.msra.mxu0 0
        %4159 = vmatprep.subr.bf16.mxu0 0
        %4160 = vmatpush1.bf16.msra.mxu0 0
        %4161 = vmatprep.subr.bf16.mxu0 0
        %4162 = vmatpush1.bf16.msra.mxu0 0
        %4163 = vmatprep.mubr.bf16.mxu0 0
        %4164 = vmatmul.mubr.bf16.gmra.mrb[0].mxu0 %v4129
        %v4165 = vpop.f32.mrb[0].mxu0
        %v4166 = vadd.f32 0.0, %v4165
        %v4167 = vpop.f32.mrb[0].mxu0
        %v4168 = vadd.f32 0.0, %v4167
        %v4169 = vpop.f32.mrb[0].mxu0
        %v4170 = vpop.f32.mrb[0].mxu0
        %4171 = vdwg.mxu0
        %v4173 = vsel %vm2040, %v4014, 0
        %4175 = vmatprep.subr.bf16.mxu0 %v4016
        %4176 = vmatpush1.bf16.msra.mxu0 %v4015
        %4177 = vmatprep.subr.bf16.mxu0 0
        %4178 = vmatpush1.bf16.msra.mxu0 0
        %4179 = vmatprep.subr.bf16.mxu0 0
        %4180 = vmatpush1.bf16.msra.mxu0 0
        %4181 = vmatprep.subr.bf16.mxu0 0
        %4182 = vmatpush1.bf16.msra.mxu0 0
        %4183 = vmatprep.subr.bf16.mxu0 0
        %4184 = vmatpush1.bf16.msra.mxu0 0
        %4185 = vmatprep.subr.bf16.mxu0 0
        %4186 = vmatpush1.bf16.msra.mxu0 0
        %4187 = vmatprep.subr.bf16.mxu0 0
        %4188 = vmatpush1.bf16.msra.mxu0 0
        %4189 = vmatprep.subr.bf16.mxu0 0
        %4190 = vmatpush1.bf16.msra.mxu0 0
        %4191 = vmatprep.subr.bf16.mxu0 0
        %4192 = vmatpush1.bf16.msra.mxu0 0
        %4193 = vmatprep.subr.bf16.mxu0 0
        %4194 = vmatpush1.bf16.msra.mxu0 0
        %4195 = vmatprep.subr.bf16.mxu0 0
        %4196 = vmatpush1.bf16.msra.mxu0 0
        %4197 = vmatprep.subr.bf16.mxu0 0
        %4198 = vmatpush1.bf16.msra.mxu0 0
        %4199 = vmatprep.subr.bf16.mxu0 0
        %4200 = vmatpush1.bf16.msra.mxu0 0
        %4201 = vmatprep.subr.bf16.mxu0 0
        %4202 = vmatpush1.bf16.msra.mxu0 0
        %4203 = vmatprep.subr.bf16.mxu0 0
        %4204 = vmatpush1.bf16.msra.mxu0 0
        %4205 = vmatprep.subr.bf16.mxu0 0
        %4206 = vmatpush1.bf16.msra.mxu0 0
        %4207 = vmatprep.mubr.bf16.mxu0 0
        %4208 = vmatmul.mubr.bf16.gmra.mrb[0].mxu0 %v4173
        %v4209 = vpop.f32.mrb[0].mxu0
        %v4210 = vadd.f32 %v4166, %v4209
        %v4211 = vpop.f32.mrb[0].mxu0
        %v4212 = vadd.f32 %v4168, %v4211
        %v4213 = vpop.f32.mrb[0].mxu0
        %v4214 = vpop.f32.mrb[0].mxu0
        %4215 = vdwg.mxu0
        %v4216 = vadd.s32 %v3891, 4294967295
        %vm4217 = vcmp.le.s32.totalorder %v3062, %v4216
        %vm4218 = vcmp.le.s32.totalorder %v3063, %v4216
        %vm4219 = vcmp.le.s32.totalorder %v3893, %v3296
        %vm4220 = vcmp.le.s32.totalorder %v3893, %v4216
        %vm4221 = vcmp.le.s32.totalorder %v3894, %v3296
        %vm4222 = vcmp.le.s32.totalorder %v3894, %v4216
        %vm4223 = vcmp.le.s32.totalorder %v3895, %v3296
        %vm4224 = vcmp.le.s32.totalorder %v3895, %v4216
        %vm4225 = vcmp.le.s32.totalorder %v3896, %v3296
        %vm4226 = vcmp.le.s32.totalorder %v3896, %v4216
        %vm4227 = vcmp.le.s32.totalorder %v3897, %v3296
        %vm4228 = vcmp.le.s32.totalorder %v3897, %v4216
        %vm4229 = vcmp.le.s32.totalorder %v3898, %v3296
        %vm4230 = vcmp.le.s32.totalorder %v3898, %v4216
        %vm4231 = vcmp.le.s32.totalorder %v4216, %v3066
        %vm4232 = vcmp.le.s32.totalorder %v4216, %v3067
        %vm4233 = vcmp.le.s32.totalorder %v3296, %v3913
        %vm4234 = vcmp.le.s32.totalorder %v4216, %v3913
        %vm4235 = vcmp.le.s32.totalorder %v3296, %v3914
        %vm4236 = vcmp.le.s32.totalorder %v4216, %v3914
        %vm4237 = vcmp.le.s32.totalorder %v3296, %v3915
        %vm4238 = vcmp.le.s32.totalorder %v4216, %v3915
        %vm4239 = vcmp.le.s32.totalorder %v3296, %v3916
        %vm4240 = vcmp.le.s32.totalorder %v4216, %v3916
        %vm4241 = vcmp.le.s32.totalorder %v3296, %v3917
        %vm4242 = vcmp.le.s32.totalorder %v4216, %v3917
        %vm4243 = vcmp.le.s32.totalorder %v3296, %v3918
        %vm4244 = vcmp.le.s32.totalorder %v4216, %v3918
        %vm4245 = vmand %vm4217, %vm4231
        %vm4246 = vmand %vm4218, %vm4232
        %vm4247 = vmand %vm4219, %vm4233
        %vm4248 = vmand %vm4220, %vm4234
        %vm4249 = vmand %vm4221, %vm4235
        %vm4250 = vmand %vm4222, %vm4236
        %vm4251 = vmand %vm4223, %vm4237
        %vm4252 = vmand %vm4224, %vm4238
        %vm4253 = vmand %vm4225, %vm4239
        %vm4254 = vmand %vm4226, %vm4240
        %vm4255 = vmand %vm4227, %vm4241
        %vm4256 = vmand %vm4228, %vm4242
        %vm4257 = vmand %vm4229, %vm4243
        %vm4258 = vmand %vm4230, %vm4244
        %v4259 = vsel %vm4245, 1.0, 0.0
        %v4260 = vsel %vm4246, 1.0, 0.0
        %v4261 = vsel %vm4247, 1.0, 0.0
        %v4262 = vsel %vm4248, 1.0, 0.0
        %v4263 = vsel %vm4249, 1.0, 0.0
        %v4264 = vsel %vm4250, 1.0, 0.0
        %v4265 = vsel %vm4251, 1.0, 0.0
        %v4266 = vsel %vm4252, 1.0, 0.0
        %v4267 = vsel %vm4253, 1.0, 0.0
        %v4268 = vsel %vm4254, 1.0, 0.0
        %v4269 = vsel %vm4255, 1.0, 0.0
        %v4270 = vsel %vm4256, 1.0, 0.0
        %v4271 = vsel %vm4257, 1.0, 0.0
        %v4272 = vsel %vm4258, 1.0, 0.0
        %v4273 = vpack.c.bf16 %v4260, %v4259
        %v4274 = vpack.c.bf16 %v4263, %v4261
        %v4275 = vpack.c.bf16 %v4264, %v4262
        %v4276 = vpack.c.bf16 %v4267, %v4265
        %v4277 = vpack.c.bf16 %v4268, %v4266
        %v4278 = vpack.c.bf16 %v4271, %v4269
        %v4279 = vpack.c.bf16 %v4272, %v4270
        %4280 = vmatprep.subr.bf16.mxu0 %v4273
        %4281 = vmatpush1.bf16.msra.mxu0 %v3305
        %4282 = vmatprep.subr.bf16.mxu0 %v4275
        %4283 = vmatpush1.bf16.msra.mxu0 %v4274
        %4284 = vmatprep.subr.bf16.mxu0 %v4277
        %4285 = vmatpush1.bf16.msra.mxu0 %v4276
        %4286 = vmatprep.subr.bf16.mxu0 %v4279
        %4287 = vmatpush1.bf16.msra.mxu0 %v4278
        %4288 = vmatprep.subr.bf16.mxu0 0
        %4289 = vmatpush1.bf16.msra.mxu0 0
        %4290 = vmatprep.subr.bf16.mxu0 0
        %4291 = vmatpush1.bf16.msra.mxu0 0
        %4292 = vmatprep.subr.bf16.mxu0 0
        %4293 = vmatpush1.bf16.msra.mxu0 0
        %4294 = vmatprep.subr.bf16.mxu0 0
        %4295 = vmatpush1.bf16.msra.mxu0 0
        %4296 = vmatprep.subr.bf16.mxu0 0
        %4297 = vmatpush1.bf16.msra.mxu0 0
        %4298 = vmatprep.subr.bf16.mxu0 0
        %4299 = vmatpush1.bf16.msra.mxu0 0
        %4300 = vmatprep.subr.bf16.mxu0 0
        %4301 = vmatpush1.bf16.msra.mxu0 0
        %4302 = vmatprep.subr.bf16.mxu0 0
        %4303 = vmatpush1.bf16.msra.mxu0 0
        %4304 = vmatprep.subr.bf16.mxu0 0
        %4305 = vmatpush1.bf16.msra.mxu0 0
        %4306 = vmatprep.subr.bf16.mxu0 0
        %4307 = vmatpush1.bf16.msra.mxu0 0
        %4308 = vmatprep.subr.bf16.mxu0 0
        %4309 = vmatpush1.bf16.msra.mxu0 0
        %4310 = vmatprep.subr.bf16.mxu0 0
        %4311 = vmatpush1.bf16.msra.mxu0 0
        %4312 = vmatprep.mubr.bf16.mxu0 0
        %4313 = vmatmul.mubr.bf16.gmra.mrb[0].mxu0 %v3969
        %v4314 = vpop.f32.mrb[0].mxu0
        %v4315 = vadd.f32 0.0, %v4314
        %v4316 = vpop.f32.mrb[0].mxu0
        %v4317 = vadd.f32 0.0, %v4316
        %v4318 = vpop.f32.mrb[0].mxu0
        %v4319 = vadd.f32 0.0, %v4318
        %v4320 = vpop.f32.mrb[0].mxu0
        %v4321 = vadd.f32 0.0, %v4320
        %4322 = vdwg.mxu0
        %s4323 = scalar_lea.vmem %s11, 8
        %v4324 = vld [vmem:[%s4323] sm:$0xf]
        %v4325 = vpack.c.bf16 %v4319, %v4315
        %v4326 = vpack.c.bf16 %v4321, %v4317
        %v4328 = vsel %vm2040, %v4324, 0
        %4330 = vmatprep.subr.bf16.mxu0 %v4326
        %4331 = vmatpush1.bf16.msra.mxu0 %v4325
        %4332 = vmatprep.subr.bf16.mxu0 0
        %4333 = vmatpush1.bf16.msra.mxu0 0
        %4334 = vmatprep.subr.bf16.mxu0 0
        %4335 = vmatpush1.bf16.msra.mxu0 0
        %4336 = vmatprep.subr.bf16.mxu0 0
        %4337 = vmatpush1.bf16.msra.mxu0 0
        %4338 = vmatprep.subr.bf16.mxu0 0
        %4339 = vmatpush1.bf16.msra.mxu0 0
        %4340 = vmatprep.subr.bf16.mxu0 0
        %4341 = vmatpush1.bf16.msra.mxu0 0
        %4342 = vmatprep.subr.bf16.mxu0 0
        %4343 = vmatpush1.bf16.msra.mxu0 0
        %4344 = vmatprep.subr.bf16.mxu0 0
        %4345 = vmatpush1.bf16.msra.mxu0 0
        %4346 = vmatprep.subr.bf16.mxu0 0
        %4347 = vmatpush1.bf16.msra.mxu0 0
        %4348 = vmatprep.subr.bf16.mxu0 0
        %4349 = vmatpush1.bf16.msra.mxu0 0
        %4350 = vmatprep.subr.bf16.mxu0 0
        %4351 = vmatpush1.bf16.msra.mxu0 0
        %4352 = vmatprep.subr.bf16.mxu0 0
        %4353 = vmatpush1.bf16.msra.mxu0 0
        %4354 = vmatprep.subr.bf16.mxu0 0
        %4355 = vmatpush1.bf16.msra.mxu0 0
        %4356 = vmatprep.subr.bf16.mxu0 0
        %4357 = vmatpush1.bf16.msra.mxu0 0
        %4358 = vmatprep.subr.bf16.mxu0 0
        %4359 = vmatpush1.bf16.msra.mxu0 0
        %4360 = vmatprep.subr.bf16.mxu0 0
        %4361 = vmatpush1.bf16.msra.mxu0 0
        %4362 = vmatprep.mubr.bf16.mxu0 0
        %4363 = vmatmul.mubr.bf16.gmra.mrb[0].mxu0 %v4328
        %v4364 = vpop.f32.mrb[0].mxu0
        %v4365 = vadd.f32 0.0, %v4364
        %v4366 = vpop.f32.mrb[0].mxu0
        %v4367 = vadd.f32 0.0, %v4366
        %v4368 = vpop.f32.mrb[0].mxu0
        %v4369 = vpop.f32.mrb[0].mxu0
        %4370 = vdwg.mxu0
        %v4371 = vadd.f32 %v4210, %v4365
        %v4372 = vadd.f32 %v4212, %v4367
        %vm4373 = vcmp.le.s32.totalorder %v3062, %v3891
        %vm4374 = vcmp.le.s32.totalorder %v3063, %v3891
        %vm4375 = vcmp.le.s32.totalorder %v3893, %v475
        %vm4376 = vcmp.le.s32.totalorder %v3893, %v3891
        %vm4377 = vcmp.le.s32.totalorder %v3894, %v475
        %vm4378 = vcmp.le.s32.totalorder %v3894, %v3891
        %vm4379 = vcmp.le.s32.totalorder %v3895, %v475
        %vm4380 = vcmp.le.s32.totalorder %v3895, %v3891
        %vm4381 = vcmp.le.s32.totalorder %v3896, %v475
        %vm4382 = vcmp.le.s32.totalorder %v3896, %v3891
        %vm4383 = vcmp.le.s32.totalorder %v3897, %v475
        %vm4384 = vcmp.le.s32.totalorder %v3897, %v3891
        %vm4385 = vcmp.le.s32.totalorder %v3898, %v475
        %vm4386 = vcmp.le.s32.totalorder %v3898, %v3891
        %vm4387 = vcmp.le.s32.totalorder %v3891, %v3066
        %vm4388 = vcmp.le.s32.totalorder %v3891, %v3067
        %vm4389 = vcmp.le.s32.totalorder %v475, %v3913
        %vm4390 = vcmp.le.s32.totalorder %v3891, %v3913
        %vm4391 = vcmp.le.s32.totalorder %v475, %v3914
        %vm4392 = vcmp.le.s32.totalorder %v3891, %v3914
        %vm4393 = vcmp.le.s32.totalorder %v475, %v3915
        %vm4394 = vcmp.le.s32.totalorder %v3891, %v3915
        %vm4395 = vcmp.le.s32.totalorder %v475, %v3916
        %vm4396 = vcmp.le.s32.totalorder %v3891, %v3916
        %vm4397 = vcmp.le.s32.totalorder %v475, %v3917
        %vm4398 = vcmp.le.s32.totalorder %v3891, %v3917
        %vm4399 = vcmp.le.s32.totalorder %v475, %v3918
        %vm4400 = vcmp.le.s32.totalorder %v3891, %v3918
        %vm4401 = vmand %vm4373, %vm4387
        %vm4402 = vmand %vm4374, %vm4388
        %vm4403 = vmand %vm4375, %vm4389
        %vm4404 = vmand %vm4376, %vm4390
        %vm4405 = vmand %vm4377, %vm4391
        %vm4406 = vmand %vm4378, %vm4392
        %vm4407 = vmand %vm4379, %vm4393
        %vm4408 = vmand %vm4380, %vm4394
        %vm4409 = vmand %vm4381, %vm4395
        %vm4410 = vmand %vm4382, %vm4396
        %vm4411 = vmand %vm4383, %vm4397
        %vm4412 = vmand %vm4384, %vm4398
        %vm4413 = vmand %vm4385, %vm4399
        %vm4414 = vmand %vm4386, %vm4400
        %v4415 = vsel %vm4401, 1.0, 0.0
        %v4416 = vsel %vm4402, 1.0, 0.0
        %v4417 = vsel %vm4403, 1.0, 0.0
        %v4418 = vsel %vm4404, 1.0, 0.0
        %v4419 = vsel %vm4405, 1.0, 0.0
        %v4420 = vsel %vm4406, 1.0, 0.0
        %v4421 = vsel %vm4407, 1.0, 0.0
        %v4422 = vsel %vm4408, 1.0, 0.0
        %v4423 = vsel %vm4409, 1.0, 0.0
        %v4424 = vsel %vm4410, 1.0, 0.0
        %v4425 = vsel %vm4411, 1.0, 0.0
        %v4426 = vsel %vm4412, 1.0, 0.0
        %v4427 = vsel %vm4413, 1.0, 0.0
        %v4428 = vsel %vm4414, 1.0, 0.0
        %v4429 = vpack.c.bf16 %v4416, %v4415
        %v4430 = vpack.c.bf16 %v4419, %v4417
        %v4431 = vpack.c.bf16 %v4420, %v4418
        %v4432 = vpack.c.bf16 %v4423, %v4421
        %v4433 = vpack.c.bf16 %v4424, %v4422
        %v4434 = vpack.c.bf16 %v4427, %v4425
        %v4435 = vpack.c.bf16 %v4428, %v4426
        %4436 = vmatprep.subr.bf16.mxu0 %v4429
        %4437 = vmatpush1.bf16.msra.mxu0 %v3419
        %4438 = vmatprep.subr.bf16.mxu0 %v4431
        %4439 = vmatpush1.bf16.msra.mxu0 %v4430
        %4440 = vmatprep.subr.bf16.mxu0 %v4433
        %4441 = vmatpush1.bf16.msra.mxu0 %v4432
        %4442 = vmatprep.subr.bf16.mxu0 %v4435
        %4443 = vmatpush1.bf16.msra.mxu0 %v4434
        %4444 = vmatprep.subr.bf16.mxu0 0
        %4445 = vmatpush1.bf16.msra.mxu0 0
        %4446 = vmatprep.subr.bf16.mxu0 0
        %4447 = vmatpush1.bf16.msra.mxu0 0
        %4448 = vmatprep.subr.bf16.mxu0 0
        %4449 = vmatpush1.bf16.msra.mxu0 0
        %4450 = vmatprep.subr.bf16.mxu0 0
        %4451 = vmatpush1.bf16.msra.mxu0 0
        %4452 = vmatprep.subr.bf16.mxu0 0
        %4453 = vmatpush1.bf16.msra.mxu0 0
        %4454 = vmatprep.subr.bf16.mxu0 0
        %4455 = vmatpush1.bf16.msra.mxu0 0
        %4456 = vmatprep.subr.bf16.mxu0 0
        %4457 = vmatpush1.bf16.msra.mxu0 0
        %4458 = vmatprep.subr.bf16.mxu0 0
        %4459 = vmatpush1.bf16.msra.mxu0 0
        %4460 = vmatprep.subr.bf16.mxu0 0
        %4461 = vmatpush1.bf16.msra.mxu0 0
        %4462 = vmatprep.subr.bf16.mxu0 0
        %4463 = vmatpush1.bf16.msra.mxu0 0
        %4464 = vmatprep.subr.bf16.mxu0 0
        %4465 = vmatpush1.bf16.msra.mxu0 0
        %4466 = vmatprep.subr.bf16.mxu0 0
        %4467 = vmatpush1.bf16.msra.mxu0 0
        %4468 = vmatprep.mubr.bf16.mxu0 0
        %4469 = vmatmul.mubr.bf16.gmra.mrb[0].mxu0 %v3969
        %v4470 = vpop.f32.mrb[0].mxu0
        %v4471 = vadd.f32 0.0, %v4470
        %v4472 = vpop.f32.mrb[0].mxu0
        %v4473 = vadd.f32 0.0, %v4472
        %v4474 = vpop.f32.mrb[0].mxu0
        %v4475 = vadd.f32 0.0, %v4474
        %v4476 = vpop.f32.mrb[0].mxu0
        %v4477 = vadd.f32 0.0, %v4476
        %4478 = vdwg.mxu0
        %s4479 = scalar_lea.vmem %s11, 12
        %v4480 = vld [vmem:[%s4479] sm:$0xf]
        %v4481 = vpack.c.bf16 %v4475, %v4471
        %v4482 = vpack.c.bf16 %v4477, %v4473
        %v4484 = vsel %vm2040, %v4480, 0
        %4486 = vmatprep.subr.bf16.mxu0 %v4482
        %4487 = vmatpush1.bf16.msra.mxu0 %v4481
        %4488 = vmatprep.subr.bf16.mxu0 0
        %4489 = vmatpush1.bf16.msra.mxu0 0
        %4490 = vmatprep.subr.bf16.mxu0 0
        %4491 = vmatpush1.bf16.msra.mxu0 0
        %4492 = vmatprep.subr.bf16.mxu0 0
        %4493 = vmatpush1.bf16.msra.mxu0 0
        %4494 = vmatprep.subr.bf16.mxu0 0
        %4495 = vmatpush1.bf16.msra.mxu0 0
        %4496 = vmatprep.subr.bf16.mxu0 0
        %4497 = vmatpush1.bf16.msra.mxu0 0
        %4498 = vmatprep.subr.bf16.mxu0 0
        %4499 = vmatpush1.bf16.msra.mxu0 0
        %4500 = vmatprep.subr.bf16.mxu0 0
        %4501 = vmatpush1.bf16.msra.mxu0 0
        %4502 = vmatprep.subr.bf16.mxu0 0
        %4503 = vmatpush1.bf16.msra.mxu0 0
        %4504 = vmatprep.subr.bf16.mxu0 0
        %4505 = vmatpush1.bf16.msra.mxu0 0
        %4506 = vmatprep.subr.bf16.mxu0 0
        %4507 = vmatpush1.bf16.msra.mxu0 0
        %4508 = vmatprep.subr.bf16.mxu0 0
        %4509 = vmatpush1.bf16.msra.mxu0 0
        %4510 = vmatprep.subr.bf16.mxu0 0
        %4511 = vmatpush1.bf16.msra.mxu0 0
        %4512 = vmatprep.subr.bf16.mxu0 0
        %4513 = vmatpush1.bf16.msra.mxu0 0
        %4514 = vmatprep.subr.bf16.mxu0 0
        %4515 = vmatpush1.bf16.msra.mxu0 0
        %4516 = vmatprep.subr.bf16.mxu0 0
        %4517 = vmatpush1.bf16.msra.mxu0 0
        %4518 = vmatprep.mubr.bf16.mxu0 0
        %4519 = vmatmul.mubr.bf16.gmra.mrb[0].mxu0 %v4484
        %v4520 = vpop.f32.mrb[0].mxu0
        %v4521 = vadd.f32 0.0, %v4520
        %v4522 = vpop.f32.mrb[0].mxu0
        %v4523 = vadd.f32 0.0, %v4522
        %v4524 = vpop.f32.mrb[0].mxu0
        %v4525 = vpop.f32.mrb[0].mxu0
        %4526 = vdwg.mxu0
        %v4527 = vadd.f32 %v4371, %v4521
        %v4528 = vadd.f32 %v4372, %v4523
        %v4529 = vadd.s32 %v3891, 1
        %vm4530 = vcmp.le.s32.totalorder %v3062, %v4529
        %vm4531 = vcmp.le.s32.totalorder %v3063, %v4529
        %vm4532 = vcmp.le.s32.totalorder %v3893, %v3525
        %vm4533 = vcmp.le.s32.totalorder %v3893, %v4529
        %vm4534 = vcmp.le.s32.totalorder %v3894, %v3525
        %vm4535 = vcmp.le.s32.totalorder %v3894, %v4529
        %vm4536 = vcmp.le.s32.totalorder %v3895, %v3525
        %vm4537 = vcmp.le.s32.totalorder %v3895, %v4529
        %vm4538 = vcmp.le.s32.totalorder %v3896, %v3525
        %vm4539 = vcmp.le.s32.totalorder %v3896, %v4529
        %vm4540 = vcmp.le.s32.totalorder %v3897, %v3525
        %vm4541 = vcmp.le.s32.totalorder %v3897, %v4529
        %vm4542 = vcmp.le.s32.totalorder %v3898, %v3525
        %vm4543 = vcmp.le.s32.totalorder %v3898, %v4529
        %vm4544 = vcmp.le.s32.totalorder %v4529, %v3066
        %vm4545 = vcmp.le.s32.totalorder %v4529, %v3067
        %vm4546 = vcmp.le.s32.totalorder %v3525, %v3913
        %vm4547 = vcmp.le.s32.totalorder %v4529, %v3913
        %vm4548 = vcmp.le.s32.totalorder %v3525, %v3914
        %vm4549 = vcmp.le.s32.totalorder %v4529, %v3914
        %vm4550 = vcmp.le.s32.totalorder %v3525, %v3915
        %vm4551 = vcmp.le.s32.totalorder %v4529, %v3915
        %vm4552 = vcmp.le.s32.totalorder %v3525, %v3916
        %vm4553 = vcmp.le.s32.totalorder %v4529, %v3916
        %vm4554 = vcmp.le.s32.totalorder %v3525, %v3917
        %vm4555 = vcmp.le.s32.totalorder %v4529, %v3917
        %vm4556 = vcmp.le.s32.totalorder %v3525, %v3918
        %vm4557 = vcmp.le.s32.totalorder %v4529, %v3918
        %vm4558 = vmand %vm4530, %vm4544
        %vm4559 = vmand %vm4531, %vm4545
        %vm4560 = vmand %vm4532, %vm4546
        %vm4561 = vmand %vm4533, %vm4547
        %vm4562 = vmand %vm4534, %vm4548
        %vm4563 = vmand %vm4535, %vm4549
        %vm4564 = vmand %vm4536, %vm4550
        %vm4565 = vmand %vm4537, %vm4551
        %vm4566 = vmand %vm4538, %vm4552
        %vm4567 = vmand %vm4539, %vm4553
        %vm4568 = vmand %vm4540, %vm4554
        %vm4569 = vmand %vm4541, %vm4555
        %vm4570 = vmand %vm4542, %vm4556
        %vm4571 = vmand %vm4543, %vm4557
        %v4572 = vsel %vm4558, 1.0, 0.0
        %v4573 = vsel %vm4559, 1.0, 0.0
        %v4574 = vsel %vm4560, 1.0, 0.0
        %v4575 = vsel %vm4561, 1.0, 0.0
        %v4576 = vsel %vm4562, 1.0, 0.0
        %v4577 = vsel %vm4563, 1.0, 0.0
        %v4578 = vsel %vm4564, 1.0, 0.0
        %v4579 = vsel %vm4565, 1.0, 0.0
        %v4580 = vsel %vm4566, 1.0, 0.0
        %v4581 = vsel %vm4567, 1.0, 0.0
        %v4582 = vsel %vm4568, 1.0, 0.0
        %v4583 = vsel %vm4569, 1.0, 0.0
        %v4584 = vsel %vm4570, 1.0, 0.0
        %v4585 = vsel %vm4571, 1.0, 0.0
        %v4586 = vpack.c.bf16 %v4573, %v4572
        %v4587 = vpack.c.bf16 %v4576, %v4574
        %v4588 = vpack.c.bf16 %v4577, %v4575
        %v4589 = vpack.c.bf16 %v4580, %v4578
        %v4590 = vpack.c.bf16 %v4581, %v4579
        %v4591 = vpack.c.bf16 %v4584, %v4582
        %v4592 = vpack.c.bf16 %v4585, %v4583
        %4593 = vmatprep.subr.bf16.mxu0 %v4586
        %4594 = vmatpush1.bf16.msra.mxu0 %v3534
        %4595 = vmatprep.subr.bf16.mxu0 %v4588
        %4596 = vmatpush1.bf16.msra.mxu0 %v4587
        %4597 = vmatprep.subr.bf16.mxu0 %v4590
        %4598 = vmatpush1.bf16.msra.mxu0 %v4589
        %4599 = vmatprep.subr.bf16.mxu0 %v4592
        %4600 = vmatpush1.bf16.msra.mxu0 %v4591
        %4601 = vmatprep.subr.bf16.mxu0 0
        %4602 = vmatpush1.bf16.msra.mxu0 0
        %4603 = vmatprep.subr.bf16.mxu0 0
        %4604 = vmatpush1.bf16.msra.mxu0 0
        %4605 = vmatprep.subr.bf16.mxu0 0
        %4606 = vmatpush1.bf16.msra.mxu0 0
        %4607 = vmatprep.subr.bf16.mxu0 0
        %4608 = vmatpush1.bf16.msra.mxu0 0
        %4609 = vmatprep.subr.bf16.mxu0 0
        %4610 = vmatpush1.bf16.msra.mxu0 0
        %4611 = vmatprep.subr.bf16.mxu0 0
        %4612 = vmatpush1.bf16.msra.mxu0 0
        %4613 = vmatprep.subr.bf16.mxu0 0
        %4614 = vmatpush1.bf16.msra.mxu0 0
        %4615 = vmatprep.subr.bf16.mxu0 0
        %4616 = vmatpush1.bf16.msra.mxu0 0
        %4617 = vmatprep.subr.bf16.mxu0 0
        %4618 = vmatpush1.bf16.msra.mxu0 0
        %4619 = vmatprep.subr.bf16.mxu0 0
        %4620 = vmatpush1.bf16.msra.mxu0 0
        %4621 = vmatprep.subr.bf16.mxu0 0
        %4622 = vmatpush1.bf16.msra.mxu0 0
        %4623 = vmatprep.subr.bf16.mxu0 0
        %4624 = vmatpush1.bf16.msra.mxu0 0
        %4625 = vmatprep.mubr.bf16.mxu0 0
        %4626 = vmatmul.mubr.bf16.gmra.mrb[0].mxu0 %v3969
        %v4627 = vpop.f32.mrb[0].mxu0
        %v4628 = vadd.f32 0.0, %v4627
        %v4629 = vpop.f32.mrb[0].mxu0
        %v4630 = vadd.f32 0.0, %v4629
        %v4631 = vpop.f32.mrb[0].mxu0
        %v4632 = vadd.f32 0.0, %v4631
        %v4633 = vpop.f32.mrb[0].mxu0
        %v4634 = vadd.f32 0.0, %v4633
        %4635 = vdwg.mxu0
        %s4636 = scalar_lea.vmem %s11, 16
        %v4637 = vld [vmem:[%s4636] sm:$0xf]
        %v4638 = vpack.c.bf16 %v4632, %v4628
        %v4639 = vpack.c.bf16 %v4634, %v4630
        %v4641 = vsel %vm2040, %v4637, 0
        %4643 = vmatprep.subr.bf16.mxu0 %v4639
        %4644 = vmatpush1.bf16.msra.mxu0 %v4638
        %4645 = vmatprep.subr.bf16.mxu0 0
        %4646 = vmatpush1.bf16.msra.mxu0 0
        %4647 = vmatprep.subr.bf16.mxu0 0
        %4648 = vmatpush1.bf16.msra.mxu0 0
        %4649 = vmatprep.subr.bf16.mxu0 0
        %4650 = vmatpush1.bf16.msra.mxu0 0
        %4651 = vmatprep.subr.bf16.mxu0 0
        %4652 = vmatpush1.bf16.msra.mxu0 0
        %4653 = vmatprep.subr.bf16.mxu0 0
        %4654 = vmatpush1.bf16.msra.mxu0 0
        %4655 = vmatprep.subr.bf16.mxu0 0
        %4656 = vmatpush1.bf16.msra.mxu0 0
        %4657 = vmatprep.subr.bf16.mxu0 0
        %4658 = vmatpush1.bf16.msra.mxu0 0
        %4659 = vmatprep.subr.bf16.mxu0 0
        %4660 = vmatpush1.bf16.msra.mxu0 0
        %4661 = vmatprep.subr.bf16.mxu0 0
        %4662 = vmatpush1.bf16.msra.mxu0 0
        %4663 = vmatprep.subr.bf16.mxu0 0
        %4664 = vmatpush1.bf16.msra.mxu0 0
        %4665 = vmatprep.subr.bf16.mxu0 0
        %4666 = vmatpush1.bf16.msra.mxu0 0
        %4667 = vmatprep.subr.bf16.mxu0 0
        %4668 = vmatpush1.bf16.msra.mxu0 0
        %4669 = vmatprep.subr.bf16.mxu0 0
        %4670 = vmatpush1.bf16.msra.mxu0 0
        %4671 = vmatprep.subr.bf16.mxu0 0
        %4672 = vmatpush1.bf16.msra.mxu0 0
        %4673 = vmatprep.subr.bf16.mxu0 0
        %4674 = vmatpush1.bf16.msra.mxu0 0
        %4675 = vmatprep.mubr.bf16.mxu0 0
        %4676 = vmatmul.mubr.bf16.gmra.mrb[0].mxu0 %v4641
        %v4677 = vpop.f32.mrb[0].mxu0
        %v4678 = vadd.f32 0.0, %v4677
        %v4679 = vpop.f32.mrb[0].mxu0
        %v4680 = vadd.f32 0.0, %v4679
        %v4681 = vpop.f32.mrb[0].mxu0
        %v4682 = vpop.f32.mrb[0].mxu0
        %4683 = vdwg.mxu0
        %v4684 = vadd.f32 %v4527, %v4678
        %v4685 = vadd.f32 %v4528, %v4680
        %v4686 = vadd.s32 %v3891, 2
        %vm4687 = vcmp.le.s32.totalorder %v3062, %v4686
        %vm4688 = vcmp.le.s32.totalorder %v3063, %v4686
        %vm4689 = vcmp.le.s32.totalorder %v3893, %v3640
        %vm4690 = vcmp.le.s32.totalorder %v3893, %v4686
        %vm4691 = vcmp.le.s32.totalorder %v3894, %v3640
        %vm4692 = vcmp.le.s32.totalorder %v3894, %v4686
        %vm4693 = vcmp.le.s32.totalorder %v3895, %v3640
        %vm4694 = vcmp.le.s32.totalorder %v3895, %v4686
        %vm4695 = vcmp.le.s32.totalorder %v3896, %v3640
        %vm4696 = vcmp.le.s32.totalorder %v3896, %v4686
        %vm4697 = vcmp.le.s32.totalorder %v3897, %v3640
        %vm4698 = vcmp.le.s32.totalorder %v3897, %v4686
        %vm4699 = vcmp.le.s32.totalorder %v3898, %v3640
        %vm4700 = vcmp.le.s32.totalorder %v3898, %v4686
        %vm4701 = vcmp.le.s32.totalorder %v4686, %v3066
        %vm4702 = vcmp.le.s32.totalorder %v4686, %v3067
        %vm4703 = vcmp.le.s32.totalorder %v3640, %v3913
        %vm4704 = vcmp.le.s32.totalorder %v4686, %v3913
        %vm4705 = vcmp.le.s32.totalorder %v3640, %v3914
        %vm4706 = vcmp.le.s32.totalorder %v4686, %v3914
        %vm4707 = vcmp.le.s32.totalorder %v3640, %v3915
        %vm4708 = vcmp.le.s32.totalorder %v4686, %v3915
        %vm4709 = vcmp.le.s32.totalorder %v3640, %v3916
        %vm4710 = vcmp.le.s32.totalorder %v4686, %v3916
        %vm4711 = vcmp.le.s32.totalorder %v3640, %v3917
        %vm4712 = vcmp.le.s32.totalorder %v4686, %v3917
        %vm4713 = vcmp.le.s32.totalorder %v3640, %v3918
        %vm4714 = vcmp.le.s32.totalorder %v4686, %v3918
        %vm4715 = vmand %vm4687, %vm4701
        %vm4716 = vmand %vm4688, %vm4702
        %vm4717 = vmand %vm4689, %vm4703
        %vm4718 = vmand %vm4690, %vm4704
        %vm4719 = vmand %vm4691, %vm4705
        %vm4720 = vmand %vm4692, %vm4706
        %vm4721 = vmand %vm4693, %vm4707
        %vm4722 = vmand %vm4694, %vm4708
        %vm4723 = vmand %vm4695, %vm4709
        %vm4724 = vmand %vm4696, %vm4710
        %vm4725 = vmand %vm4697, %vm4711
        %vm4726 = vmand %vm4698, %vm4712
        %vm4727 = vmand %vm4699, %vm4713
        %vm4728 = vmand %vm4700, %vm4714
        %v4729 = vsel %vm4715, 1.0, 0.0
        %v4730 = vsel %vm4716, 1.0, 0.0
        %v4731 = vsel %vm4717, 1.0, 0.0
        %v4732 = vsel %vm4718, 1.0, 0.0
        %v4733 = vsel %vm4719, 1.0, 0.0
        %v4734 = vsel %vm4720, 1.0, 0.0
        %v4735 = vsel %vm4721, 1.0, 0.0
        %v4736 = vsel %vm4722, 1.0, 0.0
        %v4737 = vsel %vm4723, 1.0, 0.0
        %v4738 = vsel %vm4724, 1.0, 0.0
        %v4739 = vsel %vm4725, 1.0, 0.0
        %v4740 = vsel %vm4726, 1.0, 0.0
        %v4741 = vsel %vm4727, 1.0, 0.0
        %v4742 = vsel %vm4728, 1.0, 0.0
        %v4743 = vpack.c.bf16 %v4730, %v4729
        %v4744 = vpack.c.bf16 %v4733, %v4731
        %v4745 = vpack.c.bf16 %v4734, %v4732
        %v4746 = vpack.c.bf16 %v4737, %v4735
        %v4747 = vpack.c.bf16 %v4738, %v4736
        %v4748 = vpack.c.bf16 %v4741, %v4739
        %v4749 = vpack.c.bf16 %v4742, %v4740
        %4750 = vmatprep.subr.bf16.mxu0 %v4743
        %4751 = vmatpush1.bf16.msra.mxu0 %v3649
        %4752 = vmatprep.subr.bf16.mxu0 %v4745
        %4753 = vmatpush1.bf16.msra.mxu0 %v4744
        %4754 = vmatprep.subr.bf16.mxu0 %v4747
        %4755 = vmatpush1.bf16.msra.mxu0 %v4746
        %4756 = vmatprep.subr.bf16.mxu0 %v4749
        %4757 = vmatpush1.bf16.msra.mxu0 %v4748
        %4758 = vmatprep.subr.bf16.mxu0 0
        %4759 = vmatpush1.bf16.msra.mxu0 0
        %4760 = vmatprep.subr.bf16.mxu0 0
        %4761 = vmatpush1.bf16.msra.mxu0 0
        %4762 = vmatprep.subr.bf16.mxu0 0
        %4763 = vmatpush1.bf16.msra.mxu0 0
        %4764 = vmatprep.subr.bf16.mxu0 0
        %4765 = vmatpush1.bf16.msra.mxu0 0
        %4766 = vmatprep.subr.bf16.mxu0 0
        %4767 = vmatpush1.bf16.msra.mxu0 0
        %4768 = vmatprep.subr.bf16.mxu0 0
        %4769 = vmatpush1.bf16.msra.mxu0 0
        %4770 = vmatprep.subr.bf16.mxu0 0
        %4771 = vmatpush1.bf16.msra.mxu0 0
        %4772 = vmatprep.subr.bf16.mxu0 0
        %4773 = vmatpush1.bf16.msra.mxu0 0
        %4774 = vmatprep.subr.bf16.mxu0 0
        %4775 = vmatpush1.bf16.msra.mxu0 0
        %4776 = vmatprep.subr.bf16.mxu0 0
        %4777 = vmatpush1.bf16.msra.mxu0 0
        %4778 = vmatprep.subr.bf16.mxu0 0
        %4779 = vmatpush1.bf16.msra.mxu0 0
        %4780 = vmatprep.subr.bf16.mxu0 0
        %4781 = vmatpush1.bf16.msra.mxu0 0
        %4782 = vmatprep.mubr.bf16.mxu0 0
        %4783 = vmatmul.mubr.bf16.gmra.mrb[0].mxu0 %v3969
        %v4784 = vpop.f32.mrb[0].mxu0
        %v4785 = vadd.f32 0.0, %v4784
        %v4786 = vpop.f32.mrb[0].mxu0
        %v4787 = vadd.f32 0.0, %v4786
        %v4788 = vpop.f32.mrb[0].mxu0
        %v4789 = vadd.f32 0.0, %v4788
        %v4790 = vpop.f32.mrb[0].mxu0
        %v4791 = vadd.f32 0.0, %v4790
        %4792 = vdwg.mxu0
        %s4793 = scalar_lea.vmem %s11, 20
        %v4794 = vld [vmem:[%s4793] sm:$0xf]
        %v4795 = vpack.c.bf16 %v4789, %v4785
        %v4796 = vpack.c.bf16 %v4791, %v4787
        %v4798 = vsel %vm2040, %v4794, 0
        %4800 = vmatprep.subr.bf16.mxu0 %v4796
        %4801 = vmatpush1.bf16.msra.mxu0 %v4795
        %4802 = vmatprep.subr.bf16.mxu0 0
        %4803 = vmatpush1.bf16.msra.mxu0 0
        %4804 = vmatprep.subr.bf16.mxu0 0
        %4805 = vmatpush1.bf16.msra.mxu0 0
        %4806 = vmatprep.subr.bf16.mxu0 0
        %4807 = vmatpush1.bf16.msra.mxu0 0
        %4808 = vmatprep.subr.bf16.mxu0 0
        %4809 = vmatpush1.bf16.msra.mxu0 0
        %4810 = vmatprep.subr.bf16.mxu0 0
        %4811 = vmatpush1.bf16.msra.mxu0 0
        %4812 = vmatprep.subr.bf16.mxu0 0
        %4813 = vmatpush1.bf16.msra.mxu0 0
        %4814 = vmatprep.subr.bf16.mxu0 0
        %4815 = vmatpush1.bf16.msra.mxu0 0
        %4816 = vmatprep.subr.bf16.mxu0 0
        %4817 = vmatpush1.bf16.msra.mxu0 0
        %4818 = vmatprep.subr.bf16.mxu0 0
        %4819 = vmatpush1.bf16.msra.mxu0 0
        %4820 = vmatprep.subr.bf16.mxu0 0
        %4821 = vmatpush1.bf16.msra.mxu0 0
        %4822 = vmatprep.subr.bf16.mxu0 0
        %4823 = vmatpush1.bf16.msra.mxu0 0
        %4824 = vmatprep.subr.bf16.mxu0 0
        %4825 = vmatpush1.bf16.msra.mxu0 0
        %4826 = vmatprep.subr.bf16.mxu0 0
        %4827 = vmatpush1.bf16.msra.mxu0 0
        %4828 = vmatprep.subr.bf16.mxu0 0
        %4829 = vmatpush1.bf16.msra.mxu0 0
        %4830 = vmatprep.subr.bf16.mxu0 0
        %4831 = vmatpush1.bf16.msra.mxu0 0
        %4832 = vmatprep.mubr.bf16.mxu0 0
        %4833 = vmatmul.mubr.bf16.gmra.mrb[0].mxu0 %v4798
        %v4834 = vpop.f32.mrb[0].mxu0
        %v4835 = vadd.f32 0.0, %v4834
        %v4836 = vpop.f32.mrb[0].mxu0
        %v4837 = vadd.f32 0.0, %v4836
        %v4838 = vpop.f32.mrb[0].mxu0
        %v4839 = vpop.f32.mrb[0].mxu0
        %4840 = vdwg.mxu0
        %v4841 = vadd.f32 %v4684, %v4835
        %v4842 = vadd.f32 %v4685, %v4837
        %v4843 = vadd.s32 %v3891, 3
        %vm4844 = vcmp.le.s32.totalorder %v3062, %v4843
        %vm4845 = vcmp.le.s32.totalorder %v3063, %v4843
        %vm4846 = vcmp.le.s32.totalorder %v3893, %v3755
        %vm4847 = vcmp.le.s32.totalorder %v3893, %v4843
        %vm4848 = vcmp.le.s32.totalorder %v3894, %v3755
        %vm4849 = vcmp.le.s32.totalorder %v3894, %v4843
        %vm4850 = vcmp.le.s32.totalorder %v3895, %v3755
        %vm4851 = vcmp.le.s32.totalorder %v3895, %v4843
        %vm4852 = vcmp.le.s32.totalorder %v3896, %v3755
        %vm4853 = vcmp.le.s32.totalorder %v3896, %v4843
        %vm4854 = vcmp.le.s32.totalorder %v3897, %v3755
        %vm4855 = vcmp.le.s32.totalorder %v3897, %v4843
        %vm4856 = vcmp.le.s32.totalorder %v3898, %v3755
        %vm4857 = vcmp.le.s32.totalorder %v3898, %v4843
        %vm4858 = vcmp.le.s32.totalorder %v4843, %v3066
        %vm4859 = vcmp.le.s32.totalorder %v4843, %v3067
        %vm4860 = vcmp.le.s32.totalorder %v3755, %v3913
        %vm4861 = vcmp.le.s32.totalorder %v4843, %v3913
        %vm4862 = vcmp.le.s32.totalorder %v3755, %v3914
        %vm4863 = vcmp.le.s32.totalorder %v4843, %v3914
        %vm4864 = vcmp.le.s32.totalorder %v3755, %v3915
        %vm4865 = vcmp.le.s32.totalorder %v4843, %v3915
        %vm4866 = vcmp.le.s32.totalorder %v3755, %v3916
        %vm4867 = vcmp.le.s32.totalorder %v4843, %v3916
        %vm4868 = vcmp.le.s32.totalorder %v3755, %v3917
        %vm4869 = vcmp.le.s32.totalorder %v4843, %v3917
        %vm4870 = vcmp.le.s32.totalorder %v3755, %v3918
        %vm4871 = vcmp.le.s32.totalorder %v4843, %v3918
        %vm4872 = vmand %vm4844, %vm4858
        %vm4873 = vmand %vm4845, %vm4859
        %vm4874 = vmand %vm4846, %vm4860
        %vm4875 = vmand %vm4847, %vm4861
        %vm4876 = vmand %vm4848, %vm4862
        %vm4877 = vmand %vm4849, %vm4863
        %vm4878 = vmand %vm4850, %vm4864
        %vm4879 = vmand %vm4851, %vm4865
        %vm4880 = vmand %vm4852, %vm4866
        %vm4881 = vmand %vm4853, %vm4867
        %vm4882 = vmand %vm4854, %vm4868
        %vm4883 = vmand %vm4855, %vm4869
        %vm4884 = vmand %vm4856, %vm4870
        %vm4885 = vmand %vm4857, %vm4871
        %v4886 = vsel %vm4872, 1.0, 0.0
        %v4887 = vsel %vm4873, 1.0, 0.0
        %v4888 = vsel %vm4874, 1.0, 0.0
        %v4889 = vsel %vm4875, 1.0, 0.0
        %v4890 = vsel %vm4876, 1.0, 0.0
        %v4891 = vsel %vm4877, 1.0, 0.0
        %v4892 = vsel %vm4878, 1.0, 0.0
        %v4893 = vsel %vm4879, 1.0, 0.0
        %v4894 = vsel %vm4880, 1.0, 0.0
        %v4895 = vsel %vm4881, 1.0, 0.0
        %v4896 = vsel %vm4882, 1.0, 0.0
        %v4897 = vsel %vm4883, 1.0, 0.0
        %v4898 = vsel %vm4884, 1.0, 0.0
        %v4899 = vsel %vm4885, 1.0, 0.0
        %v4900 = vpack.c.bf16 %v4887, %v4886
        %v4901 = vpack.c.bf16 %v4890, %v4888
        %v4902 = vpack.c.bf16 %v4891, %v4889
        %v4903 = vpack.c.bf16 %v4894, %v4892
        %v4904 = vpack.c.bf16 %v4895, %v4893
        %v4905 = vpack.c.bf16 %v4898, %v4896
        %v4906 = vpack.c.bf16 %v4899, %v4897
        %4907 = vmatprep.subr.bf16.mxu0 %v4900
        %4908 = vmatpush1.bf16.msra.mxu0 %v3764
        %4909 = vmatprep.subr.bf16.mxu0 %v4902
        %4910 = vmatpush1.bf16.msra.mxu0 %v4901
        %4911 = vmatprep.subr.bf16.mxu0 %v4904
        %4912 = vmatpush1.bf16.msra.mxu0 %v4903
        %4913 = vmatprep.subr.bf16.mxu0 %v4906
        %4914 = vmatpush1.bf16.msra.mxu0 %v4905
        %4915 = vmatprep.subr.bf16.mxu0 0
        %4916 = vmatpush1.bf16.msra.mxu0 0
        %4917 = vmatprep.subr.bf16.mxu0 0
        %4918 = vmatpush1.bf16.msra.mxu0 0
        %4919 = vmatprep.subr.bf16.mxu0 0
        %4920 = vmatpush1.bf16.msra.mxu0 0
        %4921 = vmatprep.subr.bf16.mxu0 0
        %4922 = vmatpush1.bf16.msra.mxu0 0
        %4923 = vmatprep.subr.bf16.mxu0 0
        %4924 = vmatpush1.bf16.msra.mxu0 0
        %4925 = vmatprep.subr.bf16.mxu0 0
        %4926 = vmatpush1.bf16.msra.mxu0 0
        %4927 = vmatprep.subr.bf16.mxu0 0
        %4928 = vmatpush1.bf16.msra.mxu0 0
        %4929 = vmatprep.subr.bf16.mxu0 0
        %4930 = vmatpush1.bf16.msra.mxu0 0
        %4931 = vmatprep.subr.bf16.mxu0 0
        %4932 = vmatpush1.bf16.msra.mxu0 0
        %4933 = vmatprep.subr.bf16.mxu0 0
        %4934 = vmatpush1.bf16.msra.mxu0 0
        %4935 = vmatprep.subr.bf16.mxu0 0
        %4936 = vmatpush1.bf16.msra.mxu0 0
        %4937 = vmatprep.subr.bf16.mxu0 0
        %4938 = vmatpush1.bf16.msra.mxu0 0
        %4939 = vmatprep.mubr.bf16.mxu0 0
        %4940 = vmatmul.mubr.bf16.gmra.mrb[0].mxu0 %v3969
        %v4941 = vpop.f32.mrb[0].mxu0
        %v4942 = vadd.f32 0.0, %v4941
        %v4943 = vpop.f32.mrb[0].mxu0
        %v4944 = vadd.f32 0.0, %v4943
        %v4945 = vpop.f32.mrb[0].mxu0
        %v4946 = vadd.f32 0.0, %v4945
        %v4947 = vpop.f32.mrb[0].mxu0
        %v4948 = vadd.f32 0.0, %v4947
        %4949 = vdwg.mxu0
        %s4950 = scalar_lea.vmem %s11, 24
        %v4951 = vld [vmem:[%s4950] sm:$0xf]
        %v4952 = vpack.c.bf16 %v4946, %v4942
        %v4953 = vpack.c.bf16 %v4948, %v4944
        %v4955 = vsel %vm2040, %v4951, 0
        %4957 = vmatprep.subr.bf16.mxu0 %v4953
        %4958 = vmatpush1.bf16.msra.mxu0 %v4952
        %4959 = vmatprep.subr.bf16.mxu0 0
        %4960 = vmatpush1.bf16.msra.mxu0 0
        %4961 = vmatprep.subr.bf16.mxu0 0
        %4962 = vmatpush1.bf16.msra.mxu0 0
        %4963 = vmatprep.subr.bf16.mxu0 0
        %4964 = vmatpush1.bf16.msra.mxu0 0
        %4965 = vmatprep.subr.bf16.mxu0 0
        %4966 = vmatpush1.bf16.msra.mxu0 0
        %4967 = vmatprep.subr.bf16.mxu0 0
        %4968 = vmatpush1.bf16.msra.mxu0 0
        %4969 = vmatprep.subr.bf16.mxu0 0
        %4970 = vmatpush1.bf16.msra.mxu0 0
        %4971 = vmatprep.subr.bf16.mxu0 0
        %4972 = vmatpush1.bf16.msra.mxu0 0
        %4973 = vmatprep.subr.bf16.mxu0 0
        %4974 = vmatpush1.bf16.msra.mxu0 0
        %4975 = vmatprep.subr.bf16.mxu0 0
        %4976 = vmatpush1.bf16.msra.mxu0 0
        %4977 = vmatprep.subr.bf16.mxu0 0
        %4978 = vmatpush1.bf16.msra.mxu0 0
        %4979 = vmatprep.subr.bf16.mxu0 0
        %4980 = vmatpush1.bf16.msra.mxu0 0
        %4981 = vmatprep.subr.bf16.mxu0 0
        %4982 = vmatpush1.bf16.msra.mxu0 0
        %4983 = vmatprep.subr.bf16.mxu0 0
        %4984 = vmatpush1.bf16.msra.mxu0 0
        %4985 = vmatprep.subr.bf16.mxu0 0
        %4986 = vmatpush1.bf16.msra.mxu0 0
        %4987 = vmatprep.subr.bf16.mxu0 0
        %4988 = vmatpush1.bf16.msra.mxu0 0
        %4989 = vmatprep.mubr.bf16.mxu0 0
        %4990 = vmatmul.mubr.bf16.gmra.mrb[0].mxu0 %v4955
        %v4991 = vpop.f32.mrb[0].mxu0
        %v4992 = vadd.f32 0.0, %v4991
        %v4993 = vpop.f32.mrb[0].mxu0
        %v4994 = vadd.f32 0.0, %v4993
        %v4995 = vpop.f32.mrb[0].mxu0
        %v4996 = vpop.f32.mrb[0].mxu0
        %4997 = vdwg.mxu0
        %v4998 = vadd.f32 %v4841, %v4992
        %v4999 = vadd.f32 %v4842, %v4994
        %v5000 = vld [vmem:[%s12] sm:$0xff]
        %5002 = vset.pattern.permute.xlu0 0
        %5003 = vperm.xlu0 %5002, %v5000
        %v5004 = vpop.permute.xlu0 %5003
        %v5006 = vadd.f32 %v4998, %v5004
        %v5007 = vadd.f32 %v4999, %v5004
        %v5008 = vtanh.pop %v5006
        %v5009 = vtanh.pop %v5007
        %v5012 = vcombine.low %v5008, %v5009
        %v5014 = vunpack.c.l.s4 1966171168
        %v5015 = vunpack.c.0.s8 %v5014
        %v5016 = vlaneseq
        %v5017 = vshrl.u32 %v5016, 7
        %v5018 = vsub.s32 %v5015, %v5017
        %v5019 = vrot.slane %v5012, %v5018
        %v5021 = vunpack.c.l.s4 1966171168
        %v5022 = vunpack.c.0.s8 %v5021
        %v5023 = vlaneseq
        %v5024 = vshrl.u32 %v5023, 7
        %v5025 = vsub.s32 %v5022, %v5024
        %v5026 = vrot.slane %v5019, %v5025
        %v5028 = vlaneseq
        %vm5029 = vcmp.ge.s32.totalorder %v5028, 0
        %vm5030 = vcmp.lt.s32.totalorder %v5028, 256
        %vm5031 = vmand %vm5029, %vm5030
        %5032 = vst.msk [vmem:[%s433] sm:$0x3] %vm5031, %v5026
        %s5033 = sand.u32 %s313, 1
        %s5034 = scalar_lea.sflag [#allocation3], %s5033
        %s5035 = sand.u32 %s313, 1
        %s5036 = smul.addr %s5035, 2
        %s5037 = scalar_lea.vmem [#allocation2], %s5036
        // Predicated region
        $region73: #{combined_forward_pallas.1} parent=71 // pred_check
          %p5038 = pneg %p323
        $region74: #{combined_forward_pallas.1} parent=71 // pred_check_branch
          %5040 = sbr.rel (%p5038) target = $region76
        $region75: #{combined_forward_pallas.1} parent=71 // pred_region
          %s5042 = ssub.s32 32, 32
          %5043 = vsyncadd %s5034, %s5042
          %s5044 = smul.addr %s27, 2
          %s5045 = smul.addr %s5044, 16
          %s5046 = scalar_lea.hbm %s13, %s5045
          %s5048 = sshll.u32 %s5037, 4
          %s5049 = int_to_ptr.vmem [resolvable:$true] %s5048
          %5051 = dma.vmem_to_hbm [thread:$0]  %s5049, 32, %s5046, %s5034
        $region76: #{combined_forward_pallas.1} parent=71 // pred_fallthru
          _
      $region72: #{combined_forward_pallas.1} parent=5 // pred_fallthru
        _
      %p5052 = scmp.le.s32.totalorder 2, %s22
      // Predicated region
      $region77: #{combined_forward_pallas.1} parent=5 // pred_check
        %p5053 = pneg %p5052
      $region78: #{combined_forward_pallas.1} parent=5 // pred_check_branch
        %5055 = sbr.rel (%p5053) target = $region80
      $region79: #{combined_forward_pallas.1} parent=5 // pred_region
        %s5056 = ssub.s32 %s22, 2
        // Predicated region
        $region81: #{combined_forward_pallas.1} parent=79 // pred_check
          %p5057 = pneg %p329
        $region82: #{combined_forward_pallas.1} parent=79 // pred_check_branch
          %5059 = sbr.rel (%p5057) target = $region84
        $region83: #{combined_forward_pallas.1} parent=79 // pred_region
          %s5060 = sand.u32 %s314, 1
          %s5061 = scalar_lea.sflag [#allocation3], %s5060
          %s5062 = sand.u32 %s314, 1
          %s5063 = smul.addr %s5062, 2
          %s5064 = scalar_lea.vmem [#allocation2], %s5063
          %5065 = dma.done %s5061, 32
        $region84: #{combined_forward_pallas.1} parent=79 // pred_fallthru
          _
      $region80: #{combined_forward_pallas.1} parent=5 // pred_fallthru
        _
    $region6: #{combined_forward_pallas.1} parent=1 // loop_footer
      %s26 = sadd.s32 1, %s22
    $region7: #{combined_forward_pallas.1} parent=1 // loop_footer_branch
      %21 = sbr.rel target = $region3
    $region8: #{combined_forward_pallas.1} parent=1 // loop_exit
      _
    %5066 = vsyncpa [#allocation3], 1
    %s5067 = scalar_lea.sflag [#allocation3], 1
    %5068 = vsyncpa %s5067, 1

</llo_original>
